<compile_context>
chip_gen: v7x
topology: tpu7x:2x2x1
jax: 0.10.0
libtpu: 0.0.40
codegen_flags: <defaults>
</compile_context>

<pallas_src>
import functools

import jax
import jax.numpy as jnp
from jax.experimental import pallas as pl

# ----------------------------- model config ---------------------------------
VOCAB = 33       # ESM alphabet size
D = 32           # embedding dim (ESM-MSA-1b: 768)
NHEADS = 4       # heads (ESM-MSA-1b: 12)
FFN = 128        # hidden FFN dim (ESM-MSA-1b: 3072)
NLAYERS = 2      # transformer layers (ESM-MSA-1b: 12)
LN_EPS = 1e-5
NEG_INF = -1e9


# ---------------- in-kernel math helpers (Mosaic-safe ops only) --------------
def _layernorm(x, w, b):
    # x: (T, D) f32 ; w, b: (1, D) f32.  Elementwise math stays f32 (v5e has
    # no bf16 VALU/EUP).
    mu = jnp.mean(x, axis=-1, keepdims=True)
    var = jnp.mean((x - mu) * (x - mu), axis=-1, keepdims=True)
    return (x - mu) * jax.lax.rsqrt(var + LN_EPS) * w + b


def _split_heads(t, nheads, dh):
    # (B, T, H*dh) -> (H*B, T, dh): lane slices + leading-dim concat.  Avoids a
    # minor-dim reshape / transpose (which Mosaic may refuse to lower).
    return jnp.concatenate(
        [t[:, :, h * dh:(h + 1) * dh] for h in range(nheads)], axis=0)


def _merge_heads(t, nheads, batch):
    # (H*B, T, dh) -> (B, T, H*dh): leading-dim slices + lane concat.
    return jnp.concatenate(
        [t[h * batch:(h + 1) * batch] for h in range(nheads)], axis=-1)


def _mha(x, ln_w, ln_b, w_qkv, b_qkv, w_o, b_o, *, nheads, batch, seq,
         mask=None):
    """Pre-LN multi-head self-attention over `seq`, independent per `batch`.

    x: (batch*seq, D) f32, flattened row-major over (batch, seq).
    Single fused QKV / output-projection 2D matmuls (bf16 MXU inputs, f32
    accumulation); heads fused into the leading dim of one pair of batched
    einsums; 1/sqrt(dh) already folded into the Q columns of w_qkv.
    """
    T, Dm = x.shape
    dh = Dm // nheads

    xn = _layernorm(x, ln_w, ln_b).astype(jnp.bfloat16)
    qkv = jnp.dot(xn, w_qkv, preferred_element_type=jnp.float32) + b_qkv
    qkv = qkv.reshape(batch, seq, 3 * Dm).astype(jnp.bfloat16)

    q = _split_heads(qkv[:, :, :Dm], nheads, dh)            # (H*batch, seq, dh)
    k = _split_heads(qkv[:, :, Dm:2 * Dm], nheads, dh)
    v = _split_heads(qkv[:, :, 2 * Dm:], nheads, dh)

    logits = jnp.einsum("bqe,bke->bqk", q, k,
                        preferred_element_type=jnp.float32)  # (H*batch, seq, seq)
    if mask is not None:
        logits = logits + mask                               # additive, 0 / -1e9

    m = jnp.max(logits, axis=-1, keepdims=True)
    p = jnp.exp(logits - m)
    # approx reciprocal -> EUP slot; use an exact divide if tight parity with
    # the PyTorch softmax is required.
    p = p * pl.reciprocal(jnp.sum(p, axis=-1, keepdims=True), approx=True)

    ctx = jnp.einsum("bqk,bke->bqe", p.astype(jnp.bfloat16), v,
                     preferred_element_type=jnp.float32)     # (H*batch, seq, dh)
    ctx = _merge_heads(ctx, nheads, batch).reshape(T, Dm).astype(jnp.bfloat16)

    out = jnp.dot(ctx, w_o, preferred_element_type=jnp.float32) + b_o
    return x + out                                           # residual


def _ffn(x, ln_w, ln_b, w1, b1, w2, b2):
    # Pre-LN feed-forward as two flat 2D matmuls.  Returns x + FFN(x).
    xn = _layernorm(x, ln_w, ln_b).astype(jnp.bfloat16)
    h = jnp.dot(xn, w1, preferred_element_type=jnp.float32) + b1
    # TODO(synk): ESM uses exact erf GELU; tanh approximation kept here.
    h = jax.nn.gelu(h, approximate=True).astype(jnp.bfloat16)
    y = jnp.dot(h, w2, preferred_element_type=jnp.float32) + b2
    return x + y                                             # residual


# ------------------------------ fused kernel ---------------------------------
def esm_msa_kernel(tok_ref, emb_ref, pos_ref, mask_ref, *refs,
                   nlayers, nheads, n_rows, seq_len):
    o_ref = refs[-1]
    w = [r[...] for r in refs[:-1]]          # 18 per layer + 2 final-LN tiles
    T = n_rows * seq_len
    V, Dm = emb_ref.shape

    # Token embedding as a gather-free one-hot matmul + positional embedding.
    tok = tok_ref[...]                                        # (T, 1) int32
    vocab = jax.lax.broadcasted_iota(jnp.int32, (T, V), 1)
    one_hot = jnp.where(vocab == tok, 1.0, 0.0)               # (T, V) f32
    x = jnp.dot(one_hot, emb_ref[...], preferred_element_type=jnp.float32)
    x = x + jnp.concatenate([pos_ref[...]] * n_rows, axis=0)  # (T, D) f32

    col_mask = mask_ref[...]                                  # (T, T) additive

    for l in range(nlayers):
        base = 18 * l
        ra = w[base:base + 6]
        ca = w[base + 6:base + 12]
        ff = w[base + 12:base + 18]
        # row attention: batch over MSA rows, attend over sequence positions
        x = _mha(x, *ra, nheads=nheads, batch=n_rows, seq=seq_len)
        # column attention: attend over MSA rows at each position, expressed as
        # position-masked attention over the flat token axis (exact; avoids an
        # in-kernel (R,S)<->(S,R) relayout).
        x = _mha(x, *ca, nheads=nheads, batch=1, seq=T, mask=col_mask)
        x = _ffn(x, *ff)

    fin_w, fin_b = w[18 * nlayers], w[18 * nlayers + 1]
    y = _layernorm(x, fin_w, fin_b)                           # emb_layer_norm_after
    y = y.reshape(n_rows, seq_len, Dm)                        # leading split only
    o_ref[...] = y[:, 1:, :]                                  # drop BOS column


# ------------------------------ parameter init -------------------------------
def _init_attn(key):
    kq, kk, kv, ko = jax.random.split(key, 4)
    wn = lambda k, shape: 0.02 * jax.random.normal(k, shape, dtype=jnp.float32)
    dh = D // NHEADS
    scale = 1.0 / float(dh) ** 0.5
    # 1/sqrt(dh) folded into the Q projection (saves a full-logits multiply).
    w_qkv = jnp.concatenate(
        [wn(kq, (D, D)) * scale, wn(kk, (D, D)), wn(kv, (D, D))],
        axis=1).astype(jnp.bfloat16)                          # (D, 3D)
    w_o = wn(ko, (D, D)).astype(jnp.bfloat16)                 # (D, D), heads concat
    # order: ln_w, ln_b, w_qkv, b_qkv, w_o, b_o
    return (jnp.ones((1, D), jnp.float32), jnp.zeros((1, D), jnp.float32),
            w_qkv, jnp.zeros((1, 3 * D), jnp.float32),
            w_o, jnp.zeros((1, D), jnp.float32))


def _init_ffn(key):
    k1, k2 = jax.random.split(key)
    w1 = (0.02 * jax.random.normal(k1, (D, FFN))).astype(jnp.bfloat16)
    w2 = (0.02 * jax.random.normal(k2, (FFN, D))).astype(jnp.bfloat16)
    return (jnp.ones((1, D), jnp.float32), jnp.zeros((1, D), jnp.float32),
            w1, jnp.zeros((1, FFN), jnp.float32),
            w2, jnp.zeros((1, D), jnp.float32))


def init_params(key, max_len):
    keys = jax.random.split(key, 2 + 2 * NLAYERS)
    params = {
        "embed": (0.02 * jax.random.normal(keys[0], (VOCAB, D))).astype(jnp.float32),
        "pos": (0.02 * jax.random.normal(keys[1], (max_len, D))).astype(jnp.float32),
        "layers": [],
        "final_ln": (jnp.ones((1, D), jnp.float32), jnp.zeros((1, D), jnp.float32)),
    }
    for l in range(NLAYERS):
        ka, kf = keys[2 + 2 * l], keys[3 + 2 * l]
        ka_row, ka_col = jax.random.split(ka)
        params["layers"].append({
            "row_attn": _init_attn(ka_row),
            "col_attn": _init_attn(ka_col),
            "ffn": _init_ffn(kf),
        })
    return params


# ------------------------------ forward pass ---------------------------------
@jax.jit
def finetune_esm_msa_forward(tokens, params):
    """tokens: (R, S) int32 (BOS in column 0).  Returns (R, S-1, D) float32."""
    R, S = tokens.shape
    # S multiple of 8 keeps the flat (R*S, D) reshapes layout-preserving.
    assert S % 8 == 0 and D % NHEADS == 0
    T = R * S

    tok_flat = tokens.reshape(T, 1).astype(jnp.int32)         # row-major (r, s)
    pos = params["pos"][:S]                                   # (S, D)

    # Additive column-attention mask: 0 where tokens share a sequence position,
    # -1e9 otherwise.  Pure function of static shapes -> constant-folded.
    pid = jnp.tile(jnp.arange(S, dtype=jnp.int32), (R,))      # (T,)
    col_mask = jnp.where(pid[:, None] == pid[None, :], 0.0,
                         NEG_INF).astype(jnp.float32)         # (T, T)

    flat_w = []
    for layer in params["layers"]:
        flat_w += list(layer["row_attn"]) + list(layer["col_attn"]) + list(layer["ffn"])
    flat_w += list(params["final_ln"])

    kernel = functools.partial(
        esm_msa_kernel, nlayers=len(params["layers"]), nheads=NHEADS,
        n_rows=R, seq_len=S)

    # Single grid-less pallas_call: every operand is a full VMEM-resident block
    # (<100 KB total), so the whole forward is one kernel launch.
    # TODO(synk): at real ESM-MSA sizes, tile with BlockSpecs + a "parallel"
    # grid axis (v7x megacore) and set pltpu.CompilerParams(vmem_limit_bytes=).
    return pl.pallas_call(
        kernel,
        out_shape=jax.ShapeDtypeStruct((R, S - 1, D), jnp.float32),
    )(tok_flat, params["embed"], pos, col_mask, *flat_w)


# ------------------------------ main -----------------------------------------
if __name__ == "__main__":
    R, L = 3, 7                      # MSA rows, residue sequence length
    S = L + 1                        # +1 BOS (prepended by batch_converter) = 8

    key = jax.random.PRNGKey(0)
    k_tok, k_par = jax.random.split(key)

    # simulate mhc_batch_converter output: BOS id 0 in column 0, residues after
    tokens = jnp.concatenate(
        [jnp.zeros((R, 1), jnp.int32),
         jax.random.randint(k_tok, (R, L), 4, VOCAB, dtype=jnp.int32)],
        axis=1,
    )

    params = init_params(k_par, max_len=S)

    reps = finetune_esm_msa_forward(tokens, params)
    reps = jax.block_until_ready(reps)

    assert reps.shape == (R, L, D), reps.shape
    assert reps.dtype == jnp.float32
    print("KERNEL_OK")
</pallas_src>

<mosaic_0001>
module attributes {stable_mosaic.version = 11 : i64} {
  func.func @esm_msa_kernel(%arg0: memref<24x1xi32, #tpu.memory_space<vmem>>, %arg1: memref<33x32xf32, #tpu.memory_space<vmem>>, %arg2: memref<8x32xf32, #tpu.memory_space<vmem>>, %arg3: memref<24x24xf32, #tpu.memory_space<vmem>>, %arg4: memref<1x32xf32, #tpu.memory_space<vmem>>, %arg5: memref<1x32xf32, #tpu.memory_space<vmem>>, %arg6: memref<32x96xbf16, #tpu.memory_space<vmem>>, %arg7: memref<1x96xf32, #tpu.memory_space<vmem>>, %arg8: memref<32x32xbf16, #tpu.memory_space<vmem>>, %arg9: memref<1x32xf32, #tpu.memory_space<vmem>>, %arg10: memref<1x32xf32, #tpu.memory_space<vmem>>, %arg11: memref<1x32xf32, #tpu.memory_space<vmem>>, %arg12: memref<32x96xbf16, #tpu.memory_space<vmem>>, %arg13: memref<1x96xf32, #tpu.memory_space<vmem>>, %arg14: memref<32x32xbf16, #tpu.memory_space<vmem>>, %arg15: memref<1x32xf32, #tpu.memory_space<vmem>>, %arg16: memref<1x32xf32, #tpu.memory_space<vmem>>, %arg17: memref<1x32xf32, #tpu.memory_space<vmem>>, %arg18: memref<32x128xbf16, #tpu.memory_space<vmem>>, %arg19: memref<1x128xf32, #tpu.memory_space<vmem>>, %arg20: memref<128x32xbf16, #tpu.memory_space<vmem>>, %arg21: memref<1x32xf32, #tpu.memory_space<vmem>>, %arg22: memref<1x32xf32, #tpu.memory_space<vmem>>, %arg23: memref<1x32xf32, #tpu.memory_space<vmem>>, %arg24: memref<32x96xbf16, #tpu.memory_space<vmem>>, %arg25: memref<1x96xf32, #tpu.memory_space<vmem>>, %arg26: memref<32x32xbf16, #tpu.memory_space<vmem>>, %arg27: memref<1x32xf32, #tpu.memory_space<vmem>>, %arg28: memref<1x32xf32, #tpu.memory_space<vmem>>, %arg29: memref<1x32xf32, #tpu.memory_space<vmem>>, %arg30: memref<32x96xbf16, #tpu.memory_space<vmem>>, %arg31: memref<1x96xf32, #tpu.memory_space<vmem>>, %arg32: memref<32x32xbf16, #tpu.memory_space<vmem>>, %arg33: memref<1x32xf32, #tpu.memory_space<vmem>>, %arg34: memref<1x32xf32, #tpu.memory_space<vmem>>, %arg35: memref<1x32xf32, #tpu.memory_space<vmem>>, %arg36: memref<32x128xbf16, #tpu.memory_space<vmem>>, %arg37: memref<1x128xf32, #tpu.memory_space<vmem>>, %arg38: memref<128x32xbf16, #tpu.memory_space<vmem>>, %arg39: memref<1x32xf32, #tpu.memory_space<vmem>>, %arg40: memref<1x32xf32, #tpu.memory_space<vmem>>, %arg41: memref<1x32xf32, #tpu.memory_space<vmem>>, %arg42: memref<3x7x32xf32, #tpu.memory_space<vmem>>) attributes {dimension_semantics = [], scalar_prefetch = 0 : i64, scratch_operands = 0 : i64, tpu.core_type = #tpu.core_type<tc>} {
    %c0 = arith.constant 0 : index
    %c0_0 = arith.constant 0 : index
    %0 = vector.load %arg4[%c0, %c0_0] : memref<1x32xf32, #tpu.memory_space<vmem>>, vector<1x32xf32>
    %c0_1 = arith.constant 0 : index
    %c0_2 = arith.constant 0 : index
    %1 = vector.load %arg5[%c0_1, %c0_2] : memref<1x32xf32, #tpu.memory_space<vmem>>, vector<1x32xf32>
    %c0_3 = arith.constant 0 : index
    %c0_4 = arith.constant 0 : index
    %2 = vector.load %arg6[%c0_3, %c0_4] : memref<32x96xbf16, #tpu.memory_space<vmem>>, vector<32x96xbf16>
    %c0_5 = arith.constant 0 : index
    %c0_6 = arith.constant 0 : index
    %3 = vector.load %arg7[%c0_5, %c0_6] : memref<1x96xf32, #tpu.memory_space<vmem>>, vector<1x96xf32>
    %c0_7 = arith.constant 0 : index
    %c0_8 = arith.constant 0 : index
    %4 = vector.load %arg8[%c0_7, %c0_8] : memref<32x32xbf16, #tpu.memory_space<vmem>>, vector<32x32xbf16>
    %c0_9 = arith.constant 0 : index
    %c0_10 = arith.constant 0 : index
    %5 = vector.load %arg9[%c0_9, %c0_10] : memref<1x32xf32, #tpu.memory_space<vmem>>, vector<1x32xf32>
    %c0_11 = arith.constant 0 : index
    %c0_12 = arith.constant 0 : index
    %6 = vector.load %arg10[%c0_11, %c0_12] : memref<1x32xf32, #tpu.memory_space<vmem>>, vector<1x32xf32>
    %c0_13 = arith.constant 0 : index
    %c0_14 = arith.constant 0 : index
    %7 = vector.load %arg11[%c0_13, %c0_14] : memref<1x32xf32, #tpu.memory_space<vmem>>, vector<1x32xf32>
    %c0_15 = arith.constant 0 : index
    %c0_16 = arith.constant 0 : index
    %8 = vector.load %arg12[%c0_15, %c0_16] : memref<32x96xbf16, #tpu.memory_space<vmem>>, vector<32x96xbf16>
    %c0_17 = arith.constant 0 : index
    %c0_18 = arith.constant 0 : index
    %9 = vector.load %arg13[%c0_17, %c0_18] : memref<1x96xf32, #tpu.memory_space<vmem>>, vector<1x96xf32>
    %c0_19 = arith.constant 0 : index
    %c0_20 = arith.constant 0 : index
    %10 = vector.load %arg14[%c0_19, %c0_20] : memref<32x32xbf16, #tpu.memory_space<vmem>>, vector<32x32xbf16>
    %c0_21 = arith.constant 0 : index
    %c0_22 = arith.constant 0 : index
    %11 = vector.load %arg15[%c0_21, %c0_22] : memref<1x32xf32, #tpu.memory_space<vmem>>, vector<1x32xf32>
    %c0_23 = arith.constant 0 : index
    %c0_24 = arith.constant 0 : index
    %12 = vector.load %arg16[%c0_23, %c0_24] : memref<1x32xf32, #tpu.memory_space<vmem>>, vector<1x32xf32>
    %c0_25 = arith.constant 0 : index
    %c0_26 = arith.constant 0 : index
    %13 = vector.load %arg17[%c0_25, %c0_26] : memref<1x32xf32, #tpu.memory_space<vmem>>, vector<1x32xf32>
    %c0_27 = arith.constant 0 : index
    %c0_28 = arith.constant 0 : index
    %14 = vector.load %arg18[%c0_27, %c0_28] : memref<32x128xbf16, #tpu.memory_space<vmem>>, vector<32x128xbf16>
    %c0_29 = arith.constant 0 : index
    %c0_30 = arith.constant 0 : index
    %15 = vector.load %arg19[%c0_29, %c0_30] : memref<1x128xf32, #tpu.memory_space<vmem>>, vector<1x128xf32>
    %c0_31 = arith.constant 0 : index
    %c0_32 = arith.constant 0 : index
    %16 = vector.load %arg20[%c0_31, %c0_32] : memref<128x32xbf16, #tpu.memory_space<vmem>>, vector<128x32xbf16>
    %c0_33 = arith.constant 0 : index
    %c0_34 = arith.constant 0 : index
    %17 = vector.load %arg21[%c0_33, %c0_34] : memref<1x32xf32, #tpu.memory_space<vmem>>, vector<1x32xf32>
    %c0_35 = arith.constant 0 : index
    %c0_36 = arith.constant 0 : index
    %18 = vector.load %arg22[%c0_35, %c0_36] : memref<1x32xf32, #tpu.memory_space<vmem>>, vector<1x32xf32>
    %c0_37 = arith.constant 0 : index
    %c0_38 = arith.constant 0 : index
    %19 = vector.load %arg23[%c0_37, %c0_38] : memref<1x32xf32, #tpu.memory_space<vmem>>, vector<1x32xf32>
    %c0_39 = arith.constant 0 : index
    %c0_40 = arith.constant 0 : index
    %20 = vector.load %arg24[%c0_39, %c0_40] : memref<32x96xbf16, #tpu.memory_space<vmem>>, vector<32x96xbf16>
    %c0_41 = arith.constant 0 : index
    %c0_42 = arith.constant 0 : index
    %21 = vector.load %arg25[%c0_41, %c0_42] : memref<1x96xf32, #tpu.memory_space<vmem>>, vector<1x96xf32>
    %c0_43 = arith.constant 0 : index
    %c0_44 = arith.constant 0 : index
    %22 = vector.load %arg26[%c0_43, %c0_44] : memref<32x32xbf16, #tpu.memory_space<vmem>>, vector<32x32xbf16>
    %c0_45 = arith.constant 0 : index
    %c0_46 = arith.constant 0 : index
    %23 = vector.load %arg27[%c0_45, %c0_46] : memref<1x32xf32, #tpu.memory_space<vmem>>, vector<1x32xf32>
    %c0_47 = arith.constant 0 : index
    %c0_48 = arith.constant 0 : index
    %24 = vector.load %arg28[%c0_47, %c0_48] : memref<1x32xf32, #tpu.memory_space<vmem>>, vector<1x32xf32>
    %c0_49 = arith.constant 0 : index
    %c0_50 = arith.constant 0 : index
    %25 = vector.load %arg29[%c0_49, %c0_50] : memref<1x32xf32, #tpu.memory_space<vmem>>, vector<1x32xf32>
    %c0_51 = arith.constant 0 : index
    %c0_52 = arith.constant 0 : index
    %26 = vector.load %arg30[%c0_51, %c0_52] : memref<32x96xbf16, #tpu.memory_space<vmem>>, vector<32x96xbf16>
    %c0_53 = arith.constant 0 : index
    %c0_54 = arith.constant 0 : index
    %27 = vector.load %arg31[%c0_53, %c0_54] : memref<1x96xf32, #tpu.memory_space<vmem>>, vector<1x96xf32>
    %c0_55 = arith.constant 0 : index
    %c0_56 = arith.constant 0 : index
    %28 = vector.load %arg32[%c0_55, %c0_56] : memref<32x32xbf16, #tpu.memory_space<vmem>>, vector<32x32xbf16>
    %c0_57 = arith.constant 0 : index
    %c0_58 = arith.constant 0 : index
    %29 = vector.load %arg33[%c0_57, %c0_58] : memref<1x32xf32, #tpu.memory_space<vmem>>, vector<1x32xf32>
    %c0_59 = arith.constant 0 : index
    %c0_60 = arith.constant 0 : index
    %30 = vector.load %arg34[%c0_59, %c0_60] : memref<1x32xf32, #tpu.memory_space<vmem>>, vector<1x32xf32>
    %c0_61 = arith.constant 0 : index
    %c0_62 = arith.constant 0 : index
    %31 = vector.load %arg35[%c0_61, %c0_62] : memref<1x32xf32, #tpu.memory_space<vmem>>, vector<1x32xf32>
    %c0_63 = arith.constant 0 : index
    %c0_64 = arith.constant 0 : index
    %32 = vector.load %arg36[%c0_63, %c0_64] : memref<32x128xbf16, #tpu.memory_space<vmem>>, vector<32x128xbf16>
    %c0_65 = arith.constant 0 : index
    %c0_66 = arith.constant 0 : index
    %33 = vector.load %arg37[%c0_65, %c0_66] : memref<1x128xf32, #tpu.memory_space<vmem>>, vector<1x128xf32>
    %c0_67 = arith.constant 0 : index
    %c0_68 = arith.constant 0 : index
    %34 = vector.load %arg38[%c0_67, %c0_68] : memref<128x32xbf16, #tpu.memory_space<vmem>>, vector<128x32xbf16>
    %c0_69 = arith.constant 0 : index
    %c0_70 = arith.constant 0 : index
    %35 = vector.load %arg39[%c0_69, %c0_70] : memref<1x32xf32, #tpu.memory_space<vmem>>, vector<1x32xf32>
    %c0_71 = arith.constant 0 : index
    %c0_72 = arith.constant 0 : index
    %36 = vector.load %arg40[%c0_71, %c0_72] : memref<1x32xf32, #tpu.memory_space<vmem>>, vector<1x32xf32>
    %c0_73 = arith.constant 0 : index
    %c0_74 = arith.constant 0 : index
    %37 = vector.load %arg41[%c0_73, %c0_74] : memref<1x32xf32, #tpu.memory_space<vmem>>, vector<1x32xf32>
    %c0_75 = arith.constant 0 : index
    %c0_76 = arith.constant 0 : index
    %38 = vector.load %arg0[%c0_75, %c0_76] : memref<24x1xi32, #tpu.memory_space<vmem>>, vector<24x1xi32>
    %39 = tpu.iota {dimensions = array<i32: 1>} : vector<24x33xi32>
    %40 = vector.broadcast %38 : vector<24x1xi32> to vector<24x33xi32>
    %41 = arith.cmpi eq, %39, %40 : vector<24x33xi32>
    %cst = arith.constant 1.000000e+00 : f32
    %cst_77 = arith.constant 0.000000e+00 : f32
    %42 = vector.broadcast %cst : f32 to vector<24x33xf32>
    %43 = vector.broadcast %cst_77 : f32 to vector<24x33xf32>
    %44 = arith.select %41, %42, %43 : vector<24x33xi1>, vector<24x33xf32>
    %c0_78 = arith.constant 0 : index
    %c0_79 = arith.constant 0 : index
    %45 = vector.load %arg1[%c0_78, %c0_79] : memref<33x32xf32, #tpu.memory_space<vmem>>, vector<33x32xf32>
    %cst_80 = arith.constant dense<0.000000e+00> : vector<24x32xf32>
    %46 = tpu.matmul %44, %45, %cst_80 {dimension_numbers = #tpu.dot_dimension_numbers<[1], [0], [0], [1], [0, 0, 1, 1], [], []>} : vector<24x33xf32>, vector<33x32xf32>, vector<24x32xf32> -> vector<24x32xf32>
    %c0_81 = arith.constant 0 : index
    %c0_82 = arith.constant 0 : index
    %47 = vector.load %arg2[%c0_81, %c0_82] : memref<8x32xf32, #tpu.memory_space<vmem>>, vector<8x32xf32>
    %48 = tpu.concatenate %47, %47, %47 in 0 : vector<8x32xf32>, vector<8x32xf32>, vector<8x32xf32> -> vector<24x32xf32>
    %49 = arith.addf %46, %48 : vector<24x32xf32>
    %c0_83 = arith.constant 0 : index
    %c0_84 = arith.constant 0 : index
    %50 = vector.load %arg3[%c0_83, %c0_84] : memref<24x24xf32, #tpu.memory_space<vmem>>, vector<24x24xf32>
    %cst_85 = arith.constant dense<0.000000e+00> : vector<24xf32>
    %51 = vector.multi_reduction <add>, %49, %cst_85 [1] : vector<24x32xf32> to vector<24xf32>
    %52 = vector.shape_cast %51 : vector<24xf32> to vector<24x1xf32>
    %cst_86 = arith.constant 3.200000e+01 : f32
    %53 = vector.broadcast %cst_86 : f32 to vector<24x1xf32>
    %54 = arith.divf %52, %53 : vector<24x1xf32>
    %55 = vector.broadcast %54 : vector<24x1xf32> to vector<24x32xf32>
    %56 = arith.subf %49, %55 : vector<24x32xf32>
    %57 = vector.broadcast %54 : vector<24x1xf32> to vector<24x32xf32>
    %58 = arith.subf %49, %57 : vector<24x32xf32>
    %59 = arith.mulf %56, %58 : vector<24x32xf32>
    %cst_87 = arith.constant dense<0.000000e+00> : vector<24xf32>
    %60 = vector.multi_reduction <add>, %59, %cst_87 [1] : vector<24x32xf32> to vector<24xf32>
    %61 = vector.shape_cast %60 : vector<24xf32> to vector<24x1xf32>
    %cst_88 = arith.constant 3.200000e+01 : f32
    %62 = vector.broadcast %cst_88 : f32 to vector<24x1xf32>
    %63 = arith.divf %61, %62 : vector<24x1xf32>
    %64 = vector.broadcast %54 : vector<24x1xf32> to vector<24x32xf32>
    %65 = arith.subf %49, %64 : vector<24x32xf32>
    %cst_89 = arith.constant 9.99999974E-6 : f32
    %66 = vector.broadcast %cst_89 : f32 to vector<24x1xf32>
    %67 = arith.addf %63, %66 : vector<24x1xf32>
    %68 = math.rsqrt %67 : vector<24x1xf32>
    %69 = vector.broadcast %68 : vector<24x1xf32> to vector<24x32xf32>
    %70 = arith.mulf %65, %69 : vector<24x32xf32>
    %71 = vector.broadcast %0 : vector<1x32xf32> to vector<24x32xf32>
    %72 = arith.mulf %70, %71 : vector<24x32xf32>
    %73 = vector.broadcast %1 : vector<1x32xf32> to vector<24x32xf32>
    %74 = arith.addf %72, %73 : vector<24x32xf32>
    %75 = arith.truncf %74 : vector<24x32xf32> to vector<24x32xbf16>
    %cst_90 = arith.constant dense<0.000000e+00> : vector<24x96xf32>
    %76 = tpu.matmul %75, %2, %cst_90 {dimension_numbers = #tpu.dot_dimension_numbers<[1], [0], [0], [1], [0, 0, 1, 1], [], []>} : vector<24x32xbf16>, vector<32x96xbf16>, vector<24x96xf32> -> vector<24x96xf32>
    %77 = vector.broadcast %3 : vector<1x96xf32> to vector<24x96xf32>
    %78 = arith.addf %76, %77 : vector<24x96xf32>
    %79 = vector.shape_cast %78 : vector<24x96xf32> to vector<3x8x96xf32>
    %80 = arith.truncf %79 : vector<3x8x96xf32> to vector<3x8x96xbf16>
    %81 = vector.extract_strided_slice %80 {offsets = [0, 0, 0], sizes = [3, 8, 32], strides = [1, 1, 1]} : vector<3x8x96xbf16> to vector<3x8x32xbf16>
    %82 = vector.extract_strided_slice %81 {offsets = [0, 0, 0], sizes = [3, 8, 8], strides = [1, 1, 1]} : vector<3x8x32xbf16> to vector<3x8x8xbf16>
    %83 = vector.extract_strided_slice %81 {offsets = [0, 0, 8], sizes = [3, 8, 8], strides = [1, 1, 1]} : vector<3x8x32xbf16> to vector<3x8x8xbf16>
    %84 = vector.extract_strided_slice %81 {offsets = [0, 0, 16], sizes = [3, 8, 8], strides = [1, 1, 1]} : vector<3x8x32xbf16> to vector<3x8x8xbf16>
    %85 = vector.extract_strided_slice %81 {offsets = [0, 0, 24], sizes = [3, 8, 8], strides = [1, 1, 1]} : vector<3x8x32xbf16> to vector<3x8x8xbf16>
    %86 = tpu.concatenate %82, %83, %84, %85 in 0 : vector<3x8x8xbf16>, vector<3x8x8xbf16>, vector<3x8x8xbf16>, vector<3x8x8xbf16> -> vector<12x8x8xbf16>
    %87 = vector.extract_strided_slice %80 {offsets = [0, 0, 32], sizes = [3, 8, 32], strides = [1, 1, 1]} : vector<3x8x96xbf16> to vector<3x8x32xbf16>
    %88 = vector.extract_strided_slice %87 {offsets = [0, 0, 0], sizes = [3, 8, 8], strides = [1, 1, 1]} : vector<3x8x32xbf16> to vector<3x8x8xbf16>
    %89 = vector.extract_strided_slice %87 {offsets = [0, 0, 8], sizes = [3, 8, 8], strides = [1, 1, 1]} : vector<3x8x32xbf16> to vector<3x8x8xbf16>
    %90 = vector.extract_strided_slice %87 {offsets = [0, 0, 16], sizes = [3, 8, 8], strides = [1, 1, 1]} : vector<3x8x32xbf16> to vector<3x8x8xbf16>
    %91 = vector.extract_strided_slice %87 {offsets = [0, 0, 24], sizes = [3, 8, 8], strides = [1, 1, 1]} : vector<3x8x32xbf16> to vector<3x8x8xbf16>
    %92 = tpu.concatenate %88, %89, %90, %91 in 0 : vector<3x8x8xbf16>, vector<3x8x8xbf16>, vector<3x8x8xbf16>, vector<3x8x8xbf16> -> vector<12x8x8xbf16>
    %93 = vector.extract_strided_slice %80 {offsets = [0, 0, 64], sizes = [3, 8, 32], strides = [1, 1, 1]} : vector<3x8x96xbf16> to vector<3x8x32xbf16>
    %94 = vector.extract_strided_slice %93 {offsets = [0, 0, 0], sizes = [3, 8, 8], strides = [1, 1, 1]} : vector<3x8x32xbf16> to vector<3x8x8xbf16>
    %95 = vector.extract_strided_slice %93 {offsets = [0, 0, 8], sizes = [3, 8, 8], strides = [1, 1, 1]} : vector<3x8x32xbf16> to vector<3x8x8xbf16>
    %96 = vector.extract_strided_slice %93 {offsets = [0, 0, 16], sizes = [3, 8, 8], strides = [1, 1, 1]} : vector<3x8x32xbf16> to vector<3x8x8xbf16>
    %97 = vector.extract_strided_slice %93 {offsets = [0, 0, 24], sizes = [3, 8, 8], strides = [1, 1, 1]} : vector<3x8x32xbf16> to vector<3x8x8xbf16>
    %98 = tpu.concatenate %94, %95, %96, %97 in 0 : vector<3x8x8xbf16>, vector<3x8x8xbf16>, vector<3x8x8xbf16>, vector<3x8x8xbf16> -> vector<12x8x8xbf16>
    "tpu.trace_start"() <{level = 10 : i32, message = "bqe,bke->bqk"}> : () -> ()
    %cst_91 = arith.constant dense<0.000000e+00> : vector<12x8x8xf32>
    %99 = tpu.matmul %86, %92, %cst_91 {dimension_numbers = #tpu.dot_dimension_numbers<[2], [2], [1], [1], [0, 0, 0, 1, 1, 1], [0], [0]>} : vector<12x8x8xbf16>, vector<12x8x8xbf16>, vector<12x8x8xf32> -> vector<12x8x8xf32>
    "tpu.trace_stop"() : () -> ()
    %cst_92 = arith.constant dense<0xFF800000> : vector<12x8xf32>
    %100 = vector.multi_reduction <maximumf>, %99, %cst_92 [2] : vector<12x8x8xf32> to vector<12x8xf32>
    %101 = vector.shape_cast %100 : vector<12x8xf32> to vector<12x8x1xf32>
    %102 = vector.broadcast %101 : vector<12x8x1xf32> to vector<12x8x8xf32>
    %103 = arith.subf %99, %102 : vector<12x8x8xf32>
    %104 = math.exp %103 : vector<12x8x8xf32>
    %cst_93 = arith.constant dense<0.000000e+00> : vector<12x8xf32>
    %105 = vector.multi_reduction <add>, %104, %cst_93 [2] : vector<12x8x8xf32> to vector<12x8xf32>
    %106 = vector.shape_cast %105 : vector<12x8xf32> to vector<12x8x1xf32>
    %107 = tpu.reciprocal %106 {approx = true} : vector<12x8x1xf32> -> vector<12x8x1xf32>
    %108 = vector.broadcast %107 : vector<12x8x1xf32> to vector<12x8x8xf32>
    %109 = arith.mulf %104, %108 : vector<12x8x8xf32>
    %110 = arith.truncf %109 : vector<12x8x8xf32> to vector<12x8x8xbf16>
    "tpu.trace_start"() <{level = 10 : i32, message = "bqk,bke->bqe"}> : () -> ()
    %cst_94 = arith.constant dense<0.000000e+00> : vector<12x8x8xf32>
    %111 = tpu.matmul %110, %98, %cst_94 {dimension_numbers = #tpu.dot_dimension_numbers<[2], [1], [1], [2], [0, 0, 0, 1, 1, 2], [0], [0]>} : vector<12x8x8xbf16>, vector<12x8x8xbf16>, vector<12x8x8xf32> -> vector<12x8x8xf32>
    "tpu.trace_stop"() : () -> ()
    %112 = vector.extract_strided_slice %111 {offsets = [0, 0, 0], sizes = [3, 8, 8], strides = [1, 1, 1]} : vector<12x8x8xf32> to vector<3x8x8xf32>
    %113 = vector.extract_strided_slice %111 {offsets = [3, 0, 0], sizes = [3, 8, 8], strides = [1, 1, 1]} : vector<12x8x8xf32> to vector<3x8x8xf32>
    %114 = vector.extract_strided_slice %111 {offsets = [6, 0, 0], sizes = [3, 8, 8], strides = [1, 1, 1]} : vector<12x8x8xf32> to vector<3x8x8xf32>
    %115 = vector.extract_strided_slice %111 {offsets = [9, 0, 0], sizes = [3, 8, 8], strides = [1, 1, 1]} : vector<12x8x8xf32> to vector<3x8x8xf32>
    %116 = tpu.concatenate %112, %113, %114, %115 in 2 : vector<3x8x8xf32>, vector<3x8x8xf32>, vector<3x8x8xf32>, vector<3x8x8xf32> -> vector<3x8x32xf32>
    %117 = vector.shape_cast %116 : vector<3x8x32xf32> to vector<24x32xf32>
    %118 = arith.truncf %117 : vector<24x32xf32> to vector<24x32xbf16>
    %cst_95 = arith.constant dense<0.000000e+00> : vector<24x32xf32>
    %119 = tpu.matmul %118, %4, %cst_95 {dimension_numbers = #tpu.dot_dimension_numbers<[1], [0], [0], [1], [0, 0, 1, 1], [], []>} : vector<24x32xbf16>, vector<32x32xbf16>, vector<24x32xf32> -> vector<24x32xf32>
    %120 = vector.broadcast %5 : vector<1x32xf32> to vector<24x32xf32>
    %121 = arith.addf %119, %120 : vector<24x32xf32>
    %122 = arith.addf %49, %121 : vector<24x32xf32>
    %cst_96 = arith.constant dense<0.000000e+00> : vector<24xf32>
    %123 = vector.multi_reduction <add>, %122, %cst_96 [1] : vector<24x32xf32> to vector<24xf32>
    %124 = vector.shape_cast %123 : vector<24xf32> to vector<24x1xf32>
    %cst_97 = arith.constant 3.200000e+01 : f32
    %125 = vector.broadcast %cst_97 : f32 to vector<24x1xf32>
    %126 = arith.divf %124, %125 : vector<24x1xf32>
    %127 = vector.broadcast %126 : vector<24x1xf32> to vector<24x32xf32>
    %128 = arith.subf %122, %127 : vector<24x32xf32>
    %129 = vector.broadcast %126 : vector<24x1xf32> to vector<24x32xf32>
    %130 = arith.subf %122, %129 : vector<24x32xf32>
    %131 = arith.mulf %128, %130 : vector<24x32xf32>
    %cst_98 = arith.constant dense<0.000000e+00> : vector<24xf32>
    %132 = vector.multi_reduction <add>, %131, %cst_98 [1] : vector<24x32xf32> to vector<24xf32>
    %133 = vector.shape_cast %132 : vector<24xf32> to vector<24x1xf32>
    %cst_99 = arith.constant 3.200000e+01 : f32
    %134 = vector.broadcast %cst_99 : f32 to vector<24x1xf32>
    %135 = arith.divf %133, %134 : vector<24x1xf32>
    %136 = vector.broadcast %126 : vector<24x1xf32> to vector<24x32xf32>
    %137 = arith.subf %122, %136 : vector<24x32xf32>
    %cst_100 = arith.constant 9.99999974E-6 : f32
    %138 = vector.broadcast %cst_100 : f32 to vector<24x1xf32>
    %139 = arith.addf %135, %138 : vector<24x1xf32>
    %140 = math.rsqrt %139 : vector<24x1xf32>
    %141 = vector.broadcast %140 : vector<24x1xf32> to vector<24x32xf32>
    %142 = arith.mulf %137, %141 : vector<24x32xf32>
    %143 = vector.broadcast %6 : vector<1x32xf32> to vector<24x32xf32>
    %144 = arith.mulf %142, %143 : vector<24x32xf32>
    %145 = vector.broadcast %7 : vector<1x32xf32> to vector<24x32xf32>
    %146 = arith.addf %144, %145 : vector<24x32xf32>
    %147 = arith.truncf %146 : vector<24x32xf32> to vector<24x32xbf16>
    %cst_101 = arith.constant dense<0.000000e+00> : vector<24x96xf32>
    %148 = tpu.matmul %147, %8, %cst_101 {dimension_numbers = #tpu.dot_dimension_numbers<[1], [0], [0], [1], [0, 0, 1, 1], [], []>} : vector<24x32xbf16>, vector<32x96xbf16>, vector<24x96xf32> -> vector<24x96xf32>
    %149 = vector.broadcast %9 : vector<1x96xf32> to vector<24x96xf32>
    %150 = arith.addf %148, %149 : vector<24x96xf32>
    %151 = vector.shape_cast %150 : vector<24x96xf32> to vector<1x24x96xf32>
    %152 = arith.truncf %151 : vector<1x24x96xf32> to vector<1x24x96xbf16>
    %153 = vector.extract_strided_slice %152 {offsets = [0, 0, 0], sizes = [1, 24, 32], strides = [1, 1, 1]} : vector<1x24x96xbf16> to vector<1x24x32xbf16>
    %154 = vector.extract_strided_slice %153 {offsets = [0, 0, 0], sizes = [1, 24, 8], strides = [1, 1, 1]} : vector<1x24x32xbf16> to vector<1x24x8xbf16>
    %155 = vector.extract_strided_slice %153 {offsets = [0, 0, 8], sizes = [1, 24, 8], strides = [1, 1, 1]} : vector<1x24x32xbf16> to vector<1x24x8xbf16>
    %156 = vector.extract_strided_slice %153 {offsets = [0, 0, 16], sizes = [1, 24, 8], strides = [1, 1, 1]} : vector<1x24x32xbf16> to vector<1x24x8xbf16>
    %157 = vector.extract_strided_slice %153 {offsets = [0, 0, 24], sizes = [1, 24, 8], strides = [1, 1, 1]} : vector<1x24x32xbf16> to vector<1x24x8xbf16>
    %158 = tpu.concatenate %154, %155, %156, %157 in 0 : vector<1x24x8xbf16>, vector<1x24x8xbf16>, vector<1x24x8xbf16>, vector<1x24x8xbf16> -> vector<4x24x8xbf16>
    %159 = vector.extract_strided_slice %152 {offsets = [0, 0, 32], sizes = [1, 24, 32], strides = [1, 1, 1]} : vector<1x24x96xbf16> to vector<1x24x32xbf16>
    %160 = vector.extract_strided_slice %159 {offsets = [0, 0, 0], sizes = [1, 24, 8], strides = [1, 1, 1]} : vector<1x24x32xbf16> to vector<1x24x8xbf16>
    %161 = vector.extract_strided_slice %159 {offsets = [0, 0, 8], sizes = [1, 24, 8], strides = [1, 1, 1]} : vector<1x24x32xbf16> to vector<1x24x8xbf16>
    %162 = vector.extract_strided_slice %159 {offsets = [0, 0, 16], sizes = [1, 24, 8], strides = [1, 1, 1]} : vector<1x24x32xbf16> to vector<1x24x8xbf16>
    %163 = vector.extract_strided_slice %159 {offsets = [0, 0, 24], sizes = [1, 24, 8], strides = [1, 1, 1]} : vector<1x24x32xbf16> to vector<1x24x8xbf16>
    %164 = tpu.concatenate %160, %161, %162, %163 in 0 : vector<1x24x8xbf16>, vector<1x24x8xbf16>, vector<1x24x8xbf16>, vector<1x24x8xbf16> -> vector<4x24x8xbf16>
    %165 = vector.extract_strided_slice %152 {offsets = [0, 0, 64], sizes = [1, 24, 32], strides = [1, 1, 1]} : vector<1x24x96xbf16> to vector<1x24x32xbf16>
    %166 = vector.extract_strided_slice %165 {offsets = [0, 0, 0], sizes = [1, 24, 8], strides = [1, 1, 1]} : vector<1x24x32xbf16> to vector<1x24x8xbf16>
    %167 = vector.extract_strided_slice %165 {offsets = [0, 0, 8], sizes = [1, 24, 8], strides = [1, 1, 1]} : vector<1x24x32xbf16> to vector<1x24x8xbf16>
    %168 = vector.extract_strided_slice %165 {offsets = [0, 0, 16], sizes = [1, 24, 8], strides = [1, 1, 1]} : vector<1x24x32xbf16> to vector<1x24x8xbf16>
    %169 = vector.extract_strided_slice %165 {offsets = [0, 0, 24], sizes = [1, 24, 8], strides = [1, 1, 1]} : vector<1x24x32xbf16> to vector<1x24x8xbf16>
    %170 = tpu.concatenate %166, %167, %168, %169 in 0 : vector<1x24x8xbf16>, vector<1x24x8xbf16>, vector<1x24x8xbf16>, vector<1x24x8xbf16> -> vector<4x24x8xbf16>
    "tpu.trace_start"() <{level = 10 : i32, message = "bqe,bke->bqk"}> : () -> ()
    %cst_102 = arith.constant dense<0.000000e+00> : vector<4x24x24xf32>
    %171 = tpu.matmul %158, %164, %cst_102 {dimension_numbers = #tpu.dot_dimension_numbers<[2], [2], [1], [1], [0, 0, 0, 1, 1, 1], [0], [0]>} : vector<4x24x8xbf16>, vector<4x24x8xbf16>, vector<4x24x24xf32> -> vector<4x24x24xf32>
    "tpu.trace_stop"() : () -> ()
    %172 = vector.shape_cast %50 : vector<24x24xf32> to vector<1x24x24xf32>
    %173 = vector.broadcast %172 : vector<1x24x24xf32> to vector<4x24x24xf32>
    %174 = arith.addf %171, %173 : vector<4x24x24xf32>
    %cst_103 = arith.constant dense<0xFF800000> : vector<4x24xf32>
    %175 = vector.multi_reduction <maximumf>, %174, %cst_103 [2] : vector<4x24x24xf32> to vector<4x24xf32>
    %176 = vector.shape_cast %175 : vector<4x24xf32> to vector<4x24x1xf32>
    %177 = vector.broadcast %176 : vector<4x24x1xf32> to vector<4x24x24xf32>
    %178 = arith.subf %174, %177 : vector<4x24x24xf32>
    %179 = math.exp %178 : vector<4x24x24xf32>
    %cst_104 = arith.constant dense<0.000000e+00> : vector<4x24xf32>
    %180 = vector.multi_reduction <add>, %179, %cst_104 [2] : vector<4x24x24xf32> to vector<4x24xf32>
    %181 = vector.shape_cast %180 : vector<4x24xf32> to vector<4x24x1xf32>
    %182 = tpu.reciprocal %181 {approx = true} : vector<4x24x1xf32> -> vector<4x24x1xf32>
    %183 = vector.broadcast %182 : vector<4x24x1xf32> to vector<4x24x24xf32>
    %184 = arith.mulf %179, %183 : vector<4x24x24xf32>
    %185 = arith.truncf %184 : vector<4x24x24xf32> to vector<4x24x24xbf16>
    "tpu.trace_start"() <{level = 10 : i32, message = "bqk,bke->bqe"}> : () -> ()
    %cst_105 = arith.constant dense<0.000000e+00> : vector<4x24x8xf32>
    %186 = tpu.matmul %185, %170, %cst_105 {dimension_numbers = #tpu.dot_dimension_numbers<[2], [1], [1], [2], [0, 0, 0, 1, 1, 2], [0], [0]>} : vector<4x24x24xbf16>, vector<4x24x8xbf16>, vector<4x24x8xf32> -> vector<4x24x8xf32>
    "tpu.trace_stop"() : () -> ()
    %187 = vector.extract_strided_slice %186 {offsets = [0, 0, 0], sizes = [1, 24, 8], strides = [1, 1, 1]} : vector<4x24x8xf32> to vector<1x24x8xf32>
    %188 = vector.extract_strided_slice %186 {offsets = [1, 0, 0], sizes = [1, 24, 8], strides = [1, 1, 1]} : vector<4x24x8xf32> to vector<1x24x8xf32>
    %189 = vector.extract_strided_slice %186 {offsets = [2, 0, 0], sizes = [1, 24, 8], strides = [1, 1, 1]} : vector<4x24x8xf32> to vector<1x24x8xf32>
    %190 = vector.extract_strided_slice %186 {offsets = [3, 0, 0], sizes = [1, 24, 8], strides = [1, 1, 1]} : vector<4x24x8xf32> to vector<1x24x8xf32>
    %191 = tpu.concatenate %187, %188, %189, %190 in 2 : vector<1x24x8xf32>, vector<1x24x8xf32>, vector<1x24x8xf32>, vector<1x24x8xf32> -> vector<1x24x32xf32>
    %192 = vector.shape_cast %191 : vector<1x24x32xf32> to vector<24x32xf32>
    %193 = arith.truncf %192 : vector<24x32xf32> to vector<24x32xbf16>
    %cst_106 = arith.constant dense<0.000000e+00> : vector<24x32xf32>
    %194 = tpu.matmul %193, %10, %cst_106 {dimension_numbers = #tpu.dot_dimension_numbers<[1], [0], [0], [1], [0, 0, 1, 1], [], []>} : vector<24x32xbf16>, vector<32x32xbf16>, vector<24x32xf32> -> vector<24x32xf32>
    %195 = vector.broadcast %11 : vector<1x32xf32> to vector<24x32xf32>
    %196 = arith.addf %194, %195 : vector<24x32xf32>
    %197 = arith.addf %122, %196 : vector<24x32xf32>
    %cst_107 = arith.constant dense<0.000000e+00> : vector<24xf32>
    %198 = vector.multi_reduction <add>, %197, %cst_107 [1] : vector<24x32xf32> to vector<24xf32>
    %199 = vector.shape_cast %198 : vector<24xf32> to vector<24x1xf32>
    %cst_108 = arith.constant 3.200000e+01 : f32
    %200 = vector.broadcast %cst_108 : f32 to vector<24x1xf32>
    %201 = arith.divf %199, %200 : vector<24x1xf32>
    %202 = vector.broadcast %201 : vector<24x1xf32> to vector<24x32xf32>
    %203 = arith.subf %197, %202 : vector<24x32xf32>
    %204 = vector.broadcast %201 : vector<24x1xf32> to vector<24x32xf32>
    %205 = arith.subf %197, %204 : vector<24x32xf32>
    %206 = arith.mulf %203, %205 : vector<24x32xf32>
    %cst_109 = arith.constant dense<0.000000e+00> : vector<24xf32>
    %207 = vector.multi_reduction <add>, %206, %cst_109 [1] : vector<24x32xf32> to vector<24xf32>
    %208 = vector.shape_cast %207 : vector<24xf32> to vector<24x1xf32>
    %cst_110 = arith.constant 3.200000e+01 : f32
    %209 = vector.broadcast %cst_110 : f32 to vector<24x1xf32>
    %210 = arith.divf %208, %209 : vector<24x1xf32>
    %211 = vector.broadcast %201 : vector<24x1xf32> to vector<24x32xf32>
    %212 = arith.subf %197, %211 : vector<24x32xf32>
    %cst_111 = arith.constant 9.99999974E-6 : f32
    %213 = vector.broadcast %cst_111 : f32 to vector<24x1xf32>
    %214 = arith.addf %210, %213 : vector<24x1xf32>
    %215 = math.rsqrt %214 : vector<24x1xf32>
    %216 = vector.broadcast %215 : vector<24x1xf32> to vector<24x32xf32>
    %217 = arith.mulf %212, %216 : vector<24x32xf32>
    %218 = vector.broadcast %12 : vector<1x32xf32> to vector<24x32xf32>
    %219 = arith.mulf %217, %218 : vector<24x32xf32>
    %220 = vector.broadcast %13 : vector<1x32xf32> to vector<24x32xf32>
    %221 = arith.addf %219, %220 : vector<24x32xf32>
    %222 = arith.truncf %221 : vector<24x32xf32> to vector<24x32xbf16>
    %cst_112 = arith.constant dense<0.000000e+00> : vector<24x128xf32>
    %223 = tpu.matmul %222, %14, %cst_112 {dimension_numbers = #tpu.dot_dimension_numbers<[1], [0], [0], [1], [0, 0, 1, 1], [], []>} : vector<24x32xbf16>, vector<32x128xbf16>, vector<24x128xf32> -> vector<24x128xf32>
    %224 = vector.broadcast %15 : vector<1x128xf32> to vector<24x128xf32>
    %225 = arith.addf %223, %224 : vector<24x128xf32>
    %226 = arith.mulf %225, %225 : vector<24x128xf32>
    %227 = arith.mulf %225, %226 : vector<24x128xf32>
    %cst_113 = arith.constant 4.471500e-02 : f32
    %228 = vector.broadcast %cst_113 : f32 to vector<24x128xf32>
    %229 = arith.mulf %228, %227 : vector<24x128xf32>
    %230 = arith.addf %225, %229 : vector<24x128xf32>
    %cst_114 = arith.constant 0.797884583 : f32
    %231 = vector.broadcast %cst_114 : f32 to vector<24x128xf32>
    %232 = arith.mulf %231, %230 : vector<24x128xf32>
    %233 = math.tanh %232 : vector<24x128xf32>
    %cst_115 = arith.constant 1.000000e+00 : f32
    %234 = vector.broadcast %cst_115 : f32 to vector<24x128xf32>
    %235 = arith.addf %234, %233 : vector<24x128xf32>
    %cst_116 = arith.constant 5.000000e-01 : f32
    %236 = vector.broadcast %cst_116 : f32 to vector<24x128xf32>
    %237 = arith.mulf %236, %235 : vector<24x128xf32>
    %238 = arith.mulf %225, %237 : vector<24x128xf32>
    %239 = arith.truncf %238 : vector<24x128xf32> to vector<24x128xbf16>
    %cst_117 = arith.constant dense<0.000000e+00> : vector<24x32xf32>
    %240 = tpu.matmul %239, %16, %cst_117 {dimension_numbers = #tpu.dot_dimension_numbers<[1], [0], [0], [1], [0, 0, 1, 1], [], []>} : vector<24x128xbf16>, vector<128x32xbf16>, vector<24x32xf32> -> vector<24x32xf32>
    %241 = vector.broadcast %17 : vector<1x32xf32> to vector<24x32xf32>
    %242 = arith.addf %240, %241 : vector<24x32xf32>
    %243 = arith.addf %197, %242 : vector<24x32xf32>
    %cst_118 = arith.constant dense<0.000000e+00> : vector<24xf32>
    %244 = vector.multi_reduction <add>, %243, %cst_118 [1] : vector<24x32xf32> to vector<24xf32>
    %245 = vector.shape_cast %244 : vector<24xf32> to vector<24x1xf32>
    %cst_119 = arith.constant 3.200000e+01 : f32
    %246 = vector.broadcast %cst_119 : f32 to vector<24x1xf32>
    %247 = arith.divf %245, %246 : vector<24x1xf32>
    %248 = vector.broadcast %247 : vector<24x1xf32> to vector<24x32xf32>
    %249 = arith.subf %243, %248 : vector<24x32xf32>
    %250 = vector.broadcast %247 : vector<24x1xf32> to vector<24x32xf32>
    %251 = arith.subf %243, %250 : vector<24x32xf32>
    %252 = arith.mulf %249, %251 : vector<24x32xf32>
    %cst_120 = arith.constant dense<0.000000e+00> : vector<24xf32>
    %253 = vector.multi_reduction <add>, %252, %cst_120 [1] : vector<24x32xf32> to vector<24xf32>
    %254 = vector.shape_cast %253 : vector<24xf32> to vector<24x1xf32>
    %cst_121 = arith.constant 3.200000e+01 : f32
    %255 = vector.broadcast %cst_121 : f32 to vector<24x1xf32>
    %256 = arith.divf %254, %255 : vector<24x1xf32>
    %257 = vector.broadcast %247 : vector<24x1xf32> to vector<24x32xf32>
    %258 = arith.subf %243, %257 : vector<24x32xf32>
    %cst_122 = arith.constant 9.99999974E-6 : f32
    %259 = vector.broadcast %cst_122 : f32 to vector<24x1xf32>
    %260 = arith.addf %256, %259 : vector<24x1xf32>
    %261 = math.rsqrt %260 : vector<24x1xf32>
    %262 = vector.broadcast %261 : vector<24x1xf32> to vector<24x32xf32>
    %263 = arith.mulf %258, %262 : vector<24x32xf32>
    %264 = vector.broadcast %18 : vector<1x32xf32> to vector<24x32xf32>
    %265 = arith.mulf %263, %264 : vector<24x32xf32>
    %266 = vector.broadcast %19 : vector<1x32xf32> to vector<24x32xf32>
    %267 = arith.addf %265, %266 : vector<24x32xf32>
    %268 = arith.truncf %267 : vector<24x32xf32> to vector<24x32xbf16>
    %cst_123 = arith.constant dense<0.000000e+00> : vector<24x96xf32>
    %269 = tpu.matmul %268, %20, %cst_123 {dimension_numbers = #tpu.dot_dimension_numbers<[1], [0], [0], [1], [0, 0, 1, 1], [], []>} : vector<24x32xbf16>, vector<32x96xbf16>, vector<24x96xf32> -> vector<24x96xf32>
    %270 = vector.broadcast %21 : vector<1x96xf32> to vector<24x96xf32>
    %271 = arith.addf %269, %270 : vector<24x96xf32>
    %272 = vector.shape_cast %271 : vector<24x96xf32> to vector<3x8x96xf32>
    %273 = arith.truncf %272 : vector<3x8x96xf32> to vector<3x8x96xbf16>
    %274 = vector.extract_strided_slice %273 {offsets = [0, 0, 0], sizes = [3, 8, 32], strides = [1, 1, 1]} : vector<3x8x96xbf16> to vector<3x8x32xbf16>
    %275 = vector.extract_strided_slice %274 {offsets = [0, 0, 0], sizes = [3, 8, 8], strides = [1, 1, 1]} : vector<3x8x32xbf16> to vector<3x8x8xbf16>
    %276 = vector.extract_strided_slice %274 {offsets = [0, 0, 8], sizes = [3, 8, 8], strides = [1, 1, 1]} : vector<3x8x32xbf16> to vector<3x8x8xbf16>
    %277 = vector.extract_strided_slice %274 {offsets = [0, 0, 16], sizes = [3, 8, 8], strides = [1, 1, 1]} : vector<3x8x32xbf16> to vector<3x8x8xbf16>
    %278 = vector.extract_strided_slice %274 {offsets = [0, 0, 24], sizes = [3, 8, 8], strides = [1, 1, 1]} : vector<3x8x32xbf16> to vector<3x8x8xbf16>
    %279 = tpu.concatenate %275, %276, %277, %278 in 0 : vector<3x8x8xbf16>, vector<3x8x8xbf16>, vector<3x8x8xbf16>, vector<3x8x8xbf16> -> vector<12x8x8xbf16>
    %280 = vector.extract_strided_slice %273 {offsets = [0, 0, 32], sizes = [3, 8, 32], strides = [1, 1, 1]} : vector<3x8x96xbf16> to vector<3x8x32xbf16>
    %281 = vector.extract_strided_slice %280 {offsets = [0, 0, 0], sizes = [3, 8, 8], strides = [1, 1, 1]} : vector<3x8x32xbf16> to vector<3x8x8xbf16>
    %282 = vector.extract_strided_slice %280 {offsets = [0, 0, 8], sizes = [3, 8, 8], strides = [1, 1, 1]} : vector<3x8x32xbf16> to vector<3x8x8xbf16>
    %283 = vector.extract_strided_slice %280 {offsets = [0, 0, 16], sizes = [3, 8, 8], strides = [1, 1, 1]} : vector<3x8x32xbf16> to vector<3x8x8xbf16>
    %284 = vector.extract_strided_slice %280 {offsets = [0, 0, 24], sizes = [3, 8, 8], strides = [1, 1, 1]} : vector<3x8x32xbf16> to vector<3x8x8xbf16>
    %285 = tpu.concatenate %281, %282, %283, %284 in 0 : vector<3x8x8xbf16>, vector<3x8x8xbf16>, vector<3x8x8xbf16>, vector<3x8x8xbf16> -> vector<12x8x8xbf16>
    %286 = vector.extract_strided_slice %273 {offsets = [0, 0, 64], sizes = [3, 8, 32], strides = [1, 1, 1]} : vector<3x8x96xbf16> to vector<3x8x32xbf16>
    %287 = vector.extract_strided_slice %286 {offsets = [0, 0, 0], sizes = [3, 8, 8], strides = [1, 1, 1]} : vector<3x8x32xbf16> to vector<3x8x8xbf16>
    %288 = vector.extract_strided_slice %286 {offsets = [0, 0, 8], sizes = [3, 8, 8], strides = [1, 1, 1]} : vector<3x8x32xbf16> to vector<3x8x8xbf16>
    %289 = vector.extract_strided_slice %286 {offsets = [0, 0, 16], sizes = [3, 8, 8], strides = [1, 1, 1]} : vector<3x8x32xbf16> to vector<3x8x8xbf16>
    %290 = vector.extract_strided_slice %286 {offsets = [0, 0, 24], sizes = [3, 8, 8], strides = [1, 1, 1]} : vector<3x8x32xbf16> to vector<3x8x8xbf16>
    %291 = tpu.concatenate %287, %288, %289, %290 in 0 : vector<3x8x8xbf16>, vector<3x8x8xbf16>, vector<3x8x8xbf16>, vector<3x8x8xbf16> -> vector<12x8x8xbf16>
    "tpu.trace_start"() <{level = 10 : i32, message = "bqe,bke->bqk"}> : () -> ()
    %cst_124 = arith.constant dense<0.000000e+00> : vector<12x8x8xf32>
    %292 = tpu.matmul %279, %285, %cst_124 {dimension_numbers = #tpu.dot_dimension_numbers<[2], [2], [1], [1], [0, 0, 0, 1, 1, 1], [0], [0]>} : vector<12x8x8xbf16>, vector<12x8x8xbf16>, vector<12x8x8xf32> -> vector<12x8x8xf32>
    "tpu.trace_stop"() : () -> ()
    %cst_125 = arith.constant dense<0xFF800000> : vector<12x8xf32>
    %293 = vector.multi_reduction <maximumf>, %292, %cst_125 [2] : vector<12x8x8xf32> to vector<12x8xf32>
    %294 = vector.shape_cast %293 : vector<12x8xf32> to vector<12x8x1xf32>
    %295 = vector.broadcast %294 : vector<12x8x1xf32> to vector<12x8x8xf32>
    %296 = arith.subf %292, %295 : vector<12x8x8xf32>
    %297 = math.exp %296 : vector<12x8x8xf32>
    %cst_126 = arith.constant dense<0.000000e+00> : vector<12x8xf32>
    %298 = vector.multi_reduction <add>, %297, %cst_126 [2] : vector<12x8x8xf32> to vector<12x8xf32>
    %299 = vector.shape_cast %298 : vector<12x8xf32> to vector<12x8x1xf32>
    %300 = tpu.reciprocal %299 {approx = true} : vector<12x8x1xf32> -> vector<12x8x1xf32>
    %301 = vector.broadcast %300 : vector<12x8x1xf32> to vector<12x8x8xf32>
    %302 = arith.mulf %297, %301 : vector<12x8x8xf32>
    %303 = arith.truncf %302 : vector<12x8x8xf32> to vector<12x8x8xbf16>
    "tpu.trace_start"() <{level = 10 : i32, message = "bqk,bke->bqe"}> : () -> ()
    %cst_127 = arith.constant dense<0.000000e+00> : vector<12x8x8xf32>
    %304 = tpu.matmul %303, %291, %cst_127 {dimension_numbers = #tpu.dot_dimension_numbers<[2], [1], [1], [2], [0, 0, 0, 1, 1, 2], [0], [0]>} : vector<12x8x8xbf16>, vector<12x8x8xbf16>, vector<12x8x8xf32> -> vector<12x8x8xf32>
    "tpu.trace_stop"() : () -> ()
    %305 = vector.extract_strided_slice %304 {offsets = [0, 0, 0], sizes = [3, 8, 8], strides = [1, 1, 1]} : vector<12x8x8xf32> to vector<3x8x8xf32>
    %306 = vector.extract_strided_slice %304 {offsets = [3, 0, 0], sizes = [3, 8, 8], strides = [1, 1, 1]} : vector<12x8x8xf32> to vector<3x8x8xf32>
    %307 = vector.extract_strided_slice %304 {offsets = [6, 0, 0], sizes = [3, 8, 8], strides = [1, 1, 1]} : vector<12x8x8xf32> to vector<3x8x8xf32>
    %308 = vector.extract_strided_slice %304 {offsets = [9, 0, 0], sizes = [3, 8, 8], strides = [1, 1, 1]} : vector<12x8x8xf32> to vector<3x8x8xf32>
    %309 = tpu.concatenate %305, %306, %307, %308 in 2 : vector<3x8x8xf32>, vector<3x8x8xf32>, vector<3x8x8xf32>, vector<3x8x8xf32> -> vector<3x8x32xf32>
    %310 = vector.shape_cast %309 : vector<3x8x32xf32> to vector<24x32xf32>
    %311 = arith.truncf %310 : vector<24x32xf32> to vector<24x32xbf16>
    %cst_128 = arith.constant dense<0.000000e+00> : vector<24x32xf32>
    %312 = tpu.matmul %311, %22, %cst_128 {dimension_numbers = #tpu.dot_dimension_numbers<[1], [0], [0], [1], [0, 0, 1, 1], [], []>} : vector<24x32xbf16>, vector<32x32xbf16>, vector<24x32xf32> -> vector<24x32xf32>
    %313 = vector.broadcast %23 : vector<1x32xf32> to vector<24x32xf32>
    %314 = arith.addf %312, %313 : vector<24x32xf32>
    %315 = arith.addf %243, %314 : vector<24x32xf32>
    %cst_129 = arith.constant dense<0.000000e+00> : vector<24xf32>
    %316 = vector.multi_reduction <add>, %315, %cst_129 [1] : vector<24x32xf32> to vector<24xf32>
    %317 = vector.shape_cast %316 : vector<24xf32> to vector<24x1xf32>
    %cst_130 = arith.constant 3.200000e+01 : f32
    %318 = vector.broadcast %cst_130 : f32 to vector<24x1xf32>
    %319 = arith.divf %317, %318 : vector<24x1xf32>
    %320 = vector.broadcast %319 : vector<24x1xf32> to vector<24x32xf32>
    %321 = arith.subf %315, %320 : vector<24x32xf32>
    %322 = vector.broadcast %319 : vector<24x1xf32> to vector<24x32xf32>
    %323 = arith.subf %315, %322 : vector<24x32xf32>
    %324 = arith.mulf %321, %323 : vector<24x32xf32>
    %cst_131 = arith.constant dense<0.000000e+00> : vector<24xf32>
    %325 = vector.multi_reduction <add>, %324, %cst_131 [1] : vector<24x32xf32> to vector<24xf32>
    %326 = vector.shape_cast %325 : vector<24xf32> to vector<24x1xf32>
    %cst_132 = arith.constant 3.200000e+01 : f32
    %327 = vector.broadcast %cst_132 : f32 to vector<24x1xf32>
    %328 = arith.divf %326, %327 : vector<24x1xf32>
    %329 = vector.broadcast %319 : vector<24x1xf32> to vector<24x32xf32>
    %330 = arith.subf %315, %329 : vector<24x32xf32>
    %cst_133 = arith.constant 9.99999974E-6 : f32
    %331 = vector.broadcast %cst_133 : f32 to vector<24x1xf32>
    %332 = arith.addf %328, %331 : vector<24x1xf32>
    %333 = math.rsqrt %332 : vector<24x1xf32>
    %334 = vector.broadcast %333 : vector<24x1xf32> to vector<24x32xf32>
    %335 = arith.mulf %330, %334 : vector<24x32xf32>
    %336 = vector.broadcast %24 : vector<1x32xf32> to vector<24x32xf32>
    %337 = arith.mulf %335, %336 : vector<24x32xf32>
    %338 = vector.broadcast %25 : vector<1x32xf32> to vector<24x32xf32>
    %339 = arith.addf %337, %338 : vector<24x32xf32>
    %340 = arith.truncf %339 : vector<24x32xf32> to vector<24x32xbf16>
    %cst_134 = arith.constant dense<0.000000e+00> : vector<24x96xf32>
    %341 = tpu.matmul %340, %26, %cst_134 {dimension_numbers = #tpu.dot_dimension_numbers<[1], [0], [0], [1], [0, 0, 1, 1], [], []>} : vector<24x32xbf16>, vector<32x96xbf16>, vector<24x96xf32> -> vector<24x96xf32>
    %342 = vector.broadcast %27 : vector<1x96xf32> to vector<24x96xf32>
    %343 = arith.addf %341, %342 : vector<24x96xf32>
    %344 = vector.shape_cast %343 : vector<24x96xf32> to vector<1x24x96xf32>
    %345 = arith.truncf %344 : vector<1x24x96xf32> to vector<1x24x96xbf16>
    %346 = vector.extract_strided_slice %345 {offsets = [0, 0, 0], sizes = [1, 24, 32], strides = [1, 1, 1]} : vector<1x24x96xbf16> to vector<1x24x32xbf16>
    %347 = vector.extract_strided_slice %346 {offsets = [0, 0, 0], sizes = [1, 24, 8], strides = [1, 1, 1]} : vector<1x24x32xbf16> to vector<1x24x8xbf16>
    %348 = vector.extract_strided_slice %346 {offsets = [0, 0, 8], sizes = [1, 24, 8], strides = [1, 1, 1]} : vector<1x24x32xbf16> to vector<1x24x8xbf16>
    %349 = vector.extract_strided_slice %346 {offsets = [0, 0, 16], sizes = [1, 24, 8], strides = [1, 1, 1]} : vector<1x24x32xbf16> to vector<1x24x8xbf16>
    %350 = vector.extract_strided_slice %346 {offsets = [0, 0, 24], sizes = [1, 24, 8], strides = [1, 1, 1]} : vector<1x24x32xbf16> to vector<1x24x8xbf16>
    %351 = tpu.concatenate %347, %348, %349, %350 in 0 : vector<1x24x8xbf16>, vector<1x24x8xbf16>, vector<1x24x8xbf16>, vector<1x24x8xbf16> -> vector<4x24x8xbf16>
    %352 = vector.extract_strided_slice %345 {offsets = [0, 0, 32], sizes = [1, 24, 32], strides = [1, 1, 1]} : vector<1x24x96xbf16> to vector<1x24x32xbf16>
    %353 = vector.extract_strided_slice %352 {offsets = [0, 0, 0], sizes = [1, 24, 8], strides = [1, 1, 1]} : vector<1x24x32xbf16> to vector<1x24x8xbf16>
    %354 = vector.extract_strided_slice %352 {offsets = [0, 0, 8], sizes = [1, 24, 8], strides = [1, 1, 1]} : vector<1x24x32xbf16> to vector<1x24x8xbf16>
    %355 = vector.extract_strided_slice %352 {offsets = [0, 0, 16], sizes = [1, 24, 8], strides = [1, 1, 1]} : vector<1x24x32xbf16> to vector<1x24x8xbf16>
    %356 = vector.extract_strided_slice %352 {offsets = [0, 0, 24], sizes = [1, 24, 8], strides = [1, 1, 1]} : vector<1x24x32xbf16> to vector<1x24x8xbf16>
    %357 = tpu.concatenate %353, %354, %355, %356 in 0 : vector<1x24x8xbf16>, vector<1x24x8xbf16>, vector<1x24x8xbf16>, vector<1x24x8xbf16> -> vector<4x24x8xbf16>
    %358 = vector.extract_strided_slice %345 {offsets = [0, 0, 64], sizes = [1, 24, 32], strides = [1, 1, 1]} : vector<1x24x96xbf16> to vector<1x24x32xbf16>
    %359 = vector.extract_strided_slice %358 {offsets = [0, 0, 0], sizes = [1, 24, 8], strides = [1, 1, 1]} : vector<1x24x32xbf16> to vector<1x24x8xbf16>
    %360 = vector.extract_strided_slice %358 {offsets = [0, 0, 8], sizes = [1, 24, 8], strides = [1, 1, 1]} : vector<1x24x32xbf16> to vector<1x24x8xbf16>
    %361 = vector.extract_strided_slice %358 {offsets = [0, 0, 16], sizes = [1, 24, 8], strides = [1, 1, 1]} : vector<1x24x32xbf16> to vector<1x24x8xbf16>
    %362 = vector.extract_strided_slice %358 {offsets = [0, 0, 24], sizes = [1, 24, 8], strides = [1, 1, 1]} : vector<1x24x32xbf16> to vector<1x24x8xbf16>
    %363 = tpu.concatenate %359, %360, %361, %362 in 0 : vector<1x24x8xbf16>, vector<1x24x8xbf16>, vector<1x24x8xbf16>, vector<1x24x8xbf16> -> vector<4x24x8xbf16>
    "tpu.trace_start"() <{level = 10 : i32, message = "bqe,bke->bqk"}> : () -> ()
    %cst_135 = arith.constant dense<0.000000e+00> : vector<4x24x24xf32>
    %364 = tpu.matmul %351, %357, %cst_135 {dimension_numbers = #tpu.dot_dimension_numbers<[2], [2], [1], [1], [0, 0, 0, 1, 1, 1], [0], [0]>} : vector<4x24x8xbf16>, vector<4x24x8xbf16>, vector<4x24x24xf32> -> vector<4x24x24xf32>
    "tpu.trace_stop"() : () -> ()
    %365 = vector.shape_cast %50 : vector<24x24xf32> to vector<1x24x24xf32>
    %366 = vector.broadcast %365 : vector<1x24x24xf32> to vector<4x24x24xf32>
    %367 = arith.addf %364, %366 : vector<4x24x24xf32>
    %cst_136 = arith.constant dense<0xFF800000> : vector<4x24xf32>
    %368 = vector.multi_reduction <maximumf>, %367, %cst_136 [2] : vector<4x24x24xf32> to vector<4x24xf32>
    %369 = vector.shape_cast %368 : vector<4x24xf32> to vector<4x24x1xf32>
    %370 = vector.broadcast %369 : vector<4x24x1xf32> to vector<4x24x24xf32>
    %371 = arith.subf %367, %370 : vector<4x24x24xf32>
    %372 = math.exp %371 : vector<4x24x24xf32>
    %cst_137 = arith.constant dense<0.000000e+00> : vector<4x24xf32>
    %373 = vector.multi_reduction <add>, %372, %cst_137 [2] : vector<4x24x24xf32> to vector<4x24xf32>
    %374 = vector.shape_cast %373 : vector<4x24xf32> to vector<4x24x1xf32>
    %375 = tpu.reciprocal %374 {approx = true} : vector<4x24x1xf32> -> vector<4x24x1xf32>
    %376 = vector.broadcast %375 : vector<4x24x1xf32> to vector<4x24x24xf32>
    %377 = arith.mulf %372, %376 : vector<4x24x24xf32>
    %378 = arith.truncf %377 : vector<4x24x24xf32> to vector<4x24x24xbf16>
    "tpu.trace_start"() <{level = 10 : i32, message = "bqk,bke->bqe"}> : () -> ()
    %cst_138 = arith.constant dense<0.000000e+00> : vector<4x24x8xf32>
    %379 = tpu.matmul %378, %363, %cst_138 {dimension_numbers = #tpu.dot_dimension_numbers<[2], [1], [1], [2], [0, 0, 0, 1, 1, 2], [0], [0]>} : vector<4x24x24xbf16>, vector<4x24x8xbf16>, vector<4x24x8xf32> -> vector<4x24x8xf32>
    "tpu.trace_stop"() : () -> ()
    %380 = vector.extract_strided_slice %379 {offsets = [0, 0, 0], sizes = [1, 24, 8], strides = [1, 1, 1]} : vector<4x24x8xf32> to vector<1x24x8xf32>
    %381 = vector.extract_strided_slice %379 {offsets = [1, 0, 0], sizes = [1, 24, 8], strides = [1, 1, 1]} : vector<4x24x8xf32> to vector<1x24x8xf32>
    %382 = vector.extract_strided_slice %379 {offsets = [2, 0, 0], sizes = [1, 24, 8], strides = [1, 1, 1]} : vector<4x24x8xf32> to vector<1x24x8xf32>
    %383 = vector.extract_strided_slice %379 {offsets = [3, 0, 0], sizes = [1, 24, 8], strides = [1, 1, 1]} : vector<4x24x8xf32> to vector<1x24x8xf32>
    %384 = tpu.concatenate %380, %381, %382, %383 in 2 : vector<1x24x8xf32>, vector<1x24x8xf32>, vector<1x24x8xf32>, vector<1x24x8xf32> -> vector<1x24x32xf32>
    %385 = vector.shape_cast %384 : vector<1x24x32xf32> to vector<24x32xf32>
    %386 = arith.truncf %385 : vector<24x32xf32> to vector<24x32xbf16>
    %cst_139 = arith.constant dense<0.000000e+00> : vector<24x32xf32>
    %387 = tpu.matmul %386, %28, %cst_139 {dimension_numbers = #tpu.dot_dimension_numbers<[1], [0], [0], [1], [0, 0, 1, 1], [], []>} : vector<24x32xbf16>, vector<32x32xbf16>, vector<24x32xf32> -> vector<24x32xf32>
    %388 = vector.broadcast %29 : vector<1x32xf32> to vector<24x32xf32>
    %389 = arith.addf %387, %388 : vector<24x32xf32>
    %390 = arith.addf %315, %389 : vector<24x32xf32>
    %cst_140 = arith.constant dense<0.000000e+00> : vector<24xf32>
    %391 = vector.multi_reduction <add>, %390, %cst_140 [1] : vector<24x32xf32> to vector<24xf32>
    %392 = vector.shape_cast %391 : vector<24xf32> to vector<24x1xf32>
    %cst_141 = arith.constant 3.200000e+01 : f32
    %393 = vector.broadcast %cst_141 : f32 to vector<24x1xf32>
    %394 = arith.divf %392, %393 : vector<24x1xf32>
    %395 = vector.broadcast %394 : vector<24x1xf32> to vector<24x32xf32>
    %396 = arith.subf %390, %395 : vector<24x32xf32>
    %397 = vector.broadcast %394 : vector<24x1xf32> to vector<24x32xf32>
    %398 = arith.subf %390, %397 : vector<24x32xf32>
    %399 = arith.mulf %396, %398 : vector<24x32xf32>
    %cst_142 = arith.constant dense<0.000000e+00> : vector<24xf32>
    %400 = vector.multi_reduction <add>, %399, %cst_142 [1] : vector<24x32xf32> to vector<24xf32>
    %401 = vector.shape_cast %400 : vector<24xf32> to vector<24x1xf32>
    %cst_143 = arith.constant 3.200000e+01 : f32
    %402 = vector.broadcast %cst_143 : f32 to vector<24x1xf32>
    %403 = arith.divf %401, %402 : vector<24x1xf32>
    %404 = vector.broadcast %394 : vector<24x1xf32> to vector<24x32xf32>
    %405 = arith.subf %390, %404 : vector<24x32xf32>
    %cst_144 = arith.constant 9.99999974E-6 : f32
    %406 = vector.broadcast %cst_144 : f32 to vector<24x1xf32>
    %407 = arith.addf %403, %406 : vector<24x1xf32>
    %408 = math.rsqrt %407 : vector<24x1xf32>
    %409 = vector.broadcast %408 : vector<24x1xf32> to vector<24x32xf32>
    %410 = arith.mulf %405, %409 : vector<24x32xf32>
    %411 = vector.broadcast %30 : vector<1x32xf32> to vector<24x32xf32>
    %412 = arith.mulf %410, %411 : vector<24x32xf32>
    %413 = vector.broadcast %31 : vector<1x32xf32> to vector<24x32xf32>
    %414 = arith.addf %412, %413 : vector<24x32xf32>
    %415 = arith.truncf %414 : vector<24x32xf32> to vector<24x32xbf16>
    %cst_145 = arith.constant dense<0.000000e+00> : vector<24x128xf32>
    %416 = tpu.matmul %415, %32, %cst_145 {dimension_numbers = #tpu.dot_dimension_numbers<[1], [0], [0], [1], [0, 0, 1, 1], [], []>} : vector<24x32xbf16>, vector<32x128xbf16>, vector<24x128xf32> -> vector<24x128xf32>
    %417 = vector.broadcast %33 : vector<1x128xf32> to vector<24x128xf32>
    %418 = arith.addf %416, %417 : vector<24x128xf32>
    %419 = arith.mulf %418, %418 : vector<24x128xf32>
    %420 = arith.mulf %418, %419 : vector<24x128xf32>
    %cst_146 = arith.constant 4.471500e-02 : f32
    %421 = vector.broadcast %cst_146 : f32 to vector<24x128xf32>
    %422 = arith.mulf %421, %420 : vector<24x128xf32>
    %423 = arith.addf %418, %422 : vector<24x128xf32>
    %cst_147 = arith.constant 0.797884583 : f32
    %424 = vector.broadcast %cst_147 : f32 to vector<24x128xf32>
    %425 = arith.mulf %424, %423 : vector<24x128xf32>
    %426 = math.tanh %425 : vector<24x128xf32>
    %cst_148 = arith.constant 1.000000e+00 : f32
    %427 = vector.broadcast %cst_148 : f32 to vector<24x128xf32>
    %428 = arith.addf %427, %426 : vector<24x128xf32>
    %cst_149 = arith.constant 5.000000e-01 : f32
    %429 = vector.broadcast %cst_149 : f32 to vector<24x128xf32>
    %430 = arith.mulf %429, %428 : vector<24x128xf32>
    %431 = arith.mulf %418, %430 : vector<24x128xf32>
    %432 = arith.truncf %431 : vector<24x128xf32> to vector<24x128xbf16>
    %cst_150 = arith.constant dense<0.000000e+00> : vector<24x32xf32>
    %433 = tpu.matmul %432, %34, %cst_150 {dimension_numbers = #tpu.dot_dimension_numbers<[1], [0], [0], [1], [0, 0, 1, 1], [], []>} : vector<24x128xbf16>, vector<128x32xbf16>, vector<24x32xf32> -> vector<24x32xf32>
    %434 = vector.broadcast %35 : vector<1x32xf32> to vector<24x32xf32>
    %435 = arith.addf %433, %434 : vector<24x32xf32>
    %436 = arith.addf %390, %435 : vector<24x32xf32>
    %cst_151 = arith.constant dense<0.000000e+00> : vector<24xf32>
    %437 = vector.multi_reduction <add>, %436, %cst_151 [1] : vector<24x32xf32> to vector<24xf32>
    %438 = vector.shape_cast %437 : vector<24xf32> to vector<24x1xf32>
    %cst_152 = arith.constant 3.200000e+01 : f32
    %439 = vector.broadcast %cst_152 : f32 to vector<24x1xf32>
    %440 = arith.divf %438, %439 : vector<24x1xf32>
    %441 = vector.broadcast %440 : vector<24x1xf32> to vector<24x32xf32>
    %442 = arith.subf %436, %441 : vector<24x32xf32>
    %443 = vector.broadcast %440 : vector<24x1xf32> to vector<24x32xf32>
    %444 = arith.subf %436, %443 : vector<24x32xf32>
    %445 = arith.mulf %442, %444 : vector<24x32xf32>
    %cst_153 = arith.constant dense<0.000000e+00> : vector<24xf32>
    %446 = vector.multi_reduction <add>, %445, %cst_153 [1] : vector<24x32xf32> to vector<24xf32>
    %447 = vector.shape_cast %446 : vector<24xf32> to vector<24x1xf32>
    %cst_154 = arith.constant 3.200000e+01 : f32
    %448 = vector.broadcast %cst_154 : f32 to vector<24x1xf32>
    %449 = arith.divf %447, %448 : vector<24x1xf32>
    %450 = vector.broadcast %440 : vector<24x1xf32> to vector<24x32xf32>
    %451 = arith.subf %436, %450 : vector<24x32xf32>
    %cst_155 = arith.constant 9.99999974E-6 : f32
    %452 = vector.broadcast %cst_155 : f32 to vector<24x1xf32>
    %453 = arith.addf %449, %452 : vector<24x1xf32>
    %454 = math.rsqrt %453 : vector<24x1xf32>
    %455 = vector.broadcast %454 : vector<24x1xf32> to vector<24x32xf32>
    %456 = arith.mulf %451, %455 : vector<24x32xf32>
    %457 = vector.broadcast %36 : vector<1x32xf32> to vector<24x32xf32>
    %458 = arith.mulf %456, %457 : vector<24x32xf32>
    %459 = vector.broadcast %37 : vector<1x32xf32> to vector<24x32xf32>
    %460 = arith.addf %458, %459 : vector<24x32xf32>
    %461 = vector.shape_cast %460 : vector<24x32xf32> to vector<3x8x32xf32>
    %462 = vector.extract_strided_slice %461 {offsets = [0, 1, 0], sizes = [3, 7, 32], strides = [1, 1, 1]} : vector<3x8x32xf32> to vector<3x7x32xf32>
    %c0_156 = arith.constant 0 : index
    %c0_157 = arith.constant 0 : index
    %c0_158 = arith.constant 0 : index
    %463 = vector.load %arg42[%c0_156, %c0_157, %c0_158] : memref<3x7x32xf32, #tpu.memory_space<vmem>>, vector<3x7x32xf32>
    tpu.vector_store %arg42[%c0_156, %c0_157, %c0_158], %462 {strides = array<i32>} : memref<3x7x32xf32, #tpu.memory_space<vmem>>, vector<3x7x32xf32>,
    return
  }
}

</mosaic_0001>

<llo_original>
// kernel: eq.8
$region0: #{eq.8}
  %s0 = inlined_call_operand.vmem [shape: s32[3,8], index: 0, kind: input, shape index: {}]
  %s1 = inlined_call_operand.vmem [shape: s32[24], index: 1, kind: output, shape index: {}]
  $region1: #{eq.8} parent=0
    #allocation0 [shape = 'u8[4096]{0}', space=vmem, size = 0x1000, scoped, tag = 'scoped mem for output reshape']
    #allocation1 [shape = 'u8[4096]{0}', space=vmem, size = 0x1000, scoped, tag = 'scoped mem for input reshape']
    %s3 = sshllo.u32 0, 4
    %v4 = vld [vmem:[%s0] sm:%s3]
    %5 = vst [vmem:[#allocation1] sm:%s3] %v4
    %v6 = vld [vmem:[#allocation1] sm:$0x1]
    %vm7 = vcmask 64512
    %8 = vst.msk [vmem:[#allocation0] sm:$0x1] %vm7, %v6
    %s9 = scalar_lea.vmem [#allocation1], 2
    %v10 = vld [vmem:[%s9] sm:$0x1]
    %11 = vrot.lane.b32.xlu0 %v10, 16
    %v12 = vpop.permute.xlu0 %11
    %vm13 = vcmask 195712
    %14 = vst.msk [vmem:[#allocation0] sm:$0x1] %vm13, %v12
    %s15 = scalar_lea.vmem [#allocation1], 1
    %v16 = vld [vmem:[%s15] sm:$0x1]
    %17 = vrot.lane.b32.xlu0 %v16, 8
    %v18 = vpop.permute.xlu0 %17
    %vm19 = vcmask 130112
    %20 = vst.msk [vmem:[#allocation0] sm:$0x1] %vm19, %v18
    %s22 = sshllo.u32 0, 1
    %v24 = vld [vmem:[#allocation0] sm:%s22]
    %s25 = sshllo.u32 0, 1
    %26 = vst [vmem:[%s1] sm:%s25] %v24

// kernel: finetune_esm_msa_forward.1
$region0: #{finetune_esm_msa_forward.1}
  #allocation0 [shape = 'u32[]', space=smem, size = 0x4, offset = 0x4, fixed_abs, tag = 'smem constant byte address 0x4 - core index']
  #allocation1 [shape = 'u32[144,128]{1,0:T(1,128)}', space=vmem, size = 0x12000, scoped, tag = 'internal scratch']
  %s0 = inlined_call_operand.smem [shape: u32[43], index: -1, kind: input, shape index: {}]
  %s1 = sld [smem:[%s0]]
  %s2 = scalar_lea.smem %s0, 1
  %s3 = sld [smem:[%s2]]
  %s4 = scalar_lea.smem %s0, 2
  %s5 = sld [smem:[%s4]]
  %s6 = scalar_lea.smem %s0, 3
  %s7 = sld [smem:[%s6]]
  %s8 = scalar_lea.smem %s0, 4
  %s9 = sld [smem:[%s8]]
  %s10 = scalar_lea.smem %s0, 5
  %s11 = sld [smem:[%s10]]
  %s12 = scalar_lea.smem %s0, 6
  %s13 = sld [smem:[%s12]]
  %s14 = scalar_lea.smem %s0, 7
  %s15 = sld [smem:[%s14]]
  %s16 = scalar_lea.smem %s0, 8
  %s17 = sld [smem:[%s16]]
  %s18 = scalar_lea.smem %s0, 9
  %s19 = sld [smem:[%s18]]
  %s20 = scalar_lea.smem %s0, 10
  %s21 = sld [smem:[%s20]]
  %s22 = scalar_lea.smem %s0, 11
  %s23 = sld [smem:[%s22]]
  %s24 = scalar_lea.smem %s0, 12
  %s25 = sld [smem:[%s24]]
  %s26 = scalar_lea.smem %s0, 13
  %s27 = sld [smem:[%s26]]
  %s28 = scalar_lea.smem %s0, 14
  %s29 = sld [smem:[%s28]]
  %s30 = scalar_lea.smem %s0, 15
  %s31 = sld [smem:[%s30]]
  %s32 = scalar_lea.smem %s0, 16
  %s33 = sld [smem:[%s32]]
  %s34 = scalar_lea.smem %s0, 17
  %s35 = sld [smem:[%s34]]
  %s36 = scalar_lea.smem %s0, 18
  %s37 = sld [smem:[%s36]]
  %s38 = scalar_lea.smem %s0, 19
  %s39 = sld [smem:[%s38]]
  %s40 = scalar_lea.smem %s0, 20
  %s41 = sld [smem:[%s40]]
  %s42 = scalar_lea.smem %s0, 21
  %s43 = sld [smem:[%s42]]
  %s44 = scalar_lea.smem %s0, 22
  %s45 = sld [smem:[%s44]]
  %s46 = scalar_lea.smem %s0, 23
  %s47 = sld [smem:[%s46]]
  %s48 = scalar_lea.smem %s0, 24
  %s49 = sld [smem:[%s48]]
  %s50 = scalar_lea.smem %s0, 25
  %s51 = sld [smem:[%s50]]
  %s52 = scalar_lea.smem %s0, 26
  %s53 = sld [smem:[%s52]]
  %s54 = scalar_lea.smem %s0, 27
  %s55 = sld [smem:[%s54]]
  %s56 = scalar_lea.smem %s0, 28
  %s57 = sld [smem:[%s56]]
  %s58 = scalar_lea.smem %s0, 29
  %s59 = sld [smem:[%s58]]
  %s60 = scalar_lea.smem %s0, 30
  %s61 = sld [smem:[%s60]]
  %s62 = scalar_lea.smem %s0, 31
  %s63 = sld [smem:[%s62]]
  %s64 = scalar_lea.smem %s0, 32
  %s65 = sld [smem:[%s64]]
  %s66 = scalar_lea.smem %s0, 33
  %s67 = sld [smem:[%s66]]
  %s68 = scalar_lea.smem %s0, 34
  %s69 = sld [smem:[%s68]]
  %s70 = scalar_lea.smem %s0, 35
  %s71 = sld [smem:[%s70]]
  %s72 = scalar_lea.smem %s0, 36
  %s73 = sld [smem:[%s72]]
  %s74 = scalar_lea.smem %s0, 37
  %s75 = sld [smem:[%s74]]
  %s76 = scalar_lea.smem %s0, 38
  %s77 = sld [smem:[%s76]]
  %s78 = scalar_lea.smem %s0, 39
  %s79 = sld [smem:[%s78]]
  %s80 = scalar_lea.smem %s0, 40
  %s81 = sld [smem:[%s80]]
  %s82 = scalar_lea.smem %s0, 41
  %s83 = sld [smem:[%s82]]
  %s84 = scalar_lea.smem %s0, 42
  %s85 = sld [smem:[%s84]]
  %s86 = sld [smem:[#allocation0]]
  $region178: #{finetune_esm_msa_forward.1} parent=0
    _
  %s88 = ssub.s32 1, %s86
  %s89 = scalar_select 0, %s88, %s86
  $region1: #{finetune_esm_msa_forward.1} parent=0
    #allocation2 [shape = 'u8[12288]{0}', space=vmem, size = 0x3000, scoped, tag = 'output window, operand 0, single buffered']
    #allocation3 [shape = 's32[1]{0}', space=sflag, size = 0x4, scoped, tag = 'scoped memory for finetune_esm_msa_forward.1']
    %90 = vsyncpa [#allocation3], 0
    // Predicated region
    $region2: #{finetune_esm_msa_forward.1} parent=1 // pred_check
      _
    $region3: #{finetune_esm_msa_forward.1} parent=1 // pred_check_branch
      %92 = sbr.rel (0) target = $region5
    $region4: #{finetune_esm_msa_forward.1} parent=1 // pred_region
      _
    $region5: #{finetune_esm_msa_forward.1} parent=1 // pred_fallthru
      _
    // Predicated region
    $region6: #{finetune_esm_msa_forward.1} parent=1 // pred_check
      _
    $region7: #{finetune_esm_msa_forward.1} parent=1 // pred_check_branch
      %94 = sbr.rel (0) target = $region9
    $region8: #{finetune_esm_msa_forward.1} parent=1 // pred_region
      _
    $region9: #{finetune_esm_msa_forward.1} parent=1 // pred_fallthru
      _
    // Predicated region
    $region10: #{finetune_esm_msa_forward.1} parent=1 // pred_check
      _
    $region11: #{finetune_esm_msa_forward.1} parent=1 // pred_check_branch
      %96 = sbr.rel (0) target = $region13
    $region12: #{finetune_esm_msa_forward.1} parent=1 // pred_region
      _
    $region13: #{finetune_esm_msa_forward.1} parent=1 // pred_fallthru
      _
    // Predicated region
    $region14: #{finetune_esm_msa_forward.1} parent=1 // pred_check
      _
    $region15: #{finetune_esm_msa_forward.1} parent=1 // pred_check_branch
      %98 = sbr.rel (0) target = $region17
    $region16: #{finetune_esm_msa_forward.1} parent=1 // pred_region
      _
    $region17: #{finetune_esm_msa_forward.1} parent=1 // pred_fallthru
      _
    // Predicated region
    $region18: #{finetune_esm_msa_forward.1} parent=1 // pred_check
      _
    $region19: #{finetune_esm_msa_forward.1} parent=1 // pred_check_branch
      %100 = sbr.rel (0) target = $region21
    $region20: #{finetune_esm_msa_forward.1} parent=1 // pred_region
      _
    $region21: #{finetune_esm_msa_forward.1} parent=1 // pred_fallthru
      _
    // Predicated region
    $region22: #{finetune_esm_msa_forward.1} parent=1 // pred_check
      _
    $region23: #{finetune_esm_msa_forward.1} parent=1 // pred_check_branch
      %102 = sbr.rel (0) target = $region25
    $region24: #{finetune_esm_msa_forward.1} parent=1 // pred_region
      _
    $region25: #{finetune_esm_msa_forward.1} parent=1 // pred_fallthru
      _
    // Predicated region
    $region26: #{finetune_esm_msa_forward.1} parent=1 // pred_check
      _
    $region27: #{finetune_esm_msa_forward.1} parent=1 // pred_check_branch
      %104 = sbr.rel (0) target = $region29
    $region28: #{finetune_esm_msa_forward.1} parent=1 // pred_region
      _
    $region29: #{finetune_esm_msa_forward.1} parent=1 // pred_fallthru
      _
    // Predicated region
    $region30: #{finetune_esm_msa_forward.1} parent=1 // pred_check
      _
    $region31: #{finetune_esm_msa_forward.1} parent=1 // pred_check_branch
      %106 = sbr.rel (0) target = $region33
    $region32: #{finetune_esm_msa_forward.1} parent=1 // pred_region
      _
    $region33: #{finetune_esm_msa_forward.1} parent=1 // pred_fallthru
      _
    // Predicated region
    $region34: #{finetune_esm_msa_forward.1} parent=1 // pred_check
      _
    $region35: #{finetune_esm_msa_forward.1} parent=1 // pred_check_branch
      %108 = sbr.rel (0) target = $region37
    $region36: #{finetune_esm_msa_forward.1} parent=1 // pred_region
      _
    $region37: #{finetune_esm_msa_forward.1} parent=1 // pred_fallthru
      _
    // Predicated region
    $region38: #{finetune_esm_msa_forward.1} parent=1 // pred_check
      _
    $region39: #{finetune_esm_msa_forward.1} parent=1 // pred_check_branch
      %110 = sbr.rel (0) target = $region41
    $region40: #{finetune_esm_msa_forward.1} parent=1 // pred_region
      _
    $region41: #{finetune_esm_msa_forward.1} parent=1 // pred_fallthru
      _
    // Predicated region
    $region42: #{finetune_esm_msa_forward.1} parent=1 // pred_check
      _
    $region43: #{finetune_esm_msa_forward.1} parent=1 // pred_check_branch
      %112 = sbr.rel (0) target = $region45
    $region44: #{finetune_esm_msa_forward.1} parent=1 // pred_region
      _
    $region45: #{finetune_esm_msa_forward.1} parent=1 // pred_fallthru
      _
    // Predicated region
    $region46: #{finetune_esm_msa_forward.1} parent=1 // pred_check
      _
    $region47: #{finetune_esm_msa_forward.1} parent=1 // pred_check_branch
      %114 = sbr.rel (0) target = $region49
    $region48: #{finetune_esm_msa_forward.1} parent=1 // pred_region
      _
    $region49: #{finetune_esm_msa_forward.1} parent=1 // pred_fallthru
      _
    // Predicated region
    $region50: #{finetune_esm_msa_forward.1} parent=1 // pred_check
      _
    $region51: #{finetune_esm_msa_forward.1} parent=1 // pred_check_branch
      %116 = sbr.rel (0) target = $region53
    $region52: #{finetune_esm_msa_forward.1} parent=1 // pred_region
      _
    $region53: #{finetune_esm_msa_forward.1} parent=1 // pred_fallthru
      _
    // Predicated region
    $region54: #{finetune_esm_msa_forward.1} parent=1 // pred_check
      _
    $region55: #{finetune_esm_msa_forward.1} parent=1 // pred_check_branch
      %118 = sbr.rel (0) target = $region57
    $region56: #{finetune_esm_msa_forward.1} parent=1 // pred_region
      _
    $region57: #{finetune_esm_msa_forward.1} parent=1 // pred_fallthru
      _
    // Predicated region
    $region58: #{finetune_esm_msa_forward.1} parent=1 // pred_check
      _
    $region59: #{finetune_esm_msa_forward.1} parent=1 // pred_check_branch
      %120 = sbr.rel (0) target = $region61
    $region60: #{finetune_esm_msa_forward.1} parent=1 // pred_region
      _
    $region61: #{finetune_esm_msa_forward.1} parent=1 // pred_fallthru
      _
    // Predicated region
    $region62: #{finetune_esm_msa_forward.1} parent=1 // pred_check
      _
    $region63: #{finetune_esm_msa_forward.1} parent=1 // pred_check_branch
      %122 = sbr.rel (0) target = $region65
    $region64: #{finetune_esm_msa_forward.1} parent=1 // pred_region
      _
    $region65: #{finetune_esm_msa_forward.1} parent=1 // pred_fallthru
      _
    // Predicated region
    $region66: #{finetune_esm_msa_forward.1} parent=1 // pred_check
      _
    $region67: #{finetune_esm_msa_forward.1} parent=1 // pred_check_branch
      %124 = sbr.rel (0) target = $region69
    $region68: #{finetune_esm_msa_forward.1} parent=1 // pred_region
      _
    $region69: #{finetune_esm_msa_forward.1} parent=1 // pred_fallthru
      _
    // Predicated region
    $region70: #{finetune_esm_msa_forward.1} parent=1 // pred_check
      _
    $region71: #{finetune_esm_msa_forward.1} parent=1 // pred_check_branch
      %126 = sbr.rel (0) target = $region73
    $region72: #{finetune_esm_msa_forward.1} parent=1 // pred_region
      _
    $region73: #{finetune_esm_msa_forward.1} parent=1 // pred_fallthru
      _
    // Predicated region
    $region74: #{finetune_esm_msa_forward.1} parent=1 // pred_check
      _
    $region75: #{finetune_esm_msa_forward.1} parent=1 // pred_check_branch
      %128 = sbr.rel (0) target = $region77
    $region76: #{finetune_esm_msa_forward.1} parent=1 // pred_region
      _
    $region77: #{finetune_esm_msa_forward.1} parent=1 // pred_fallthru
      _
    // Predicated region
    $region78: #{finetune_esm_msa_forward.1} parent=1 // pred_check
      _
    $region79: #{finetune_esm_msa_forward.1} parent=1 // pred_check_branch
      %130 = sbr.rel (0) target = $region81
    $region80: #{finetune_esm_msa_forward.1} parent=1 // pred_region
      _
    $region81: #{finetune_esm_msa_forward.1} parent=1 // pred_fallthru
      _
    // Predicated region
    $region82: #{finetune_esm_msa_forward.1} parent=1 // pred_check
      _
    $region83: #{finetune_esm_msa_forward.1} parent=1 // pred_check_branch
      %132 = sbr.rel (0) target = $region85
    $region84: #{finetune_esm_msa_forward.1} parent=1 // pred_region
      _
    $region85: #{finetune_esm_msa_forward.1} parent=1 // pred_fallthru
      _
    // Predicated region
    $region86: #{finetune_esm_msa_forward.1} parent=1 // pred_check
      _
    $region87: #{finetune_esm_msa_forward.1} parent=1 // pred_check_branch
      %134 = sbr.rel (0) target = $region89
    $region88: #{finetune_esm_msa_forward.1} parent=1 // pred_region
      _
    $region89: #{finetune_esm_msa_forward.1} parent=1 // pred_fallthru
      _
    // Predicated region
    $region90: #{finetune_esm_msa_forward.1} parent=1 // pred_check
      _
    $region91: #{finetune_esm_msa_forward.1} parent=1 // pred_check_branch
      %136 = sbr.rel (0) target = $region93
    $region92: #{finetune_esm_msa_forward.1} parent=1 // pred_region
      _
    $region93: #{finetune_esm_msa_forward.1} parent=1 // pred_fallthru
      _
    // Predicated region
    $region94: #{finetune_esm_msa_forward.1} parent=1 // pred_check
      _
    $region95: #{finetune_esm_msa_forward.1} parent=1 // pred_check_branch
      %138 = sbr.rel (0) target = $region97
    $region96: #{finetune_esm_msa_forward.1} parent=1 // pred_region
      _
    $region97: #{finetune_esm_msa_forward.1} parent=1 // pred_fallthru
      _
    // Predicated region
    $region98: #{finetune_esm_msa_forward.1} parent=1 // pred_check
      _
    $region99: #{finetune_esm_msa_forward.1} parent=1 // pred_check_branch
      %140 = sbr.rel (0) target = $region101
    $region100: #{finetune_esm_msa_forward.1} parent=1 // pred_region
      _
    $region101: #{finetune_esm_msa_forward.1} parent=1 // pred_fallthru
      _
    // Predicated region
    $region102: #{finetune_esm_msa_forward.1} parent=1 // pred_check
      _
    $region103: #{finetune_esm_msa_forward.1} parent=1 // pred_check_branch
      %142 = sbr.rel (0) target = $region105
    $region104: #{finetune_esm_msa_forward.1} parent=1 // pred_region
      _
    $region105: #{finetune_esm_msa_forward.1} parent=1 // pred_fallthru
      _
    // Predicated region
    $region106: #{finetune_esm_msa_forward.1} parent=1 // pred_check
      _
    $region107: #{finetune_esm_msa_forward.1} parent=1 // pred_check_branch
      %144 = sbr.rel (0) target = $region109
    $region108: #{finetune_esm_msa_forward.1} parent=1 // pred_region
      _
    $region109: #{finetune_esm_msa_forward.1} parent=1 // pred_fallthru
      _
    // Predicated region
    $region110: #{finetune_esm_msa_forward.1} parent=1 // pred_check
      _
    $region111: #{finetune_esm_msa_forward.1} parent=1 // pred_check_branch
      %146 = sbr.rel (0) target = $region113
    $region112: #{finetune_esm_msa_forward.1} parent=1 // pred_region
      _
    $region113: #{finetune_esm_msa_forward.1} parent=1 // pred_fallthru
      _
    // Predicated region
    $region114: #{finetune_esm_msa_forward.1} parent=1 // pred_check
      _
    $region115: #{finetune_esm_msa_forward.1} parent=1 // pred_check_branch
      %148 = sbr.rel (0) target = $region117
    $region116: #{finetune_esm_msa_forward.1} parent=1 // pred_region
      _
    $region117: #{finetune_esm_msa_forward.1} parent=1 // pred_fallthru
      _
    // Predicated region
    $region118: #{finetune_esm_msa_forward.1} parent=1 // pred_check
      _
    $region119: #{finetune_esm_msa_forward.1} parent=1 // pred_check_branch
      %150 = sbr.rel (0) target = $region121
    $region120: #{finetune_esm_msa_forward.1} parent=1 // pred_region
      _
    $region121: #{finetune_esm_msa_forward.1} parent=1 // pred_fallthru
      _
    // Predicated region
    $region122: #{finetune_esm_msa_forward.1} parent=1 // pred_check
      _
    $region123: #{finetune_esm_msa_forward.1} parent=1 // pred_check_branch
      %152 = sbr.rel (0) target = $region125
    $region124: #{finetune_esm_msa_forward.1} parent=1 // pred_region
      _
    $region125: #{finetune_esm_msa_forward.1} parent=1 // pred_fallthru
      _
    // Predicated region
    $region126: #{finetune_esm_msa_forward.1} parent=1 // pred_check
      _
    $region127: #{finetune_esm_msa_forward.1} parent=1 // pred_check_branch
      %154 = sbr.rel (0) target = $region129
    $region128: #{finetune_esm_msa_forward.1} parent=1 // pred_region
      _
    $region129: #{finetune_esm_msa_forward.1} parent=1 // pred_fallthru
      _
    // Predicated region
    $region130: #{finetune_esm_msa_forward.1} parent=1 // pred_check
      _
    $region131: #{finetune_esm_msa_forward.1} parent=1 // pred_check_branch
      %156 = sbr.rel (0) target = $region133
    $region132: #{finetune_esm_msa_forward.1} parent=1 // pred_region
      _
    $region133: #{finetune_esm_msa_forward.1} parent=1 // pred_fallthru
      _
    // Predicated region
    $region134: #{finetune_esm_msa_forward.1} parent=1 // pred_check
      _
    $region135: #{finetune_esm_msa_forward.1} parent=1 // pred_check_branch
      %158 = sbr.rel (0) target = $region137
    $region136: #{finetune_esm_msa_forward.1} parent=1 // pred_region
      _
    $region137: #{finetune_esm_msa_forward.1} parent=1 // pred_fallthru
      _
    // Predicated region
    $region138: #{finetune_esm_msa_forward.1} parent=1 // pred_check
      _
    $region139: #{finetune_esm_msa_forward.1} parent=1 // pred_check_branch
      %160 = sbr.rel (0) target = $region141
    $region140: #{finetune_esm_msa_forward.1} parent=1 // pred_region
      _
    $region141: #{finetune_esm_msa_forward.1} parent=1 // pred_fallthru
      _
    // Predicated region
    $region142: #{finetune_esm_msa_forward.1} parent=1 // pred_check
      _
    $region143: #{finetune_esm_msa_forward.1} parent=1 // pred_check_branch
      %162 = sbr.rel (0) target = $region145
    $region144: #{finetune_esm_msa_forward.1} parent=1 // pred_region
      _
    $region145: #{finetune_esm_msa_forward.1} parent=1 // pred_fallthru
      _
    // Predicated region
    $region146: #{finetune_esm_msa_forward.1} parent=1 // pred_check
      _
    $region147: #{finetune_esm_msa_forward.1} parent=1 // pred_check_branch
      %164 = sbr.rel (0) target = $region149
    $region148: #{finetune_esm_msa_forward.1} parent=1 // pred_region
      _
    $region149: #{finetune_esm_msa_forward.1} parent=1 // pred_fallthru
      _
    // Predicated region
    $region150: #{finetune_esm_msa_forward.1} parent=1 // pred_check
      _
    $region151: #{finetune_esm_msa_forward.1} parent=1 // pred_check_branch
      %166 = sbr.rel (0) target = $region153
    $region152: #{finetune_esm_msa_forward.1} parent=1 // pred_region
      _
    $region153: #{finetune_esm_msa_forward.1} parent=1 // pred_fallthru
      _
    // Predicated region
    $region154: #{finetune_esm_msa_forward.1} parent=1 // pred_check
      _
    $region155: #{finetune_esm_msa_forward.1} parent=1 // pred_check_branch
      %168 = sbr.rel (0) target = $region157
    $region156: #{finetune_esm_msa_forward.1} parent=1 // pred_region
      _
    $region157: #{finetune_esm_msa_forward.1} parent=1 // pred_fallthru
      _
    // Predicated region
    $region158: #{finetune_esm_msa_forward.1} parent=1 // pred_check
      _
    $region159: #{finetune_esm_msa_forward.1} parent=1 // pred_check_branch
      %170 = sbr.rel (0) target = $region161
    $region160: #{finetune_esm_msa_forward.1} parent=1 // pred_region
      _
    $region161: #{finetune_esm_msa_forward.1} parent=1 // pred_fallthru
      _
    // Predicated region
    $region162: #{finetune_esm_msa_forward.1} parent=1 // pred_check
      _
    $region163: #{finetune_esm_msa_forward.1} parent=1 // pred_check_branch
      %172 = sbr.rel (0) target = $region165
    $region164: #{finetune_esm_msa_forward.1} parent=1 // pred_region
      _
    $region165: #{finetune_esm_msa_forward.1} parent=1 // pred_fallthru
      _
    // Predicated region
    $region166: #{finetune_esm_msa_forward.1} parent=1 // pred_check
      _
    $region167: #{finetune_esm_msa_forward.1} parent=1 // pred_check_branch
      %174 = sbr.rel (0) target = $region169
    $region168: #{finetune_esm_msa_forward.1} parent=1 // pred_region
      _
    $region169: #{finetune_esm_msa_forward.1} parent=1 // pred_fallthru
      _
    %v176 = vld [vmem:[%s9] sm:$0x1]
    %v177 = vld [vmem:[%s11] sm:$0x1]
    %v178 = vld [vmem:[%s13] sm:$0xf]
    %v179 = vld [vmem:[%s13 + $0x4] sm:$0xf]
    %v180 = vld [vmem:[%s13 + $0x8] sm:$0xf]
    %v181 = vld [vmem:[%s13 + $0xc] sm:$0xf]
    %v182 = vld [vmem:[%s15] sm:$0x1]
    %v183 = vld [vmem:[%s17] sm:$0xf]
    %v184 = vld [vmem:[%s17 + $0x4] sm:$0xf]
    %v185 = vld [vmem:[%s17 + $0x8] sm:$0xf]
    %v186 = vld [vmem:[%s17 + $0xc] sm:$0xf]
    %v187 = vld [vmem:[%s19] sm:$0x1]
    %v188 = vld [vmem:[%s21] sm:$0x1]
    %v189 = vld [vmem:[%s23] sm:$0x1]
    %v190 = vld [vmem:[%s25] sm:$0xf]
    %v191 = vld [vmem:[%s25 + $0x4] sm:$0xf]
    %v192 = vld [vmem:[%s25 + $0x8] sm:$0xf]
    %v193 = vld [vmem:[%s25 + $0xc] sm:$0xf]
    %v194 = vld [vmem:[%s27] sm:$0x1]
    %v195 = vld [vmem:[%s29] sm:$0xf]
    %v196 = vld [vmem:[%s29 + $0x4] sm:$0xf]
    %v197 = vld [vmem:[%s29 + $0x8] sm:$0xf]
    %v198 = vld [vmem:[%s29 + $0xc] sm:$0xf]
    %v199 = vld [vmem:[%s31] sm:$0x1]
    %v200 = vld [vmem:[%s33] sm:$0x1]
    %v201 = vld [vmem:[%s35] sm:$0x1]
    %v202 = vld [vmem:[%s37] sm:$0xf]
    %v203 = vld [vmem:[%s37 + $0x4] sm:$0xf]
    %v204 = vld [vmem:[%s37 + $0x8] sm:$0xf]
    %v205 = vld [vmem:[%s37 + $0xc] sm:$0xf]
    %v206 = vld [vmem:[%s39] sm:$0x1]
    %v207 = vld [vmem:[%s41] sm:$0xf]
    %v208 = vld [vmem:[%s41 + $0x4] sm:$0xf]
    %v209 = vld [vmem:[%s41 + $0x8] sm:$0xf]
    %v210 = vld [vmem:[%s41 + $0xc] sm:$0xf]
    %v211 = vld [vmem:[%s41 + $0x10] sm:$0xf]
    %v212 = vld [vmem:[%s41 + $0x14] sm:$0xf]
    %v213 = vld [vmem:[%s41 + $0x18] sm:$0xf]
    %v214 = vld [vmem:[%s41 + $0x1c] sm:$0xf]
    %v215 = vld [vmem:[%s41 + $0x20] sm:$0xf]
    %v216 = vld [vmem:[%s41 + $0x24] sm:$0xf]
    %v217 = vld [vmem:[%s41 + $0x28] sm:$0xf]
    %v218 = vld [vmem:[%s41 + $0x2c] sm:$0xf]
    %v219 = vld [vmem:[%s41 + $0x30] sm:$0xf]
    %v220 = vld [vmem:[%s41 + $0x34] sm:$0xf]
    %v221 = vld [vmem:[%s41 + $0x38] sm:$0xf]
    %v222 = vld [vmem:[%s41 + $0x3c] sm:$0xf]
    %v223 = vld [vmem:[%s43] sm:$0x1]
    %v224 = vld [vmem:[%s45] sm:$0x1]
    %v225 = vld [vmem:[%s47] sm:$0x1]
    %v226 = vld [vmem:[%s49] sm:$0xf]
    %v227 = vld [vmem:[%s49 + $0x4] sm:$0xf]
    %v228 = vld [vmem:[%s49 + $0x8] sm:$0xf]
    %v229 = vld [vmem:[%s49 + $0xc] sm:$0xf]
    %v230 = vld [vmem:[%s51] sm:$0x1]
    %v231 = vld [vmem:[%s53] sm:$0xf]
    %v232 = vld [vmem:[%s53 + $0x4] sm:$0xf]
    %v233 = vld [vmem:[%s53 + $0x8] sm:$0xf]
    %v234 = vld [vmem:[%s53 + $0xc] sm:$0xf]
    %v235 = vld [vmem:[%s55] sm:$0x1]
    %v236 = vld [vmem:[%s57] sm:$0x1]
    %v237 = vld [vmem:[%s59] sm:$0x1]
    %v238 = vld [vmem:[%s61] sm:$0xf]
    %v239 = vld [vmem:[%s61 + $0x4] sm:$0xf]
    %v240 = vld [vmem:[%s61 + $0x8] sm:$0xf]
    %v241 = vld [vmem:[%s61 + $0xc] sm:$0xf]
    %v242 = vld [vmem:[%s63] sm:$0x1]
    %v243 = vld [vmem:[%s65] sm:$0xf]
    %v244 = vld [vmem:[%s65 + $0x4] sm:$0xf]
    %v245 = vld [vmem:[%s65 + $0x8] sm:$0xf]
    %v246 = vld [vmem:[%s65 + $0xc] sm:$0xf]
    %v247 = vld [vmem:[%s67] sm:$0x1]
    %v248 = vld [vmem:[%s69] sm:$0x1]
    %v249 = vld [vmem:[%s71] sm:$0x1]
    %v250 = vld [vmem:[%s73] sm:$0xf]
    %v251 = vld [vmem:[%s73 + $0x4] sm:$0xf]
    %v252 = vld [vmem:[%s73 + $0x8] sm:$0xf]
    %v253 = vld [vmem:[%s73 + $0xc] sm:$0xf]
    %v254 = vld [vmem:[%s75] sm:$0x1]
    %v255 = vld [vmem:[%s77] sm:$0xf]
    %v256 = vld [vmem:[%s77 + $0x4] sm:$0xf]
    %v257 = vld [vmem:[%s77 + $0x8] sm:$0xf]
    %v258 = vld [vmem:[%s77 + $0xc] sm:$0xf]
    %v259 = vld [vmem:[%s77 + $0x10] sm:$0xf]
    %v260 = vld [vmem:[%s77 + $0x14] sm:$0xf]
    %v261 = vld [vmem:[%s77 + $0x18] sm:$0xf]
    %v262 = vld [vmem:[%s77 + $0x1c] sm:$0xf]
    %v263 = vld [vmem:[%s77 + $0x20] sm:$0xf]
    %v264 = vld [vmem:[%s77 + $0x24] sm:$0xf]
    %v265 = vld [vmem:[%s77 + $0x28] sm:$0xf]
    %v266 = vld [vmem:[%s77 + $0x2c] sm:$0xf]
    %v267 = vld [vmem:[%s77 + $0x30] sm:$0xf]
    %v268 = vld [vmem:[%s77 + $0x34] sm:$0xf]
    %v269 = vld [vmem:[%s77 + $0x38] sm:$0xf]
    %v270 = vld [vmem:[%s77 + $0x3c] sm:$0xf]
    %v271 = vld [vmem:[%s79] sm:$0x1]
    %v272 = vld [vmem:[%s81] sm:$0x1]
    %v273 = vld [vmem:[%s83] sm:$0x1]
    %v274 = vld [vmem:[%s1] sm:$0xff]
    %v275 = vld [vmem:[%s1 + $0x8] sm:$0xff]
    %v276 = vld [vmem:[%s1 + $0x10] sm:$0xff]
    %v277 = vlaneseq
    %v278 = vand.u32 %v277, 127
    %279 = vset.pattern.permute.xlu0 0
    %280 = vperm.xlu0 %279, %v274
    %v281 = vpop.permute.xlu0 %280
    %282 = vset.pattern.permute.xlu0 0
    %283 = vperm.xlu0 %282, %v275
    %v284 = vpop.permute.xlu0 %283
    %285 = vset.pattern.permute.xlu0 0
    %286 = vperm.xlu0 %285, %v276
    %v287 = vpop.permute.xlu0 %286
    %vm288 = vcmp.eq.s32.totalorder %v278, %v281
    %vm289 = vcmp.eq.s32.totalorder %v278, %v284
    %vm290 = vcmp.eq.s32.totalorder %v278, %v287
    %v291 = vsel %vm288, 1.0, 0.0
    %v292 = vsel %vm289, 1.0, 0.0
    %v293 = vsel %vm290, 1.0, 0.0
    %v294 = vld [vmem:[%s3] sm:$0xff]
    %v295 = vld [vmem:[%s3 + $0x8] sm:$0xff]
    %v296 = vld [vmem:[%s3 + $0x10] sm:$0xff]
    %v297 = vld [vmem:[%s3 + $0x18] sm:$0xff]
    %v298 = vld [vmem:[%s3 + $0x20] sm:$0x1]
    %v299 = vld [vmem:[%s5] sm:$0xff]
    %vm300 = vcmask 269312
    %v302 = vsel %vm300, %v291, 0
    %v305 = vsel %vm300, %v292, 0
    %v308 = vsel %vm300, %v293, 0
    %vm310 = vcmask 1040384
    %v312 = vsel %vm310, %v298, 0
    %314 = vmatprep.subr.mxu0 0.0
    %315 = vmatpush1.msra.mxu0 %v294
    %316 = vmatprep.subr.mxu0 0.0
    %317 = vmatpush1.msra.mxu0 %v295
    %318 = vmatprep.subr.mxu0 0.0
    %319 = vmatpush1.msra.mxu0 %v296
    %320 = vmatprep.subr.mxu0 0.0
    %321 = vmatpush1.msra.mxu0 %v297
    %322 = vmatprep.subr.mxu0 0.0
    %323 = vmatpush1.msra.mxu0 %v312
    %324 = vmatprep.subr.mxu0 0.0
    %325 = vmatpush1.msra.mxu0 0.0
    %326 = vmatprep.subr.mxu0 0.0
    %327 = vmatpush1.msra.mxu0 0.0
    %328 = vmatprep.subr.mxu0 0.0
    %329 = vmatpush1.msra.mxu0 0.0
    %330 = vmatprep.subr.mxu0 0.0
    %331 = vmatpush1.msra.mxu0 0.0
    %332 = vmatprep.subr.mxu0 0.0
    %333 = vmatpush1.msra.mxu0 0.0
    %334 = vmatprep.subr.mxu0 0.0
    %335 = vmatpush1.msra.mxu0 0.0
    %336 = vmatprep.subr.mxu0 0.0
    %337 = vmatpush1.msra.mxu0 0.0
    %338 = vmatprep.subr.mxu0 0.0
    %339 = vmatpush1.msra.mxu0 0.0
    %340 = vmatprep.subr.mxu0 0.0
    %341 = vmatpush1.msra.mxu0 0.0
    %342 = vmatprep.subr.mxu0 0.0
    %343 = vmatpush1.msra.mxu0 0.0
    %344 = vmatprep.subr.mxu0 0.0
    %345 = vmatpush1.msra.mxu0 0.0
    %346 = vmatprep.subr.mxu0 0.0
    %347 = vmatpush1.msra.mxu0 0.0
    %348 = vmatprep.subr.mxu0 0.0
    %349 = vmatpush1.msra.mxu0 0.0
    %350 = vmatprep.subr.mxu0 0.0
    %351 = vmatpush1.msra.mxu0 0.0
    %352 = vmatprep.subr.mxu0 0.0
    %353 = vmatpush1.msra.mxu0 0.0
    %354 = vmatprep.subr.mxu0 0.0
    %355 = vmatpush1.msra.mxu0 0.0
    %356 = vmatprep.subr.mxu0 0.0
    %357 = vmatpush1.msra.mxu0 0.0
    %358 = vmatprep.subr.mxu0 0.0
    %359 = vmatpush1.msra.mxu0 0.0
    %360 = vmatprep.subr.mxu0 0.0
    %361 = vmatpush1.msra.mxu0 0.0
    %362 = vmatprep.subr.mxu0 0.0
    %363 = vmatpush1.msra.mxu0 0.0
    %364 = vmatprep.subr.mxu0 0.0
    %365 = vmatpush1.msra.mxu0 0.0
    %366 = vmatprep.subr.mxu0 0.0
    %367 = vmatpush1.msra.mxu0 0.0
    %368 = vmatprep.subr.mxu0 0.0
    %369 = vmatpush1.msra.mxu0 0.0
    %370 = vmatprep.subr.mxu0 0.0
    %371 = vmatpush1.msra.mxu0 0.0
    %372 = vmatprep.subr.mxu0 0.0
    %373 = vmatpush1.msra.mxu0 0.0
    %374 = vmatprep.subr.mxu0 0.0
    %375 = vmatpush1.msra.mxu0 0.0
    %376 = vmatprep.subr.mxu0 0.0
    %377 = vmatpush1.msra.mxu0 0.0
    %378 = vmatprep.mubr.f32.mxu0 0.0
    %379 = vmatmul.mubr.f32.gmra.mrb[0].mxu0 %v302
    %v380 = vpop.f32.mrb[0].mxu0
    %v381 = vadd.f32 %v299, %v380
    %v382 = vpop.f32.mrb[0].mxu0
    %383 = vmatprep.mubr.f32.mxu0 0.0
    %384 = vmatmul.mubr.f32.gmra.mrb[0].mxu0 %v305
    %v385 = vpop.f32.mrb[0].mxu0
    %v386 = vadd.f32 %v299, %v385
    %v387 = vpop.f32.mrb[0].mxu0
    %388 = vmatprep.mubr.f32.mxu0 0.0
    %389 = vmatmul.mubr.f32.gmra.mrb[0].mxu0 %v308
    %v390 = vpop.f32.mrb[0].mxu0
    %v391 = vadd.f32 %v299, %v390
    %v392 = vpop.f32.mrb[0].mxu0
    %393 = vdwg.mxu0
    %v394 = vld [vmem:[%s7] sm:$0xff]
    %v395 = vld [vmem:[%s7 + $0x8] sm:$0xff]
    %v396 = vld [vmem:[%s7 + $0x10] sm:$0xff]
    %vm397 = vcmask 261120
    %v398 = vsel %vm397, %v381, 0.0
    %399 = vadd.xlane.f32.xlu0 %v398
    %v400 = vpop.xlane.xlu0 %399
    %v401 = vsel %vm397, %v386, 0.0
    %402 = vadd.xlane.f32.xlu0 %v401
    %v403 = vpop.xlane.xlu0 %402
    %v404 = vsel %vm397, %v391, 0.0
    %405 = vadd.xlane.f32.xlu0 %v404
    %v406 = vpop.xlane.xlu0 %405
    %v407 = vrcp.pop 32.0
    %v408 = vmul.f32 %v400, %v407
    %v409 = vmul.f32 %v403, %v407
    %v410 = vmul.f32 %v406, %v407
    %v411 = vsub.f32 %v381, %v408
    %v412 = vsub.f32 %v386, %v409
    %v413 = vsub.f32 %v391, %v410
    %v414 = vmul.f32 %v411, %v411
    %v415 = vmul.f32 %v412, %v412
    %v416 = vmul.f32 %v413, %v413
    %v417 = vsel %vm397, %v414, 0.0
    %418 = vadd.xlane.f32.xlu0 %v417
    %v419 = vpop.xlane.xlu0 %418
    %v420 = vsel %vm397, %v415, 0.0
    %421 = vadd.xlane.f32.xlu0 %v420
    %v422 = vpop.xlane.xlu0 %421
    %v423 = vsel %vm397, %v416, 0.0
    %424 = vadd.xlane.f32.xlu0 %v423
    %v425 = vpop.xlane.xlu0 %424
    %v426 = vmul.f32 %v419, %v407
    %v427 = vmul.f32 %v422, %v407
    %v428 = vmul.f32 %v425, %v407
    %v429 = vadd.f32 %v426, 1e-05
    %v430 = vadd.f32 %v427, 1e-05
    %v431 = vadd.f32 %v428, 1e-05
    %v432 = vrsqrt.pop %v429
    %v433 = vrsqrt.pop %v430
    %v434 = vrsqrt.pop %v431
    %v435 = vmul.f32 %v411, %v432
    %v436 = vmul.f32 %v412, %v433
    %v437 = vmul.f32 %v413, %v434
    %v439 = vlaneseq
    %v440 = vshrl.u32 %v439, 7
    %v441 = vsub.s32 0, %v440
    %v442 = vrot.slane %v176, %v441
    %v444 = vmul.f32 %v435, %v442
    %v445 = vmul.f32 %v436, %v442
    %v446 = vmul.f32 %v437, %v442
    %v448 = vlaneseq
    %v449 = vshrl.u32 %v448, 7
    %v450 = vsub.s32 0, %v449
    %v451 = vrot.slane %v177, %v450
    %v453 = vadd.f32 %v444, %v451
    %v454 = vadd.f32 %v445, %v451
    %v455 = vadd.f32 %v446, %v451
    %v456 = vpack.c.bf16 %v454, %v453
    %v457 = vpack.c.bf16 %v455, %v455
    %v459 = vlaneseq
    %v460 = vshrl.u32 %v459, 7
    %v461 = vsub.s32 0, %v460
    %v462 = vrot.slane %v182, %v461
    %v468 = vunpack.c.l.b16 %v178
    %v469 = vunpack.c.l.b16 %v179
    %v470 = vunpack.c.l.b16 %v180
    %v471 = vunpack.c.l.b16 %v181
    %v472 = vpack.c.b16 %v469, %v468
    %v473 = vpack.c.b16 %v471, %v470
    %v477 = vsel %vm397, %v456, 0
    %v480 = vsel %vm397, %v457, 0
    %482 = vmatprep.subr.bf16.mxu0 0
    %483 = vmatpush1.bf16.msra.mxu0 %v472
    %484 = vmatprep.subr.bf16.mxu0 0
    %485 = vmatpush1.bf16.msra.mxu0 %v473
    %486 = vmatprep.subr.bf16.mxu0 0
    %487 = vmatpush1.bf16.msra.mxu0 0
    %488 = vmatprep.subr.bf16.mxu0 0
    %489 = vmatpush1.bf16.msra.mxu0 0
    %490 = vmatprep.subr.bf16.mxu0 0
    %491 = vmatpush1.bf16.msra.mxu0 0
    %492 = vmatprep.subr.bf16.mxu0 0
    %493 = vmatpush1.bf16.msra.mxu0 0
    %494 = vmatprep.subr.bf16.mxu0 0
    %495 = vmatpush1.bf16.msra.mxu0 0
    %496 = vmatprep.subr.bf16.mxu0 0
    %497 = vmatpush1.bf16.msra.mxu0 0
    %498 = vmatprep.subr.bf16.mxu0 0
    %499 = vmatpush1.bf16.msra.mxu0 0
    %500 = vmatprep.subr.bf16.mxu0 0
    %501 = vmatpush1.bf16.msra.mxu0 0
    %502 = vmatprep.subr.bf16.mxu0 0
    %503 = vmatpush1.bf16.msra.mxu0 0
    %504 = vmatprep.subr.bf16.mxu0 0
    %505 = vmatpush1.bf16.msra.mxu0 0
    %506 = vmatprep.subr.bf16.mxu0 0
    %507 = vmatpush1.bf16.msra.mxu0 0
    %508 = vmatprep.subr.bf16.mxu0 0
    %509 = vmatpush1.bf16.msra.mxu0 0
    %510 = vmatprep.subr.bf16.mxu0 0
    %511 = vmatpush1.bf16.msra.mxu0 0
    %512 = vmatprep.subr.bf16.mxu0 0
    %513 = vmatpush1.bf16.msra.mxu0 0
    %514 = vmatprep.mubr.bf16.mxu0 0
    %515 = vmatmul.mubr.bf16.gmra.mrb[0].mxu0 %v477
    %v516 = vpop.f32.mrb[0].mxu0
    %v517 = vadd.f32 %v462, %v516
    %v518 = vpop.f32.mrb[0].mxu0
    %v519 = vpop.f32.mrb[0].mxu0
    %v520 = vadd.f32 %v462, %v519
    %v521 = vpop.f32.mrb[0].mxu0
    %522 = vmatprep.mubr.bf16.mxu0 0
    %523 = vmatmul.mubr.bf16.gmra.mrb[0].mxu0 %v480
    %v524 = vpop.f32.mrb[0].mxu0
    %v525 = vadd.f32 %v462, %v524
    %v526 = vpop.f32.mrb[0].mxu0
    %v527 = vpop.f32.mrb[0].mxu0
    %v528 = vpop.f32.mrb[0].mxu0
    %529 = vdwg.mxu0
    %v530 = vpack.c.bf16 %v517, %v517
    %v531 = vpack.c.bf16 %v520, %v520
    %v532 = vpack.c.bf16 %v525, %v525
    %536 = vrot.lane.b32.xlu0 %v530, 120
    %v537 = vpop.permute.xlu0 %536
    %538 = vrot.lane.b32.xlu0 %v531, 120
    %v539 = vpop.permute.xlu0 %538
    %540 = vrot.lane.b32.xlu0 %v532, 120
    %v541 = vpop.permute.xlu0 %540
    %542 = vrot.lane.b32.xlu0 %v530, 112
    %v543 = vpop.permute.xlu0 %542
    %544 = vrot.lane.b32.xlu0 %v531, 112
    %v545 = vpop.permute.xlu0 %544
    %546 = vrot.lane.b32.xlu0 %v532, 112
    %v547 = vpop.permute.xlu0 %546
    %548 = vrot.lane.b32.xlu0 %v530, 104
    %v549 = vpop.permute.xlu0 %548
    %550 = vrot.lane.b32.xlu0 %v531, 104
    %v551 = vpop.permute.xlu0 %550
    %552 = vrot.lane.b32.xlu0 %v532, 104
    %v553 = vpop.permute.xlu0 %552
    %554 = vrot.lane.b32.xlu0 %v530, 96
    %v555 = vpop.permute.xlu0 %554
    %vm556 = vcmask 64512
    %v558 = vsel %vm556, %v530, 0
    %v561 = vsel %vm556, %v555, 0
    %563 = vmatprep.subr.bf16.mxu0 0
    %564 = vmatpush1.bf16.xpose.msra.mxu0 %v561
    %565 = vmatprep.subr.bf16.mxu0 0
    %566 = vmatpush1.bf16.xpose.msra.mxu0 0
    %567 = vmatprep.subr.bf16.mxu0 0
    %568 = vmatpush1.bf16.xpose.msra.mxu0 0
    %569 = vmatprep.subr.bf16.mxu0 0
    %570 = vmatpush1.bf16.xpose.msra.mxu0 0
    %571 = vmatprep.subr.bf16.mxu0 0
    %572 = vmatpush1.bf16.xpose.msra.mxu0 0
    %573 = vmatprep.subr.bf16.mxu0 0
    %574 = vmatpush1.bf16.xpose.msra.mxu0 0
    %575 = vmatprep.subr.bf16.mxu0 0
    %576 = vmatpush1.bf16.xpose.msra.mxu0 0
    %577 = vmatprep.subr.bf16.mxu0 0
    %578 = vmatpush1.bf16.xpose.msra.mxu0 0
    %579 = vmatprep.subr.bf16.mxu0 0
    %580 = vmatpush1.bf16.xpose.msra.mxu0 0
    %581 = vmatprep.subr.bf16.mxu0 0
    %582 = vmatpush1.bf16.xpose.msra.mxu0 0
    %583 = vmatprep.subr.bf16.mxu0 0
    %584 = vmatpush1.bf16.xpose.msra.mxu0 0
    %585 = vmatprep.subr.bf16.mxu0 0
    %586 = vmatpush1.bf16.xpose.msra.mxu0 0
    %587 = vmatprep.subr.bf16.mxu0 0
    %588 = vmatpush1.bf16.xpose.msra.mxu0 0
    %589 = vmatprep.subr.bf16.mxu0 0
    %590 = vmatpush1.bf16.xpose.msra.mxu0 0
    %591 = vmatprep.subr.bf16.mxu0 0
    %592 = vmatpush1.bf16.xpose.msra.mxu0 0
    %593 = vmatprep.subr.bf16.mxu0 0
    %594 = vmatpush1.bf16.xpose.msra.mxu0 0
    %595 = vmatprep.mubr.bf16.mxu0 0
    %596 = vmatmul.mubr.bf16.gmra.mrb[0].mxu0 %v558
    %v597 = vpop.f32.mrb[0].mxu0
    %v598 = vadd.f32 0.0, %v597
    %v599 = vpop.f32.mrb[0].mxu0
    %v600 = vpop.f32.mrb[0].mxu0
    %v601 = vpop.f32.mrb[0].mxu0
    %602 = vdwg.mxu0
    %603 = vrot.lane.b32.xlu0 %v531, 96
    %v604 = vpop.permute.xlu0 %603
    %v606 = vsel %vm556, %v531, 0
    %v609 = vsel %vm556, %v604, 0
    %611 = vmatprep.subr.bf16.mxu0 0
    %612 = vmatpush1.bf16.xpose.msra.mxu0 %v609
    %613 = vmatprep.subr.bf16.mxu0 0
    %614 = vmatpush1.bf16.xpose.msra.mxu0 0
    %615 = vmatprep.subr.bf16.mxu0 0
    %616 = vmatpush1.bf16.xpose.msra.mxu0 0
    %617 = vmatprep.subr.bf16.mxu0 0
    %618 = vmatpush1.bf16.xpose.msra.mxu0 0
    %619 = vmatprep.subr.bf16.mxu0 0
    %620 = vmatpush1.bf16.xpose.msra.mxu0 0
    %621 = vmatprep.subr.bf16.mxu0 0
    %622 = vmatpush1.bf16.xpose.msra.mxu0 0
    %623 = vmatprep.subr.bf16.mxu0 0
    %624 = vmatpush1.bf16.xpose.msra.mxu0 0
    %625 = vmatprep.subr.bf16.mxu0 0
    %626 = vmatpush1.bf16.xpose.msra.mxu0 0
    %627 = vmatprep.subr.bf16.mxu0 0
    %628 = vmatpush1.bf16.xpose.msra.mxu0 0
    %629 = vmatprep.subr.bf16.mxu0 0
    %630 = vmatpush1.bf16.xpose.msra.mxu0 0
    %631 = vmatprep.subr.bf16.mxu0 0
    %632 = vmatpush1.bf16.xpose.msra.mxu0 0
    %633 = vmatprep.subr.bf16.mxu0 0
    %634 = vmatpush1.bf16.xpose.msra.mxu0 0
    %635 = vmatprep.subr.bf16.mxu0 0
    %636 = vmatpush1.bf16.xpose.msra.mxu0 0
    %637 = vmatprep.subr.bf16.mxu0 0
    %638 = vmatpush1.bf16.xpose.msra.mxu0 0
    %639 = vmatprep.subr.bf16.mxu0 0
    %640 = vmatpush1.bf16.xpose.msra.mxu0 0
    %641 = vmatprep.subr.bf16.mxu0 0
    %642 = vmatpush1.bf16.xpose.msra.mxu0 0
    %643 = vmatprep.mubr.bf16.mxu0 0
    %644 = vmatmul.mubr.bf16.gmra.mrb[0].mxu0 %v606
    %v645 = vpop.f32.mrb[0].mxu0
    %v646 = vadd.f32 0.0, %v645
    %v647 = vpop.f32.mrb[0].mxu0
    %v648 = vpop.f32.mrb[0].mxu0
    %v649 = vpop.f32.mrb[0].mxu0
    %650 = vdwg.mxu0
    %651 = vrot.lane.b32.xlu0 %v532, 96
    %v652 = vpop.permute.xlu0 %651
    %v654 = vsel %vm556, %v532, 0
    %v657 = vsel %vm556, %v652, 0
    %659 = vmatprep.subr.bf16.mxu0 0
    %660 = vmatpush1.bf16.xpose.msra.mxu0 %v657
    %661 = vmatprep.subr.bf16.mxu0 0
    %662 = vmatpush1.bf16.xpose.msra.mxu0 0
    %663 = vmatprep.subr.bf16.mxu0 0
    %664 = vmatpush1.bf16.xpose.msra.mxu0 0
    %665 = vmatprep.subr.bf16.mxu0 0
    %666 = vmatpush1.bf16.xpose.msra.mxu0 0
    %667 = vmatprep.subr.bf16.mxu0 0
    %668 = vmatpush1.bf16.xpose.msra.mxu0 0
    %669 = vmatprep.subr.bf16.mxu0 0
    %670 = vmatpush1.bf16.xpose.msra.mxu0 0
    %671 = vmatprep.subr.bf16.mxu0 0
    %672 = vmatpush1.bf16.xpose.msra.mxu0 0
    %673 = vmatprep.subr.bf16.mxu0 0
    %674 = vmatpush1.bf16.xpose.msra.mxu0 0
    %675 = vmatprep.subr.bf16.mxu0 0
    %676 = vmatpush1.bf16.xpose.msra.mxu0 0
    %677 = vmatprep.subr.bf16.mxu0 0
    %678 = vmatpush1.bf16.xpose.msra.mxu0 0
    %679 = vmatprep.subr.bf16.mxu0 0
    %680 = vmatpush1.bf16.xpose.msra.mxu0 0
    %681 = vmatprep.subr.bf16.mxu0 0
    %682 = vmatpush1.bf16.xpose.msra.mxu0 0
    %683 = vmatprep.subr.bf16.mxu0 0
    %684 = vmatpush1.bf16.xpose.msra.mxu0 0
    %685 = vmatprep.subr.bf16.mxu0 0
    %686 = vmatpush1.bf16.xpose.msra.mxu0 0
    %687 = vmatprep.subr.bf16.mxu0 0
    %688 = vmatpush1.bf16.xpose.msra.mxu0 0
    %689 = vmatprep.subr.bf16.mxu0 0
    %690 = vmatpush1.bf16.xpose.msra.mxu0 0
    %691 = vmatprep.mubr.bf16.mxu0 0
    %692 = vmatmul.mubr.bf16.gmra.mrb[0].mxu0 %v654
    %v693 = vpop.f32.mrb[0].mxu0
    %v694 = vadd.f32 0.0, %v693
    %v695 = vpop.f32.mrb[0].mxu0
    %v696 = vpop.f32.mrb[0].mxu0
    %v697 = vpop.f32.mrb[0].mxu0
    %698 = vdwg.mxu0
    %699 = vrot.lane.b32.xlu0 %v537, 96
    %v700 = vpop.permute.xlu0 %699
    %v702 = vsel %vm556, %v537, 0
    %v705 = vsel %vm556, %v700, 0
    %707 = vmatprep.subr.bf16.mxu0 0
    %708 = vmatpush1.bf16.xpose.msra.mxu0 %v705
    %709 = vmatprep.subr.bf16.mxu0 0
    %710 = vmatpush1.bf16.xpose.msra.mxu0 0
    %711 = vmatprep.subr.bf16.mxu0 0
    %712 = vmatpush1.bf16.xpose.msra.mxu0 0
    %713 = vmatprep.subr.bf16.mxu0 0
    %714 = vmatpush1.bf16.xpose.msra.mxu0 0
    %715 = vmatprep.subr.bf16.mxu0 0
    %716 = vmatpush1.bf16.xpose.msra.mxu0 0
    %717 = vmatprep.subr.bf16.mxu0 0
    %718 = vmatpush1.bf16.xpose.msra.mxu0 0
    %719 = vmatprep.subr.bf16.mxu0 0
    %720 = vmatpush1.bf16.xpose.msra.mxu0 0
    %721 = vmatprep.subr.bf16.mxu0 0
    %722 = vmatpush1.bf16.xpose.msra.mxu0 0
    %723 = vmatprep.subr.bf16.mxu0 0
    %724 = vmatpush1.bf16.xpose.msra.mxu0 0
    %725 = vmatprep.subr.bf16.mxu0 0
    %726 = vmatpush1.bf16.xpose.msra.mxu0 0
    %727 = vmatprep.subr.bf16.mxu0 0
    %728 = vmatpush1.bf16.xpose.msra.mxu0 0
    %729 = vmatprep.subr.bf16.mxu0 0
    %730 = vmatpush1.bf16.xpose.msra.mxu0 0
    %731 = vmatprep.subr.bf16.mxu0 0
    %732 = vmatpush1.bf16.xpose.msra.mxu0 0
    %733 = vmatprep.subr.bf16.mxu0 0
    %734 = vmatpush1.bf16.xpose.msra.mxu0 0
    %735 = vmatprep.subr.bf16.mxu0 0
    %736 = vmatpush1.bf16.xpose.msra.mxu0 0
    %737 = vmatprep.subr.bf16.mxu0 0
    %738 = vmatpush1.bf16.xpose.msra.mxu0 0
    %739 = vmatprep.mubr.bf16.mxu0 0
    %740 = vmatmul.mubr.bf16.gmra.mrb[0].mxu0 %v702
    %v741 = vpop.f32.mrb[0].mxu0
    %v742 = vadd.f32 0.0, %v741
    %v743 = vpop.f32.mrb[0].mxu0
    %v744 = vpop.f32.mrb[0].mxu0
    %v745 = vpop.f32.mrb[0].mxu0
    %746 = vdwg.mxu0
    %747 = vrot.lane.b32.xlu0 %v539, 96
    %v748 = vpop.permute.xlu0 %747
    %v750 = vsel %vm556, %v539, 0
    %v753 = vsel %vm556, %v748, 0
    %755 = vmatprep.subr.bf16.mxu0 0
    %756 = vmatpush1.bf16.xpose.msra.mxu0 %v753
    %757 = vmatprep.subr.bf16.mxu0 0
    %758 = vmatpush1.bf16.xpose.msra.mxu0 0
    %759 = vmatprep.subr.bf16.mxu0 0
    %760 = vmatpush1.bf16.xpose.msra.mxu0 0
    %761 = vmatprep.subr.bf16.mxu0 0
    %762 = vmatpush1.bf16.xpose.msra.mxu0 0
    %763 = vmatprep.subr.bf16.mxu0 0
    %764 = vmatpush1.bf16.xpose.msra.mxu0 0
    %765 = vmatprep.subr.bf16.mxu0 0
    %766 = vmatpush1.bf16.xpose.msra.mxu0 0
    %767 = vmatprep.subr.bf16.mxu0 0
    %768 = vmatpush1.bf16.xpose.msra.mxu0 0
    %769 = vmatprep.subr.bf16.mxu0 0
    %770 = vmatpush1.bf16.xpose.msra.mxu0 0
    %771 = vmatprep.subr.bf16.mxu0 0
    %772 = vmatpush1.bf16.xpose.msra.mxu0 0
    %773 = vmatprep.subr.bf16.mxu0 0
    %774 = vmatpush1.bf16.xpose.msra.mxu0 0
    %775 = vmatprep.subr.bf16.mxu0 0
    %776 = vmatpush1.bf16.xpose.msra.mxu0 0
    %777 = vmatprep.subr.bf16.mxu0 0
    %778 = vmatpush1.bf16.xpose.msra.mxu0 0
    %779 = vmatprep.subr.bf16.mxu0 0
    %780 = vmatpush1.bf16.xpose.msra.mxu0 0
    %781 = vmatprep.subr.bf16.mxu0 0
    %782 = vmatpush1.bf16.xpose.msra.mxu0 0
    %783 = vmatprep.subr.bf16.mxu0 0
    %784 = vmatpush1.bf16.xpose.msra.mxu0 0
    %785 = vmatprep.subr.bf16.mxu0 0
    %786 = vmatpush1.bf16.xpose.msra.mxu0 0
    %787 = vmatprep.mubr.bf16.mxu0 0
    %788 = vmatmul.mubr.bf16.gmra.mrb[0].mxu0 %v750
    %v789 = vpop.f32.mrb[0].mxu0
    %v790 = vadd.f32 0.0, %v789
    %v791 = vpop.f32.mrb[0].mxu0
    %v792 = vpop.f32.mrb[0].mxu0
    %v793 = vpop.f32.mrb[0].mxu0
    %794 = vdwg.mxu0
    %795 = vrot.lane.b32.xlu0 %v541, 96
    %v796 = vpop.permute.xlu0 %795
    %v798 = vsel %vm556, %v541, 0
    %v801 = vsel %vm556, %v796, 0
    %803 = vmatprep.subr.bf16.mxu0 0
    %804 = vmatpush1.bf16.xpose.msra.mxu0 %v801
    %805 = vmatprep.subr.bf16.mxu0 0
    %806 = vmatpush1.bf16.xpose.msra.mxu0 0
    %807 = vmatprep.subr.bf16.mxu0 0
    %808 = vmatpush1.bf16.xpose.msra.mxu0 0
    %809 = vmatprep.subr.bf16.mxu0 0
    %810 = vmatpush1.bf16.xpose.msra.mxu0 0
    %811 = vmatprep.subr.bf16.mxu0 0
    %812 = vmatpush1.bf16.xpose.msra.mxu0 0
    %813 = vmatprep.subr.bf16.mxu0 0
    %814 = vmatpush1.bf16.xpose.msra.mxu0 0
    %815 = vmatprep.subr.bf16.mxu0 0
    %816 = vmatpush1.bf16.xpose.msra.mxu0 0
    %817 = vmatprep.subr.bf16.mxu0 0
    %818 = vmatpush1.bf16.xpose.msra.mxu0 0
    %819 = vmatprep.subr.bf16.mxu0 0
    %820 = vmatpush1.bf16.xpose.msra.mxu0 0
    %821 = vmatprep.subr.bf16.mxu0 0
    %822 = vmatpush1.bf16.xpose.msra.mxu0 0
    %823 = vmatprep.subr.bf16.mxu0 0
    %824 = vmatpush1.bf16.xpose.msra.mxu0 0
    %825 = vmatprep.subr.bf16.mxu0 0
    %826 = vmatpush1.bf16.xpose.msra.mxu0 0
    %827 = vmatprep.subr.bf16.mxu0 0
    %828 = vmatpush1.bf16.xpose.msra.mxu0 0
    %829 = vmatprep.subr.bf16.mxu0 0
    %830 = vmatpush1.bf16.xpose.msra.mxu0 0
    %831 = vmatprep.subr.bf16.mxu0 0
    %832 = vmatpush1.bf16.xpose.msra.mxu0 0
    %833 = vmatprep.subr.bf16.mxu0 0
    %834 = vmatpush1.bf16.xpose.msra.mxu0 0
    %835 = vmatprep.mubr.bf16.mxu0 0
    %836 = vmatmul.mubr.bf16.gmra.mrb[0].mxu0 %v798
    %v837 = vpop.f32.mrb[0].mxu0
    %v838 = vadd.f32 0.0, %v837
    %v839 = vpop.f32.mrb[0].mxu0
    %v840 = vpop.f32.mrb[0].mxu0
    %v841 = vpop.f32.mrb[0].mxu0
    %842 = vdwg.mxu0
    %843 = vrot.lane.b32.xlu0 %v543, 96
    %v844 = vpop.permute.xlu0 %843
    %v846 = vsel %vm556, %v543, 0
    %v849 = vsel %vm556, %v844, 0
    %851 = vmatprep.subr.bf16.mxu0 0
    %852 = vmatpush1.bf16.xpose.msra.mxu0 %v849
    %853 = vmatprep.subr.bf16.mxu0 0
    %854 = vmatpush1.bf16.xpose.msra.mxu0 0
    %855 = vmatprep.subr.bf16.mxu0 0
    %856 = vmatpush1.bf16.xpose.msra.mxu0 0
    %857 = vmatprep.subr.bf16.mxu0 0
    %858 = vmatpush1.bf16.xpose.msra.mxu0 0
    %859 = vmatprep.subr.bf16.mxu0 0
    %860 = vmatpush1.bf16.xpose.msra.mxu0 0
    %861 = vmatprep.subr.bf16.mxu0 0
    %862 = vmatpush1.bf16.xpose.msra.mxu0 0
    %863 = vmatprep.subr.bf16.mxu0 0
    %864 = vmatpush1.bf16.xpose.msra.mxu0 0
    %865 = vmatprep.subr.bf16.mxu0 0
    %866 = vmatpush1.bf16.xpose.msra.mxu0 0
    %867 = vmatprep.subr.bf16.mxu0 0
    %868 = vmatpush1.bf16.xpose.msra.mxu0 0
    %869 = vmatprep.subr.bf16.mxu0 0
    %870 = vmatpush1.bf16.xpose.msra.mxu0 0
    %871 = vmatprep.subr.bf16.mxu0 0
    %872 = vmatpush1.bf16.xpose.msra.mxu0 0
    %873 = vmatprep.subr.bf16.mxu0 0
    %874 = vmatpush1.bf16.xpose.msra.mxu0 0
    %875 = vmatprep.subr.bf16.mxu0 0
    %876 = vmatpush1.bf16.xpose.msra.mxu0 0
    %877 = vmatprep.subr.bf16.mxu0 0
    %878 = vmatpush1.bf16.xpose.msra.mxu0 0
    %879 = vmatprep.subr.bf16.mxu0 0
    %880 = vmatpush1.bf16.xpose.msra.mxu0 0
    %881 = vmatprep.subr.bf16.mxu0 0
    %882 = vmatpush1.bf16.xpose.msra.mxu0 0
    %883 = vmatprep.mubr.bf16.mxu0 0
    %884 = vmatmul.mubr.bf16.gmra.mrb[0].mxu0 %v846
    %v885 = vpop.f32.mrb[0].mxu0
    %v886 = vadd.f32 0.0, %v885
    %v887 = vpop.f32.mrb[0].mxu0
    %v888 = vpop.f32.mrb[0].mxu0
    %v889 = vpop.f32.mrb[0].mxu0
    %890 = vdwg.mxu0
    %891 = vrot.lane.b32.xlu0 %v545, 96
    %v892 = vpop.permute.xlu0 %891
    %v894 = vsel %vm556, %v545, 0
    %v897 = vsel %vm556, %v892, 0
    %899 = vmatprep.subr.bf16.mxu0 0
    %900 = vmatpush1.bf16.xpose.msra.mxu0 %v897
    %901 = vmatprep.subr.bf16.mxu0 0
    %902 = vmatpush1.bf16.xpose.msra.mxu0 0
    %903 = vmatprep.subr.bf16.mxu0 0
    %904 = vmatpush1.bf16.xpose.msra.mxu0 0
    %905 = vmatprep.subr.bf16.mxu0 0
    %906 = vmatpush1.bf16.xpose.msra.mxu0 0
    %907 = vmatprep.subr.bf16.mxu0 0
    %908 = vmatpush1.bf16.xpose.msra.mxu0 0
    %909 = vmatprep.subr.bf16.mxu0 0
    %910 = vmatpush1.bf16.xpose.msra.mxu0 0
    %911 = vmatprep.subr.bf16.mxu0 0
    %912 = vmatpush1.bf16.xpose.msra.mxu0 0
    %913 = vmatprep.subr.bf16.mxu0 0
    %914 = vmatpush1.bf16.xpose.msra.mxu0 0
    %915 = vmatprep.subr.bf16.mxu0 0
    %916 = vmatpush1.bf16.xpose.msra.mxu0 0
    %917 = vmatprep.subr.bf16.mxu0 0
    %918 = vmatpush1.bf16.xpose.msra.mxu0 0
    %919 = vmatprep.subr.bf16.mxu0 0
    %920 = vmatpush1.bf16.xpose.msra.mxu0 0
    %921 = vmatprep.subr.bf16.mxu0 0
    %922 = vmatpush1.bf16.xpose.msra.mxu0 0
    %923 = vmatprep.subr.bf16.mxu0 0
    %924 = vmatpush1.bf16.xpose.msra.mxu0 0
    %925 = vmatprep.subr.bf16.mxu0 0
    %926 = vmatpush1.bf16.xpose.msra.mxu0 0
    %927 = vmatprep.subr.bf16.mxu0 0
    %928 = vmatpush1.bf16.xpose.msra.mxu0 0
    %929 = vmatprep.subr.bf16.mxu0 0
    %930 = vmatpush1.bf16.xpose.msra.mxu0 0
    %931 = vmatprep.mubr.bf16.mxu0 0
    %932 = vmatmul.mubr.bf16.gmra.mrb[0].mxu0 %v894
    %v933 = vpop.f32.mrb[0].mxu0
    %v934 = vadd.f32 0.0, %v933
    %v935 = vpop.f32.mrb[0].mxu0
    %v936 = vpop.f32.mrb[0].mxu0
    %v937 = vpop.f32.mrb[0].mxu0
    %938 = vdwg.mxu0
    %939 = vrot.lane.b32.xlu0 %v547, 96
    %v940 = vpop.permute.xlu0 %939
    %v942 = vsel %vm556, %v547, 0
    %v945 = vsel %vm556, %v940, 0
    %947 = vmatprep.subr.bf16.mxu0 0
    %948 = vmatpush1.bf16.xpose.msra.mxu0 %v945
    %949 = vmatprep.subr.bf16.mxu0 0
    %950 = vmatpush1.bf16.xpose.msra.mxu0 0
    %951 = vmatprep.subr.bf16.mxu0 0
    %952 = vmatpush1.bf16.xpose.msra.mxu0 0
    %953 = vmatprep.subr.bf16.mxu0 0
    %954 = vmatpush1.bf16.xpose.msra.mxu0 0
    %955 = vmatprep.subr.bf16.mxu0 0
    %956 = vmatpush1.bf16.xpose.msra.mxu0 0
    %957 = vmatprep.subr.bf16.mxu0 0
    %958 = vmatpush1.bf16.xpose.msra.mxu0 0
    %959 = vmatprep.subr.bf16.mxu0 0
    %960 = vmatpush1.bf16.xpose.msra.mxu0 0
    %961 = vmatprep.subr.bf16.mxu0 0
    %962 = vmatpush1.bf16.xpose.msra.mxu0 0
    %963 = vmatprep.subr.bf16.mxu0 0
    %964 = vmatpush1.bf16.xpose.msra.mxu0 0
    %965 = vmatprep.subr.bf16.mxu0 0
    %966 = vmatpush1.bf16.xpose.msra.mxu0 0
    %967 = vmatprep.subr.bf16.mxu0 0
    %968 = vmatpush1.bf16.xpose.msra.mxu0 0
    %969 = vmatprep.subr.bf16.mxu0 0
    %970 = vmatpush1.bf16.xpose.msra.mxu0 0
    %971 = vmatprep.subr.bf16.mxu0 0
    %972 = vmatpush1.bf16.xpose.msra.mxu0 0
    %973 = vmatprep.subr.bf16.mxu0 0
    %974 = vmatpush1.bf16.xpose.msra.mxu0 0
    %975 = vmatprep.subr.bf16.mxu0 0
    %976 = vmatpush1.bf16.xpose.msra.mxu0 0
    %977 = vmatprep.subr.bf16.mxu0 0
    %978 = vmatpush1.bf16.xpose.msra.mxu0 0
    %979 = vmatprep.mubr.bf16.mxu0 0
    %980 = vmatmul.mubr.bf16.gmra.mrb[0].mxu0 %v942
    %v981 = vpop.f32.mrb[0].mxu0
    %v982 = vadd.f32 0.0, %v981
    %v983 = vpop.f32.mrb[0].mxu0
    %v984 = vpop.f32.mrb[0].mxu0
    %v985 = vpop.f32.mrb[0].mxu0
    %986 = vdwg.mxu0
    %987 = vrot.lane.b32.xlu0 %v549, 96
    %v988 = vpop.permute.xlu0 %987
    %v990 = vsel %vm556, %v549, 0
    %v993 = vsel %vm556, %v988, 0
    %995 = vmatprep.subr.bf16.mxu0 0
    %996 = vmatpush1.bf16.xpose.msra.mxu0 %v993
    %997 = vmatprep.subr.bf16.mxu0 0
    %998 = vmatpush1.bf16.xpose.msra.mxu0 0
    %999 = vmatprep.subr.bf16.mxu0 0
    %1000 = vmatpush1.bf16.xpose.msra.mxu0 0
    %1001 = vmatprep.subr.bf16.mxu0 0
    %1002 = vmatpush1.bf16.xpose.msra.mxu0 0
    %1003 = vmatprep.subr.bf16.mxu0 0
    %1004 = vmatpush1.bf16.xpose.msra.mxu0 0
    %1005 = vmatprep.subr.bf16.mxu0 0
    %1006 = vmatpush1.bf16.xpose.msra.mxu0 0
    %1007 = vmatprep.subr.bf16.mxu0 0
    %1008 = vmatpush1.bf16.xpose.msra.mxu0 0
    %1009 = vmatprep.subr.bf16.mxu0 0
    %1010 = vmatpush1.bf16.xpose.msra.mxu0 0
    %1011 = vmatprep.subr.bf16.mxu0 0
    %1012 = vmatpush1.bf16.xpose.msra.mxu0 0
    %1013 = vmatprep.subr.bf16.mxu0 0
    %1014 = vmatpush1.bf16.xpose.msra.mxu0 0
    %1015 = vmatprep.subr.bf16.mxu0 0
    %1016 = vmatpush1.bf16.xpose.msra.mxu0 0
    %1017 = vmatprep.subr.bf16.mxu0 0
    %1018 = vmatpush1.bf16.xpose.msra.mxu0 0
    %1019 = vmatprep.subr.bf16.mxu0 0
    %1020 = vmatpush1.bf16.xpose.msra.mxu0 0
    %1021 = vmatprep.subr.bf16.mxu0 0
    %1022 = vmatpush1.bf16.xpose.msra.mxu0 0
    %1023 = vmatprep.subr.bf16.mxu0 0
    %1024 = vmatpush1.bf16.xpose.msra.mxu0 0
    %1025 = vmatprep.subr.bf16.mxu0 0
    %1026 = vmatpush1.bf16.xpose.msra.mxu0 0
    %1027 = vmatprep.mubr.bf16.mxu0 0
    %1028 = vmatmul.mubr.bf16.gmra.mrb[0].mxu0 %v990
    %v1029 = vpop.f32.mrb[0].mxu0
    %v1030 = vadd.f32 0.0, %v1029
    %v1031 = vpop.f32.mrb[0].mxu0
    %v1032 = vpop.f32.mrb[0].mxu0
    %v1033 = vpop.f32.mrb[0].mxu0
    %1034 = vdwg.mxu0
    %1035 = vrot.lane.b32.xlu0 %v551, 96
    %v1036 = vpop.permute.xlu0 %1035
    %v1038 = vsel %vm556, %v551, 0
    %v1041 = vsel %vm556, %v1036, 0
    %1043 = vmatprep.subr.bf16.mxu0 0
    %1044 = vmatpush1.bf16.xpose.msra.mxu0 %v1041
    %1045 = vmatprep.subr.bf16.mxu0 0
    %1046 = vmatpush1.bf16.xpose.msra.mxu0 0
    %1047 = vmatprep.subr.bf16.mxu0 0
    %1048 = vmatpush1.bf16.xpose.msra.mxu0 0
    %1049 = vmatprep.subr.bf16.mxu0 0
    %1050 = vmatpush1.bf16.xpose.msra.mxu0 0
    %1051 = vmatprep.subr.bf16.mxu0 0
    %1052 = vmatpush1.bf16.xpose.msra.mxu0 0
    %1053 = vmatprep.subr.bf16.mxu0 0
    %1054 = vmatpush1.bf16.xpose.msra.mxu0 0
    %1055 = vmatprep.subr.bf16.mxu0 0
    %1056 = vmatpush1.bf16.xpose.msra.mxu0 0
    %1057 = vmatprep.subr.bf16.mxu0 0
    %1058 = vmatpush1.bf16.xpose.msra.mxu0 0
    %1059 = vmatprep.subr.bf16.mxu0 0
    %1060 = vmatpush1.bf16.xpose.msra.mxu0 0
    %1061 = vmatprep.subr.bf16.mxu0 0
    %1062 = vmatpush1.bf16.xpose.msra.mxu0 0
    %1063 = vmatprep.subr.bf16.mxu0 0
    %1064 = vmatpush1.bf16.xpose.msra.mxu0 0
    %1065 = vmatprep.subr.bf16.mxu0 0
    %1066 = vmatpush1.bf16.xpose.msra.mxu0 0
    %1067 = vmatprep.subr.bf16.mxu0 0
    %1068 = vmatpush1.bf16.xpose.msra.mxu0 0
    %1069 = vmatprep.subr.bf16.mxu0 0
    %1070 = vmatpush1.bf16.xpose.msra.mxu0 0
    %1071 = vmatprep.subr.bf16.mxu0 0
    %1072 = vmatpush1.bf16.xpose.msra.mxu0 0
    %1073 = vmatprep.subr.bf16.mxu0 0
    %1074 = vmatpush1.bf16.xpose.msra.mxu0 0
    %1075 = vmatprep.mubr.bf16.mxu0 0
    %1076 = vmatmul.mubr.bf16.gmra.mrb[0].mxu0 %v1038
    %v1077 = vpop.f32.mrb[0].mxu0
    %v1078 = vadd.f32 0.0, %v1077
    %v1079 = vpop.f32.mrb[0].mxu0
    %v1080 = vpop.f32.mrb[0].mxu0
    %v1081 = vpop.f32.mrb[0].mxu0
    %1082 = vdwg.mxu0
    %1083 = vrot.lane.b32.xlu0 %v553, 96
    %v1084 = vpop.permute.xlu0 %1083
    %v1086 = vsel %vm556, %v553, 0
    %v1089 = vsel %vm556, %v1084, 0
    %1091 = vmatprep.subr.bf16.mxu0 0
    %1092 = vmatpush1.bf16.xpose.msra.mxu0 %v1089
    %1093 = vmatprep.subr.bf16.mxu0 0
    %1094 = vmatpush1.bf16.xpose.msra.mxu0 0
    %1095 = vmatprep.subr.bf16.mxu0 0
    %1096 = vmatpush1.bf16.xpose.msra.mxu0 0
    %1097 = vmatprep.subr.bf16.mxu0 0
    %1098 = vmatpush1.bf16.xpose.msra.mxu0 0
    %1099 = vmatprep.subr.bf16.mxu0 0
    %1100 = vmatpush1.bf16.xpose.msra.mxu0 0
    %1101 = vmatprep.subr.bf16.mxu0 0
    %1102 = vmatpush1.bf16.xpose.msra.mxu0 0
    %1103 = vmatprep.subr.bf16.mxu0 0
    %1104 = vmatpush1.bf16.xpose.msra.mxu0 0
    %1105 = vmatprep.subr.bf16.mxu0 0
    %1106 = vmatpush1.bf16.xpose.msra.mxu0 0
    %1107 = vmatprep.subr.bf16.mxu0 0
    %1108 = vmatpush1.bf16.xpose.msra.mxu0 0
    %1109 = vmatprep.subr.bf16.mxu0 0
    %1110 = vmatpush1.bf16.xpose.msra.mxu0 0
    %1111 = vmatprep.subr.bf16.mxu0 0
    %1112 = vmatpush1.bf16.xpose.msra.mxu0 0
    %1113 = vmatprep.subr.bf16.mxu0 0
    %1114 = vmatpush1.bf16.xpose.msra.mxu0 0
    %1115 = vmatprep.subr.bf16.mxu0 0
    %1116 = vmatpush1.bf16.xpose.msra.mxu0 0
    %1117 = vmatprep.subr.bf16.mxu0 0
    %1118 = vmatpush1.bf16.xpose.msra.mxu0 0
    %1119 = vmatprep.subr.bf16.mxu0 0
    %1120 = vmatpush1.bf16.xpose.msra.mxu0 0
    %1121 = vmatprep.subr.bf16.mxu0 0
    %1122 = vmatpush1.bf16.xpose.msra.mxu0 0
    %1123 = vmatprep.mubr.bf16.mxu0 0
    %1124 = vmatmul.mubr.bf16.gmra.mrb[0].mxu0 %v1086
    %v1125 = vpop.f32.mrb[0].mxu0
    %v1126 = vadd.f32 0.0, %v1125
    %v1127 = vpop.f32.mrb[0].mxu0
    %v1128 = vpop.f32.mrb[0].mxu0
    %v1129 = vpop.f32.mrb[0].mxu0
    %1130 = vdwg.mxu0
    %v1131 = vsel %vm556, %v598, -inf
    %1132 = vmax.xlane.f32.xlu0 %v1131
    %v1133 = vpop.xlane.xlu0 %1132
    %v1134 = vsel %vm556, %v646, -inf
    %1135 = vmax.xlane.f32.xlu0 %v1134
    %v1136 = vpop.xlane.xlu0 %1135
    %v1137 = vsel %vm556, %v694, -inf
    %1138 = vmax.xlane.f32.xlu0 %v1137
    %v1139 = vpop.xlane.xlu0 %1138
    %v1140 = vsel %vm556, %v742, -inf
    %1141 = vmax.xlane.f32.xlu0 %v1140
    %v1142 = vpop.xlane.xlu0 %1141
    %v1143 = vsel %vm556, %v790, -inf
    %1144 = vmax.xlane.f32.xlu0 %v1143
    %v1145 = vpop.xlane.xlu0 %1144
    %v1146 = vsel %vm556, %v838, -inf
    %1147 = vmax.xlane.f32.xlu0 %v1146
    %v1148 = vpop.xlane.xlu0 %1147
    %v1149 = vsel %vm556, %v886, -inf
    %1150 = vmax.xlane.f32.xlu0 %v1149
    %v1151 = vpop.xlane.xlu0 %1150
    %v1152 = vsel %vm556, %v934, -inf
    %1153 = vmax.xlane.f32.xlu0 %v1152
    %v1154 = vpop.xlane.xlu0 %1153
    %v1155 = vsel %vm556, %v982, -inf
    %1156 = vmax.xlane.f32.xlu0 %v1155
    %v1157 = vpop.xlane.xlu0 %1156
    %v1158 = vsel %vm556, %v1030, -inf
    %1159 = vmax.xlane.f32.xlu0 %v1158
    %v1160 = vpop.xlane.xlu0 %1159
    %v1161 = vsel %vm556, %v1078, -inf
    %1162 = vmax.xlane.f32.xlu0 %v1161
    %v1163 = vpop.xlane.xlu0 %1162
    %v1164 = vsel %vm556, %v1126, -inf
    %1165 = vmax.xlane.f32.xlu0 %v1164
    %v1166 = vpop.xlane.xlu0 %1165
    %v1167 = vsub.f32 %v598, %v1133
    %v1168 = vsub.f32 %v646, %v1136
    %v1169 = vsub.f32 %v694, %v1139
    %v1170 = vsub.f32 %v742, %v1142
    %v1171 = vsub.f32 %v790, %v1145
    %v1172 = vsub.f32 %v838, %v1148
    %v1173 = vsub.f32 %v886, %v1151
    %v1174 = vsub.f32 %v934, %v1154
    %v1175 = vsub.f32 %v982, %v1157
    %v1176 = vsub.f32 %v1030, %v1160
    %v1177 = vsub.f32 %v1078, %v1163
    %v1178 = vsub.f32 %v1126, %v1166
    %v1179 = vmul.f32 %v1167, 1.442695
    %v1180 = vpow.pop %v1179
    %v1181 = vmul.f32 %v1168, 1.442695
    %v1182 = vpow.pop %v1181
    %v1183 = vmul.f32 %v1169, 1.442695
    %v1184 = vpow.pop %v1183
    %v1185 = vmul.f32 %v1170, 1.442695
    %v1186 = vpow.pop %v1185
    %v1187 = vmul.f32 %v1171, 1.442695
    %v1188 = vpow.pop %v1187
    %v1189 = vmul.f32 %v1172, 1.442695
    %v1190 = vpow.pop %v1189
    %v1191 = vmul.f32 %v1173, 1.442695
    %v1192 = vpow.pop %v1191
    %v1193 = vmul.f32 %v1174, 1.442695
    %v1194 = vpow.pop %v1193
    %v1195 = vmul.f32 %v1175, 1.442695
    %v1196 = vpow.pop %v1195
    %v1197 = vmul.f32 %v1176, 1.442695
    %v1198 = vpow.pop %v1197
    %v1199 = vmul.f32 %v1177, 1.442695
    %v1200 = vpow.pop %v1199
    %v1201 = vmul.f32 %v1178, 1.442695
    %v1202 = vpow.pop %v1201
    %v1203 = vsel %vm556, %v1180, 0.0
    %1204 = vadd.xlane.f32.xlu0 %v1203
    %v1205 = vpop.xlane.xlu0 %1204
    %v1206 = vsel %vm556, %v1182, 0.0
    %1207 = vadd.xlane.f32.xlu0 %v1206
    %v1208 = vpop.xlane.xlu0 %1207
    %v1209 = vsel %vm556, %v1184, 0.0
    %1210 = vadd.xlane.f32.xlu0 %v1209
    %v1211 = vpop.xlane.xlu0 %1210
    %v1212 = vsel %vm556, %v1186, 0.0
    %1213 = vadd.xlane.f32.xlu0 %v1212
    %v1214 = vpop.xlane.xlu0 %1213
    %v1215 = vsel %vm556, %v1188, 0.0
    %1216 = vadd.xlane.f32.xlu0 %v1215
    %v1217 = vpop.xlane.xlu0 %1216
    %v1218 = vsel %vm556, %v1190, 0.0
    %1219 = vadd.xlane.f32.xlu0 %v1218
    %v1220 = vpop.xlane.xlu0 %1219
    %v1221 = vsel %vm556, %v1192, 0.0
    %1222 = vadd.xlane.f32.xlu0 %v1221
    %v1223 = vpop.xlane.xlu0 %1222
    %v1224 = vsel %vm556, %v1194, 0.0
    %1225 = vadd.xlane.f32.xlu0 %v1224
    %v1226 = vpop.xlane.xlu0 %1225
    %v1227 = vsel %vm556, %v1196, 0.0
    %1228 = vadd.xlane.f32.xlu0 %v1227
    %v1229 = vpop.xlane.xlu0 %1228
    %v1230 = vsel %vm556, %v1198, 0.0
    %1231 = vadd.xlane.f32.xlu0 %v1230
    %v1232 = vpop.xlane.xlu0 %1231
    %v1233 = vsel %vm556, %v1200, 0.0
    %1234 = vadd.xlane.f32.xlu0 %v1233
    %v1235 = vpop.xlane.xlu0 %1234
    %v1236 = vsel %vm556, %v1202, 0.0
    %1237 = vadd.xlane.f32.xlu0 %v1236
    %v1238 = vpop.xlane.xlu0 %1237
    %v1239 = vrcp.pop %v1205
    %v1240 = vrcp.pop %v1208
    %v1241 = vrcp.pop %v1211
    %v1242 = vrcp.pop %v1214
    %v1243 = vrcp.pop %v1217
    %v1244 = vrcp.pop %v1220
    %v1245 = vrcp.pop %v1223
    %v1246 = vrcp.pop %v1226
    %v1247 = vrcp.pop %v1229
    %v1248 = vrcp.pop %v1232
    %v1249 = vrcp.pop %v1235
    %v1250 = vrcp.pop %v1238
    %v1251 = vmul.f32 %v1180, %v1239
    %v1252 = vmul.f32 %v1182, %v1240
    %v1253 = vmul.f32 %v1184, %v1241
    %v1254 = vmul.f32 %v1186, %v1242
    %v1255 = vmul.f32 %v1188, %v1243
    %v1256 = vmul.f32 %v1190, %v1244
    %v1257 = vmul.f32 %v1192, %v1245
    %v1258 = vmul.f32 %v1194, %v1246
    %v1259 = vmul.f32 %v1196, %v1247
    %v1260 = vmul.f32 %v1198, %v1248
    %v1261 = vmul.f32 %v1200, %v1249
    %v1262 = vmul.f32 %v1202, %v1250
    %v1263 = vpack.c.bf16 %v1251, %v1251
    %v1264 = vpack.c.bf16 %v1252, %v1252
    %v1265 = vpack.c.bf16 %v1253, %v1253
    %v1266 = vpack.c.bf16 %v1254, %v1254
    %v1267 = vpack.c.bf16 %v1255, %v1255
    %v1268 = vpack.c.bf16 %v1256, %v1256
    %v1269 = vpack.c.bf16 %v1257, %v1257
    %v1270 = vpack.c.bf16 %v1258, %v1258
    %v1271 = vpack.c.bf16 %v1259, %v1259
    %v1272 = vpack.c.bf16 %v1260, %v1260
    %v1273 = vpack.c.bf16 %v1261, %v1261
    %v1274 = vpack.c.bf16 %v1262, %v1262
    %1275 = vrot.lane.b32.xlu0 %v530, 64
    %v1276 = vpop.permute.xlu0 %1275
    %v1278 = vsel %vm556, %v1263, 0
    %vm1280 = vcmask 1043456
    %v1282 = vsel %vm1280, %v1276, 0
    %1284 = vmatprep.subr.bf16.mxu0 0
    %1285 = vmatpush1.bf16.msra.mxu0 %v1282
    %1286 = vmatprep.subr.bf16.mxu0 0
    %1287 = vmatpush1.bf16.msra.mxu0 0
    %1288 = vmatprep.subr.bf16.mxu0 0
    %1289 = vmatpush1.bf16.msra.mxu0 0
    %1290 = vmatprep.subr.bf16.mxu0 0
    %1291 = vmatpush1.bf16.msra.mxu0 0
    %1292 = vmatprep.subr.bf16.mxu0 0
    %1293 = vmatpush1.bf16.msra.mxu0 0
    %1294 = vmatprep.subr.bf16.mxu0 0
    %1295 = vmatpush1.bf16.msra.mxu0 0
    %1296 = vmatprep.subr.bf16.mxu0 0
    %1297 = vmatpush1.bf16.msra.mxu0 0
    %1298 = vmatprep.subr.bf16.mxu0 0
    %1299 = vmatpush1.bf16.msra.mxu0 0
    %1300 = vmatprep.subr.bf16.mxu0 0
    %1301 = vmatpush1.bf16.msra.mxu0 0
    %1302 = vmatprep.subr.bf16.mxu0 0
    %1303 = vmatpush1.bf16.msra.mxu0 0
    %1304 = vmatprep.subr.bf16.mxu0 0
    %1305 = vmatpush1.bf16.msra.mxu0 0
    %1306 = vmatprep.subr.bf16.mxu0 0
    %1307 = vmatpush1.bf16.msra.mxu0 0
    %1308 = vmatprep.subr.bf16.mxu0 0
    %1309 = vmatpush1.bf16.msra.mxu0 0
    %1310 = vmatprep.subr.bf16.mxu0 0
    %1311 = vmatpush1.bf16.msra.mxu0 0
    %1312 = vmatprep.subr.bf16.mxu0 0
    %1313 = vmatpush1.bf16.msra.mxu0 0
    %1314 = vmatprep.subr.bf16.mxu0 0
    %1315 = vmatpush1.bf16.msra.mxu0 0
    %1316 = vmatprep.mubr.bf16.mxu0 0
    %1317 = vmatmul.mubr.bf16.gmra.mrb[0].mxu0 %v1278
    %v1318 = vpop.f32.mrb[0].mxu0
    %v1319 = vadd.f32 0.0, %v1318
    %v1320 = vpop.f32.mrb[0].mxu0
    %v1321 = vpop.f32.mrb[0].mxu0
    %v1322 = vpop.f32.mrb[0].mxu0
    %1323 = vdwg.mxu0
    %1324 = vrot.lane.b32.xlu0 %v531, 64
    %v1325 = vpop.permute.xlu0 %1324
    %v1327 = vsel %vm556, %v1264, 0
    %v1330 = vsel %vm1280, %v1325, 0
    %1332 = vmatprep.subr.bf16.mxu0 0
    %1333 = vmatpush1.bf16.msra.mxu0 %v1330
    %1334 = vmatprep.subr.bf16.mxu0 0
    %1335 = vmatpush1.bf16.msra.mxu0 0
    %1336 = vmatprep.subr.bf16.mxu0 0
    %1337 = vmatpush1.bf16.msra.mxu0 0
    %1338 = vmatprep.subr.bf16.mxu0 0
    %1339 = vmatpush1.bf16.msra.mxu0 0
    %1340 = vmatprep.subr.bf16.mxu0 0
    %1341 = vmatpush1.bf16.msra.mxu0 0
    %1342 = vmatprep.subr.bf16.mxu0 0
    %1343 = vmatpush1.bf16.msra.mxu0 0
    %1344 = vmatprep.subr.bf16.mxu0 0
    %1345 = vmatpush1.bf16.msra.mxu0 0
    %1346 = vmatprep.subr.bf16.mxu0 0
    %1347 = vmatpush1.bf16.msra.mxu0 0
    %1348 = vmatprep.subr.bf16.mxu0 0
    %1349 = vmatpush1.bf16.msra.mxu0 0
    %1350 = vmatprep.subr.bf16.mxu0 0
    %1351 = vmatpush1.bf16.msra.mxu0 0
    %1352 = vmatprep.subr.bf16.mxu0 0
    %1353 = vmatpush1.bf16.msra.mxu0 0
    %1354 = vmatprep.subr.bf16.mxu0 0
    %1355 = vmatpush1.bf16.msra.mxu0 0
    %1356 = vmatprep.subr.bf16.mxu0 0
    %1357 = vmatpush1.bf16.msra.mxu0 0
    %1358 = vmatprep.subr.bf16.mxu0 0
    %1359 = vmatpush1.bf16.msra.mxu0 0
    %1360 = vmatprep.subr.bf16.mxu0 0
    %1361 = vmatpush1.bf16.msra.mxu0 0
    %1362 = vmatprep.subr.bf16.mxu0 0
    %1363 = vmatpush1.bf16.msra.mxu0 0
    %1364 = vmatprep.mubr.bf16.mxu0 0
    %1365 = vmatmul.mubr.bf16.gmra.mrb[0].mxu0 %v1327
    %v1366 = vpop.f32.mrb[0].mxu0
    %v1367 = vadd.f32 0.0, %v1366
    %v1368 = vpop.f32.mrb[0].mxu0
    %v1369 = vpop.f32.mrb[0].mxu0
    %v1370 = vpop.f32.mrb[0].mxu0
    %1371 = vdwg.mxu0
    %1372 = vrot.lane.b32.xlu0 %v532, 64
    %v1373 = vpop.permute.xlu0 %1372
    %v1375 = vsel %vm556, %v1265, 0
    %v1378 = vsel %vm1280, %v1373, 0
    %1380 = vmatprep.subr.bf16.mxu0 0
    %1381 = vmatpush1.bf16.msra.mxu0 %v1378
    %1382 = vmatprep.subr.bf16.mxu0 0
    %1383 = vmatpush1.bf16.msra.mxu0 0
    %1384 = vmatprep.subr.bf16.mxu0 0
    %1385 = vmatpush1.bf16.msra.mxu0 0
    %1386 = vmatprep.subr.bf16.mxu0 0
    %1387 = vmatpush1.bf16.msra.mxu0 0
    %1388 = vmatprep.subr.bf16.mxu0 0
    %1389 = vmatpush1.bf16.msra.mxu0 0
    %1390 = vmatprep.subr.bf16.mxu0 0
    %1391 = vmatpush1.bf16.msra.mxu0 0
    %1392 = vmatprep.subr.bf16.mxu0 0
    %1393 = vmatpush1.bf16.msra.mxu0 0
    %1394 = vmatprep.subr.bf16.mxu0 0
    %1395 = vmatpush1.bf16.msra.mxu0 0
    %1396 = vmatprep.subr.bf16.mxu0 0
    %1397 = vmatpush1.bf16.msra.mxu0 0
    %1398 = vmatprep.subr.bf16.mxu0 0
    %1399 = vmatpush1.bf16.msra.mxu0 0
    %1400 = vmatprep.subr.bf16.mxu0 0
    %1401 = vmatpush1.bf16.msra.mxu0 0
    %1402 = vmatprep.subr.bf16.mxu0 0
    %1403 = vmatpush1.bf16.msra.mxu0 0
    %1404 = vmatprep.subr.bf16.mxu0 0
    %1405 = vmatpush1.bf16.msra.mxu0 0
    %1406 = vmatprep.subr.bf16.mxu0 0
    %1407 = vmatpush1.bf16.msra.mxu0 0
    %1408 = vmatprep.subr.bf16.mxu0 0
    %1409 = vmatpush1.bf16.msra.mxu0 0
    %1410 = vmatprep.subr.bf16.mxu0 0
    %1411 = vmatpush1.bf16.msra.mxu0 0
    %1412 = vmatprep.mubr.bf16.mxu0 0
    %1413 = vmatmul.mubr.bf16.gmra.mrb[0].mxu0 %v1375
    %v1414 = vpop.f32.mrb[0].mxu0
    %v1415 = vadd.f32 0.0, %v1414
    %v1416 = vpop.f32.mrb[0].mxu0
    %v1417 = vpop.f32.mrb[0].mxu0
    %v1418 = vpop.f32.mrb[0].mxu0
    %1419 = vdwg.mxu0
    %1420 = vrot.lane.b32.xlu0 %v537, 64
    %v1421 = vpop.permute.xlu0 %1420
    %v1423 = vsel %vm556, %v1266, 0
    %v1426 = vsel %vm1280, %v1421, 0
    %1428 = vmatprep.subr.bf16.mxu0 0
    %1429 = vmatpush1.bf16.msra.mxu0 %v1426
    %1430 = vmatprep.subr.bf16.mxu0 0
    %1431 = vmatpush1.bf16.msra.mxu0 0
    %1432 = vmatprep.subr.bf16.mxu0 0
    %1433 = vmatpush1.bf16.msra.mxu0 0
    %1434 = vmatprep.subr.bf16.mxu0 0
    %1435 = vmatpush1.bf16.msra.mxu0 0
    %1436 = vmatprep.subr.bf16.mxu0 0
    %1437 = vmatpush1.bf16.msra.mxu0 0
    %1438 = vmatprep.subr.bf16.mxu0 0
    %1439 = vmatpush1.bf16.msra.mxu0 0
    %1440 = vmatprep.subr.bf16.mxu0 0
    %1441 = vmatpush1.bf16.msra.mxu0 0
    %1442 = vmatprep.subr.bf16.mxu0 0
    %1443 = vmatpush1.bf16.msra.mxu0 0
    %1444 = vmatprep.subr.bf16.mxu0 0
    %1445 = vmatpush1.bf16.msra.mxu0 0
    %1446 = vmatprep.subr.bf16.mxu0 0
    %1447 = vmatpush1.bf16.msra.mxu0 0
    %1448 = vmatprep.subr.bf16.mxu0 0
    %1449 = vmatpush1.bf16.msra.mxu0 0
    %1450 = vmatprep.subr.bf16.mxu0 0
    %1451 = vmatpush1.bf16.msra.mxu0 0
    %1452 = vmatprep.subr.bf16.mxu0 0
    %1453 = vmatpush1.bf16.msra.mxu0 0
    %1454 = vmatprep.subr.bf16.mxu0 0
    %1455 = vmatpush1.bf16.msra.mxu0 0
    %1456 = vmatprep.subr.bf16.mxu0 0
    %1457 = vmatpush1.bf16.msra.mxu0 0
    %1458 = vmatprep.subr.bf16.mxu0 0
    %1459 = vmatpush1.bf16.msra.mxu0 0
    %1460 = vmatprep.mubr.bf16.mxu0 0
    %1461 = vmatmul.mubr.bf16.gmra.mrb[0].mxu0 %v1423
    %v1462 = vpop.f32.mrb[0].mxu0
    %v1463 = vadd.f32 0.0, %v1462
    %v1464 = vpop.f32.mrb[0].mxu0
    %v1465 = vpop.f32.mrb[0].mxu0
    %v1466 = vpop.f32.mrb[0].mxu0
    %1467 = vdwg.mxu0
    %1468 = vrot.lane.b32.xlu0 %v539, 64
    %v1469 = vpop.permute.xlu0 %1468
    %v1471 = vsel %vm556, %v1267, 0
    %v1474 = vsel %vm1280, %v1469, 0
    %1476 = vmatprep.subr.bf16.mxu0 0
    %1477 = vmatpush1.bf16.msra.mxu0 %v1474
    %1478 = vmatprep.subr.bf16.mxu0 0
    %1479 = vmatpush1.bf16.msra.mxu0 0
    %1480 = vmatprep.subr.bf16.mxu0 0
    %1481 = vmatpush1.bf16.msra.mxu0 0
    %1482 = vmatprep.subr.bf16.mxu0 0
    %1483 = vmatpush1.bf16.msra.mxu0 0
    %1484 = vmatprep.subr.bf16.mxu0 0
    %1485 = vmatpush1.bf16.msra.mxu0 0
    %1486 = vmatprep.subr.bf16.mxu0 0
    %1487 = vmatpush1.bf16.msra.mxu0 0
    %1488 = vmatprep.subr.bf16.mxu0 0
    %1489 = vmatpush1.bf16.msra.mxu0 0
    %1490 = vmatprep.subr.bf16.mxu0 0
    %1491 = vmatpush1.bf16.msra.mxu0 0
    %1492 = vmatprep.subr.bf16.mxu0 0
    %1493 = vmatpush1.bf16.msra.mxu0 0
    %1494 = vmatprep.subr.bf16.mxu0 0
    %1495 = vmatpush1.bf16.msra.mxu0 0
    %1496 = vmatprep.subr.bf16.mxu0 0
    %1497 = vmatpush1.bf16.msra.mxu0 0
    %1498 = vmatprep.subr.bf16.mxu0 0
    %1499 = vmatpush1.bf16.msra.mxu0 0
    %1500 = vmatprep.subr.bf16.mxu0 0
    %1501 = vmatpush1.bf16.msra.mxu0 0
    %1502 = vmatprep.subr.bf16.mxu0 0
    %1503 = vmatpush1.bf16.msra.mxu0 0
    %1504 = vmatprep.subr.bf16.mxu0 0
    %1505 = vmatpush1.bf16.msra.mxu0 0
    %1506 = vmatprep.subr.bf16.mxu0 0
    %1507 = vmatpush1.bf16.msra.mxu0 0
    %1508 = vmatprep.mubr.bf16.mxu0 0
    %1509 = vmatmul.mubr.bf16.gmra.mrb[0].mxu0 %v1471
    %v1510 = vpop.f32.mrb[0].mxu0
    %v1511 = vadd.f32 0.0, %v1510
    %v1512 = vpop.f32.mrb[0].mxu0
    %v1513 = vpop.f32.mrb[0].mxu0
    %v1514 = vpop.f32.mrb[0].mxu0
    %1515 = vdwg.mxu0
    %1516 = vrot.lane.b32.xlu0 %v541, 64
    %v1517 = vpop.permute.xlu0 %1516
    %v1519 = vsel %vm556, %v1268, 0
    %v1522 = vsel %vm1280, %v1517, 0
    %1524 = vmatprep.subr.bf16.mxu0 0
    %1525 = vmatpush1.bf16.msra.mxu0 %v1522
    %1526 = vmatprep.subr.bf16.mxu0 0
    %1527 = vmatpush1.bf16.msra.mxu0 0
    %1528 = vmatprep.subr.bf16.mxu0 0
    %1529 = vmatpush1.bf16.msra.mxu0 0
    %1530 = vmatprep.subr.bf16.mxu0 0
    %1531 = vmatpush1.bf16.msra.mxu0 0
    %1532 = vmatprep.subr.bf16.mxu0 0
    %1533 = vmatpush1.bf16.msra.mxu0 0
    %1534 = vmatprep.subr.bf16.mxu0 0
    %1535 = vmatpush1.bf16.msra.mxu0 0
    %1536 = vmatprep.subr.bf16.mxu0 0
    %1537 = vmatpush1.bf16.msra.mxu0 0
    %1538 = vmatprep.subr.bf16.mxu0 0
    %1539 = vmatpush1.bf16.msra.mxu0 0
    %1540 = vmatprep.subr.bf16.mxu0 0
    %1541 = vmatpush1.bf16.msra.mxu0 0
    %1542 = vmatprep.subr.bf16.mxu0 0
    %1543 = vmatpush1.bf16.msra.mxu0 0
    %1544 = vmatprep.subr.bf16.mxu0 0
    %1545 = vmatpush1.bf16.msra.mxu0 0
    %1546 = vmatprep.subr.bf16.mxu0 0
    %1547 = vmatpush1.bf16.msra.mxu0 0
    %1548 = vmatprep.subr.bf16.mxu0 0
    %1549 = vmatpush1.bf16.msra.mxu0 0
    %1550 = vmatprep.subr.bf16.mxu0 0
    %1551 = vmatpush1.bf16.msra.mxu0 0
    %1552 = vmatprep.subr.bf16.mxu0 0
    %1553 = vmatpush1.bf16.msra.mxu0 0
    %1554 = vmatprep.subr.bf16.mxu0 0
    %1555 = vmatpush1.bf16.msra.mxu0 0
    %1556 = vmatprep.mubr.bf16.mxu0 0
    %1557 = vmatmul.mubr.bf16.gmra.mrb[0].mxu0 %v1519
    %v1558 = vpop.f32.mrb[0].mxu0
    %v1559 = vadd.f32 0.0, %v1558
    %v1560 = vpop.f32.mrb[0].mxu0
    %v1561 = vpop.f32.mrb[0].mxu0
    %v1562 = vpop.f32.mrb[0].mxu0
    %1563 = vdwg.mxu0
    %1564 = vrot.lane.b32.xlu0 %v543, 64
    %v1565 = vpop.permute.xlu0 %1564
    %v1567 = vsel %vm556, %v1269, 0
    %v1570 = vsel %vm1280, %v1565, 0
    %1572 = vmatprep.subr.bf16.mxu0 0
    %1573 = vmatpush1.bf16.msra.mxu0 %v1570
    %1574 = vmatprep.subr.bf16.mxu0 0
    %1575 = vmatpush1.bf16.msra.mxu0 0
    %1576 = vmatprep.subr.bf16.mxu0 0
    %1577 = vmatpush1.bf16.msra.mxu0 0
    %1578 = vmatprep.subr.bf16.mxu0 0
    %1579 = vmatpush1.bf16.msra.mxu0 0
    %1580 = vmatprep.subr.bf16.mxu0 0
    %1581 = vmatpush1.bf16.msra.mxu0 0
    %1582 = vmatprep.subr.bf16.mxu0 0
    %1583 = vmatpush1.bf16.msra.mxu0 0
    %1584 = vmatprep.subr.bf16.mxu0 0
    %1585 = vmatpush1.bf16.msra.mxu0 0
    %1586 = vmatprep.subr.bf16.mxu0 0
    %1587 = vmatpush1.bf16.msra.mxu0 0
    %1588 = vmatprep.subr.bf16.mxu0 0
    %1589 = vmatpush1.bf16.msra.mxu0 0
    %1590 = vmatprep.subr.bf16.mxu0 0
    %1591 = vmatpush1.bf16.msra.mxu0 0
    %1592 = vmatprep.subr.bf16.mxu0 0
    %1593 = vmatpush1.bf16.msra.mxu0 0
    %1594 = vmatprep.subr.bf16.mxu0 0
    %1595 = vmatpush1.bf16.msra.mxu0 0
    %1596 = vmatprep.subr.bf16.mxu0 0
    %1597 = vmatpush1.bf16.msra.mxu0 0
    %1598 = vmatprep.subr.bf16.mxu0 0
    %1599 = vmatpush1.bf16.msra.mxu0 0
    %1600 = vmatprep.subr.bf16.mxu0 0
    %1601 = vmatpush1.bf16.msra.mxu0 0
    %1602 = vmatprep.subr.bf16.mxu0 0
    %1603 = vmatpush1.bf16.msra.mxu0 0
    %1604 = vmatprep.mubr.bf16.mxu0 0
    %1605 = vmatmul.mubr.bf16.gmra.mrb[0].mxu0 %v1567
    %v1606 = vpop.f32.mrb[0].mxu0
    %v1607 = vadd.f32 0.0, %v1606
    %v1608 = vpop.f32.mrb[0].mxu0
    %v1609 = vpop.f32.mrb[0].mxu0
    %v1610 = vpop.f32.mrb[0].mxu0
    %1611 = vdwg.mxu0
    %1612 = vrot.lane.b32.xlu0 %v545, 64
    %v1613 = vpop.permute.xlu0 %1612
    %v1615 = vsel %vm556, %v1270, 0
    %v1618 = vsel %vm1280, %v1613, 0
    %1620 = vmatprep.subr.bf16.mxu0 0
    %1621 = vmatpush1.bf16.msra.mxu0 %v1618
    %1622 = vmatprep.subr.bf16.mxu0 0
    %1623 = vmatpush1.bf16.msra.mxu0 0
    %1624 = vmatprep.subr.bf16.mxu0 0
    %1625 = vmatpush1.bf16.msra.mxu0 0
    %1626 = vmatprep.subr.bf16.mxu0 0
    %1627 = vmatpush1.bf16.msra.mxu0 0
    %1628 = vmatprep.subr.bf16.mxu0 0
    %1629 = vmatpush1.bf16.msra.mxu0 0
    %1630 = vmatprep.subr.bf16.mxu0 0
    %1631 = vmatpush1.bf16.msra.mxu0 0
    %1632 = vmatprep.subr.bf16.mxu0 0
    %1633 = vmatpush1.bf16.msra.mxu0 0
    %1634 = vmatprep.subr.bf16.mxu0 0
    %1635 = vmatpush1.bf16.msra.mxu0 0
    %1636 = vmatprep.subr.bf16.mxu0 0
    %1637 = vmatpush1.bf16.msra.mxu0 0
    %1638 = vmatprep.subr.bf16.mxu0 0
    %1639 = vmatpush1.bf16.msra.mxu0 0
    %1640 = vmatprep.subr.bf16.mxu0 0
    %1641 = vmatpush1.bf16.msra.mxu0 0
    %1642 = vmatprep.subr.bf16.mxu0 0
    %1643 = vmatpush1.bf16.msra.mxu0 0
    %1644 = vmatprep.subr.bf16.mxu0 0
    %1645 = vmatpush1.bf16.msra.mxu0 0
    %1646 = vmatprep.subr.bf16.mxu0 0
    %1647 = vmatpush1.bf16.msra.mxu0 0
    %1648 = vmatprep.subr.bf16.mxu0 0
    %1649 = vmatpush1.bf16.msra.mxu0 0
    %1650 = vmatprep.subr.bf16.mxu0 0
    %1651 = vmatpush1.bf16.msra.mxu0 0
    %1652 = vmatprep.mubr.bf16.mxu0 0
    %1653 = vmatmul.mubr.bf16.gmra.mrb[0].mxu0 %v1615
    %v1654 = vpop.f32.mrb[0].mxu0
    %v1655 = vadd.f32 0.0, %v1654
    %v1656 = vpop.f32.mrb[0].mxu0
    %v1657 = vpop.f32.mrb[0].mxu0
    %v1658 = vpop.f32.mrb[0].mxu0
    %1659 = vdwg.mxu0
    %1660 = vrot.lane.b32.xlu0 %v547, 64
    %v1661 = vpop.permute.xlu0 %1660
    %v1663 = vsel %vm556, %v1271, 0
    %v1666 = vsel %vm1280, %v1661, 0
    %1668 = vmatprep.subr.bf16.mxu0 0
    %1669 = vmatpush1.bf16.msra.mxu0 %v1666
    %1670 = vmatprep.subr.bf16.mxu0 0
    %1671 = vmatpush1.bf16.msra.mxu0 0
    %1672 = vmatprep.subr.bf16.mxu0 0
    %1673 = vmatpush1.bf16.msra.mxu0 0
    %1674 = vmatprep.subr.bf16.mxu0 0
    %1675 = vmatpush1.bf16.msra.mxu0 0
    %1676 = vmatprep.subr.bf16.mxu0 0
    %1677 = vmatpush1.bf16.msra.mxu0 0
    %1678 = vmatprep.subr.bf16.mxu0 0
    %1679 = vmatpush1.bf16.msra.mxu0 0
    %1680 = vmatprep.subr.bf16.mxu0 0
    %1681 = vmatpush1.bf16.msra.mxu0 0
    %1682 = vmatprep.subr.bf16.mxu0 0
    %1683 = vmatpush1.bf16.msra.mxu0 0
    %1684 = vmatprep.subr.bf16.mxu0 0
    %1685 = vmatpush1.bf16.msra.mxu0 0
    %1686 = vmatprep.subr.bf16.mxu0 0
    %1687 = vmatpush1.bf16.msra.mxu0 0
    %1688 = vmatprep.subr.bf16.mxu0 0
    %1689 = vmatpush1.bf16.msra.mxu0 0
    %1690 = vmatprep.subr.bf16.mxu0 0
    %1691 = vmatpush1.bf16.msra.mxu0 0
    %1692 = vmatprep.subr.bf16.mxu0 0
    %1693 = vmatpush1.bf16.msra.mxu0 0
    %1694 = vmatprep.subr.bf16.mxu0 0
    %1695 = vmatpush1.bf16.msra.mxu0 0
    %1696 = vmatprep.subr.bf16.mxu0 0
    %1697 = vmatpush1.bf16.msra.mxu0 0
    %1698 = vmatprep.subr.bf16.mxu0 0
    %1699 = vmatpush1.bf16.msra.mxu0 0
    %1700 = vmatprep.mubr.bf16.mxu0 0
    %1701 = vmatmul.mubr.bf16.gmra.mrb[0].mxu0 %v1663
    %v1702 = vpop.f32.mrb[0].mxu0
    %v1703 = vadd.f32 0.0, %v1702
    %v1704 = vpop.f32.mrb[0].mxu0
    %v1705 = vpop.f32.mrb[0].mxu0
    %v1706 = vpop.f32.mrb[0].mxu0
    %1707 = vdwg.mxu0
    %1708 = vrot.lane.b32.xlu0 %v549, 64
    %v1709 = vpop.permute.xlu0 %1708
    %v1711 = vsel %vm556, %v1272, 0
    %v1714 = vsel %vm1280, %v1709, 0
    %1716 = vmatprep.subr.bf16.mxu0 0
    %1717 = vmatpush1.bf16.msra.mxu0 %v1714
    %1718 = vmatprep.subr.bf16.mxu0 0
    %1719 = vmatpush1.bf16.msra.mxu0 0
    %1720 = vmatprep.subr.bf16.mxu0 0
    %1721 = vmatpush1.bf16.msra.mxu0 0
    %1722 = vmatprep.subr.bf16.mxu0 0
    %1723 = vmatpush1.bf16.msra.mxu0 0
    %1724 = vmatprep.subr.bf16.mxu0 0
    %1725 = vmatpush1.bf16.msra.mxu0 0
    %1726 = vmatprep.subr.bf16.mxu0 0
    %1727 = vmatpush1.bf16.msra.mxu0 0
    %1728 = vmatprep.subr.bf16.mxu0 0
    %1729 = vmatpush1.bf16.msra.mxu0 0
    %1730 = vmatprep.subr.bf16.mxu0 0
    %1731 = vmatpush1.bf16.msra.mxu0 0
    %1732 = vmatprep.subr.bf16.mxu0 0
    %1733 = vmatpush1.bf16.msra.mxu0 0
    %1734 = vmatprep.subr.bf16.mxu0 0
    %1735 = vmatpush1.bf16.msra.mxu0 0
    %1736 = vmatprep.subr.bf16.mxu0 0
    %1737 = vmatpush1.bf16.msra.mxu0 0
    %1738 = vmatprep.subr.bf16.mxu0 0
    %1739 = vmatpush1.bf16.msra.mxu0 0
    %1740 = vmatprep.subr.bf16.mxu0 0
    %1741 = vmatpush1.bf16.msra.mxu0 0
    %1742 = vmatprep.subr.bf16.mxu0 0
    %1743 = vmatpush1.bf16.msra.mxu0 0
    %1744 = vmatprep.subr.bf16.mxu0 0
    %1745 = vmatpush1.bf16.msra.mxu0 0
    %1746 = vmatprep.subr.bf16.mxu0 0
    %1747 = vmatpush1.bf16.msra.mxu0 0
    %1748 = vmatprep.mubr.bf16.mxu0 0
    %1749 = vmatmul.mubr.bf16.gmra.mrb[0].mxu0 %v1711
    %v1750 = vpop.f32.mrb[0].mxu0
    %v1751 = vadd.f32 0.0, %v1750
    %v1752 = vpop.f32.mrb[0].mxu0
    %v1753 = vpop.f32.mrb[0].mxu0
    %v1754 = vpop.f32.mrb[0].mxu0
    %1755 = vdwg.mxu0
    %1756 = vrot.lane.b32.xlu0 %v551, 64
    %v1757 = vpop.permute.xlu0 %1756
    %v1759 = vsel %vm556, %v1273, 0
    %v1762 = vsel %vm1280, %v1757, 0
    %1764 = vmatprep.subr.bf16.mxu0 0
    %1765 = vmatpush1.bf16.msra.mxu0 %v1762
    %1766 = vmatprep.subr.bf16.mxu0 0
    %1767 = vmatpush1.bf16.msra.mxu0 0
    %1768 = vmatprep.subr.bf16.mxu0 0
    %1769 = vmatpush1.bf16.msra.mxu0 0
    %1770 = vmatprep.subr.bf16.mxu0 0
    %1771 = vmatpush1.bf16.msra.mxu0 0
    %1772 = vmatprep.subr.bf16.mxu0 0
    %1773 = vmatpush1.bf16.msra.mxu0 0
    %1774 = vmatprep.subr.bf16.mxu0 0
    %1775 = vmatpush1.bf16.msra.mxu0 0
    %1776 = vmatprep.subr.bf16.mxu0 0
    %1777 = vmatpush1.bf16.msra.mxu0 0
    %1778 = vmatprep.subr.bf16.mxu0 0
    %1779 = vmatpush1.bf16.msra.mxu0 0
    %1780 = vmatprep.subr.bf16.mxu0 0
    %1781 = vmatpush1.bf16.msra.mxu0 0
    %1782 = vmatprep.subr.bf16.mxu0 0
    %1783 = vmatpush1.bf16.msra.mxu0 0
    %1784 = vmatprep.subr.bf16.mxu0 0
    %1785 = vmatpush1.bf16.msra.mxu0 0
    %1786 = vmatprep.subr.bf16.mxu0 0
    %1787 = vmatpush1.bf16.msra.mxu0 0
    %1788 = vmatprep.subr.bf16.mxu0 0
    %1789 = vmatpush1.bf16.msra.mxu0 0
    %1790 = vmatprep.subr.bf16.mxu0 0
    %1791 = vmatpush1.bf16.msra.mxu0 0
    %1792 = vmatprep.subr.bf16.mxu0 0
    %1793 = vmatpush1.bf16.msra.mxu0 0
    %1794 = vmatprep.subr.bf16.mxu0 0
    %1795 = vmatpush1.bf16.msra.mxu0 0
    %1796 = vmatprep.mubr.bf16.mxu0 0
    %1797 = vmatmul.mubr.bf16.gmra.mrb[0].mxu0 %v1759
    %v1798 = vpop.f32.mrb[0].mxu0
    %v1799 = vadd.f32 0.0, %v1798
    %v1800 = vpop.f32.mrb[0].mxu0
    %v1801 = vpop.f32.mrb[0].mxu0
    %v1802 = vpop.f32.mrb[0].mxu0
    %1803 = vdwg.mxu0
    %1804 = vrot.lane.b32.xlu0 %v553, 64
    %v1805 = vpop.permute.xlu0 %1804
    %v1807 = vsel %vm556, %v1274, 0
    %v1810 = vsel %vm1280, %v1805, 0
    %1812 = vmatprep.subr.bf16.mxu0 0
    %1813 = vmatpush1.bf16.msra.mxu0 %v1810
    %1814 = vmatprep.subr.bf16.mxu0 0
    %1815 = vmatpush1.bf16.msra.mxu0 0
    %1816 = vmatprep.subr.bf16.mxu0 0
    %1817 = vmatpush1.bf16.msra.mxu0 0
    %1818 = vmatprep.subr.bf16.mxu0 0
    %1819 = vmatpush1.bf16.msra.mxu0 0
    %1820 = vmatprep.subr.bf16.mxu0 0
    %1821 = vmatpush1.bf16.msra.mxu0 0
    %1822 = vmatprep.subr.bf16.mxu0 0
    %1823 = vmatpush1.bf16.msra.mxu0 0
    %1824 = vmatprep.subr.bf16.mxu0 0
    %1825 = vmatpush1.bf16.msra.mxu0 0
    %1826 = vmatprep.subr.bf16.mxu0 0
    %1827 = vmatpush1.bf16.msra.mxu0 0
    %1828 = vmatprep.subr.bf16.mxu0 0
    %1829 = vmatpush1.bf16.msra.mxu0 0
    %1830 = vmatprep.subr.bf16.mxu0 0
    %1831 = vmatpush1.bf16.msra.mxu0 0
    %1832 = vmatprep.subr.bf16.mxu0 0
    %1833 = vmatpush1.bf16.msra.mxu0 0
    %1834 = vmatprep.subr.bf16.mxu0 0
    %1835 = vmatpush1.bf16.msra.mxu0 0
    %1836 = vmatprep.subr.bf16.mxu0 0
    %1837 = vmatpush1.bf16.msra.mxu0 0
    %1838 = vmatprep.subr.bf16.mxu0 0
    %1839 = vmatpush1.bf16.msra.mxu0 0
    %1840 = vmatprep.subr.bf16.mxu0 0
    %1841 = vmatpush1.bf16.msra.mxu0 0
    %1842 = vmatprep.subr.bf16.mxu0 0
    %1843 = vmatpush1.bf16.msra.mxu0 0
    %1844 = vmatprep.mubr.bf16.mxu0 0
    %1845 = vmatmul.mubr.bf16.gmra.mrb[0].mxu0 %v1807
    %v1846 = vpop.f32.mrb[0].mxu0
    %v1847 = vadd.f32 0.0, %v1846
    %v1848 = vpop.f32.mrb[0].mxu0
    %v1849 = vpop.f32.mrb[0].mxu0
    %v1850 = vpop.f32.mrb[0].mxu0
    %1851 = vdwg.mxu0
    %1855 = vrot.lane.b32.xlu0 %v1463, 8
    %v1856 = vpop.permute.xlu0 %1855
    %1857 = vrot.lane.b32.xlu0 %v1511, 8
    %v1858 = vpop.permute.xlu0 %1857
    %1859 = vrot.lane.b32.xlu0 %v1559, 8
    %v1860 = vpop.permute.xlu0 %1859
    %1867 = vrot.lane.b32.xlu0 %v1607, 16
    %v1868 = vpop.permute.xlu0 %1867
    %1869 = vrot.lane.b32.xlu0 %v1655, 16
    %v1870 = vpop.permute.xlu0 %1869
    %1871 = vrot.lane.b32.xlu0 %v1703, 16
    %v1872 = vpop.permute.xlu0 %1871
    %1879 = vrot.lane.b32.xlu0 %v1751, 24
    %v1880 = vpop.permute.xlu0 %1879
    %1881 = vrot.lane.b32.xlu0 %v1799, 24
    %v1882 = vpop.permute.xlu0 %1881
    %1883 = vrot.lane.b32.xlu0 %v1847, 24
    %v1884 = vpop.permute.xlu0 %1883
    %v1888 = vsel %vm556, %v1319, %v1856
    %v1889 = vsel %vm556, %v1367, %v1858
    %v1890 = vsel %vm556, %v1415, %v1860
    %vm1891 = vcmask 130048
    %v1892 = vsel %vm1891, %v1888, %v1868
    %v1893 = vsel %vm1891, %v1889, %v1870
    %v1894 = vsel %vm1891, %v1890, %v1872
    %vm1895 = vcmask 195584
    %v1896 = vsel %vm1895, %v1892, %v1880
    %v1897 = vsel %vm1895, %v1893, %v1882
    %v1898 = vsel %vm1895, %v1894, %v1884
    %v1899 = vpack.c.bf16 %v1897, %v1896
    %v1900 = vpack.c.bf16 %v1898, %v1898
    %v1902 = vlaneseq
    %v1903 = vshrl.u32 %v1902, 7
    %v1904 = vsub.s32 0, %v1903
    %v1905 = vrot.slane %v187, %v1904
    %v1911 = vunpack.c.l.b16 %v183
    %v1912 = vunpack.c.l.b16 %v184
    %v1913 = vunpack.c.l.b16 %v185
    %v1914 = vunpack.c.l.b16 %v186
    %v1915 = vpack.c.b16 %v1912, %v1911
    %v1916 = vpack.c.b16 %v1914, %v1913
    %v1920 = vsel %vm397, %v1899, 0
    %v1923 = vsel %vm397, %v1900, 0
    %1925 = vmatprep.subr.bf16.mxu0 0
    %1926 = vmatpush1.bf16.msra.mxu0 %v1915
    %1927 = vmatprep.subr.bf16.mxu0 0
    %1928 = vmatpush1.bf16.msra.mxu0 %v1916
    %1929 = vmatprep.subr.bf16.mxu0 0
    %1930 = vmatpush1.bf16.msra.mxu0 0
    %1931 = vmatprep.subr.bf16.mxu0 0
    %1932 = vmatpush1.bf16.msra.mxu0 0
    %1933 = vmatprep.subr.bf16.mxu0 0
    %1934 = vmatpush1.bf16.msra.mxu0 0
    %1935 = vmatprep.subr.bf16.mxu0 0
    %1936 = vmatpush1.bf16.msra.mxu0 0
    %1937 = vmatprep.subr.bf16.mxu0 0
    %1938 = vmatpush1.bf16.msra.mxu0 0
    %1939 = vmatprep.subr.bf16.mxu0 0
    %1940 = vmatpush1.bf16.msra.mxu0 0
    %1941 = vmatprep.subr.bf16.mxu0 0
    %1942 = vmatpush1.bf16.msra.mxu0 0
    %1943 = vmatprep.subr.bf16.mxu0 0
    %1944 = vmatpush1.bf16.msra.mxu0 0
    %1945 = vmatprep.subr.bf16.mxu0 0
    %1946 = vmatpush1.bf16.msra.mxu0 0
    %1947 = vmatprep.subr.bf16.mxu0 0
    %1948 = vmatpush1.bf16.msra.mxu0 0
    %1949 = vmatprep.subr.bf16.mxu0 0
    %1950 = vmatpush1.bf16.msra.mxu0 0
    %1951 = vmatprep.subr.bf16.mxu0 0
    %1952 = vmatpush1.bf16.msra.mxu0 0
    %1953 = vmatprep.subr.bf16.mxu0 0
    %1954 = vmatpush1.bf16.msra.mxu0 0
    %1955 = vmatprep.subr.bf16.mxu0 0
    %1956 = vmatpush1.bf16.msra.mxu0 0
    %1957 = vmatprep.mubr.bf16.mxu0 0
    %1958 = vmatmul.mubr.bf16.gmra.mrb[0].mxu0 %v1920
    %v1959 = vpop.f32.mrb[0].mxu0
    %v1960 = vadd.f32 %v1905, %v1959
    %v1961 = vpop.f32.mrb[0].mxu0
    %v1962 = vpop.f32.mrb[0].mxu0
    %v1963 = vadd.f32 %v1905, %v1962
    %v1964 = vpop.f32.mrb[0].mxu0
    %1965 = vmatprep.mubr.bf16.mxu0 0
    %1966 = vmatmul.mubr.bf16.gmra.mrb[0].mxu0 %v1923
    %v1967 = vpop.f32.mrb[0].mxu0
    %v1968 = vadd.f32 %v1905, %v1967
    %v1969 = vpop.f32.mrb[0].mxu0
    %v1970 = vpop.f32.mrb[0].mxu0
    %v1971 = vpop.f32.mrb[0].mxu0
    %1972 = vdwg.mxu0
    %v1973 = vadd.f32 %v381, %v1960
    %v1974 = vadd.f32 %v386, %v1963
    %v1975 = vadd.f32 %v391, %v1968
    %v1976 = vsel %vm397, %v1973, 0.0
    %1977 = vadd.xlane.f32.xlu0 %v1976
    %v1978 = vpop.xlane.xlu0 %1977
    %v1979 = vsel %vm397, %v1974, 0.0
    %1980 = vadd.xlane.f32.xlu0 %v1979
    %v1981 = vpop.xlane.xlu0 %1980
    %v1982 = vsel %vm397, %v1975, 0.0
    %1983 = vadd.xlane.f32.xlu0 %v1982
    %v1984 = vpop.xlane.xlu0 %1983
    %v1985 = vmul.f32 %v1978, %v407
    %v1986 = vmul.f32 %v1981, %v407
    %v1987 = vmul.f32 %v1984, %v407
    %v1988 = vsub.f32 %v1973, %v1985
    %v1989 = vsub.f32 %v1974, %v1986
    %v1990 = vsub.f32 %v1975, %v1987
    %v1991 = vmul.f32 %v1988, %v1988
    %v1992 = vmul.f32 %v1989, %v1989
    %v1993 = vmul.f32 %v1990, %v1990
    %v1994 = vsel %vm397, %v1991, 0.0
    %1995 = vadd.xlane.f32.xlu0 %v1994
    %v1996 = vpop.xlane.xlu0 %1995
    %v1997 = vsel %vm397, %v1992, 0.0
    %1998 = vadd.xlane.f32.xlu0 %v1997
    %v1999 = vpop.xlane.xlu0 %1998
    %v2000 = vsel %vm397, %v1993, 0.0
    %2001 = vadd.xlane.f32.xlu0 %v2000
    %v2002 = vpop.xlane.xlu0 %2001
    %v2003 = vmul.f32 %v1996, %v407
    %v2004 = vmul.f32 %v1999, %v407
    %v2005 = vmul.f32 %v2002, %v407
    %v2006 = vadd.f32 %v2003, 1e-05
    %v2007 = vadd.f32 %v2004, 1e-05
    %v2008 = vadd.f32 %v2005, 1e-05
    %v2009 = vrsqrt.pop %v2006
    %v2010 = vrsqrt.pop %v2007
    %v2011 = vrsqrt.pop %v2008
    %v2012 = vmul.f32 %v1988, %v2009
    %v2013 = vmul.f32 %v1989, %v2010
    %v2014 = vmul.f32 %v1990, %v2011
    %v2016 = vlaneseq
    %v2017 = vshrl.u32 %v2016, 7
    %v2018 = vsub.s32 0, %v2017
    %v2019 = vrot.slane %v188, %v2018
    %v2021 = vmul.f32 %v2012, %v2019
    %v2022 = vmul.f32 %v2013, %v2019
    %v2023 = vmul.f32 %v2014, %v2019
    %v2025 = vlaneseq
    %v2026 = vshrl.u32 %v2025, 7
    %v2027 = vsub.s32 0, %v2026
    %v2028 = vrot.slane %v189, %v2027
    %v2030 = vadd.f32 %v2021, %v2028
    %v2031 = vadd.f32 %v2022, %v2028
    %v2032 = vadd.f32 %v2023, %v2028
    %v2033 = vpack.c.bf16 %v2031, %v2030
    %v2034 = vpack.c.bf16 %v2032, %v2032
    %v2036 = vlaneseq
    %v2037 = vshrl.u32 %v2036, 7
    %v2038 = vsub.s32 0, %v2037
    %v2039 = vrot.slane %v194, %v2038
    %v2045 = vunpack.c.l.b16 %v190
    %v2046 = vunpack.c.l.b16 %v191
    %v2047 = vunpack.c.l.b16 %v192
    %v2048 = vunpack.c.l.b16 %v193
    %v2049 = vpack.c.b16 %v2046, %v2045
    %v2050 = vpack.c.b16 %v2048, %v2047
    %v2054 = vsel %vm397, %v2033, 0
    %v2057 = vsel %vm397, %v2034, 0
    %2059 = vmatprep.subr.bf16.mxu0 0
    %2060 = vmatpush1.bf16.msra.mxu0 %v2049
    %2061 = vmatprep.subr.bf16.mxu0 0
    %2062 = vmatpush1.bf16.msra.mxu0 %v2050
    %2063 = vmatprep.subr.bf16.mxu0 0
    %2064 = vmatpush1.bf16.msra.mxu0 0
    %2065 = vmatprep.subr.bf16.mxu0 0
    %2066 = vmatpush1.bf16.msra.mxu0 0
    %2067 = vmatprep.subr.bf16.mxu0 0
    %2068 = vmatpush1.bf16.msra.mxu0 0
    %2069 = vmatprep.subr.bf16.mxu0 0
    %2070 = vmatpush1.bf16.msra.mxu0 0
    %2071 = vmatprep.subr.bf16.mxu0 0
    %2072 = vmatpush1.bf16.msra.mxu0 0
    %2073 = vmatprep.subr.bf16.mxu0 0
    %2074 = vmatpush1.bf16.msra.mxu0 0
    %2075 = vmatprep.subr.bf16.mxu0 0
    %2076 = vmatpush1.bf16.msra.mxu0 0
    %2077 = vmatprep.subr.bf16.mxu0 0
    %2078 = vmatpush1.bf16.msra.mxu0 0
    %2079 = vmatprep.subr.bf16.mxu0 0
    %2080 = vmatpush1.bf16.msra.mxu0 0
    %2081 = vmatprep.subr.bf16.mxu0 0
    %2082 = vmatpush1.bf16.msra.mxu0 0
    %2083 = vmatprep.subr.bf16.mxu0 0
    %2084 = vmatpush1.bf16.msra.mxu0 0
    %2085 = vmatprep.subr.bf16.mxu0 0
    %2086 = vmatpush1.bf16.msra.mxu0 0
    %2087 = vmatprep.subr.bf16.mxu0 0
    %2088 = vmatpush1.bf16.msra.mxu0 0
    %2089 = vmatprep.subr.bf16.mxu0 0
    %2090 = vmatpush1.bf16.msra.mxu0 0
    %2091 = vmatprep.mubr.bf16.mxu0 0
    %2092 = vmatmul.mubr.bf16.gmra.mrb[0].mxu0 %v2054
    %v2093 = vpop.f32.mrb[0].mxu0
    %v2094 = vadd.f32 %v2039, %v2093
    %v2095 = vpop.f32.mrb[0].mxu0
    %v2096 = vpop.f32.mrb[0].mxu0
    %v2097 = vadd.f32 %v2039, %v2096
    %v2098 = vpop.f32.mrb[0].mxu0
    %2099 = vmatprep.mubr.bf16.mxu0 0
    %2100 = vmatmul.mubr.bf16.gmra.mrb[0].mxu0 %v2057
    %v2101 = vpop.f32.mrb[0].mxu0
    %v2102 = vadd.f32 %v2039, %v2101
    %v2103 = vpop.f32.mrb[0].mxu0
    %v2104 = vpop.f32.mrb[0].mxu0
    %v2105 = vpop.f32.mrb[0].mxu0
    %2106 = vdwg.mxu0
    %v2107 = vpack.c.bf16 %v2097, %v2094
    %v2108 = vpack.c.bf16 %v2102, %v2102
    %2111 = vrot.lane.b32.xlu0 %v2107, 120
    %v2112 = vpop.permute.xlu0 %2111
    %2113 = vrot.lane.b32.xlu0 %v2108, 120
    %v2114 = vpop.permute.xlu0 %2113
    %2115 = vrot.lane.b32.xlu0 %v2107, 112
    %v2116 = vpop.permute.xlu0 %2115
    %2117 = vrot.lane.b32.xlu0 %v2108, 112
    %v2118 = vpop.permute.xlu0 %2117
    %2119 = vrot.lane.b32.xlu0 %v2107, 104
    %v2120 = vpop.permute.xlu0 %2119
    %2121 = vrot.lane.b32.xlu0 %v2108, 104
    %v2122 = vpop.permute.xlu0 %2121
    %2123 = vrot.lane.b32.xlu0 %v2107, 96
    %v2124 = vpop.permute.xlu0 %2123
    %2125 = vrot.lane.b32.xlu0 %v2108, 96
    %v2126 = vpop.permute.xlu0 %2125
    %v2128 = vsel %vm556, %v2107, 0
    %v2131 = vsel %vm556, %v2108, 0
    %v2134 = vsel %vm556, %v2124, 0
    %v2137 = vsel %vm556, %v2126, 0
    %2139 = vmatprep.subr.bf16.mxu0 0
    %2140 = vmatpush1.bf16.xpose.msra.mxu0 %v2134
    %2141 = vmatprep.subr.bf16.mxu0 0
    %2142 = vmatpush1.bf16.xpose.msra.mxu0 %v2137
    %2143 = vmatprep.subr.bf16.mxu0 0
    %2144 = vmatpush1.bf16.xpose.msra.mxu0 0
    %2145 = vmatprep.subr.bf16.mxu0 0
    %2146 = vmatpush1.bf16.xpose.msra.mxu0 0
    %2147 = vmatprep.subr.bf16.mxu0 0
    %2148 = vmatpush1.bf16.xpose.msra.mxu0 0
    %2149 = vmatprep.subr.bf16.mxu0 0
    %2150 = vmatpush1.bf16.xpose.msra.mxu0 0
    %2151 = vmatprep.subr.bf16.mxu0 0
    %2152 = vmatpush1.bf16.xpose.msra.mxu0 0
    %2153 = vmatprep.subr.bf16.mxu0 0
    %2154 = vmatpush1.bf16.xpose.msra.mxu0 0
    %2155 = vmatprep.subr.bf16.mxu0 0
    %2156 = vmatpush1.bf16.xpose.msra.mxu0 0
    %2157 = vmatprep.subr.bf16.mxu0 0
    %2158 = vmatpush1.bf16.xpose.msra.mxu0 0
    %2159 = vmatprep.subr.bf16.mxu0 0
    %2160 = vmatpush1.bf16.xpose.msra.mxu0 0
    %2161 = vmatprep.subr.bf16.mxu0 0
    %2162 = vmatpush1.bf16.xpose.msra.mxu0 0
    %2163 = vmatprep.subr.bf16.mxu0 0
    %2164 = vmatpush1.bf16.xpose.msra.mxu0 0
    %2165 = vmatprep.subr.bf16.mxu0 0
    %2166 = vmatpush1.bf16.xpose.msra.mxu0 0
    %2167 = vmatprep.subr.bf16.mxu0 0
    %2168 = vmatpush1.bf16.xpose.msra.mxu0 0
    %2169 = vmatprep.subr.bf16.mxu0 0
    %2170 = vmatpush1.bf16.xpose.msra.mxu0 0
    %2171 = vmatprep.mubr.bf16.mxu0 0
    %2172 = vmatmul.mubr.bf16.gmra.mrb[0].mxu0 %v2128
    %v2173 = vpop.f32.mrb[0].mxu0
    %v2174 = vadd.f32 %v394, %v2173
    %v2175 = vpop.f32.mrb[0].mxu0
    %v2176 = vpop.f32.mrb[0].mxu0
    %v2177 = vadd.f32 %v395, %v2176
    %v2178 = vpop.f32.mrb[0].mxu0
    %2179 = vmatprep.mubr.bf16.mxu0 0
    %2180 = vmatmul.mubr.bf16.gmra.mrb[0].mxu0 %v2131
    %v2181 = vpop.f32.mrb[0].mxu0
    %v2182 = vadd.f32 %v396, %v2181
    %v2183 = vpop.f32.mrb[0].mxu0
    %v2184 = vpop.f32.mrb[0].mxu0
    %v2185 = vpop.f32.mrb[0].mxu0
    %2186 = vdwg.mxu0
    %2187 = vrot.lane.b32.xlu0 %v2112, 96
    %v2188 = vpop.permute.xlu0 %2187
    %2189 = vrot.lane.b32.xlu0 %v2114, 96
    %v2190 = vpop.permute.xlu0 %2189
    %v2192 = vsel %vm556, %v2112, 0
    %v2195 = vsel %vm556, %v2114, 0
    %v2198 = vsel %vm556, %v2188, 0
    %v2201 = vsel %vm556, %v2190, 0
    %2203 = vmatprep.subr.bf16.mxu0 0
    %2204 = vmatpush1.bf16.xpose.msra.mxu0 %v2198
    %2205 = vmatprep.subr.bf16.mxu0 0
    %2206 = vmatpush1.bf16.xpose.msra.mxu0 %v2201
    %2207 = vmatprep.subr.bf16.mxu0 0
    %2208 = vmatpush1.bf16.xpose.msra.mxu0 0
    %2209 = vmatprep.subr.bf16.mxu0 0
    %2210 = vmatpush1.bf16.xpose.msra.mxu0 0
    %2211 = vmatprep.subr.bf16.mxu0 0
    %2212 = vmatpush1.bf16.xpose.msra.mxu0 0
    %2213 = vmatprep.subr.bf16.mxu0 0
    %2214 = vmatpush1.bf16.xpose.msra.mxu0 0
    %2215 = vmatprep.subr.bf16.mxu0 0
    %2216 = vmatpush1.bf16.xpose.msra.mxu0 0
    %2217 = vmatprep.subr.bf16.mxu0 0
    %2218 = vmatpush1.bf16.xpose.msra.mxu0 0
    %2219 = vmatprep.subr.bf16.mxu0 0
    %2220 = vmatpush1.bf16.xpose.msra.mxu0 0
    %2221 = vmatprep.subr.bf16.mxu0 0
    %2222 = vmatpush1.bf16.xpose.msra.mxu0 0
    %2223 = vmatprep.subr.bf16.mxu0 0
    %2224 = vmatpush1.bf16.xpose.msra.mxu0 0
    %2225 = vmatprep.subr.bf16.mxu0 0
    %2226 = vmatpush1.bf16.xpose.msra.mxu0 0
    %2227 = vmatprep.subr.bf16.mxu0 0
    %2228 = vmatpush1.bf16.xpose.msra.mxu0 0
    %2229 = vmatprep.subr.bf16.mxu0 0
    %2230 = vmatpush1.bf16.xpose.msra.mxu0 0
    %2231 = vmatprep.subr.bf16.mxu0 0
    %2232 = vmatpush1.bf16.xpose.msra.mxu0 0
    %2233 = vmatprep.subr.bf16.mxu0 0
    %2234 = vmatpush1.bf16.xpose.msra.mxu0 0
    %2235 = vmatprep.mubr.bf16.mxu0 0
    %2236 = vmatmul.mubr.bf16.gmra.mrb[0].mxu0 %v2192
    %v2237 = vpop.f32.mrb[0].mxu0
    %v2238 = vadd.f32 %v394, %v2237
    %v2239 = vpop.f32.mrb[0].mxu0
    %v2240 = vpop.f32.mrb[0].mxu0
    %v2241 = vadd.f32 %v395, %v2240
    %v2242 = vpop.f32.mrb[0].mxu0
    %2243 = vmatprep.mubr.bf16.mxu0 0
    %2244 = vmatmul.mubr.bf16.gmra.mrb[0].mxu0 %v2195
    %v2245 = vpop.f32.mrb[0].mxu0
    %v2246 = vadd.f32 %v396, %v2245
    %v2247 = vpop.f32.mrb[0].mxu0
    %v2248 = vpop.f32.mrb[0].mxu0
    %v2249 = vpop.f32.mrb[0].mxu0
    %2250 = vdwg.mxu0
    %2251 = vrot.lane.b32.xlu0 %v2116, 96
    %v2252 = vpop.permute.xlu0 %2251
    %2253 = vrot.lane.b32.xlu0 %v2118, 96
    %v2254 = vpop.permute.xlu0 %2253
    %v2256 = vsel %vm556, %v2116, 0
    %v2259 = vsel %vm556, %v2118, 0
    %v2262 = vsel %vm556, %v2252, 0
    %v2265 = vsel %vm556, %v2254, 0
    %2267 = vmatprep.subr.bf16.mxu0 0
    %2268 = vmatpush1.bf16.xpose.msra.mxu0 %v2262
    %2269 = vmatprep.subr.bf16.mxu0 0
    %2270 = vmatpush1.bf16.xpose.msra.mxu0 %v2265
    %2271 = vmatprep.subr.bf16.mxu0 0
    %2272 = vmatpush1.bf16.xpose.msra.mxu0 0
    %2273 = vmatprep.subr.bf16.mxu0 0
    %2274 = vmatpush1.bf16.xpose.msra.mxu0 0
    %2275 = vmatprep.subr.bf16.mxu0 0
    %2276 = vmatpush1.bf16.xpose.msra.mxu0 0
    %2277 = vmatprep.subr.bf16.mxu0 0
    %2278 = vmatpush1.bf16.xpose.msra.mxu0 0
    %2279 = vmatprep.subr.bf16.mxu0 0
    %2280 = vmatpush1.bf16.xpose.msra.mxu0 0
    %2281 = vmatprep.subr.bf16.mxu0 0
    %2282 = vmatpush1.bf16.xpose.msra.mxu0 0
    %2283 = vmatprep.subr.bf16.mxu0 0
    %2284 = vmatpush1.bf16.xpose.msra.mxu0 0
    %2285 = vmatprep.subr.bf16.mxu0 0
    %2286 = vmatpush1.bf16.xpose.msra.mxu0 0
    %2287 = vmatprep.subr.bf16.mxu0 0
    %2288 = vmatpush1.bf16.xpose.msra.mxu0 0
    %2289 = vmatprep.subr.bf16.mxu0 0
    %2290 = vmatpush1.bf16.xpose.msra.mxu0 0
    %2291 = vmatprep.subr.bf16.mxu0 0
    %2292 = vmatpush1.bf16.xpose.msra.mxu0 0
    %2293 = vmatprep.subr.bf16.mxu0 0
    %2294 = vmatpush1.bf16.xpose.msra.mxu0 0
    %2295 = vmatprep.subr.bf16.mxu0 0
    %2296 = vmatpush1.bf16.xpose.msra.mxu0 0
    %2297 = vmatprep.subr.bf16.mxu0 0
    %2298 = vmatpush1.bf16.xpose.msra.mxu0 0
    %2299 = vmatprep.mubr.bf16.mxu0 0
    %2300 = vmatmul.mubr.bf16.gmra.mrb[0].mxu0 %v2256
    %v2301 = vpop.f32.mrb[0].mxu0
    %v2302 = vadd.f32 %v394, %v2301
    %v2303 = vpop.f32.mrb[0].mxu0
    %v2304 = vpop.f32.mrb[0].mxu0
    %v2305 = vadd.f32 %v395, %v2304
    %v2306 = vpop.f32.mrb[0].mxu0
    %2307 = vmatprep.mubr.bf16.mxu0 0
    %2308 = vmatmul.mubr.bf16.gmra.mrb[0].mxu0 %v2259
    %v2309 = vpop.f32.mrb[0].mxu0
    %v2310 = vadd.f32 %v396, %v2309
    %v2311 = vpop.f32.mrb[0].mxu0
    %v2312 = vpop.f32.mrb[0].mxu0
    %v2313 = vpop.f32.mrb[0].mxu0
    %2314 = vdwg.mxu0
    %2315 = vrot.lane.b32.xlu0 %v2120, 96
    %v2316 = vpop.permute.xlu0 %2315
    %2317 = vrot.lane.b32.xlu0 %v2122, 96
    %v2318 = vpop.permute.xlu0 %2317
    %v2320 = vsel %vm556, %v2120, 0
    %v2323 = vsel %vm556, %v2122, 0
    %v2326 = vsel %vm556, %v2316, 0
    %v2329 = vsel %vm556, %v2318, 0
    %2331 = vmatprep.subr.bf16.mxu0 0
    %2332 = vmatpush1.bf16.xpose.msra.mxu0 %v2326
    %2333 = vmatprep.subr.bf16.mxu0 0
    %2334 = vmatpush1.bf16.xpose.msra.mxu0 %v2329
    %2335 = vmatprep.subr.bf16.mxu0 0
    %2336 = vmatpush1.bf16.xpose.msra.mxu0 0
    %2337 = vmatprep.subr.bf16.mxu0 0
    %2338 = vmatpush1.bf16.xpose.msra.mxu0 0
    %2339 = vmatprep.subr.bf16.mxu0 0
    %2340 = vmatpush1.bf16.xpose.msra.mxu0 0
    %2341 = vmatprep.subr.bf16.mxu0 0
    %2342 = vmatpush1.bf16.xpose.msra.mxu0 0
    %2343 = vmatprep.subr.bf16.mxu0 0
    %2344 = vmatpush1.bf16.xpose.msra.mxu0 0
    %2345 = vmatprep.subr.bf16.mxu0 0
    %2346 = vmatpush1.bf16.xpose.msra.mxu0 0
    %2347 = vmatprep.subr.bf16.mxu0 0
    %2348 = vmatpush1.bf16.xpose.msra.mxu0 0
    %2349 = vmatprep.subr.bf16.mxu0 0
    %2350 = vmatpush1.bf16.xpose.msra.mxu0 0
    %2351 = vmatprep.subr.bf16.mxu0 0
    %2352 = vmatpush1.bf16.xpose.msra.mxu0 0
    %2353 = vmatprep.subr.bf16.mxu0 0
    %2354 = vmatpush1.bf16.xpose.msra.mxu0 0
    %2355 = vmatprep.subr.bf16.mxu0 0
    %2356 = vmatpush1.bf16.xpose.msra.mxu0 0
    %2357 = vmatprep.subr.bf16.mxu0 0
    %2358 = vmatpush1.bf16.xpose.msra.mxu0 0
    %2359 = vmatprep.subr.bf16.mxu0 0
    %2360 = vmatpush1.bf16.xpose.msra.mxu0 0
    %2361 = vmatprep.subr.bf16.mxu0 0
    %2362 = vmatpush1.bf16.xpose.msra.mxu0 0
    %2363 = vmatprep.mubr.bf16.mxu0 0
    %2364 = vmatmul.mubr.bf16.gmra.mrb[0].mxu0 %v2320
    %v2365 = vpop.f32.mrb[0].mxu0
    %v2366 = vadd.f32 %v394, %v2365
    %v2367 = vpop.f32.mrb[0].mxu0
    %v2368 = vpop.f32.mrb[0].mxu0
    %v2369 = vadd.f32 %v395, %v2368
    %v2370 = vpop.f32.mrb[0].mxu0
    %2371 = vmatprep.mubr.bf16.mxu0 0
    %2372 = vmatmul.mubr.bf16.gmra.mrb[0].mxu0 %v2323
    %v2373 = vpop.f32.mrb[0].mxu0
    %v2374 = vadd.f32 %v396, %v2373
    %v2375 = vpop.f32.mrb[0].mxu0
    %v2376 = vpop.f32.mrb[0].mxu0
    %v2377 = vpop.f32.mrb[0].mxu0
    %2378 = vdwg.mxu0
    %v2379 = vsel %vm1895, %v2174, -inf
    %2380 = vmax.xlane.f32.xlu0 %v2379
    %v2381 = vpop.xlane.xlu0 %2380
    %v2382 = vsel %vm1895, %v2177, -inf
    %2383 = vmax.xlane.f32.xlu0 %v2382
    %v2384 = vpop.xlane.xlu0 %2383
    %v2385 = vsel %vm1895, %v2182, -inf
    %2386 = vmax.xlane.f32.xlu0 %v2385
    %v2387 = vpop.xlane.xlu0 %2386
    %v2388 = vsel %vm1895, %v2238, -inf
    %2389 = vmax.xlane.f32.xlu0 %v2388
    %v2390 = vpop.xlane.xlu0 %2389
    %v2391 = vsel %vm1895, %v2241, -inf
    %2392 = vmax.xlane.f32.xlu0 %v2391
    %v2393 = vpop.xlane.xlu0 %2392
    %v2394 = vsel %vm1895, %v2246, -inf
    %2395 = vmax.xlane.f32.xlu0 %v2394
    %v2396 = vpop.xlane.xlu0 %2395
    %v2397 = vsel %vm1895, %v2302, -inf
    %2398 = vmax.xlane.f32.xlu0 %v2397
    %v2399 = vpop.xlane.xlu0 %2398
    %v2400 = vsel %vm1895, %v2305, -inf
    %2401 = vmax.xlane.f32.xlu0 %v2400
    %v2402 = vpop.xlane.xlu0 %2401
    %v2403 = vsel %vm1895, %v2310, -inf
    %2404 = vmax.xlane.f32.xlu0 %v2403
    %v2405 = vpop.xlane.xlu0 %2404
    %v2406 = vsel %vm1895, %v2366, -inf
    %2407 = vmax.xlane.f32.xlu0 %v2406
    %v2408 = vpop.xlane.xlu0 %2407
    %v2409 = vsel %vm1895, %v2369, -inf
    %2410 = vmax.xlane.f32.xlu0 %v2409
    %v2411 = vpop.xlane.xlu0 %2410
    %v2412 = vsel %vm1895, %v2374, -inf
    %2413 = vmax.xlane.f32.xlu0 %v2412
    %v2414 = vpop.xlane.xlu0 %2413
    %v2415 = vsub.f32 %v2174, %v2381
    %v2416 = vsub.f32 %v2177, %v2384
    %v2417 = vsub.f32 %v2182, %v2387
    %v2418 = vsub.f32 %v2238, %v2390
    %v2419 = vsub.f32 %v2241, %v2393
    %v2420 = vsub.f32 %v2246, %v2396
    %v2421 = vsub.f32 %v2302, %v2399
    %v2422 = vsub.f32 %v2305, %v2402
    %v2423 = vsub.f32 %v2310, %v2405
    %v2424 = vsub.f32 %v2366, %v2408
    %v2425 = vsub.f32 %v2369, %v2411
    %v2426 = vsub.f32 %v2374, %v2414
    %v2427 = vmul.f32 %v2415, 1.442695
    %v2428 = vpow.pop %v2427
    %v2429 = vmul.f32 %v2416, 1.442695
    %v2430 = vpow.pop %v2429
    %v2431 = vmul.f32 %v2417, 1.442695
    %v2432 = vpow.pop %v2431
    %v2433 = vmul.f32 %v2418, 1.442695
    %v2434 = vpow.pop %v2433
    %v2435 = vmul.f32 %v2419, 1.442695
    %v2436 = vpow.pop %v2435
    %v2437 = vmul.f32 %v2420, 1.442695
    %v2438 = vpow.pop %v2437
    %v2439 = vmul.f32 %v2421, 1.442695
    %v2440 = vpow.pop %v2439
    %v2441 = vmul.f32 %v2422, 1.442695
    %v2442 = vpow.pop %v2441
    %v2443 = vmul.f32 %v2423, 1.442695
    %v2444 = vpow.pop %v2443
    %v2445 = vmul.f32 %v2424, 1.442695
    %v2446 = vpow.pop %v2445
    %v2447 = vmul.f32 %v2425, 1.442695
    %v2448 = vpow.pop %v2447
    %v2449 = vmul.f32 %v2426, 1.442695
    %v2450 = vpow.pop %v2449
    %v2451 = vsel %vm1895, %v2428, 0.0
    %2452 = vadd.xlane.f32.xlu0 %v2451
    %v2453 = vpop.xlane.xlu0 %2452
    %v2454 = vsel %vm1895, %v2430, 0.0
    %2455 = vadd.xlane.f32.xlu0 %v2454
    %v2456 = vpop.xlane.xlu0 %2455
    %v2457 = vsel %vm1895, %v2432, 0.0
    %2458 = vadd.xlane.f32.xlu0 %v2457
    %v2459 = vpop.xlane.xlu0 %2458
    %v2460 = vsel %vm1895, %v2434, 0.0
    %2461 = vadd.xlane.f32.xlu0 %v2460
    %v2462 = vpop.xlane.xlu0 %2461
    %v2463 = vsel %vm1895, %v2436, 0.0
    %2464 = vadd.xlane.f32.xlu0 %v2463
    %v2465 = vpop.xlane.xlu0 %2464
    %v2466 = vsel %vm1895, %v2438, 0.0
    %2467 = vadd.xlane.f32.xlu0 %v2466
    %v2468 = vpop.xlane.xlu0 %2467
    %v2469 = vsel %vm1895, %v2440, 0.0
    %2470 = vadd.xlane.f32.xlu0 %v2469
    %v2471 = vpop.xlane.xlu0 %2470
    %v2472 = vsel %vm1895, %v2442, 0.0
    %2473 = vadd.xlane.f32.xlu0 %v2472
    %v2474 = vpop.xlane.xlu0 %2473
    %v2475 = vsel %vm1895, %v2444, 0.0
    %2476 = vadd.xlane.f32.xlu0 %v2475
    %v2477 = vpop.xlane.xlu0 %2476
    %v2478 = vsel %vm1895, %v2446, 0.0
    %2479 = vadd.xlane.f32.xlu0 %v2478
    %v2480 = vpop.xlane.xlu0 %2479
    %v2481 = vsel %vm1895, %v2448, 0.0
    %2482 = vadd.xlane.f32.xlu0 %v2481
    %v2483 = vpop.xlane.xlu0 %2482
    %v2484 = vsel %vm1895, %v2450, 0.0
    %2485 = vadd.xlane.f32.xlu0 %v2484
    %v2486 = vpop.xlane.xlu0 %2485
    %v2487 = vrcp.pop %v2453
    %v2488 = vrcp.pop %v2456
    %v2489 = vrcp.pop %v2459
    %v2490 = vrcp.pop %v2462
    %v2491 = vrcp.pop %v2465
    %v2492 = vrcp.pop %v2468
    %v2493 = vrcp.pop %v2471
    %v2494 = vrcp.pop %v2474
    %v2495 = vrcp.pop %v2477
    %v2496 = vrcp.pop %v2480
    %v2497 = vrcp.pop %v2483
    %v2498 = vrcp.pop %v2486
    %v2499 = vmul.f32 %v2428, %v2487
    %v2500 = vmul.f32 %v2430, %v2488
    %v2501 = vmul.f32 %v2432, %v2489
    %v2502 = vmul.f32 %v2434, %v2490
    %v2503 = vmul.f32 %v2436, %v2491
    %v2504 = vmul.f32 %v2438, %v2492
    %v2505 = vmul.f32 %v2440, %v2493
    %v2506 = vmul.f32 %v2442, %v2494
    %v2507 = vmul.f32 %v2444, %v2495
    %v2508 = vmul.f32 %v2446, %v2496
    %v2509 = vmul.f32 %v2448, %v2497
    %v2510 = vmul.f32 %v2450, %v2498
    %v2511 = vpack.c.bf16 %v2500, %v2499
    %v2512 = vpack.c.bf16 %v2501, %v2501
    %v2513 = vpack.c.bf16 %v2503, %v2502
    %v2514 = vpack.c.bf16 %v2504, %v2504
    %v2515 = vpack.c.bf16 %v2506, %v2505
    %v2516 = vpack.c.bf16 %v2507, %v2507
    %v2517 = vpack.c.bf16 %v2509, %v2508
    %v2518 = vpack.c.bf16 %v2510, %v2510
    %2519 = vrot.lane.b32.xlu0 %v2107, 64
    %v2520 = vpop.permute.xlu0 %2519
    %2521 = vrot.lane.b32.xlu0 %v2108, 64
    %v2522 = vpop.permute.xlu0 %2521
    %v2525 = vsel %vm1895, %v2511, 0
    %v2528 = vsel %vm1895, %v2512, 0
    %v2531 = vsel %vm1280, %v2522, 0
    %2533 = vmatprep.subr.bf16.mxu0 0
    %2534 = vmatpush1.bf16.msra.mxu0 %v2520
    %2535 = vmatprep.subr.bf16.mxu0 0
    %2536 = vmatpush1.bf16.msra.mxu0 %v2531
    %2537 = vmatprep.subr.bf16.mxu0 0
    %2538 = vmatpush1.bf16.msra.mxu0 0
    %2539 = vmatprep.subr.bf16.mxu0 0
    %2540 = vmatpush1.bf16.msra.mxu0 0
    %2541 = vmatprep.subr.bf16.mxu0 0
    %2542 = vmatpush1.bf16.msra.mxu0 0
    %2543 = vmatprep.subr.bf16.mxu0 0
    %2544 = vmatpush1.bf16.msra.mxu0 0
    %2545 = vmatprep.subr.bf16.mxu0 0
    %2546 = vmatpush1.bf16.msra.mxu0 0
    %2547 = vmatprep.subr.bf16.mxu0 0
    %2548 = vmatpush1.bf16.msra.mxu0 0
    %2549 = vmatprep.subr.bf16.mxu0 0
    %2550 = vmatpush1.bf16.msra.mxu0 0
    %2551 = vmatprep.subr.bf16.mxu0 0
    %2552 = vmatpush1.bf16.msra.mxu0 0
    %2553 = vmatprep.subr.bf16.mxu0 0
    %2554 = vmatpush1.bf16.msra.mxu0 0
    %2555 = vmatprep.subr.bf16.mxu0 0
    %2556 = vmatpush1.bf16.msra.mxu0 0
    %2557 = vmatprep.subr.bf16.mxu0 0
    %2558 = vmatpush1.bf16.msra.mxu0 0
    %2559 = vmatprep.subr.bf16.mxu0 0
    %2560 = vmatpush1.bf16.msra.mxu0 0
    %2561 = vmatprep.subr.bf16.mxu0 0
    %2562 = vmatpush1.bf16.msra.mxu0 0
    %2563 = vmatprep.subr.bf16.mxu0 0
    %2564 = vmatpush1.bf16.msra.mxu0 0
    %2565 = vmatprep.mubr.bf16.mxu0 0
    %2566 = vmatmul.mubr.bf16.gmra.mrb[0].mxu0 %v2525
    %v2567 = vpop.f32.mrb[0].mxu0
    %v2568 = vadd.f32 0.0, %v2567
    %v2569 = vpop.f32.mrb[0].mxu0
    %v2570 = vpop.f32.mrb[0].mxu0
    %v2571 = vadd.f32 0.0, %v2570
    %v2572 = vpop.f32.mrb[0].mxu0
    %2573 = vmatprep.mubr.bf16.mxu0 0
    %2574 = vmatmul.mubr.bf16.gmra.mrb[0].mxu0 %v2528
    %v2575 = vpop.f32.mrb[0].mxu0
    %v2576 = vadd.f32 0.0, %v2575
    %v2577 = vpop.f32.mrb[0].mxu0
    %v2578 = vpop.f32.mrb[0].mxu0
    %v2579 = vpop.f32.mrb[0].mxu0
    %2580 = vdwg.mxu0
    %2581 = vrot.lane.b32.xlu0 %v2112, 64
    %v2582 = vpop.permute.xlu0 %2581
    %2583 = vrot.lane.b32.xlu0 %v2114, 64
    %v2584 = vpop.permute.xlu0 %2583
    %v2587 = vsel %vm1895, %v2513, 0
    %v2590 = vsel %vm1895, %v2514, 0
    %v2593 = vsel %vm1280, %v2584, 0
    %2595 = vmatprep.subr.bf16.mxu0 0
    %2596 = vmatpush1.bf16.msra.mxu0 %v2582
    %2597 = vmatprep.subr.bf16.mxu0 0
    %2598 = vmatpush1.bf16.msra.mxu0 %v2593
    %2599 = vmatprep.subr.bf16.mxu0 0
    %2600 = vmatpush1.bf16.msra.mxu0 0
    %2601 = vmatprep.subr.bf16.mxu0 0
    %2602 = vmatpush1.bf16.msra.mxu0 0
    %2603 = vmatprep.subr.bf16.mxu0 0
    %2604 = vmatpush1.bf16.msra.mxu0 0
    %2605 = vmatprep.subr.bf16.mxu0 0
    %2606 = vmatpush1.bf16.msra.mxu0 0
    %2607 = vmatprep.subr.bf16.mxu0 0
    %2608 = vmatpush1.bf16.msra.mxu0 0
    %2609 = vmatprep.subr.bf16.mxu0 0
    %2610 = vmatpush1.bf16.msra.mxu0 0
    %2611 = vmatprep.subr.bf16.mxu0 0
    %2612 = vmatpush1.bf16.msra.mxu0 0
    %2613 = vmatprep.subr.bf16.mxu0 0
    %2614 = vmatpush1.bf16.msra.mxu0 0
    %2615 = vmatprep.subr.bf16.mxu0 0
    %2616 = vmatpush1.bf16.msra.mxu0 0
    %2617 = vmatprep.subr.bf16.mxu0 0
    %2618 = vmatpush1.bf16.msra.mxu0 0
    %2619 = vmatprep.subr.bf16.mxu0 0
    %2620 = vmatpush1.bf16.msra.mxu0 0
    %2621 = vmatprep.subr.bf16.mxu0 0
    %2622 = vmatpush1.bf16.msra.mxu0 0
    %2623 = vmatprep.subr.bf16.mxu0 0
    %2624 = vmatpush1.bf16.msra.mxu0 0
    %2625 = vmatprep.subr.bf16.mxu0 0
    %2626 = vmatpush1.bf16.msra.mxu0 0
    %2627 = vmatprep.mubr.bf16.mxu0 0
    %2628 = vmatmul.mubr.bf16.gmra.mrb[0].mxu0 %v2587
    %v2629 = vpop.f32.mrb[0].mxu0
    %v2630 = vadd.f32 0.0, %v2629
    %v2631 = vpop.f32.mrb[0].mxu0
    %v2632 = vpop.f32.mrb[0].mxu0
    %v2633 = vadd.f32 0.0, %v2632
    %v2634 = vpop.f32.mrb[0].mxu0
    %2635 = vmatprep.mubr.bf16.mxu0 0
    %2636 = vmatmul.mubr.bf16.gmra.mrb[0].mxu0 %v2590
    %v2637 = vpop.f32.mrb[0].mxu0
    %v2638 = vadd.f32 0.0, %v2637
    %v2639 = vpop.f32.mrb[0].mxu0
    %v2640 = vpop.f32.mrb[0].mxu0
    %v2641 = vpop.f32.mrb[0].mxu0
    %2642 = vdwg.mxu0
    %2643 = vrot.lane.b32.xlu0 %v2116, 64
    %v2644 = vpop.permute.xlu0 %2643
    %2645 = vrot.lane.b32.xlu0 %v2118, 64
    %v2646 = vpop.permute.xlu0 %2645
    %v2649 = vsel %vm1895, %v2515, 0
    %v2652 = vsel %vm1895, %v2516, 0
    %v2655 = vsel %vm1280, %v2646, 0
    %2657 = vmatprep.subr.bf16.mxu0 0
    %2658 = vmatpush1.bf16.msra.mxu0 %v2644
    %2659 = vmatprep.subr.bf16.mxu0 0
    %2660 = vmatpush1.bf16.msra.mxu0 %v2655
    %2661 = vmatprep.subr.bf16.mxu0 0
    %2662 = vmatpush1.bf16.msra.mxu0 0
    %2663 = vmatprep.subr.bf16.mxu0 0
    %2664 = vmatpush1.bf16.msra.mxu0 0
    %2665 = vmatprep.subr.bf16.mxu0 0
    %2666 = vmatpush1.bf16.msra.mxu0 0
    %2667 = vmatprep.subr.bf16.mxu0 0
    %2668 = vmatpush1.bf16.msra.mxu0 0
    %2669 = vmatprep.subr.bf16.mxu0 0
    %2670 = vmatpush1.bf16.msra.mxu0 0
    %2671 = vmatprep.subr.bf16.mxu0 0
    %2672 = vmatpush1.bf16.msra.mxu0 0
    %2673 = vmatprep.subr.bf16.mxu0 0
    %2674 = vmatpush1.bf16.msra.mxu0 0
    %2675 = vmatprep.subr.bf16.mxu0 0
    %2676 = vmatpush1.bf16.msra.mxu0 0
    %2677 = vmatprep.subr.bf16.mxu0 0
    %2678 = vmatpush1.bf16.msra.mxu0 0
    %2679 = vmatprep.subr.bf16.mxu0 0
    %2680 = vmatpush1.bf16.msra.mxu0 0
    %2681 = vmatprep.subr.bf16.mxu0 0
    %2682 = vmatpush1.bf16.msra.mxu0 0
    %2683 = vmatprep.subr.bf16.mxu0 0
    %2684 = vmatpush1.bf16.msra.mxu0 0
    %2685 = vmatprep.subr.bf16.mxu0 0
    %2686 = vmatpush1.bf16.msra.mxu0 0
    %2687 = vmatprep.subr.bf16.mxu0 0
    %2688 = vmatpush1.bf16.msra.mxu0 0
    %2689 = vmatprep.mubr.bf16.mxu0 0
    %2690 = vmatmul.mubr.bf16.gmra.mrb[0].mxu0 %v2649
    %v2691 = vpop.f32.mrb[0].mxu0
    %v2692 = vadd.f32 0.0, %v2691
    %v2693 = vpop.f32.mrb[0].mxu0
    %v2694 = vpop.f32.mrb[0].mxu0
    %v2695 = vadd.f32 0.0, %v2694
    %v2696 = vpop.f32.mrb[0].mxu0
    %2697 = vmatprep.mubr.bf16.mxu0 0
    %2698 = vmatmul.mubr.bf16.gmra.mrb[0].mxu0 %v2652
    %v2699 = vpop.f32.mrb[0].mxu0
    %v2700 = vadd.f32 0.0, %v2699
    %v2701 = vpop.f32.mrb[0].mxu0
    %v2702 = vpop.f32.mrb[0].mxu0
    %v2703 = vpop.f32.mrb[0].mxu0
    %2704 = vdwg.mxu0
    %2705 = vrot.lane.b32.xlu0 %v2120, 64
    %v2706 = vpop.permute.xlu0 %2705
    %2707 = vrot.lane.b32.xlu0 %v2122, 64
    %v2708 = vpop.permute.xlu0 %2707
    %v2711 = vsel %vm1895, %v2517, 0
    %v2714 = vsel %vm1895, %v2518, 0
    %v2717 = vsel %vm1280, %v2708, 0
    %2719 = vmatprep.subr.bf16.mxu0 0
    %2720 = vmatpush1.bf16.msra.mxu0 %v2706
    %2721 = vmatprep.subr.bf16.mxu0 0
    %2722 = vmatpush1.bf16.msra.mxu0 %v2717
    %2723 = vmatprep.subr.bf16.mxu0 0
    %2724 = vmatpush1.bf16.msra.mxu0 0
    %2725 = vmatprep.subr.bf16.mxu0 0
    %2726 = vmatpush1.bf16.msra.mxu0 0
    %2727 = vmatprep.subr.bf16.mxu0 0
    %2728 = vmatpush1.bf16.msra.mxu0 0
    %2729 = vmatprep.subr.bf16.mxu0 0
    %2730 = vmatpush1.bf16.msra.mxu0 0
    %2731 = vmatprep.subr.bf16.mxu0 0
    %2732 = vmatpush1.bf16.msra.mxu0 0
    %2733 = vmatprep.subr.bf16.mxu0 0
    %2734 = vmatpush1.bf16.msra.mxu0 0
    %2735 = vmatprep.subr.bf16.mxu0 0
    %2736 = vmatpush1.bf16.msra.mxu0 0
    %2737 = vmatprep.subr.bf16.mxu0 0
    %2738 = vmatpush1.bf16.msra.mxu0 0
    %2739 = vmatprep.subr.bf16.mxu0 0
    %2740 = vmatpush1.bf16.msra.mxu0 0
    %2741 = vmatprep.subr.bf16.mxu0 0
    %2742 = vmatpush1.bf16.msra.mxu0 0
    %2743 = vmatprep.subr.bf16.mxu0 0
    %2744 = vmatpush1.bf16.msra.mxu0 0
    %2745 = vmatprep.subr.bf16.mxu0 0
    %2746 = vmatpush1.bf16.msra.mxu0 0
    %2747 = vmatprep.subr.bf16.mxu0 0
    %2748 = vmatpush1.bf16.msra.mxu0 0
    %2749 = vmatprep.subr.bf16.mxu0 0
    %2750 = vmatpush1.bf16.msra.mxu0 0
    %2751 = vmatprep.mubr.bf16.mxu0 0
    %2752 = vmatmul.mubr.bf16.gmra.mrb[0].mxu0 %v2711
    %v2753 = vpop.f32.mrb[0].mxu0
    %v2754 = vadd.f32 0.0, %v2753
    %v2755 = vpop.f32.mrb[0].mxu0
    %v2756 = vpop.f32.mrb[0].mxu0
    %v2757 = vadd.f32 0.0, %v2756
    %v2758 = vpop.f32.mrb[0].mxu0
    %2759 = vmatprep.mubr.bf16.mxu0 0
    %2760 = vmatmul.mubr.bf16.gmra.mrb[0].mxu0 %v2714
    %v2761 = vpop.f32.mrb[0].mxu0
    %v2762 = vadd.f32 0.0, %v2761
    %v2763 = vpop.f32.mrb[0].mxu0
    %v2764 = vpop.f32.mrb[0].mxu0
    %v2765 = vpop.f32.mrb[0].mxu0
    %2766 = vdwg.mxu0
    %2770 = vrot.lane.b32.xlu0 %v2630, 8
    %v2771 = vpop.permute.xlu0 %2770
    %2772 = vrot.lane.b32.xlu0 %v2633, 8
    %v2773 = vpop.permute.xlu0 %2772
    %2774 = vrot.lane.b32.xlu0 %v2638, 8
    %v2775 = vpop.permute.xlu0 %2774
    %2782 = vrot.lane.b32.xlu0 %v2692, 16
    %v2783 = vpop.permute.xlu0 %2782
    %2784 = vrot.lane.b32.xlu0 %v2695, 16
    %v2785 = vpop.permute.xlu0 %2784
    %2786 = vrot.lane.b32.xlu0 %v2700, 16
    %v2787 = vpop.permute.xlu0 %2786
    %2794 = vrot.lane.b32.xlu0 %v2754, 24
    %v2795 = vpop.permute.xlu0 %2794
    %2796 = vrot.lane.b32.xlu0 %v2757, 24
    %v2797 = vpop.permute.xlu0 %2796
    %2798 = vrot.lane.b32.xlu0 %v2762, 24
    %v2799 = vpop.permute.xlu0 %2798
    %v2803 = vsel %vm556, %v2568, %v2771
    %v2804 = vsel %vm556, %v2571, %v2773
    %v2805 = vsel %vm556, %v2576, %v2775
    %v2806 = vsel %vm1891, %v2803, %v2783
    %v2807 = vsel %vm1891, %v2804, %v2785
    %v2808 = vsel %vm1891, %v2805, %v2787
    %v2809 = vsel %vm1895, %v2806, %v2795
    %v2810 = vsel %vm1895, %v2807, %v2797
    %v2811 = vsel %vm1895, %v2808, %v2799
    %v2812 = vpack.c.bf16 %v2810, %v2809
    %v2813 = vpack.c.bf16 %v2811, %v2811
    %v2815 = vlaneseq
    %v2816 = vshrl.u32 %v2815, 7
    %v2817 = vsub.s32 0, %v2816
    %v2818 = vrot.slane %v199, %v2817
    %v2824 = vunpack.c.l.b16 %v195
    %v2825 = vunpack.c.l.b16 %v196
    %v2826 = vunpack.c.l.b16 %v197
    %v2827 = vunpack.c.l.b16 %v198
    %v2828 = vpack.c.b16 %v2825, %v2824
    %v2829 = vpack.c.b16 %v2827, %v2826
    %v2833 = vsel %vm397, %v2812, 0
    %v2836 = vsel %vm397, %v2813, 0
    %2838 = vmatprep.subr.bf16.mxu0 0
    %2839 = vmatpush1.bf16.msra.mxu0 %v2828
    %2840 = vmatprep.subr.bf16.mxu0 0
    %2841 = vmatpush1.bf16.msra.mxu0 %v2829
    %2842 = vmatprep.subr.bf16.mxu0 0
    %2843 = vmatpush1.bf16.msra.mxu0 0
    %2844 = vmatprep.subr.bf16.mxu0 0
    %2845 = vmatpush1.bf16.msra.mxu0 0
    %2846 = vmatprep.subr.bf16.mxu0 0
    %2847 = vmatpush1.bf16.msra.mxu0 0
    %2848 = vmatprep.subr.bf16.mxu0 0
    %2849 = vmatpush1.bf16.msra.mxu0 0
    %2850 = vmatprep.subr.bf16.mxu0 0
    %2851 = vmatpush1.bf16.msra.mxu0 0
    %2852 = vmatprep.subr.bf16.mxu0 0
    %2853 = vmatpush1.bf16.msra.mxu0 0
    %2854 = vmatprep.subr.bf16.mxu0 0
    %2855 = vmatpush1.bf16.msra.mxu0 0
    %2856 = vmatprep.subr.bf16.mxu0 0
    %2857 = vmatpush1.bf16.msra.mxu0 0
    %2858 = vmatprep.subr.bf16.mxu0 0
    %2859 = vmatpush1.bf16.msra.mxu0 0
    %2860 = vmatprep.subr.bf16.mxu0 0
    %2861 = vmatpush1.bf16.msra.mxu0 0
    %2862 = vmatprep.subr.bf16.mxu0 0
    %2863 = vmatpush1.bf16.msra.mxu0 0
    %2864 = vmatprep.subr.bf16.mxu0 0
    %2865 = vmatpush1.bf16.msra.mxu0 0
    %2866 = vmatprep.subr.bf16.mxu0 0
    %2867 = vmatpush1.bf16.msra.mxu0 0
    %2868 = vmatprep.subr.bf16.mxu0 0
    %2869 = vmatpush1.bf16.msra.mxu0 0
    %2870 = vmatprep.mubr.bf16.mxu0 0
    %2871 = vmatmul.mubr.bf16.gmra.mrb[0].mxu0 %v2833
    %v2872 = vpop.f32.mrb[0].mxu0
    %v2873 = vadd.f32 %v2818, %v2872
    %v2874 = vpop.f32.mrb[0].mxu0
    %v2875 = vpop.f32.mrb[0].mxu0
    %v2876 = vadd.f32 %v2818, %v2875
    %v2877 = vpop.f32.mrb[0].mxu0
    %2878 = vmatprep.mubr.bf16.mxu0 0
    %2879 = vmatmul.mubr.bf16.gmra.mrb[0].mxu0 %v2836
    %v2880 = vpop.f32.mrb[0].mxu0
    %v2881 = vadd.f32 %v2818, %v2880
    %v2882 = vpop.f32.mrb[0].mxu0
    %v2883 = vpop.f32.mrb[0].mxu0
    %v2884 = vpop.f32.mrb[0].mxu0
    %2885 = vdwg.mxu0
    %v2886 = vadd.f32 %v1973, %v2873
    %v2887 = vadd.f32 %v1974, %v2876
    %v2888 = vadd.f32 %v1975, %v2881
    %v2889 = vsel %vm397, %v2886, 0.0
    %2890 = vadd.xlane.f32.xlu0 %v2889
    %v2891 = vpop.xlane.xlu0 %2890
    %v2892 = vsel %vm397, %v2887, 0.0
    %2893 = vadd.xlane.f32.xlu0 %v2892
    %v2894 = vpop.xlane.xlu0 %2893
    %v2895 = vsel %vm397, %v2888, 0.0
    %2896 = vadd.xlane.f32.xlu0 %v2895
    %v2897 = vpop.xlane.xlu0 %2896
    %v2898 = vmul.f32 %v2891, %v407
    %v2899 = vmul.f32 %v2894, %v407
    %v2900 = vmul.f32 %v2897, %v407
    %v2901 = vsub.f32 %v2886, %v2898
    %v2902 = vsub.f32 %v2887, %v2899
    %v2903 = vsub.f32 %v2888, %v2900
    %v2904 = vmul.f32 %v2901, %v2901
    %v2905 = vmul.f32 %v2902, %v2902
    %v2906 = vmul.f32 %v2903, %v2903
    %v2907 = vsel %vm397, %v2904, 0.0
    %2908 = vadd.xlane.f32.xlu0 %v2907
    %v2909 = vpop.xlane.xlu0 %2908
    %v2910 = vsel %vm397, %v2905, 0.0
    %2911 = vadd.xlane.f32.xlu0 %v2910
    %v2912 = vpop.xlane.xlu0 %2911
    %v2913 = vsel %vm397, %v2906, 0.0
    %2914 = vadd.xlane.f32.xlu0 %v2913
    %v2915 = vpop.xlane.xlu0 %2914
    %v2916 = vmul.f32 %v2909, %v407
    %v2917 = vmul.f32 %v2912, %v407
    %v2918 = vmul.f32 %v2915, %v407
    %v2919 = vadd.f32 %v2916, 1e-05
    %v2920 = vadd.f32 %v2917, 1e-05
    %v2921 = vadd.f32 %v2918, 1e-05
    %v2922 = vrsqrt.pop %v2919
    %v2923 = vrsqrt.pop %v2920
    %v2924 = vrsqrt.pop %v2921
    %v2925 = vmul.f32 %v2901, %v2922
    %v2926 = vmul.f32 %v2902, %v2923
    %v2927 = vmul.f32 %v2903, %v2924
    %v2929 = vlaneseq
    %v2930 = vshrl.u32 %v2929, 7
    %v2931 = vsub.s32 0, %v2930
    %v2932 = vrot.slane %v200, %v2931
    %v2934 = vmul.f32 %v2925, %v2932
    %v2935 = vmul.f32 %v2926, %v2932
    %v2936 = vmul.f32 %v2927, %v2932
    %v2938 = vlaneseq
    %v2939 = vshrl.u32 %v2938, 7
    %v2940 = vsub.s32 0, %v2939
    %v2941 = vrot.slane %v201, %v2940
    %v2943 = vadd.f32 %v2934, %v2941
    %v2944 = vadd.f32 %v2935, %v2941
    %v2945 = vadd.f32 %v2936, %v2941
    %v2946 = vpack.c.bf16 %v2944, %v2943
    %v2947 = vpack.c.bf16 %v2945, %v2945
    %v2949 = vlaneseq
    %v2950 = vshrl.u32 %v2949, 7
    %v2951 = vsub.s32 0, %v2950
    %v2952 = vrot.slane %v206, %v2951
    %v2958 = vunpack.c.l.b16 %v202
    %v2959 = vunpack.c.l.b16 %v203
    %v2960 = vunpack.c.l.b16 %v204
    %v2961 = vunpack.c.l.b16 %v205
    %v2962 = vpack.c.b16 %v2959, %v2958
    %v2963 = vpack.c.b16 %v2961, %v2960
    %v2967 = vsel %vm397, %v2946, 0
    %v2970 = vsel %vm397, %v2947, 0
    %2972 = vmatprep.subr.bf16.mxu0 0
    %2973 = vmatpush1.bf16.msra.mxu0 %v2962
    %2974 = vmatprep.subr.bf16.mxu0 0
    %2975 = vmatpush1.bf16.msra.mxu0 %v2963
    %2976 = vmatprep.subr.bf16.mxu0 0
    %2977 = vmatpush1.bf16.msra.mxu0 0
    %2978 = vmatprep.subr.bf16.mxu0 0
    %2979 = vmatpush1.bf16.msra.mxu0 0
    %2980 = vmatprep.subr.bf16.mxu0 0
    %2981 = vmatpush1.bf16.msra.mxu0 0
    %2982 = vmatprep.subr.bf16.mxu0 0
    %2983 = vmatpush1.bf16.msra.mxu0 0
    %2984 = vmatprep.subr.bf16.mxu0 0
    %2985 = vmatpush1.bf16.msra.mxu0 0
    %2986 = vmatprep.subr.bf16.mxu0 0
    %2987 = vmatpush1.bf16.msra.mxu0 0
    %2988 = vmatprep.subr.bf16.mxu0 0
    %2989 = vmatpush1.bf16.msra.mxu0 0
    %2990 = vmatprep.subr.bf16.mxu0 0
    %2991 = vmatpush1.bf16.msra.mxu0 0
    %2992 = vmatprep.subr.bf16.mxu0 0
    %2993 = vmatpush1.bf16.msra.mxu0 0
    %2994 = vmatprep.subr.bf16.mxu0 0
    %2995 = vmatpush1.bf16.msra.mxu0 0
    %2996 = vmatprep.subr.bf16.mxu0 0
    %2997 = vmatpush1.bf16.msra.mxu0 0
    %2998 = vmatprep.subr.bf16.mxu0 0
    %2999 = vmatpush1.bf16.msra.mxu0 0
    %3000 = vmatprep.subr.bf16.mxu0 0
    %3001 = vmatpush1.bf16.msra.mxu0 0
    %3002 = vmatprep.subr.bf16.mxu0 0
    %3003 = vmatpush1.bf16.msra.mxu0 0
    %3004 = vmatprep.mubr.bf16.mxu0 0
    %3005 = vmatmul.mubr.bf16.gmra.mrb[0].mxu0 %v2967
    %v3006 = vpop.f32.mrb[0].mxu0
    %v3007 = vadd.f32 %v2952, %v3006
    %v3008 = vpop.f32.mrb[0].mxu0
    %v3009 = vpop.f32.mrb[0].mxu0
    %v3010 = vadd.f32 %v2952, %v3009
    %v3011 = vpop.f32.mrb[0].mxu0
    %3012 = vmatprep.mubr.bf16.mxu0 0
    %3013 = vmatmul.mubr.bf16.gmra.mrb[0].mxu0 %v2970
    %v3014 = vpop.f32.mrb[0].mxu0
    %v3015 = vadd.f32 %v2952, %v3014
    %v3016 = vpop.f32.mrb[0].mxu0
    %v3017 = vpop.f32.mrb[0].mxu0
    %v3018 = vpop.f32.mrb[0].mxu0
    %3019 = vdwg.mxu0
    %v3020 = vmul.f32 %v3007, %v3007
    %v3021 = vmul.f32 %v3010, %v3010
    %v3022 = vmul.f32 %v3015, %v3015
    %v3023 = vmul.f32 %v3007, %v3020
    %v3024 = vmul.f32 %v3010, %v3021
    %v3025 = vmul.f32 %v3015, %v3022
    %v3026 = vmul.f32 %v3023, 0.044715
    %v3027 = vmul.f32 %v3024, 0.044715
    %v3028 = vmul.f32 %v3025, 0.044715
    %v3029 = vadd.f32 %v3007, %v3026
    %v3030 = vadd.f32 %v3010, %v3027
    %v3031 = vadd.f32 %v3015, %v3028
    %v3032 = vmul.f32 %v3029, 0.7978846
    %v3033 = vmul.f32 %v3030, 0.7978846
    %v3034 = vmul.f32 %v3031, 0.7978846
    %v3035 = vtanh.pop %v3032
    %v3036 = vtanh.pop %v3033
    %v3037 = vtanh.pop %v3034
    %v3038 = vadd.f32 %v3035, 1.0
    %v3039 = vadd.f32 %v3036, 1.0
    %v3040 = vadd.f32 %v3037, 1.0
    %v3041 = vmul.f32 %v3038, 0.5
    %v3042 = vmul.f32 %v3039, 0.5
    %v3043 = vmul.f32 %v3040, 0.5
    %v3044 = vmul.f32 %v3007, %v3041
    %v3045 = vmul.f32 %v3010, %v3042
    %v3046 = vmul.f32 %v3015, %v3043
    %v3047 = vpack.c.bf16 %v3045, %v3044
    %v3048 = vpack.c.bf16 %v3046, %v3046
    %v3050 = vlaneseq
    %v3051 = vshrl.u32 %v3050, 7
    %v3052 = vsub.s32 0, %v3051
    %v3053 = vrot.slane %v223, %v3052
    %v3071 = vunpack.c.l.b16 %v207
    %v3072 = vunpack.c.l.b16 %v208
    %v3073 = vunpack.c.l.b16 %v209
    %v3074 = vunpack.c.l.b16 %v210
    %v3075 = vunpack.c.l.b16 %v211
    %v3076 = vunpack.c.l.b16 %v212
    %v3077 = vunpack.c.l.b16 %v213
    %v3078 = vunpack.c.l.b16 %v214
    %v3079 = vunpack.c.l.b16 %v215
    %v3080 = vunpack.c.l.b16 %v216
    %v3081 = vunpack.c.l.b16 %v217
    %v3082 = vunpack.c.l.b16 %v218
    %v3083 = vunpack.c.l.b16 %v219
    %v3084 = vunpack.c.l.b16 %v220
    %v3085 = vunpack.c.l.b16 %v221
    %v3086 = vunpack.c.l.b16 %v222
    %v3087 = vpack.c.b16 %v3072, %v3071
    %v3088 = vpack.c.b16 %v3074, %v3073
    %v3089 = vpack.c.b16 %v3076, %v3075
    %v3090 = vpack.c.b16 %v3078, %v3077
    %v3091 = vpack.c.b16 %v3080, %v3079
    %v3092 = vpack.c.b16 %v3082, %v3081
    %v3093 = vpack.c.b16 %v3084, %v3083
    %v3094 = vpack.c.b16 %v3086, %v3085
    %3103 = vmatprep.subr.bf16.mxu0 0
    %3104 = vmatpush1.bf16.msra.mxu0 %v3087
    %3105 = vmatprep.subr.bf16.mxu0 0
    %3106 = vmatpush1.bf16.msra.mxu0 %v3088
    %3107 = vmatprep.subr.bf16.mxu0 0
    %3108 = vmatpush1.bf16.msra.mxu0 %v3089
    %3109 = vmatprep.subr.bf16.mxu0 0
    %3110 = vmatpush1.bf16.msra.mxu0 %v3090
    %3111 = vmatprep.subr.bf16.mxu0 0
    %3112 = vmatpush1.bf16.msra.mxu0 %v3091
    %3113 = vmatprep.subr.bf16.mxu0 0
    %3114 = vmatpush1.bf16.msra.mxu0 %v3092
    %3115 = vmatprep.subr.bf16.mxu0 0
    %3116 = vmatpush1.bf16.msra.mxu0 %v3093
    %3117 = vmatprep.subr.bf16.mxu0 0
    %3118 = vmatpush1.bf16.msra.mxu0 %v3094
    %3119 = vmatprep.subr.bf16.mxu0 0
    %3120 = vmatpush1.bf16.msra.mxu0 0
    %3121 = vmatprep.subr.bf16.mxu0 0
    %3122 = vmatpush1.bf16.msra.mxu0 0
    %3123 = vmatprep.subr.bf16.mxu0 0
    %3124 = vmatpush1.bf16.msra.mxu0 0
    %3125 = vmatprep.subr.bf16.mxu0 0
    %3126 = vmatpush1.bf16.msra.mxu0 0
    %3127 = vmatprep.subr.bf16.mxu0 0
    %3128 = vmatpush1.bf16.msra.mxu0 0
    %3129 = vmatprep.subr.bf16.mxu0 0
    %3130 = vmatpush1.bf16.msra.mxu0 0
    %3131 = vmatprep.subr.bf16.mxu0 0
    %3132 = vmatpush1.bf16.msra.mxu0 0
    %3133 = vmatprep.subr.bf16.mxu0 0
    %3134 = vmatpush1.bf16.msra.mxu0 0
    %3135 = vmatprep.mubr.bf16.mxu0 0
    %3136 = vmatmul.mubr.bf16.gmra.mrb[0].mxu0 %v3047
    %v3137 = vpop.f32.mrb[0].mxu0
    %v3138 = vadd.f32 %v3053, %v3137
    %v3139 = vpop.f32.mrb[0].mxu0
    %v3140 = vpop.f32.mrb[0].mxu0
    %v3141 = vadd.f32 %v3053, %v3140
    %v3142 = vpop.f32.mrb[0].mxu0
    %3143 = vmatprep.mubr.bf16.mxu0 0
    %3144 = vmatmul.mubr.bf16.gmra.mrb[0].mxu0 %v3048
    %v3145 = vpop.f32.mrb[0].mxu0
    %v3146 = vadd.f32 %v3053, %v3145
    %v3147 = vpop.f32.mrb[0].mxu0
    %v3148 = vpop.f32.mrb[0].mxu0
    %v3149 = vpop.f32.mrb[0].mxu0
    %3150 = vdwg.mxu0
    %v3151 = vadd.f32 %v2886, %v3138
    %v3152 = vadd.f32 %v2887, %v3141
    %v3153 = vadd.f32 %v2888, %v3146
    %v3154 = vsel %vm397, %v3151, 0.0
    %3155 = vadd.xlane.f32.xlu0 %v3154
    %v3156 = vpop.xlane.xlu0 %3155
    %v3157 = vsel %vm397, %v3152, 0.0
    %3158 = vadd.xlane.f32.xlu0 %v3157
    %v3159 = vpop.xlane.xlu0 %3158
    %v3160 = vsel %vm397, %v3153, 0.0
    %3161 = vadd.xlane.f32.xlu0 %v3160
    %v3162 = vpop.xlane.xlu0 %3161
    %v3163 = vmul.f32 %v3156, %v407
    %v3164 = vmul.f32 %v3159, %v407
    %v3165 = vmul.f32 %v3162, %v407
    %v3166 = vsub.f32 %v3151, %v3163
    %v3167 = vsub.f32 %v3152, %v3164
    %v3168 = vsub.f32 %v3153, %v3165
    %v3169 = vmul.f32 %v3166, %v3166
    %v3170 = vmul.f32 %v3167, %v3167
    %v3171 = vmul.f32 %v3168, %v3168
    %v3172 = vsel %vm397, %v3169, 0.0
    %3173 = vadd.xlane.f32.xlu0 %v3172
    %v3174 = vpop.xlane.xlu0 %3173
    %v3175 = vsel %vm397, %v3170, 0.0
    %3176 = vadd.xlane.f32.xlu0 %v3175
    %v3177 = vpop.xlane.xlu0 %3176
    %v3178 = vsel %vm397, %v3171, 0.0
    %3179 = vadd.xlane.f32.xlu0 %v3178
    %v3180 = vpop.xlane.xlu0 %3179
    %v3181 = vmul.f32 %v3174, %v407
    %v3182 = vmul.f32 %v3177, %v407
    %v3183 = vmul.f32 %v3180, %v407
    %v3184 = vadd.f32 %v3181, 1e-05
    %v3185 = vadd.f32 %v3182, 1e-05
    %v3186 = vadd.f32 %v3183, 1e-05
    %v3187 = vrsqrt.pop %v3184
    %v3188 = vrsqrt.pop %v3185
    %v3189 = vrsqrt.pop %v3186
    %v3190 = vmul.f32 %v3166, %v3187
    %v3191 = vmul.f32 %v3167, %v3188
    %v3192 = vmul.f32 %v3168, %v3189
    %v3194 = vlaneseq
    %v3195 = vshrl.u32 %v3194, 7
    %v3196 = vsub.s32 0, %v3195
    %v3197 = vrot.slane %v224, %v3196
    %v3199 = vmul.f32 %v3190, %v3197
    %v3200 = vmul.f32 %v3191, %v3197
    %v3201 = vmul.f32 %v3192, %v3197
    %v3203 = vlaneseq
    %v3204 = vshrl.u32 %v3203, 7
    %v3205 = vsub.s32 0, %v3204
    %v3206 = vrot.slane %v225, %v3205
    %v3208 = vadd.f32 %v3199, %v3206
    %v3209 = vadd.f32 %v3200, %v3206
    %v3210 = vadd.f32 %v3201, %v3206
    %v3211 = vpack.c.bf16 %v3209, %v3208
    %v3212 = vpack.c.bf16 %v3210, %v3210
    %v3214 = vlaneseq
    %v3215 = vshrl.u32 %v3214, 7
    %v3216 = vsub.s32 0, %v3215
    %v3217 = vrot.slane %v230, %v3216
    %v3223 = vunpack.c.l.b16 %v226
    %v3224 = vunpack.c.l.b16 %v227
    %v3225 = vunpack.c.l.b16 %v228
    %v3226 = vunpack.c.l.b16 %v229
    %v3227 = vpack.c.b16 %v3224, %v3223
    %v3228 = vpack.c.b16 %v3226, %v3225
    %v3232 = vsel %vm397, %v3211, 0
    %v3235 = vsel %vm397, %v3212, 0
    %3237 = vmatprep.subr.bf16.mxu0 0
    %3238 = vmatpush1.bf16.msra.mxu0 %v3227
    %3239 = vmatprep.subr.bf16.mxu0 0
    %3240 = vmatpush1.bf16.msra.mxu0 %v3228
    %3241 = vmatprep.subr.bf16.mxu0 0
    %3242 = vmatpush1.bf16.msra.mxu0 0
    %3243 = vmatprep.subr.bf16.mxu0 0
    %3244 = vmatpush1.bf16.msra.mxu0 0
    %3245 = vmatprep.subr.bf16.mxu0 0
    %3246 = vmatpush1.bf16.msra.mxu0 0
    %3247 = vmatprep.subr.bf16.mxu0 0
    %3248 = vmatpush1.bf16.msra.mxu0 0
    %3249 = vmatprep.subr.bf16.mxu0 0
    %3250 = vmatpush1.bf16.msra.mxu0 0
    %3251 = vmatprep.subr.bf16.mxu0 0
    %3252 = vmatpush1.bf16.msra.mxu0 0
    %3253 = vmatprep.subr.bf16.mxu0 0
    %3254 = vmatpush1.bf16.msra.mxu0 0
    %3255 = vmatprep.subr.bf16.mxu0 0
    %3256 = vmatpush1.bf16.msra.mxu0 0
    %3257 = vmatprep.subr.bf16.mxu0 0
    %3258 = vmatpush1.bf16.msra.mxu0 0
    %3259 = vmatprep.subr.bf16.mxu0 0
    %3260 = vmatpush1.bf16.msra.mxu0 0
    %3261 = vmatprep.subr.bf16.mxu0 0
    %3262 = vmatpush1.bf16.msra.mxu0 0
    %3263 = vmatprep.subr.bf16.mxu0 0
    %3264 = vmatpush1.bf16.msra.mxu0 0
    %3265 = vmatprep.subr.bf16.mxu0 0
    %3266 = vmatpush1.bf16.msra.mxu0 0
    %3267 = vmatprep.subr.bf16.mxu0 0
    %3268 = vmatpush1.bf16.msra.mxu0 0
    %3269 = vmatprep.mubr.bf16.mxu0 0
    %3270 = vmatmul.mubr.bf16.gmra.mrb[0].mxu0 %v3232
    %v3271 = vpop.f32.mrb[0].mxu0
    %v3272 = vadd.f32 %v3217, %v3271
    %v3273 = vpop.f32.mrb[0].mxu0
    %v3274 = vpop.f32.mrb[0].mxu0
    %v3275 = vadd.f32 %v3217, %v3274
    %v3276 = vpop.f32.mrb[0].mxu0
    %3277 = vmatprep.mubr.bf16.mxu0 0
    %3278 = vmatmul.mubr.bf16.gmra.mrb[0].mxu0 %v3235
    %v3279 = vpop.f32.mrb[0].mxu0
    %v3280 = vadd.f32 %v3217, %v3279
    %v3281 = vpop.f32.mrb[0].mxu0
    %v3282 = vpop.f32.mrb[0].mxu0
    %v3283 = vpop.f32.mrb[0].mxu0
    %3284 = vdwg.mxu0
    %v3285 = vpack.c.bf16 %v3272, %v3272
    %v3286 = vpack.c.bf16 %v3275, %v3275
    %v3287 = vpack.c.bf16 %v3280, %v3280
    %3291 = vrot.lane.b32.xlu0 %v3285, 120
    %v3292 = vpop.permute.xlu0 %3291
    %3293 = vrot.lane.b32.xlu0 %v3286, 120
    %v3294 = vpop.permute.xlu0 %3293
    %3295 = vrot.lane.b32.xlu0 %v3287, 120
    %v3296 = vpop.permute.xlu0 %3295
    %3297 = vrot.lane.b32.xlu0 %v3285, 112
    %v3298 = vpop.permute.xlu0 %3297
    %3299 = vrot.lane.b32.xlu0 %v3286, 112
    %v3300 = vpop.permute.xlu0 %3299
    %3301 = vrot.lane.b32.xlu0 %v3287, 112
    %v3302 = vpop.permute.xlu0 %3301
    %3303 = vrot.lane.b32.xlu0 %v3285, 104
    %v3304 = vpop.permute.xlu0 %3303
    %3305 = vrot.lane.b32.xlu0 %v3286, 104
    %v3306 = vpop.permute.xlu0 %3305
    %3307 = vrot.lane.b32.xlu0 %v3287, 104
    %v3308 = vpop.permute.xlu0 %3307
    %3309 = vrot.lane.b32.xlu0 %v3285, 96
    %v3310 = vpop.permute.xlu0 %3309
    %v3312 = vsel %vm556, %v3285, 0
    %v3315 = vsel %vm556, %v3310, 0
    %3317 = vmatprep.subr.bf16.mxu0 0
    %3318 = vmatpush1.bf16.xpose.msra.mxu0 %v3315
    %3319 = vmatprep.subr.bf16.mxu0 0
    %3320 = vmatpush1.bf16.xpose.msra.mxu0 0
    %3321 = vmatprep.subr.bf16.mxu0 0
    %3322 = vmatpush1.bf16.xpose.msra.mxu0 0
    %3323 = vmatprep.subr.bf16.mxu0 0
    %3324 = vmatpush1.bf16.xpose.msra.mxu0 0
    %3325 = vmatprep.subr.bf16.mxu0 0
    %3326 = vmatpush1.bf16.xpose.msra.mxu0 0
    %3327 = vmatprep.subr.bf16.mxu0 0
    %3328 = vmatpush1.bf16.xpose.msra.mxu0 0
    %3329 = vmatprep.subr.bf16.mxu0 0
    %3330 = vmatpush1.bf16.xpose.msra.mxu0 0
    %3331 = vmatprep.subr.bf16.mxu0 0
    %3332 = vmatpush1.bf16.xpose.msra.mxu0 0
    %3333 = vmatprep.subr.bf16.mxu0 0
    %3334 = vmatpush1.bf16.xpose.msra.mxu0 0
    %3335 = vmatprep.subr.bf16.mxu0 0
    %3336 = vmatpush1.bf16.xpose.msra.mxu0 0
    %3337 = vmatprep.subr.bf16.mxu0 0
    %3338 = vmatpush1.bf16.xpose.msra.mxu0 0
    %3339 = vmatprep.subr.bf16.mxu0 0
    %3340 = vmatpush1.bf16.xpose.msra.mxu0 0
    %3341 = vmatprep.subr.bf16.mxu0 0
    %3342 = vmatpush1.bf16.xpose.msra.mxu0 0
    %3343 = vmatprep.subr.bf16.mxu0 0
    %3344 = vmatpush1.bf16.xpose.msra.mxu0 0
    %3345 = vmatprep.subr.bf16.mxu0 0
    %3346 = vmatpush1.bf16.xpose.msra.mxu0 0
    %3347 = vmatprep.subr.bf16.mxu0 0
    %3348 = vmatpush1.bf16.xpose.msra.mxu0 0
    %3349 = vmatprep.mubr.bf16.mxu0 0
    %3350 = vmatmul.mubr.bf16.gmra.mrb[0].mxu0 %v3312
    %v3351 = vpop.f32.mrb[0].mxu0
    %v3352 = vadd.f32 0.0, %v3351
    %v3353 = vpop.f32.mrb[0].mxu0
    %v3354 = vpop.f32.mrb[0].mxu0
    %v3355 = vpop.f32.mrb[0].mxu0
    %3356 = vdwg.mxu0
    %3357 = vrot.lane.b32.xlu0 %v3286, 96
    %v3358 = vpop.permute.xlu0 %3357
    %v3360 = vsel %vm556, %v3286, 0
    %v3363 = vsel %vm556, %v3358, 0
    %3365 = vmatprep.subr.bf16.mxu0 0
    %3366 = vmatpush1.bf16.xpose.msra.mxu0 %v3363
    %3367 = vmatprep.subr.bf16.mxu0 0
    %3368 = vmatpush1.bf16.xpose.msra.mxu0 0
    %3369 = vmatprep.subr.bf16.mxu0 0
    %3370 = vmatpush1.bf16.xpose.msra.mxu0 0
    %3371 = vmatprep.subr.bf16.mxu0 0
    %3372 = vmatpush1.bf16.xpose.msra.mxu0 0
    %3373 = vmatprep.subr.bf16.mxu0 0
    %3374 = vmatpush1.bf16.xpose.msra.mxu0 0
    %3375 = vmatprep.subr.bf16.mxu0 0
    %3376 = vmatpush1.bf16.xpose.msra.mxu0 0
    %3377 = vmatprep.subr.bf16.mxu0 0
    %3378 = vmatpush1.bf16.xpose.msra.mxu0 0
    %3379 = vmatprep.subr.bf16.mxu0 0
    %3380 = vmatpush1.bf16.xpose.msra.mxu0 0
    %3381 = vmatprep.subr.bf16.mxu0 0
    %3382 = vmatpush1.bf16.xpose.msra.mxu0 0
    %3383 = vmatprep.subr.bf16.mxu0 0
    %3384 = vmatpush1.bf16.xpose.msra.mxu0 0
    %3385 = vmatprep.subr.bf16.mxu0 0
    %3386 = vmatpush1.bf16.xpose.msra.mxu0 0
    %3387 = vmatprep.subr.bf16.mxu0 0
    %3388 = vmatpush1.bf16.xpose.msra.mxu0 0
    %3389 = vmatprep.subr.bf16.mxu0 0
    %3390 = vmatpush1.bf16.xpose.msra.mxu0 0
    %3391 = vmatprep.subr.bf16.mxu0 0
    %3392 = vmatpush1.bf16.xpose.msra.mxu0 0
    %3393 = vmatprep.subr.bf16.mxu0 0
    %3394 = vmatpush1.bf16.xpose.msra.mxu0 0
    %3395 = vmatprep.subr.bf16.mxu0 0
    %3396 = vmatpush1.bf16.xpose.msra.mxu0 0
    %3397 = vmatprep.mubr.bf16.mxu0 0
    %3398 = vmatmul.mubr.bf16.gmra.mrb[0].mxu0 %v3360
    %v3399 = vpop.f32.mrb[0].mxu0
    %v3400 = vadd.f32 0.0, %v3399
    %v3401 = vpop.f32.mrb[0].mxu0
    %v3402 = vpop.f32.mrb[0].mxu0
    %v3403 = vpop.f32.mrb[0].mxu0
    %3404 = vdwg.mxu0
    %3405 = vrot.lane.b32.xlu0 %v3287, 96
    %v3406 = vpop.permute.xlu0 %3405
    %v3408 = vsel %vm556, %v3287, 0
    %v3411 = vsel %vm556, %v3406, 0
    %3413 = vmatprep.subr.bf16.mxu0 0
    %3414 = vmatpush1.bf16.xpose.msra.mxu0 %v3411
    %3415 = vmatprep.subr.bf16.mxu0 0
    %3416 = vmatpush1.bf16.xpose.msra.mxu0 0
    %3417 = vmatprep.subr.bf16.mxu0 0
    %3418 = vmatpush1.bf16.xpose.msra.mxu0 0
    %3419 = vmatprep.subr.bf16.mxu0 0
    %3420 = vmatpush1.bf16.xpose.msra.mxu0 0
    %3421 = vmatprep.subr.bf16.mxu0 0
    %3422 = vmatpush1.bf16.xpose.msra.mxu0 0
    %3423 = vmatprep.subr.bf16.mxu0 0
    %3424 = vmatpush1.bf16.xpose.msra.mxu0 0
    %3425 = vmatprep.subr.bf16.mxu0 0
    %3426 = vmatpush1.bf16.xpose.msra.mxu0 0
    %3427 = vmatprep.subr.bf16.mxu0 0
    %3428 = vmatpush1.bf16.xpose.msra.mxu0 0
    %3429 = vmatprep.subr.bf16.mxu0 0
    %3430 = vmatpush1.bf16.xpose.msra.mxu0 0
    %3431 = vmatprep.subr.bf16.mxu0 0
    %3432 = vmatpush1.bf16.xpose.msra.mxu0 0
    %3433 = vmatprep.subr.bf16.mxu0 0
    %3434 = vmatpush1.bf16.xpose.msra.mxu0 0
    %3435 = vmatprep.subr.bf16.mxu0 0
    %3436 = vmatpush1.bf16.xpose.msra.mxu0 0
    %3437 = vmatprep.subr.bf16.mxu0 0
    %3438 = vmatpush1.bf16.xpose.msra.mxu0 0
    %3439 = vmatprep.subr.bf16.mxu0 0
    %3440 = vmatpush1.bf16.xpose.msra.mxu0 0
    %3441 = vmatprep.subr.bf16.mxu0 0
    %3442 = vmatpush1.bf16.xpose.msra.mxu0 0
    %3443 = vmatprep.subr.bf16.mxu0 0
    %3444 = vmatpush1.bf16.xpose.msra.mxu0 0
    %3445 = vmatprep.mubr.bf16.mxu0 0
    %3446 = vmatmul.mubr.bf16.gmra.mrb[0].mxu0 %v3408
    %v3447 = vpop.f32.mrb[0].mxu0
    %v3448 = vadd.f32 0.0, %v3447
    %v3449 = vpop.f32.mrb[0].mxu0
    %v3450 = vpop.f32.mrb[0].mxu0
    %v3451 = vpop.f32.mrb[0].mxu0
    %3452 = vdwg.mxu0
    %3453 = vrot.lane.b32.xlu0 %v3292, 96
    %v3454 = vpop.permute.xlu0 %3453
    %v3456 = vsel %vm556, %v3292, 0
    %v3459 = vsel %vm556, %v3454, 0
    %3461 = vmatprep.subr.bf16.mxu0 0
    %3462 = vmatpush1.bf16.xpose.msra.mxu0 %v3459
    %3463 = vmatprep.subr.bf16.mxu0 0
    %3464 = vmatpush1.bf16.xpose.msra.mxu0 0
    %3465 = vmatprep.subr.bf16.mxu0 0
    %3466 = vmatpush1.bf16.xpose.msra.mxu0 0
    %3467 = vmatprep.subr.bf16.mxu0 0
    %3468 = vmatpush1.bf16.xpose.msra.mxu0 0
    %3469 = vmatprep.subr.bf16.mxu0 0
    %3470 = vmatpush1.bf16.xpose.msra.mxu0 0
    %3471 = vmatprep.subr.bf16.mxu0 0
    %3472 = vmatpush1.bf16.xpose.msra.mxu0 0
    %3473 = vmatprep.subr.bf16.mxu0 0
    %3474 = vmatpush1.bf16.xpose.msra.mxu0 0
    %3475 = vmatprep.subr.bf16.mxu0 0
    %3476 = vmatpush1.bf16.xpose.msra.mxu0 0
    %3477 = vmatprep.subr.bf16.mxu0 0
    %3478 = vmatpush1.bf16.xpose.msra.mxu0 0
    %3479 = vmatprep.subr.bf16.mxu0 0
    %3480 = vmatpush1.bf16.xpose.msra.mxu0 0
    %3481 = vmatprep.subr.bf16.mxu0 0
    %3482 = vmatpush1.bf16.xpose.msra.mxu0 0
    %3483 = vmatprep.subr.bf16.mxu0 0
    %3484 = vmatpush1.bf16.xpose.msra.mxu0 0
    %3485 = vmatprep.subr.bf16.mxu0 0
    %3486 = vmatpush1.bf16.xpose.msra.mxu0 0
    %3487 = vmatprep.subr.bf16.mxu0 0
    %3488 = vmatpush1.bf16.xpose.msra.mxu0 0
    %3489 = vmatprep.subr.bf16.mxu0 0
    %3490 = vmatpush1.bf16.xpose.msra.mxu0 0
    %3491 = vmatprep.subr.bf16.mxu0 0
    %3492 = vmatpush1.bf16.xpose.msra.mxu0 0
    %3493 = vmatprep.mubr.bf16.mxu0 0
    %3494 = vmatmul.mubr.bf16.gmra.mrb[0].mxu0 %v3456
    %v3495 = vpop.f32.mrb[0].mxu0
    %v3496 = vadd.f32 0.0, %v3495
    %v3497 = vpop.f32.mrb[0].mxu0
    %v3498 = vpop.f32.mrb[0].mxu0
    %v3499 = vpop.f32.mrb[0].mxu0
    %3500 = vdwg.mxu0
    %3501 = vrot.lane.b32.xlu0 %v3294, 96
    %v3502 = vpop.permute.xlu0 %3501
    %v3504 = vsel %vm556, %v3294, 0
    %v3507 = vsel %vm556, %v3502, 0
    %3509 = vmatprep.subr.bf16.mxu0 0
    %3510 = vmatpush1.bf16.xpose.msra.mxu0 %v3507
    %3511 = vmatprep.subr.bf16.mxu0 0
    %3512 = vmatpush1.bf16.xpose.msra.mxu0 0
    %3513 = vmatprep.subr.bf16.mxu0 0
    %3514 = vmatpush1.bf16.xpose.msra.mxu0 0
    %3515 = vmatprep.subr.bf16.mxu0 0
    %3516 = vmatpush1.bf16.xpose.msra.mxu0 0
    %3517 = vmatprep.subr.bf16.mxu0 0
    %3518 = vmatpush1.bf16.xpose.msra.mxu0 0
    %3519 = vmatprep.subr.bf16.mxu0 0
    %3520 = vmatpush1.bf16.xpose.msra.mxu0 0
    %3521 = vmatprep.subr.bf16.mxu0 0
    %3522 = vmatpush1.bf16.xpose.msra.mxu0 0
    %3523 = vmatprep.subr.bf16.mxu0 0
    %3524 = vmatpush1.bf16.xpose.msra.mxu0 0
    %3525 = vmatprep.subr.bf16.mxu0 0
    %3526 = vmatpush1.bf16.xpose.msra.mxu0 0
    %3527 = vmatprep.subr.bf16.mxu0 0
    %3528 = vmatpush1.bf16.xpose.msra.mxu0 0
    %3529 = vmatprep.subr.bf16.mxu0 0
    %3530 = vmatpush1.bf16.xpose.msra.mxu0 0
    %3531 = vmatprep.subr.bf16.mxu0 0
    %3532 = vmatpush1.bf16.xpose.msra.mxu0 0
    %3533 = vmatprep.subr.bf16.mxu0 0
    %3534 = vmatpush1.bf16.xpose.msra.mxu0 0
    %3535 = vmatprep.subr.bf16.mxu0 0
    %3536 = vmatpush1.bf16.xpose.msra.mxu0 0
    %3537 = vmatprep.subr.bf16.mxu0 0
    %3538 = vmatpush1.bf16.xpose.msra.mxu0 0
    %3539 = vmatprep.subr.bf16.mxu0 0
    %3540 = vmatpush1.bf16.xpose.msra.mxu0 0
    %3541 = vmatprep.mubr.bf16.mxu0 0
    %3542 = vmatmul.mubr.bf16.gmra.mrb[0].mxu0 %v3504
    %v3543 = vpop.f32.mrb[0].mxu0
    %v3544 = vadd.f32 0.0, %v3543
    %v3545 = vpop.f32.mrb[0].mxu0
    %v3546 = vpop.f32.mrb[0].mxu0
    %v3547 = vpop.f32.mrb[0].mxu0
    %3548 = vdwg.mxu0
    %3549 = vrot.lane.b32.xlu0 %v3296, 96
    %v3550 = vpop.permute.xlu0 %3549
    %v3552 = vsel %vm556, %v3296, 0
    %v3555 = vsel %vm556, %v3550, 0
    %3557 = vmatprep.subr.bf16.mxu0 0
    %3558 = vmatpush1.bf16.xpose.msra.mxu0 %v3555
    %3559 = vmatprep.subr.bf16.mxu0 0
    %3560 = vmatpush1.bf16.xpose.msra.mxu0 0
    %3561 = vmatprep.subr.bf16.mxu0 0
    %3562 = vmatpush1.bf16.xpose.msra.mxu0 0
    %3563 = vmatprep.subr.bf16.mxu0 0
    %3564 = vmatpush1.bf16.xpose.msra.mxu0 0
    %3565 = vmatprep.subr.bf16.mxu0 0
    %3566 = vmatpush1.bf16.xpose.msra.mxu0 0
    %3567 = vmatprep.subr.bf16.mxu0 0
    %3568 = vmatpush1.bf16.xpose.msra.mxu0 0
    %3569 = vmatprep.subr.bf16.mxu0 0
    %3570 = vmatpush1.bf16.xpose.msra.mxu0 0
    %3571 = vmatprep.subr.bf16.mxu0 0
    %3572 = vmatpush1.bf16.xpose.msra.mxu0 0
    %3573 = vmatprep.subr.bf16.mxu0 0
    %3574 = vmatpush1.bf16.xpose.msra.mxu0 0
    %3575 = vmatprep.subr.bf16.mxu0 0
    %3576 = vmatpush1.bf16.xpose.msra.mxu0 0
    %3577 = vmatprep.subr.bf16.mxu0 0
    %3578 = vmatpush1.bf16.xpose.msra.mxu0 0
    %3579 = vmatprep.subr.bf16.mxu0 0
    %3580 = vmatpush1.bf16.xpose.msra.mxu0 0
    %3581 = vmatprep.subr.bf16.mxu0 0
    %3582 = vmatpush1.bf16.xpose.msra.mxu0 0
    %3583 = vmatprep.subr.bf16.mxu0 0
    %3584 = vmatpush1.bf16.xpose.msra.mxu0 0
    %3585 = vmatprep.subr.bf16.mxu0 0
    %3586 = vmatpush1.bf16.xpose.msra.mxu0 0
    %3587 = vmatprep.subr.bf16.mxu0 0
    %3588 = vmatpush1.bf16.xpose.msra.mxu0 0
    %3589 = vmatprep.mubr.bf16.mxu0 0
    %3590 = vmatmul.mubr.bf16.gmra.mrb[0].mxu0 %v3552
    %v3591 = vpop.f32.mrb[0].mxu0
    %v3592 = vadd.f32 0.0, %v3591
    %v3593 = vpop.f32.mrb[0].mxu0
    %v3594 = vpop.f32.mrb[0].mxu0
    %v3595 = vpop.f32.mrb[0].mxu0
    %3596 = vdwg.mxu0
    %3597 = vrot.lane.b32.xlu0 %v3298, 96
    %v3598 = vpop.permute.xlu0 %3597
    %v3600 = vsel %vm556, %v3298, 0
    %v3603 = vsel %vm556, %v3598, 0
    %3605 = vmatprep.subr.bf16.mxu0 0
    %3606 = vmatpush1.bf16.xpose.msra.mxu0 %v3603
    %3607 = vmatprep.subr.bf16.mxu0 0
    %3608 = vmatpush1.bf16.xpose.msra.mxu0 0
    %3609 = vmatprep.subr.bf16.mxu0 0
    %3610 = vmatpush1.bf16.xpose.msra.mxu0 0
    %3611 = vmatprep.subr.bf16.mxu0 0
    %3612 = vmatpush1.bf16.xpose.msra.mxu0 0
    %3613 = vmatprep.subr.bf16.mxu0 0
    %3614 = vmatpush1.bf16.xpose.msra.mxu0 0
    %3615 = vmatprep.subr.bf16.mxu0 0
    %3616 = vmatpush1.bf16.xpose.msra.mxu0 0
    %3617 = vmatprep.subr.bf16.mxu0 0
    %3618 = vmatpush1.bf16.xpose.msra.mxu0 0
    %3619 = vmatprep.subr.bf16.mxu0 0
    %3620 = vmatpush1.bf16.xpose.msra.mxu0 0
    %3621 = vmatprep.subr.bf16.mxu0 0
    %3622 = vmatpush1.bf16.xpose.msra.mxu0 0
    %3623 = vmatprep.subr.bf16.mxu0 0
    %3624 = vmatpush1.bf16.xpose.msra.mxu0 0
    %3625 = vmatprep.subr.bf16.mxu0 0
    %3626 = vmatpush1.bf16.xpose.msra.mxu0 0
    %3627 = vmatprep.subr.bf16.mxu0 0
    %3628 = vmatpush1.bf16.xpose.msra.mxu0 0
    %3629 = vmatprep.subr.bf16.mxu0 0
    %3630 = vmatpush1.bf16.xpose.msra.mxu0 0
    %3631 = vmatprep.subr.bf16.mxu0 0
    %3632 = vmatpush1.bf16.xpose.msra.mxu0 0
    %3633 = vmatprep.subr.bf16.mxu0 0
    %3634 = vmatpush1.bf16.xpose.msra.mxu0 0
    %3635 = vmatprep.subr.bf16.mxu0 0
    %3636 = vmatpush1.bf16.xpose.msra.mxu0 0
    %3637 = vmatprep.mubr.bf16.mxu0 0
    %3638 = vmatmul.mubr.bf16.gmra.mrb[0].mxu0 %v3600
    %v3639 = vpop.f32.mrb[0].mxu0
    %v3640 = vadd.f32 0.0, %v3639
    %v3641 = vpop.f32.mrb[0].mxu0
    %v3642 = vpop.f32.mrb[0].mxu0
    %v3643 = vpop.f32.mrb[0].mxu0
    %3644 = vdwg.mxu0
    %3645 = vrot.lane.b32.xlu0 %v3300, 96
    %v3646 = vpop.permute.xlu0 %3645
    %v3648 = vsel %vm556, %v3300, 0
    %v3651 = vsel %vm556, %v3646, 0
    %3653 = vmatprep.subr.bf16.mxu0 0
    %3654 = vmatpush1.bf16.xpose.msra.mxu0 %v3651
    %3655 = vmatprep.subr.bf16.mxu0 0
    %3656 = vmatpush1.bf16.xpose.msra.mxu0 0
    %3657 = vmatprep.subr.bf16.mxu0 0
    %3658 = vmatpush1.bf16.xpose.msra.mxu0 0
    %3659 = vmatprep.subr.bf16.mxu0 0
    %3660 = vmatpush1.bf16.xpose.msra.mxu0 0
    %3661 = vmatprep.subr.bf16.mxu0 0
    %3662 = vmatpush1.bf16.xpose.msra.mxu0 0
    %3663 = vmatprep.subr.bf16.mxu0 0
    %3664 = vmatpush1.bf16.xpose.msra.mxu0 0
    %3665 = vmatprep.subr.bf16.mxu0 0
    %3666 = vmatpush1.bf16.xpose.msra.mxu0 0
    %3667 = vmatprep.subr.bf16.mxu0 0
    %3668 = vmatpush1.bf16.xpose.msra.mxu0 0
    %3669 = vmatprep.subr.bf16.mxu0 0
    %3670 = vmatpush1.bf16.xpose.msra.mxu0 0
    %3671 = vmatprep.subr.bf16.mxu0 0
    %3672 = vmatpush1.bf16.xpose.msra.mxu0 0
    %3673 = vmatprep.subr.bf16.mxu0 0
    %3674 = vmatpush1.bf16.xpose.msra.mxu0 0
    %3675 = vmatprep.subr.bf16.mxu0 0
    %3676 = vmatpush1.bf16.xpose.msra.mxu0 0
    %3677 = vmatprep.subr.bf16.mxu0 0
    %3678 = vmatpush1.bf16.xpose.msra.mxu0 0
    %3679 = vmatprep.subr.bf16.mxu0 0
    %3680 = vmatpush1.bf16.xpose.msra.mxu0 0
    %3681 = vmatprep.subr.bf16.mxu0 0
    %3682 = vmatpush1.bf16.xpose.msra.mxu0 0
    %3683 = vmatprep.subr.bf16.mxu0 0
    %3684 = vmatpush1.bf16.xpose.msra.mxu0 0
    %3685 = vmatprep.mubr.bf16.mxu0 0
    %3686 = vmatmul.mubr.bf16.gmra.mrb[0].mxu0 %v3648
    %v3687 = vpop.f32.mrb[0].mxu0
    %v3688 = vadd.f32 0.0, %v3687
    %v3689 = vpop.f32.mrb[0].mxu0
    %v3690 = vpop.f32.mrb[0].mxu0
    %v3691 = vpop.f32.mrb[0].mxu0
    %3692 = vdwg.mxu0
    %3693 = vrot.lane.b32.xlu0 %v3302, 96
    %v3694 = vpop.permute.xlu0 %3693
    %v3696 = vsel %vm556, %v3302, 0
    %v3699 = vsel %vm556, %v3694, 0
    %3701 = vmatprep.subr.bf16.mxu0 0
    %3702 = vmatpush1.bf16.xpose.msra.mxu0 %v3699
    %3703 = vmatprep.subr.bf16.mxu0 0
    %3704 = vmatpush1.bf16.xpose.msra.mxu0 0
    %3705 = vmatprep.subr.bf16.mxu0 0
    %3706 = vmatpush1.bf16.xpose.msra.mxu0 0
    %3707 = vmatprep.subr.bf16.mxu0 0
    %3708 = vmatpush1.bf16.xpose.msra.mxu0 0
    %3709 = vmatprep.subr.bf16.mxu0 0
    %3710 = vmatpush1.bf16.xpose.msra.mxu0 0
    %3711 = vmatprep.subr.bf16.mxu0 0
    %3712 = vmatpush1.bf16.xpose.msra.mxu0 0
    %3713 = vmatprep.subr.bf16.mxu0 0
    %3714 = vmatpush1.bf16.xpose.msra.mxu0 0
    %3715 = vmatprep.subr.bf16.mxu0 0
    %3716 = vmatpush1.bf16.xpose.msra.mxu0 0
    %3717 = vmatprep.subr.bf16.mxu0 0
    %3718 = vmatpush1.bf16.xpose.msra.mxu0 0
    %3719 = vmatprep.subr.bf16.mxu0 0
    %3720 = vmatpush1.bf16.xpose.msra.mxu0 0
    %3721 = vmatprep.subr.bf16.mxu0 0
    %3722 = vmatpush1.bf16.xpose.msra.mxu0 0
    %3723 = vmatprep.subr.bf16.mxu0 0
    %3724 = vmatpush1.bf16.xpose.msra.mxu0 0
    %3725 = vmatprep.subr.bf16.mxu0 0
    %3726 = vmatpush1.bf16.xpose.msra.mxu0 0
    %3727 = vmatprep.subr.bf16.mxu0 0
    %3728 = vmatpush1.bf16.xpose.msra.mxu0 0
    %3729 = vmatprep.subr.bf16.mxu0 0
    %3730 = vmatpush1.bf16.xpose.msra.mxu0 0
    %3731 = vmatprep.subr.bf16.mxu0 0
    %3732 = vmatpush1.bf16.xpose.msra.mxu0 0
    %3733 = vmatprep.mubr.bf16.mxu0 0
    %3734 = vmatmul.mubr.bf16.gmra.mrb[0].mxu0 %v3696
    %v3735 = vpop.f32.mrb[0].mxu0
    %v3736 = vadd.f32 0.0, %v3735
    %v3737 = vpop.f32.mrb[0].mxu0
    %v3738 = vpop.f32.mrb[0].mxu0
    %v3739 = vpop.f32.mrb[0].mxu0
    %3740 = vdwg.mxu0
    %3741 = vrot.lane.b32.xlu0 %v3304, 96
    %v3742 = vpop.permute.xlu0 %3741
    %v3744 = vsel %vm556, %v3304, 0
    %v3747 = vsel %vm556, %v3742, 0
    %3749 = vmatprep.subr.bf16.mxu0 0
    %3750 = vmatpush1.bf16.xpose.msra.mxu0 %v3747
    %3751 = vmatprep.subr.bf16.mxu0 0
    %3752 = vmatpush1.bf16.xpose.msra.mxu0 0
    %3753 = vmatprep.subr.bf16.mxu0 0
    %3754 = vmatpush1.bf16.xpose.msra.mxu0 0
    %3755 = vmatprep.subr.bf16.mxu0 0
    %3756 = vmatpush1.bf16.xpose.msra.mxu0 0
    %3757 = vmatprep.subr.bf16.mxu0 0
    %3758 = vmatpush1.bf16.xpose.msra.mxu0 0
    %3759 = vmatprep.subr.bf16.mxu0 0
    %3760 = vmatpush1.bf16.xpose.msra.mxu0 0
    %3761 = vmatprep.subr.bf16.mxu0 0
    %3762 = vmatpush1.bf16.xpose.msra.mxu0 0
    %3763 = vmatprep.subr.bf16.mxu0 0
    %3764 = vmatpush1.bf16.xpose.msra.mxu0 0
    %3765 = vmatprep.subr.bf16.mxu0 0
    %3766 = vmatpush1.bf16.xpose.msra.mxu0 0
    %3767 = vmatprep.subr.bf16.mxu0 0
    %3768 = vmatpush1.bf16.xpose.msra.mxu0 0
    %3769 = vmatprep.subr.bf16.mxu0 0
    %3770 = vmatpush1.bf16.xpose.msra.mxu0 0
    %3771 = vmatprep.subr.bf16.mxu0 0
    %3772 = vmatpush1.bf16.xpose.msra.mxu0 0
    %3773 = vmatprep.subr.bf16.mxu0 0
    %3774 = vmatpush1.bf16.xpose.msra.mxu0 0
    %3775 = vmatprep.subr.bf16.mxu0 0
    %3776 = vmatpush1.bf16.xpose.msra.mxu0 0
    %3777 = vmatprep.subr.bf16.mxu0 0
    %3778 = vmatpush1.bf16.xpose.msra.mxu0 0
    %3779 = vmatprep.subr.bf16.mxu0 0
    %3780 = vmatpush1.bf16.xpose.msra.mxu0 0
    %3781 = vmatprep.mubr.bf16.mxu0 0
    %3782 = vmatmul.mubr.bf16.gmra.mrb[0].mxu0 %v3744
    %v3783 = vpop.f32.mrb[0].mxu0
    %v3784 = vadd.f32 0.0, %v3783
    %v3785 = vpop.f32.mrb[0].mxu0
    %v3786 = vpop.f32.mrb[0].mxu0
    %v3787 = vpop.f32.mrb[0].mxu0
    %3788 = vdwg.mxu0
    %3789 = vrot.lane.b32.xlu0 %v3306, 96
    %v3790 = vpop.permute.xlu0 %3789
    %v3792 = vsel %vm556, %v3306, 0
    %v3795 = vsel %vm556, %v3790, 0
    %3797 = vmatprep.subr.bf16.mxu0 0
    %3798 = vmatpush1.bf16.xpose.msra.mxu0 %v3795
    %3799 = vmatprep.subr.bf16.mxu0 0
    %3800 = vmatpush1.bf16.xpose.msra.mxu0 0
    %3801 = vmatprep.subr.bf16.mxu0 0
    %3802 = vmatpush1.bf16.xpose.msra.mxu0 0
    %3803 = vmatprep.subr.bf16.mxu0 0
    %3804 = vmatpush1.bf16.xpose.msra.mxu0 0
    %3805 = vmatprep.subr.bf16.mxu0 0
    %3806 = vmatpush1.bf16.xpose.msra.mxu0 0
    %3807 = vmatprep.subr.bf16.mxu0 0
    %3808 = vmatpush1.bf16.xpose.msra.mxu0 0
    %3809 = vmatprep.subr.bf16.mxu0 0
    %3810 = vmatpush1.bf16.xpose.msra.mxu0 0
    %3811 = vmatprep.subr.bf16.mxu0 0
    %3812 = vmatpush1.bf16.xpose.msra.mxu0 0
    %3813 = vmatprep.subr.bf16.mxu0 0
    %3814 = vmatpush1.bf16.xpose.msra.mxu0 0
    %3815 = vmatprep.subr.bf16.mxu0 0
    %3816 = vmatpush1.bf16.xpose.msra.mxu0 0
    %3817 = vmatprep.subr.bf16.mxu0 0
    %3818 = vmatpush1.bf16.xpose.msra.mxu0 0
    %3819 = vmatprep.subr.bf16.mxu0 0
    %3820 = vmatpush1.bf16.xpose.msra.mxu0 0
    %3821 = vmatprep.subr.bf16.mxu0 0
    %3822 = vmatpush1.bf16.xpose.msra.mxu0 0
    %3823 = vmatprep.subr.bf16.mxu0 0
    %3824 = vmatpush1.bf16.xpose.msra.mxu0 0
    %3825 = vmatprep.subr.bf16.mxu0 0
    %3826 = vmatpush1.bf16.xpose.msra.mxu0 0
    %3827 = vmatprep.subr.bf16.mxu0 0
    %3828 = vmatpush1.bf16.xpose.msra.mxu0 0
    %3829 = vmatprep.mubr.bf16.mxu0 0
    %3830 = vmatmul.mubr.bf16.gmra.mrb[0].mxu0 %v3792
    %v3831 = vpop.f32.mrb[0].mxu0
    %v3832 = vadd.f32 0.0, %v3831
    %v3833 = vpop.f32.mrb[0].mxu0
    %v3834 = vpop.f32.mrb[0].mxu0
    %v3835 = vpop.f32.mrb[0].mxu0
    %3836 = vdwg.mxu0
    %3837 = vrot.lane.b32.xlu0 %v3308, 96
    %v3838 = vpop.permute.xlu0 %3837
    %v3840 = vsel %vm556, %v3308, 0
    %v3843 = vsel %vm556, %v3838, 0
    %3845 = vmatprep.subr.bf16.mxu0 0
    %3846 = vmatpush1.bf16.xpose.msra.mxu0 %v3843
    %3847 = vmatprep.subr.bf16.mxu0 0
    %3848 = vmatpush1.bf16.xpose.msra.mxu0 0
    %3849 = vmatprep.subr.bf16.mxu0 0
    %3850 = vmatpush1.bf16.xpose.msra.mxu0 0
    %3851 = vmatprep.subr.bf16.mxu0 0
    %3852 = vmatpush1.bf16.xpose.msra.mxu0 0
    %3853 = vmatprep.subr.bf16.mxu0 0
    %3854 = vmatpush1.bf16.xpose.msra.mxu0 0
    %3855 = vmatprep.subr.bf16.mxu0 0
    %3856 = vmatpush1.bf16.xpose.msra.mxu0 0
    %3857 = vmatprep.subr.bf16.mxu0 0
    %3858 = vmatpush1.bf16.xpose.msra.mxu0 0
    %3859 = vmatprep.subr.bf16.mxu0 0
    %3860 = vmatpush1.bf16.xpose.msra.mxu0 0
    %3861 = vmatprep.subr.bf16.mxu0 0
    %3862 = vmatpush1.bf16.xpose.msra.mxu0 0
    %3863 = vmatprep.subr.bf16.mxu0 0
    %3864 = vmatpush1.bf16.xpose.msra.mxu0 0
    %3865 = vmatprep.subr.bf16.mxu0 0
    %3866 = vmatpush1.bf16.xpose.msra.mxu0 0
    %3867 = vmatprep.subr.bf16.mxu0 0
    %3868 = vmatpush1.bf16.xpose.msra.mxu0 0
    %3869 = vmatprep.subr.bf16.mxu0 0
    %3870 = vmatpush1.bf16.xpose.msra.mxu0 0
    %3871 = vmatprep.subr.bf16.mxu0 0
    %3872 = vmatpush1.bf16.xpose.msra.mxu0 0
    %3873 = vmatprep.subr.bf16.mxu0 0
    %3874 = vmatpush1.bf16.xpose.msra.mxu0 0
    %3875 = vmatprep.subr.bf16.mxu0 0
    %3876 = vmatpush1.bf16.xpose.msra.mxu0 0
    %3877 = vmatprep.mubr.bf16.mxu0 0
    %3878 = vmatmul.mubr.bf16.gmra.mrb[0].mxu0 %v3840
    %v3879 = vpop.f32.mrb[0].mxu0
    %v3880 = vadd.f32 0.0, %v3879
    %v3881 = vpop.f32.mrb[0].mxu0
    %v3882 = vpop.f32.mrb[0].mxu0
    %v3883 = vpop.f32.mrb[0].mxu0
    %3884 = vdwg.mxu0
    %v3885 = vsel %vm556, %v3352, -inf
    %3886 = vmax.xlane.f32.xlu0 %v3885
    %v3887 = vpop.xlane.xlu0 %3886
    %v3888 = vsel %vm556, %v3400, -inf
    %3889 = vmax.xlane.f32.xlu0 %v3888
    %v3890 = vpop.xlane.xlu0 %3889
    %v3891 = vsel %vm556, %v3448, -inf
    %3892 = vmax.xlane.f32.xlu0 %v3891
    %v3893 = vpop.xlane.xlu0 %3892
    %v3894 = vsel %vm556, %v3496, -inf
    %3895 = vmax.xlane.f32.xlu0 %v3894
    %v3896 = vpop.xlane.xlu0 %3895
    %v3897 = vsel %vm556, %v3544, -inf
    %3898 = vmax.xlane.f32.xlu0 %v3897
    %v3899 = vpop.xlane.xlu0 %3898
    %v3900 = vsel %vm556, %v3592, -inf
    %3901 = vmax.xlane.f32.xlu0 %v3900
    %v3902 = vpop.xlane.xlu0 %3901
    %v3903 = vsel %vm556, %v3640, -inf
    %3904 = vmax.xlane.f32.xlu0 %v3903
    %v3905 = vpop.xlane.xlu0 %3904
    %v3906 = vsel %vm556, %v3688, -inf
    %3907 = vmax.xlane.f32.xlu0 %v3906
    %v3908 = vpop.xlane.xlu0 %3907
    %v3909 = vsel %vm556, %v3736, -inf
    %3910 = vmax.xlane.f32.xlu0 %v3909
    %v3911 = vpop.xlane.xlu0 %3910
    %v3912 = vsel %vm556, %v3784, -inf
    %3913 = vmax.xlane.f32.xlu0 %v3912
    %v3914 = vpop.xlane.xlu0 %3913
    %v3915 = vsel %vm556, %v3832, -inf
    %3916 = vmax.xlane.f32.xlu0 %v3915
    %v3917 = vpop.xlane.xlu0 %3916
    %v3918 = vsel %vm556, %v3880, -inf
    %3919 = vmax.xlane.f32.xlu0 %v3918
    %v3920 = vpop.xlane.xlu0 %3919
    %v3921 = vsub.f32 %v3352, %v3887
    %v3922 = vsub.f32 %v3400, %v3890
    %v3923 = vsub.f32 %v3448, %v3893
    %v3924 = vsub.f32 %v3496, %v3896
    %v3925 = vsub.f32 %v3544, %v3899
    %v3926 = vsub.f32 %v3592, %v3902
    %v3927 = vsub.f32 %v3640, %v3905
    %v3928 = vsub.f32 %v3688, %v3908
    %v3929 = vsub.f32 %v3736, %v3911
    %v3930 = vsub.f32 %v3784, %v3914
    %v3931 = vsub.f32 %v3832, %v3917
    %v3932 = vsub.f32 %v3880, %v3920
    %v3933 = vmul.f32 %v3921, 1.442695
    %v3934 = vpow.pop %v3933
    %v3935 = vmul.f32 %v3922, 1.442695
    %v3936 = vpow.pop %v3935
    %v3937 = vmul.f32 %v3923, 1.442695
    %v3938 = vpow.pop %v3937
    %v3939 = vmul.f32 %v3924, 1.442695
    %v3940 = vpow.pop %v3939
    %v3941 = vmul.f32 %v3925, 1.442695
    %v3942 = vpow.pop %v3941
    %v3943 = vmul.f32 %v3926, 1.442695
    %v3944 = vpow.pop %v3943
    %v3945 = vmul.f32 %v3927, 1.442695
    %v3946 = vpow.pop %v3945
    %v3947 = vmul.f32 %v3928, 1.442695
    %v3948 = vpow.pop %v3947
    %v3949 = vmul.f32 %v3929, 1.442695
    %v3950 = vpow.pop %v3949
    %v3951 = vmul.f32 %v3930, 1.442695
    %v3952 = vpow.pop %v3951
    %v3953 = vmul.f32 %v3931, 1.442695
    %v3954 = vpow.pop %v3953
    %v3955 = vmul.f32 %v3932, 1.442695
    %v3956 = vpow.pop %v3955
    %v3957 = vsel %vm556, %v3934, 0.0
    %3958 = vadd.xlane.f32.xlu0 %v3957
    %v3959 = vpop.xlane.xlu0 %3958
    %v3960 = vsel %vm556, %v3936, 0.0
    %3961 = vadd.xlane.f32.xlu0 %v3960
    %v3962 = vpop.xlane.xlu0 %3961
    %v3963 = vsel %vm556, %v3938, 0.0
    %3964 = vadd.xlane.f32.xlu0 %v3963
    %v3965 = vpop.xlane.xlu0 %3964
    %v3966 = vsel %vm556, %v3940, 0.0
    %3967 = vadd.xlane.f32.xlu0 %v3966
    %v3968 = vpop.xlane.xlu0 %3967
    %v3969 = vsel %vm556, %v3942, 0.0
    %3970 = vadd.xlane.f32.xlu0 %v3969
    %v3971 = vpop.xlane.xlu0 %3970
    %v3972 = vsel %vm556, %v3944, 0.0
    %3973 = vadd.xlane.f32.xlu0 %v3972
    %v3974 = vpop.xlane.xlu0 %3973
    %v3975 = vsel %vm556, %v3946, 0.0
    %3976 = vadd.xlane.f32.xlu0 %v3975
    %v3977 = vpop.xlane.xlu0 %3976
    %v3978 = vsel %vm556, %v3948, 0.0
    %3979 = vadd.xlane.f32.xlu0 %v3978
    %v3980 = vpop.xlane.xlu0 %3979
    %v3981 = vsel %vm556, %v3950, 0.0
    %3982 = vadd.xlane.f32.xlu0 %v3981
    %v3983 = vpop.xlane.xlu0 %3982
    %v3984 = vsel %vm556, %v3952, 0.0
    %3985 = vadd.xlane.f32.xlu0 %v3984
    %v3986 = vpop.xlane.xlu0 %3985
    %v3987 = vsel %vm556, %v3954, 0.0
    %3988 = vadd.xlane.f32.xlu0 %v3987
    %v3989 = vpop.xlane.xlu0 %3988
    %v3990 = vsel %vm556, %v3956, 0.0
    %3991 = vadd.xlane.f32.xlu0 %v3990
    %v3992 = vpop.xlane.xlu0 %3991
    %v3993 = vrcp.pop %v3959
    %v3994 = vrcp.pop %v3962
    %v3995 = vrcp.pop %v3965
    %v3996 = vrcp.pop %v3968
    %v3997 = vrcp.pop %v3971
    %v3998 = vrcp.pop %v3974
    %v3999 = vrcp.pop %v3977
    %v4000 = vrcp.pop %v3980
    %v4001 = vrcp.pop %v3983
    %v4002 = vrcp.pop %v3986
    %v4003 = vrcp.pop %v3989
    %v4004 = vrcp.pop %v3992
    %v4005 = vmul.f32 %v3934, %v3993
    %v4006 = vmul.f32 %v3936, %v3994
    %v4007 = vmul.f32 %v3938, %v3995
    %v4008 = vmul.f32 %v3940, %v3996
    %v4009 = vmul.f32 %v3942, %v3997
    %v4010 = vmul.f32 %v3944, %v3998
    %v4011 = vmul.f32 %v3946, %v3999
    %v4012 = vmul.f32 %v3948, %v4000
    %v4013 = vmul.f32 %v3950, %v4001
    %v4014 = vmul.f32 %v3952, %v4002
    %v4015 = vmul.f32 %v3954, %v4003
    %v4016 = vmul.f32 %v3956, %v4004
    %v4017 = vpack.c.bf16 %v4005, %v4005
    %v4018 = vpack.c.bf16 %v4006, %v4006
    %v4019 = vpack.c.bf16 %v4007, %v4007
    %v4020 = vpack.c.bf16 %v4008, %v4008
    %v4021 = vpack.c.bf16 %v4009, %v4009
    %v4022 = vpack.c.bf16 %v4010, %v4010
    %v4023 = vpack.c.bf16 %v4011, %v4011
    %v4024 = vpack.c.bf16 %v4012, %v4012
    %v4025 = vpack.c.bf16 %v4013, %v4013
    %v4026 = vpack.c.bf16 %v4014, %v4014
    %v4027 = vpack.c.bf16 %v4015, %v4015
    %v4028 = vpack.c.bf16 %v4016, %v4016
    %4029 = vrot.lane.b32.xlu0 %v3285, 64
    %v4030 = vpop.permute.xlu0 %4029
    %v4032 = vsel %vm556, %v4017, 0
    %v4035 = vsel %vm1280, %v4030, 0
    %4037 = vmatprep.subr.bf16.mxu0 0
    %4038 = vmatpush1.bf16.msra.mxu0 %v4035
    %4039 = vmatprep.subr.bf16.mxu0 0
    %4040 = vmatpush1.bf16.msra.mxu0 0
    %4041 = vmatprep.subr.bf16.mxu0 0
    %4042 = vmatpush1.bf16.msra.mxu0 0
    %4043 = vmatprep.subr.bf16.mxu0 0
    %4044 = vmatpush1.bf16.msra.mxu0 0
    %4045 = vmatprep.subr.bf16.mxu0 0
    %4046 = vmatpush1.bf16.msra.mxu0 0
    %4047 = vmatprep.subr.bf16.mxu0 0
    %4048 = vmatpush1.bf16.msra.mxu0 0
    %4049 = vmatprep.subr.bf16.mxu0 0
    %4050 = vmatpush1.bf16.msra.mxu0 0
    %4051 = vmatprep.subr.bf16.mxu0 0
    %4052 = vmatpush1.bf16.msra.mxu0 0
    %4053 = vmatprep.subr.bf16.mxu0 0
    %4054 = vmatpush1.bf16.msra.mxu0 0
    %4055 = vmatprep.subr.bf16.mxu0 0
    %4056 = vmatpush1.bf16.msra.mxu0 0
    %4057 = vmatprep.subr.bf16.mxu0 0
    %4058 = vmatpush1.bf16.msra.mxu0 0
    %4059 = vmatprep.subr.bf16.mxu0 0
    %4060 = vmatpush1.bf16.msra.mxu0 0
    %4061 = vmatprep.subr.bf16.mxu0 0
    %4062 = vmatpush1.bf16.msra.mxu0 0
    %4063 = vmatprep.subr.bf16.mxu0 0
    %4064 = vmatpush1.bf16.msra.mxu0 0
    %4065 = vmatprep.subr.bf16.mxu0 0
    %4066 = vmatpush1.bf16.msra.mxu0 0
    %4067 = vmatprep.subr.bf16.mxu0 0
    %4068 = vmatpush1.bf16.msra.mxu0 0
    %4069 = vmatprep.mubr.bf16.mxu0 0
    %4070 = vmatmul.mubr.bf16.gmra.mrb[0].mxu0 %v4032
    %v4071 = vpop.f32.mrb[0].mxu0
    %v4072 = vadd.f32 0.0, %v4071
    %v4073 = vpop.f32.mrb[0].mxu0
    %v4074 = vpop.f32.mrb[0].mxu0
    %v4075 = vpop.f32.mrb[0].mxu0
    %4076 = vdwg.mxu0
    %4077 = vrot.lane.b32.xlu0 %v3286, 64
    %v4078 = vpop.permute.xlu0 %4077
    %v4080 = vsel %vm556, %v4018, 0
    %v4083 = vsel %vm1280, %v4078, 0
    %4085 = vmatprep.subr.bf16.mxu0 0
    %4086 = vmatpush1.bf16.msra.mxu0 %v4083
    %4087 = vmatprep.subr.bf16.mxu0 0
    %4088 = vmatpush1.bf16.msra.mxu0 0
    %4089 = vmatprep.subr.bf16.mxu0 0
    %4090 = vmatpush1.bf16.msra.mxu0 0
    %4091 = vmatprep.subr.bf16.mxu0 0
    %4092 = vmatpush1.bf16.msra.mxu0 0
    %4093 = vmatprep.subr.bf16.mxu0 0
    %4094 = vmatpush1.bf16.msra.mxu0 0
    %4095 = vmatprep.subr.bf16.mxu0 0
    %4096 = vmatpush1.bf16.msra.mxu0 0
    %4097 = vmatprep.subr.bf16.mxu0 0
    %4098 = vmatpush1.bf16.msra.mxu0 0
    %4099 = vmatprep.subr.bf16.mxu0 0
    %4100 = vmatpush1.bf16.msra.mxu0 0
    %4101 = vmatprep.subr.bf16.mxu0 0
    %4102 = vmatpush1.bf16.msra.mxu0 0
    %4103 = vmatprep.subr.bf16.mxu0 0
    %4104 = vmatpush1.bf16.msra.mxu0 0
    %4105 = vmatprep.subr.bf16.mxu0 0
    %4106 = vmatpush1.bf16.msra.mxu0 0
    %4107 = vmatprep.subr.bf16.mxu0 0
    %4108 = vmatpush1.bf16.msra.mxu0 0
    %4109 = vmatprep.subr.bf16.mxu0 0
    %4110 = vmatpush1.bf16.msra.mxu0 0
    %4111 = vmatprep.subr.bf16.mxu0 0
    %4112 = vmatpush1.bf16.msra.mxu0 0
    %4113 = vmatprep.subr.bf16.mxu0 0
    %4114 = vmatpush1.bf16.msra.mxu0 0
    %4115 = vmatprep.subr.bf16.mxu0 0
    %4116 = vmatpush1.bf16.msra.mxu0 0
    %4117 = vmatprep.mubr.bf16.mxu0 0
    %4118 = vmatmul.mubr.bf16.gmra.mrb[0].mxu0 %v4080
    %v4119 = vpop.f32.mrb[0].mxu0
    %v4120 = vadd.f32 0.0, %v4119
    %v4121 = vpop.f32.mrb[0].mxu0
    %v4122 = vpop.f32.mrb[0].mxu0
    %v4123 = vpop.f32.mrb[0].mxu0
    %4124 = vdwg.mxu0
    %4125 = vrot.lane.b32.xlu0 %v3287, 64
    %v4126 = vpop.permute.xlu0 %4125
    %v4128 = vsel %vm556, %v4019, 0
    %v4131 = vsel %vm1280, %v4126, 0
    %4133 = vmatprep.subr.bf16.mxu0 0
    %4134 = vmatpush1.bf16.msra.mxu0 %v4131
    %4135 = vmatprep.subr.bf16.mxu0 0
    %4136 = vmatpush1.bf16.msra.mxu0 0
    %4137 = vmatprep.subr.bf16.mxu0 0
    %4138 = vmatpush1.bf16.msra.mxu0 0
    %4139 = vmatprep.subr.bf16.mxu0 0
    %4140 = vmatpush1.bf16.msra.mxu0 0
    %4141 = vmatprep.subr.bf16.mxu0 0
    %4142 = vmatpush1.bf16.msra.mxu0 0
    %4143 = vmatprep.subr.bf16.mxu0 0
    %4144 = vmatpush1.bf16.msra.mxu0 0
    %4145 = vmatprep.subr.bf16.mxu0 0
    %4146 = vmatpush1.bf16.msra.mxu0 0
    %4147 = vmatprep.subr.bf16.mxu0 0
    %4148 = vmatpush1.bf16.msra.mxu0 0
    %4149 = vmatprep.subr.bf16.mxu0 0
    %4150 = vmatpush1.bf16.msra.mxu0 0
    %4151 = vmatprep.subr.bf16.mxu0 0
    %4152 = vmatpush1.bf16.msra.mxu0 0
    %4153 = vmatprep.subr.bf16.mxu0 0
    %4154 = vmatpush1.bf16.msra.mxu0 0
    %4155 = vmatprep.subr.bf16.mxu0 0
    %4156 = vmatpush1.bf16.msra.mxu0 0
    %4157 = vmatprep.subr.bf16.mxu0 0
    %4158 = vmatpush1.bf16.msra.mxu0 0
    %4159 = vmatprep.subr.bf16.mxu0 0
    %4160 = vmatpush1.bf16.msra.mxu0 0
    %4161 = vmatprep.subr.bf16.mxu0 0
    %4162 = vmatpush1.bf16.msra.mxu0 0
    %4163 = vmatprep.subr.bf16.mxu0 0
    %4164 = vmatpush1.bf16.msra.mxu0 0
    %4165 = vmatprep.mubr.bf16.mxu0 0
    %4166 = vmatmul.mubr.bf16.gmra.mrb[0].mxu0 %v4128
    %v4167 = vpop.f32.mrb[0].mxu0
    %v4168 = vadd.f32 0.0, %v4167
    %v4169 = vpop.f32.mrb[0].mxu0
    %v4170 = vpop.f32.mrb[0].mxu0
    %v4171 = vpop.f32.mrb[0].mxu0
    %4172 = vdwg.mxu0
    %4173 = vrot.lane.b32.xlu0 %v3292, 64
    %v4174 = vpop.permute.xlu0 %4173
    %v4176 = vsel %vm556, %v4020, 0
    %v4179 = vsel %vm1280, %v4174, 0
    %4181 = vmatprep.subr.bf16.mxu0 0
    %4182 = vmatpush1.bf16.msra.mxu0 %v4179
    %4183 = vmatprep.subr.bf16.mxu0 0
    %4184 = vmatpush1.bf16.msra.mxu0 0
    %4185 = vmatprep.subr.bf16.mxu0 0
    %4186 = vmatpush1.bf16.msra.mxu0 0
    %4187 = vmatprep.subr.bf16.mxu0 0
    %4188 = vmatpush1.bf16.msra.mxu0 0
    %4189 = vmatprep.subr.bf16.mxu0 0
    %4190 = vmatpush1.bf16.msra.mxu0 0
    %4191 = vmatprep.subr.bf16.mxu0 0
    %4192 = vmatpush1.bf16.msra.mxu0 0
    %4193 = vmatprep.subr.bf16.mxu0 0
    %4194 = vmatpush1.bf16.msra.mxu0 0
    %4195 = vmatprep.subr.bf16.mxu0 0
    %4196 = vmatpush1.bf16.msra.mxu0 0
    %4197 = vmatprep.subr.bf16.mxu0 0
    %4198 = vmatpush1.bf16.msra.mxu0 0
    %4199 = vmatprep.subr.bf16.mxu0 0
    %4200 = vmatpush1.bf16.msra.mxu0 0
    %4201 = vmatprep.subr.bf16.mxu0 0
    %4202 = vmatpush1.bf16.msra.mxu0 0
    %4203 = vmatprep.subr.bf16.mxu0 0
    %4204 = vmatpush1.bf16.msra.mxu0 0
    %4205 = vmatprep.subr.bf16.mxu0 0
    %4206 = vmatpush1.bf16.msra.mxu0 0
    %4207 = vmatprep.subr.bf16.mxu0 0
    %4208 = vmatpush1.bf16.msra.mxu0 0
    %4209 = vmatprep.subr.bf16.mxu0 0
    %4210 = vmatpush1.bf16.msra.mxu0 0
    %4211 = vmatprep.subr.bf16.mxu0 0
    %4212 = vmatpush1.bf16.msra.mxu0 0
    %4213 = vmatprep.mubr.bf16.mxu0 0
    %4214 = vmatmul.mubr.bf16.gmra.mrb[0].mxu0 %v4176
    %v4215 = vpop.f32.mrb[0].mxu0
    %v4216 = vadd.f32 0.0, %v4215
    %v4217 = vpop.f32.mrb[0].mxu0
    %v4218 = vpop.f32.mrb[0].mxu0
    %v4219 = vpop.f32.mrb[0].mxu0
    %4220 = vdwg.mxu0
    %4221 = vrot.lane.b32.xlu0 %v3294, 64
    %v4222 = vpop.permute.xlu0 %4221
    %v4224 = vsel %vm556, %v4021, 0
    %v4227 = vsel %vm1280, %v4222, 0
    %4229 = vmatprep.subr.bf16.mxu0 0
    %4230 = vmatpush1.bf16.msra.mxu0 %v4227
    %4231 = vmatprep.subr.bf16.mxu0 0
    %4232 = vmatpush1.bf16.msra.mxu0 0
    %4233 = vmatprep.subr.bf16.mxu0 0
    %4234 = vmatpush1.bf16.msra.mxu0 0
    %4235 = vmatprep.subr.bf16.mxu0 0
    %4236 = vmatpush1.bf16.msra.mxu0 0
    %4237 = vmatprep.subr.bf16.mxu0 0
    %4238 = vmatpush1.bf16.msra.mxu0 0
    %4239 = vmatprep.subr.bf16.mxu0 0
    %4240 = vmatpush1.bf16.msra.mxu0 0
    %4241 = vmatprep.subr.bf16.mxu0 0
    %4242 = vmatpush1.bf16.msra.mxu0 0
    %4243 = vmatprep.subr.bf16.mxu0 0
    %4244 = vmatpush1.bf16.msra.mxu0 0
    %4245 = vmatprep.subr.bf16.mxu0 0
    %4246 = vmatpush1.bf16.msra.mxu0 0
    %4247 = vmatprep.subr.bf16.mxu0 0
    %4248 = vmatpush1.bf16.msra.mxu0 0
    %4249 = vmatprep.subr.bf16.mxu0 0
    %4250 = vmatpush1.bf16.msra.mxu0 0
    %4251 = vmatprep.subr.bf16.mxu0 0
    %4252 = vmatpush1.bf16.msra.mxu0 0
    %4253 = vmatprep.subr.bf16.mxu0 0
    %4254 = vmatpush1.bf16.msra.mxu0 0
    %4255 = vmatprep.subr.bf16.mxu0 0
    %4256 = vmatpush1.bf16.msra.mxu0 0
    %4257 = vmatprep.subr.bf16.mxu0 0
    %4258 = vmatpush1.bf16.msra.mxu0 0
    %4259 = vmatprep.subr.bf16.mxu0 0
    %4260 = vmatpush1.bf16.msra.mxu0 0
    %4261 = vmatprep.mubr.bf16.mxu0 0
    %4262 = vmatmul.mubr.bf16.gmra.mrb[0].mxu0 %v4224
    %v4263 = vpop.f32.mrb[0].mxu0
    %v4264 = vadd.f32 0.0, %v4263
    %v4265 = vpop.f32.mrb[0].mxu0
    %v4266 = vpop.f32.mrb[0].mxu0
    %v4267 = vpop.f32.mrb[0].mxu0
    %4268 = vdwg.mxu0
    %4269 = vrot.lane.b32.xlu0 %v3296, 64
    %v4270 = vpop.permute.xlu0 %4269
    %v4272 = vsel %vm556, %v4022, 0
    %v4275 = vsel %vm1280, %v4270, 0
    %4277 = vmatprep.subr.bf16.mxu0 0
    %4278 = vmatpush1.bf16.msra.mxu0 %v4275
    %4279 = vmatprep.subr.bf16.mxu0 0
    %4280 = vmatpush1.bf16.msra.mxu0 0
    %4281 = vmatprep.subr.bf16.mxu0 0
    %4282 = vmatpush1.bf16.msra.mxu0 0
    %4283 = vmatprep.subr.bf16.mxu0 0
    %4284 = vmatpush1.bf16.msra.mxu0 0
    %4285 = vmatprep.subr.bf16.mxu0 0
    %4286 = vmatpush1.bf16.msra.mxu0 0
    %4287 = vmatprep.subr.bf16.mxu0 0
    %4288 = vmatpush1.bf16.msra.mxu0 0
    %4289 = vmatprep.subr.bf16.mxu0 0
    %4290 = vmatpush1.bf16.msra.mxu0 0
    %4291 = vmatprep.subr.bf16.mxu0 0
    %4292 = vmatpush1.bf16.msra.mxu0 0
    %4293 = vmatprep.subr.bf16.mxu0 0
    %4294 = vmatpush1.bf16.msra.mxu0 0
    %4295 = vmatprep.subr.bf16.mxu0 0
    %4296 = vmatpush1.bf16.msra.mxu0 0
    %4297 = vmatprep.subr.bf16.mxu0 0
    %4298 = vmatpush1.bf16.msra.mxu0 0
    %4299 = vmatprep.subr.bf16.mxu0 0
    %4300 = vmatpush1.bf16.msra.mxu0 0
    %4301 = vmatprep.subr.bf16.mxu0 0
    %4302 = vmatpush1.bf16.msra.mxu0 0
    %4303 = vmatprep.subr.bf16.mxu0 0
    %4304 = vmatpush1.bf16.msra.mxu0 0
    %4305 = vmatprep.subr.bf16.mxu0 0
    %4306 = vmatpush1.bf16.msra.mxu0 0
    %4307 = vmatprep.subr.bf16.mxu0 0
    %4308 = vmatpush1.bf16.msra.mxu0 0
    %4309 = vmatprep.mubr.bf16.mxu0 0
    %4310 = vmatmul.mubr.bf16.gmra.mrb[0].mxu0 %v4272
    %v4311 = vpop.f32.mrb[0].mxu0
    %v4312 = vadd.f32 0.0, %v4311
    %v4313 = vpop.f32.mrb[0].mxu0
    %v4314 = vpop.f32.mrb[0].mxu0
    %v4315 = vpop.f32.mrb[0].mxu0
    %4316 = vdwg.mxu0
    %4317 = vrot.lane.b32.xlu0 %v3298, 64
    %v4318 = vpop.permute.xlu0 %4317
    %v4320 = vsel %vm556, %v4023, 0
    %v4323 = vsel %vm1280, %v4318, 0
    %4325 = vmatprep.subr.bf16.mxu0 0
    %4326 = vmatpush1.bf16.msra.mxu0 %v4323
    %4327 = vmatprep.subr.bf16.mxu0 0
    %4328 = vmatpush1.bf16.msra.mxu0 0
    %4329 = vmatprep.subr.bf16.mxu0 0
    %4330 = vmatpush1.bf16.msra.mxu0 0
    %4331 = vmatprep.subr.bf16.mxu0 0
    %4332 = vmatpush1.bf16.msra.mxu0 0
    %4333 = vmatprep.subr.bf16.mxu0 0
    %4334 = vmatpush1.bf16.msra.mxu0 0
    %4335 = vmatprep.subr.bf16.mxu0 0
    %4336 = vmatpush1.bf16.msra.mxu0 0
    %4337 = vmatprep.subr.bf16.mxu0 0
    %4338 = vmatpush1.bf16.msra.mxu0 0
    %4339 = vmatprep.subr.bf16.mxu0 0
    %4340 = vmatpush1.bf16.msra.mxu0 0
    %4341 = vmatprep.subr.bf16.mxu0 0
    %4342 = vmatpush1.bf16.msra.mxu0 0
    %4343 = vmatprep.subr.bf16.mxu0 0
    %4344 = vmatpush1.bf16.msra.mxu0 0
    %4345 = vmatprep.subr.bf16.mxu0 0
    %4346 = vmatpush1.bf16.msra.mxu0 0
    %4347 = vmatprep.subr.bf16.mxu0 0
    %4348 = vmatpush1.bf16.msra.mxu0 0
    %4349 = vmatprep.subr.bf16.mxu0 0
    %4350 = vmatpush1.bf16.msra.mxu0 0
    %4351 = vmatprep.subr.bf16.mxu0 0
    %4352 = vmatpush1.bf16.msra.mxu0 0
    %4353 = vmatprep.subr.bf16.mxu0 0
    %4354 = vmatpush1.bf16.msra.mxu0 0
    %4355 = vmatprep.subr.bf16.mxu0 0
    %4356 = vmatpush1.bf16.msra.mxu0 0
    %4357 = vmatprep.mubr.bf16.mxu0 0
    %4358 = vmatmul.mubr.bf16.gmra.mrb[0].mxu0 %v4320
    %v4359 = vpop.f32.mrb[0].mxu0
    %v4360 = vadd.f32 0.0, %v4359
    %v4361 = vpop.f32.mrb[0].mxu0
    %v4362 = vpop.f32.mrb[0].mxu0
    %v4363 = vpop.f32.mrb[0].mxu0
    %4364 = vdwg.mxu0
    %4365 = vrot.lane.b32.xlu0 %v3300, 64
    %v4366 = vpop.permute.xlu0 %4365
    %v4368 = vsel %vm556, %v4024, 0
    %v4371 = vsel %vm1280, %v4366, 0
    %4373 = vmatprep.subr.bf16.mxu0 0
    %4374 = vmatpush1.bf16.msra.mxu0 %v4371
    %4375 = vmatprep.subr.bf16.mxu0 0
    %4376 = vmatpush1.bf16.msra.mxu0 0
    %4377 = vmatprep.subr.bf16.mxu0 0
    %4378 = vmatpush1.bf16.msra.mxu0 0
    %4379 = vmatprep.subr.bf16.mxu0 0
    %4380 = vmatpush1.bf16.msra.mxu0 0
    %4381 = vmatprep.subr.bf16.mxu0 0
    %4382 = vmatpush1.bf16.msra.mxu0 0
    %4383 = vmatprep.subr.bf16.mxu0 0
    %4384 = vmatpush1.bf16.msra.mxu0 0
    %4385 = vmatprep.subr.bf16.mxu0 0
    %4386 = vmatpush1.bf16.msra.mxu0 0
    %4387 = vmatprep.subr.bf16.mxu0 0
    %4388 = vmatpush1.bf16.msra.mxu0 0
    %4389 = vmatprep.subr.bf16.mxu0 0
    %4390 = vmatpush1.bf16.msra.mxu0 0
    %4391 = vmatprep.subr.bf16.mxu0 0
    %4392 = vmatpush1.bf16.msra.mxu0 0
    %4393 = vmatprep.subr.bf16.mxu0 0
    %4394 = vmatpush1.bf16.msra.mxu0 0
    %4395 = vmatprep.subr.bf16.mxu0 0
    %4396 = vmatpush1.bf16.msra.mxu0 0
    %4397 = vmatprep.subr.bf16.mxu0 0
    %4398 = vmatpush1.bf16.msra.mxu0 0
    %4399 = vmatprep.subr.bf16.mxu0 0
    %4400 = vmatpush1.bf16.msra.mxu0 0
    %4401 = vmatprep.subr.bf16.mxu0 0
    %4402 = vmatpush1.bf16.msra.mxu0 0
    %4403 = vmatprep.subr.bf16.mxu0 0
    %4404 = vmatpush1.bf16.msra.mxu0 0
    %4405 = vmatprep.mubr.bf16.mxu0 0
    %4406 = vmatmul.mubr.bf16.gmra.mrb[0].mxu0 %v4368
    %v4407 = vpop.f32.mrb[0].mxu0
    %v4408 = vadd.f32 0.0, %v4407
    %v4409 = vpop.f32.mrb[0].mxu0
    %v4410 = vpop.f32.mrb[0].mxu0
    %v4411 = vpop.f32.mrb[0].mxu0
    %4412 = vdwg.mxu0
    %4413 = vrot.lane.b32.xlu0 %v3302, 64
    %v4414 = vpop.permute.xlu0 %4413
    %v4416 = vsel %vm556, %v4025, 0
    %v4419 = vsel %vm1280, %v4414, 0
    %4421 = vmatprep.subr.bf16.mxu0 0
    %4422 = vmatpush1.bf16.msra.mxu0 %v4419
    %4423 = vmatprep.subr.bf16.mxu0 0
    %4424 = vmatpush1.bf16.msra.mxu0 0
    %4425 = vmatprep.subr.bf16.mxu0 0
    %4426 = vmatpush1.bf16.msra.mxu0 0
    %4427 = vmatprep.subr.bf16.mxu0 0
    %4428 = vmatpush1.bf16.msra.mxu0 0
    %4429 = vmatprep.subr.bf16.mxu0 0
    %4430 = vmatpush1.bf16.msra.mxu0 0
    %4431 = vmatprep.subr.bf16.mxu0 0
    %4432 = vmatpush1.bf16.msra.mxu0 0
    %4433 = vmatprep.subr.bf16.mxu0 0
    %4434 = vmatpush1.bf16.msra.mxu0 0
    %4435 = vmatprep.subr.bf16.mxu0 0
    %4436 = vmatpush1.bf16.msra.mxu0 0
    %4437 = vmatprep.subr.bf16.mxu0 0
    %4438 = vmatpush1.bf16.msra.mxu0 0
    %4439 = vmatprep.subr.bf16.mxu0 0
    %4440 = vmatpush1.bf16.msra.mxu0 0
    %4441 = vmatprep.subr.bf16.mxu0 0
    %4442 = vmatpush1.bf16.msra.mxu0 0
    %4443 = vmatprep.subr.bf16.mxu0 0
    %4444 = vmatpush1.bf16.msra.mxu0 0
    %4445 = vmatprep.subr.bf16.mxu0 0
    %4446 = vmatpush1.bf16.msra.mxu0 0
    %4447 = vmatprep.subr.bf16.mxu0 0
    %4448 = vmatpush1.bf16.msra.mxu0 0
    %4449 = vmatprep.subr.bf16.mxu0 0
    %4450 = vmatpush1.bf16.msra.mxu0 0
    %4451 = vmatprep.subr.bf16.mxu0 0
    %4452 = vmatpush1.bf16.msra.mxu0 0
    %4453 = vmatprep.mubr.bf16.mxu0 0
    %4454 = vmatmul.mubr.bf16.gmra.mrb[0].mxu0 %v4416
    %v4455 = vpop.f32.mrb[0].mxu0
    %v4456 = vadd.f32 0.0, %v4455
    %v4457 = vpop.f32.mrb[0].mxu0
    %v4458 = vpop.f32.mrb[0].mxu0
    %v4459 = vpop.f32.mrb[0].mxu0
    %4460 = vdwg.mxu0
    %4461 = vrot.lane.b32.xlu0 %v3304, 64
    %v4462 = vpop.permute.xlu0 %4461
    %v4464 = vsel %vm556, %v4026, 0
    %v4467 = vsel %vm1280, %v4462, 0
    %4469 = vmatprep.subr.bf16.mxu0 0
    %4470 = vmatpush1.bf16.msra.mxu0 %v4467
    %4471 = vmatprep.subr.bf16.mxu0 0
    %4472 = vmatpush1.bf16.msra.mxu0 0
    %4473 = vmatprep.subr.bf16.mxu0 0
    %4474 = vmatpush1.bf16.msra.mxu0 0
    %4475 = vmatprep.subr.bf16.mxu0 0
    %4476 = vmatpush1.bf16.msra.mxu0 0
    %4477 = vmatprep.subr.bf16.mxu0 0
    %4478 = vmatpush1.bf16.msra.mxu0 0
    %4479 = vmatprep.subr.bf16.mxu0 0
    %4480 = vmatpush1.bf16.msra.mxu0 0
    %4481 = vmatprep.subr.bf16.mxu0 0
    %4482 = vmatpush1.bf16.msra.mxu0 0
    %4483 = vmatprep.subr.bf16.mxu0 0
    %4484 = vmatpush1.bf16.msra.mxu0 0
    %4485 = vmatprep.subr.bf16.mxu0 0
    %4486 = vmatpush1.bf16.msra.mxu0 0
    %4487 = vmatprep.subr.bf16.mxu0 0
    %4488 = vmatpush1.bf16.msra.mxu0 0
    %4489 = vmatprep.subr.bf16.mxu0 0
    %4490 = vmatpush1.bf16.msra.mxu0 0
    %4491 = vmatprep.subr.bf16.mxu0 0
    %4492 = vmatpush1.bf16.msra.mxu0 0
    %4493 = vmatprep.subr.bf16.mxu0 0
    %4494 = vmatpush1.bf16.msra.mxu0 0
    %4495 = vmatprep.subr.bf16.mxu0 0
    %4496 = vmatpush1.bf16.msra.mxu0 0
    %4497 = vmatprep.subr.bf16.mxu0 0
    %4498 = vmatpush1.bf16.msra.mxu0 0
    %4499 = vmatprep.subr.bf16.mxu0 0
    %4500 = vmatpush1.bf16.msra.mxu0 0
    %4501 = vmatprep.mubr.bf16.mxu0 0
    %4502 = vmatmul.mubr.bf16.gmra.mrb[0].mxu0 %v4464
    %v4503 = vpop.f32.mrb[0].mxu0
    %v4504 = vadd.f32 0.0, %v4503
    %v4505 = vpop.f32.mrb[0].mxu0
    %v4506 = vpop.f32.mrb[0].mxu0
    %v4507 = vpop.f32.mrb[0].mxu0
    %4508 = vdwg.mxu0
    %4509 = vrot.lane.b32.xlu0 %v3306, 64
    %v4510 = vpop.permute.xlu0 %4509
    %v4512 = vsel %vm556, %v4027, 0
    %v4515 = vsel %vm1280, %v4510, 0
    %4517 = vmatprep.subr.bf16.mxu0 0
    %4518 = vmatpush1.bf16.msra.mxu0 %v4515
    %4519 = vmatprep.subr.bf16.mxu0 0
    %4520 = vmatpush1.bf16.msra.mxu0 0
    %4521 = vmatprep.subr.bf16.mxu0 0
    %4522 = vmatpush1.bf16.msra.mxu0 0
    %4523 = vmatprep.subr.bf16.mxu0 0
    %4524 = vmatpush1.bf16.msra.mxu0 0
    %4525 = vmatprep.subr.bf16.mxu0 0
    %4526 = vmatpush1.bf16.msra.mxu0 0
    %4527 = vmatprep.subr.bf16.mxu0 0
    %4528 = vmatpush1.bf16.msra.mxu0 0
    %4529 = vmatprep.subr.bf16.mxu0 0
    %4530 = vmatpush1.bf16.msra.mxu0 0
    %4531 = vmatprep.subr.bf16.mxu0 0
    %4532 = vmatpush1.bf16.msra.mxu0 0
    %4533 = vmatprep.subr.bf16.mxu0 0
    %4534 = vmatpush1.bf16.msra.mxu0 0
    %4535 = vmatprep.subr.bf16.mxu0 0
    %4536 = vmatpush1.bf16.msra.mxu0 0
    %4537 = vmatprep.subr.bf16.mxu0 0
    %4538 = vmatpush1.bf16.msra.mxu0 0
    %4539 = vmatprep.subr.bf16.mxu0 0
    %4540 = vmatpush1.bf16.msra.mxu0 0
    %4541 = vmatprep.subr.bf16.mxu0 0
    %4542 = vmatpush1.bf16.msra.mxu0 0
    %4543 = vmatprep.subr.bf16.mxu0 0
    %4544 = vmatpush1.bf16.msra.mxu0 0
    %4545 = vmatprep.subr.bf16.mxu0 0
    %4546 = vmatpush1.bf16.msra.mxu0 0
    %4547 = vmatprep.subr.bf16.mxu0 0
    %4548 = vmatpush1.bf16.msra.mxu0 0
    %4549 = vmatprep.mubr.bf16.mxu0 0
    %4550 = vmatmul.mubr.bf16.gmra.mrb[0].mxu0 %v4512
    %v4551 = vpop.f32.mrb[0].mxu0
    %v4552 = vadd.f32 0.0, %v4551
    %v4553 = vpop.f32.mrb[0].mxu0
    %v4554 = vpop.f32.mrb[0].mxu0
    %v4555 = vpop.f32.mrb[0].mxu0
    %4556 = vdwg.mxu0
    %4557 = vrot.lane.b32.xlu0 %v3308, 64
    %v4558 = vpop.permute.xlu0 %4557
    %v4560 = vsel %vm556, %v4028, 0
    %v4563 = vsel %vm1280, %v4558, 0
    %4565 = vmatprep.subr.bf16.mxu0 0
    %4566 = vmatpush1.bf16.msra.mxu0 %v4563
    %4567 = vmatprep.subr.bf16.mxu0 0
    %4568 = vmatpush1.bf16.msra.mxu0 0
    %4569 = vmatprep.subr.bf16.mxu0 0
    %4570 = vmatpush1.bf16.msra.mxu0 0
    %4571 = vmatprep.subr.bf16.mxu0 0
    %4572 = vmatpush1.bf16.msra.mxu0 0
    %4573 = vmatprep.subr.bf16.mxu0 0
    %4574 = vmatpush1.bf16.msra.mxu0 0
    %4575 = vmatprep.subr.bf16.mxu0 0
    %4576 = vmatpush1.bf16.msra.mxu0 0
    %4577 = vmatprep.subr.bf16.mxu0 0
    %4578 = vmatpush1.bf16.msra.mxu0 0
    %4579 = vmatprep.subr.bf16.mxu0 0
    %4580 = vmatpush1.bf16.msra.mxu0 0
    %4581 = vmatprep.subr.bf16.mxu0 0
    %4582 = vmatpush1.bf16.msra.mxu0 0
    %4583 = vmatprep.subr.bf16.mxu0 0
    %4584 = vmatpush1.bf16.msra.mxu0 0
    %4585 = vmatprep.subr.bf16.mxu0 0
    %4586 = vmatpush1.bf16.msra.mxu0 0
    %4587 = vmatprep.subr.bf16.mxu0 0
    %4588 = vmatpush1.bf16.msra.mxu0 0
    %4589 = vmatprep.subr.bf16.mxu0 0
    %4590 = vmatpush1.bf16.msra.mxu0 0
    %4591 = vmatprep.subr.bf16.mxu0 0
    %4592 = vmatpush1.bf16.msra.mxu0 0
    %4593 = vmatprep.subr.bf16.mxu0 0
    %4594 = vmatpush1.bf16.msra.mxu0 0
    %4595 = vmatprep.subr.bf16.mxu0 0
    %4596 = vmatpush1.bf16.msra.mxu0 0
    %4597 = vmatprep.mubr.bf16.mxu0 0
    %4598 = vmatmul.mubr.bf16.gmra.mrb[0].mxu0 %v4560
    %v4599 = vpop.f32.mrb[0].mxu0
    %v4600 = vadd.f32 0.0, %v4599
    %v4601 = vpop.f32.mrb[0].mxu0
    %v4602 = vpop.f32.mrb[0].mxu0
    %v4603 = vpop.f32.mrb[0].mxu0
    %4604 = vdwg.mxu0
    %4608 = vrot.lane.b32.xlu0 %v4216, 8
    %v4609 = vpop.permute.xlu0 %4608
    %4610 = vrot.lane.b32.xlu0 %v4264, 8
    %v4611 = vpop.permute.xlu0 %4610
    %4612 = vrot.lane.b32.xlu0 %v4312, 8
    %v4613 = vpop.permute.xlu0 %4612
    %4620 = vrot.lane.b32.xlu0 %v4360, 16
    %v4621 = vpop.permute.xlu0 %4620
    %4622 = vrot.lane.b32.xlu0 %v4408, 16
    %v4623 = vpop.permute.xlu0 %4622
    %4624 = vrot.lane.b32.xlu0 %v4456, 16
    %v4625 = vpop.permute.xlu0 %4624
    %4632 = vrot.lane.b32.xlu0 %v4504, 24
    %v4633 = vpop.permute.xlu0 %4632
    %4634 = vrot.lane.b32.xlu0 %v4552, 24
    %v4635 = vpop.permute.xlu0 %4634
    %4636 = vrot.lane.b32.xlu0 %v4600, 24
    %v4637 = vpop.permute.xlu0 %4636
    %v4641 = vsel %vm556, %v4072, %v4609
    %v4642 = vsel %vm556, %v4120, %v4611
    %v4643 = vsel %vm556, %v4168, %v4613
    %v4644 = vsel %vm1891, %v4641, %v4621
    %v4645 = vsel %vm1891, %v4642, %v4623
    %v4646 = vsel %vm1891, %v4643, %v4625
    %v4647 = vsel %vm1895, %v4644, %v4633
    %v4648 = vsel %vm1895, %v4645, %v4635
    %v4649 = vsel %vm1895, %v4646, %v4637
    %v4650 = vpack.c.bf16 %v4648, %v4647
    %v4651 = vpack.c.bf16 %v4649, %v4649
    %v4653 = vlaneseq
    %v4654 = vshrl.u32 %v4653, 7
    %v4655 = vsub.s32 0, %v4654
    %v4656 = vrot.slane %v235, %v4655
    %v4662 = vunpack.c.l.b16 %v231
    %v4663 = vunpack.c.l.b16 %v232
    %v4664 = vunpack.c.l.b16 %v233
    %v4665 = vunpack.c.l.b16 %v234
    %v4666 = vpack.c.b16 %v4663, %v4662
    %v4667 = vpack.c.b16 %v4665, %v4664
    %v4671 = vsel %vm397, %v4650, 0
    %v4674 = vsel %vm397, %v4651, 0
    %4676 = vmatprep.subr.bf16.mxu0 0
    %4677 = vmatpush1.bf16.msra.mxu0 %v4666
    %4678 = vmatprep.subr.bf16.mxu0 0
    %4679 = vmatpush1.bf16.msra.mxu0 %v4667
    %4680 = vmatprep.subr.bf16.mxu0 0
    %4681 = vmatpush1.bf16.msra.mxu0 0
    %4682 = vmatprep.subr.bf16.mxu0 0
    %4683 = vmatpush1.bf16.msra.mxu0 0
    %4684 = vmatprep.subr.bf16.mxu0 0
    %4685 = vmatpush1.bf16.msra.mxu0 0
    %4686 = vmatprep.subr.bf16.mxu0 0
    %4687 = vmatpush1.bf16.msra.mxu0 0
    %4688 = vmatprep.subr.bf16.mxu0 0
    %4689 = vmatpush1.bf16.msra.mxu0 0
    %4690 = vmatprep.subr.bf16.mxu0 0
    %4691 = vmatpush1.bf16.msra.mxu0 0
    %4692 = vmatprep.subr.bf16.mxu0 0
    %4693 = vmatpush1.bf16.msra.mxu0 0
    %4694 = vmatprep.subr.bf16.mxu0 0
    %4695 = vmatpush1.bf16.msra.mxu0 0
    %4696 = vmatprep.subr.bf16.mxu0 0
    %4697 = vmatpush1.bf16.msra.mxu0 0
    %4698 = vmatprep.subr.bf16.mxu0 0
    %4699 = vmatpush1.bf16.msra.mxu0 0
    %4700 = vmatprep.subr.bf16.mxu0 0
    %4701 = vmatpush1.bf16.msra.mxu0 0
    %4702 = vmatprep.subr.bf16.mxu0 0
    %4703 = vmatpush1.bf16.msra.mxu0 0
    %4704 = vmatprep.subr.bf16.mxu0 0
    %4705 = vmatpush1.bf16.msra.mxu0 0
    %4706 = vmatprep.subr.bf16.mxu0 0
    %4707 = vmatpush1.bf16.msra.mxu0 0
    %4708 = vmatprep.mubr.bf16.mxu0 0
    %4709 = vmatmul.mubr.bf16.gmra.mrb[0].mxu0 %v4671
    %v4710 = vpop.f32.mrb[0].mxu0
    %v4711 = vadd.f32 %v4656, %v4710
    %v4712 = vpop.f32.mrb[0].mxu0
    %v4713 = vpop.f32.mrb[0].mxu0
    %v4714 = vadd.f32 %v4656, %v4713
    %v4715 = vpop.f32.mrb[0].mxu0
    %4716 = vmatprep.mubr.bf16.mxu0 0
    %4717 = vmatmul.mubr.bf16.gmra.mrb[0].mxu0 %v4674
    %v4718 = vpop.f32.mrb[0].mxu0
    %v4719 = vadd.f32 %v4656, %v4718
    %v4720 = vpop.f32.mrb[0].mxu0
    %v4721 = vpop.f32.mrb[0].mxu0
    %v4722 = vpop.f32.mrb[0].mxu0
    %4723 = vdwg.mxu0
    %v4724 = vadd.f32 %v3151, %v4711
    %v4725 = vadd.f32 %v3152, %v4714
    %v4726 = vadd.f32 %v3153, %v4719
    %v4727 = vsel %vm397, %v4724, 0.0
    %4728 = vadd.xlane.f32.xlu0 %v4727
    %v4729 = vpop.xlane.xlu0 %4728
    %v4730 = vsel %vm397, %v4725, 0.0
    %4731 = vadd.xlane.f32.xlu0 %v4730
    %v4732 = vpop.xlane.xlu0 %4731
    %v4733 = vsel %vm397, %v4726, 0.0
    %4734 = vadd.xlane.f32.xlu0 %v4733
    %v4735 = vpop.xlane.xlu0 %4734
    %v4736 = vmul.f32 %v4729, %v407
    %v4737 = vmul.f32 %v4732, %v407
    %v4738 = vmul.f32 %v4735, %v407
    %v4739 = vsub.f32 %v4724, %v4736
    %v4740 = vsub.f32 %v4725, %v4737
    %v4741 = vsub.f32 %v4726, %v4738
    %v4742 = vmul.f32 %v4739, %v4739
    %v4743 = vmul.f32 %v4740, %v4740
    %v4744 = vmul.f32 %v4741, %v4741
    %v4745 = vsel %vm397, %v4742, 0.0
    %4746 = vadd.xlane.f32.xlu0 %v4745
    %v4747 = vpop.xlane.xlu0 %4746
    %v4748 = vsel %vm397, %v4743, 0.0
    %4749 = vadd.xlane.f32.xlu0 %v4748
    %v4750 = vpop.xlane.xlu0 %4749
    %v4751 = vsel %vm397, %v4744, 0.0
    %4752 = vadd.xlane.f32.xlu0 %v4751
    %v4753 = vpop.xlane.xlu0 %4752
    %v4754 = vmul.f32 %v4747, %v407
    %v4755 = vmul.f32 %v4750, %v407
    %v4756 = vmul.f32 %v4753, %v407
    %v4757 = vadd.f32 %v4754, 1e-05
    %v4758 = vadd.f32 %v4755, 1e-05
    %v4759 = vadd.f32 %v4756, 1e-05
    %v4760 = vrsqrt.pop %v4757
    %v4761 = vrsqrt.pop %v4758
    %v4762 = vrsqrt.pop %v4759
    %v4763 = vmul.f32 %v4739, %v4760
    %v4764 = vmul.f32 %v4740, %v4761
    %v4765 = vmul.f32 %v4741, %v4762
    %v4767 = vlaneseq
    %v4768 = vshrl.u32 %v4767, 7
    %v4769 = vsub.s32 0, %v4768
    %v4770 = vrot.slane %v236, %v4769
    %v4772 = vmul.f32 %v4763, %v4770
    %v4773 = vmul.f32 %v4764, %v4770
    %v4774 = vmul.f32 %v4765, %v4770
    %v4776 = vlaneseq
    %v4777 = vshrl.u32 %v4776, 7
    %v4778 = vsub.s32 0, %v4777
    %v4779 = vrot.slane %v237, %v4778
    %v4781 = vadd.f32 %v4772, %v4779
    %v4782 = vadd.f32 %v4773, %v4779
    %v4783 = vadd.f32 %v4774, %v4779
    %v4784 = vpack.c.bf16 %v4782, %v4781
    %v4785 = vpack.c.bf16 %v4783, %v4783
    %v4787 = vlaneseq
    %v4788 = vshrl.u32 %v4787, 7
    %v4789 = vsub.s32 0, %v4788
    %v4790 = vrot.slane %v242, %v4789
    %v4796 = vunpack.c.l.b16 %v238
    %v4797 = vunpack.c.l.b16 %v239
    %v4798 = vunpack.c.l.b16 %v240
    %v4799 = vunpack.c.l.b16 %v241
    %v4800 = vpack.c.b16 %v4797, %v4796
    %v4801 = vpack.c.b16 %v4799, %v4798
    %v4805 = vsel %vm397, %v4784, 0
    %v4808 = vsel %vm397, %v4785, 0
    %4810 = vmatprep.subr.bf16.mxu0 0
    %4811 = vmatpush1.bf16.msra.mxu0 %v4800
    %4812 = vmatprep.subr.bf16.mxu0 0
    %4813 = vmatpush1.bf16.msra.mxu0 %v4801
    %4814 = vmatprep.subr.bf16.mxu0 0
    %4815 = vmatpush1.bf16.msra.mxu0 0
    %4816 = vmatprep.subr.bf16.mxu0 0
    %4817 = vmatpush1.bf16.msra.mxu0 0
    %4818 = vmatprep.subr.bf16.mxu0 0
    %4819 = vmatpush1.bf16.msra.mxu0 0
    %4820 = vmatprep.subr.bf16.mxu0 0
    %4821 = vmatpush1.bf16.msra.mxu0 0
    %4822 = vmatprep.subr.bf16.mxu0 0
    %4823 = vmatpush1.bf16.msra.mxu0 0
    %4824 = vmatprep.subr.bf16.mxu0 0
    %4825 = vmatpush1.bf16.msra.mxu0 0
    %4826 = vmatprep.subr.bf16.mxu0 0
    %4827 = vmatpush1.bf16.msra.mxu0 0
    %4828 = vmatprep.subr.bf16.mxu0 0
    %4829 = vmatpush1.bf16.msra.mxu0 0
    %4830 = vmatprep.subr.bf16.mxu0 0
    %4831 = vmatpush1.bf16.msra.mxu0 0
    %4832 = vmatprep.subr.bf16.mxu0 0
    %4833 = vmatpush1.bf16.msra.mxu0 0
    %4834 = vmatprep.subr.bf16.mxu0 0
    %4835 = vmatpush1.bf16.msra.mxu0 0
    %4836 = vmatprep.subr.bf16.mxu0 0
    %4837 = vmatpush1.bf16.msra.mxu0 0
    %4838 = vmatprep.subr.bf16.mxu0 0
    %4839 = vmatpush1.bf16.msra.mxu0 0
    %4840 = vmatprep.subr.bf16.mxu0 0
    %4841 = vmatpush1.bf16.msra.mxu0 0
    %4842 = vmatprep.mubr.bf16.mxu0 0
    %4843 = vmatmul.mubr.bf16.gmra.mrb[0].mxu0 %v4805
    %v4844 = vpop.f32.mrb[0].mxu0
    %v4845 = vadd.f32 %v4790, %v4844
    %v4846 = vpop.f32.mrb[0].mxu0
    %v4847 = vpop.f32.mrb[0].mxu0
    %v4848 = vadd.f32 %v4790, %v4847
    %v4849 = vpop.f32.mrb[0].mxu0
    %4850 = vmatprep.mubr.bf16.mxu0 0
    %4851 = vmatmul.mubr.bf16.gmra.mrb[0].mxu0 %v4808
    %v4852 = vpop.f32.mrb[0].mxu0
    %v4853 = vadd.f32 %v4790, %v4852
    %v4854 = vpop.f32.mrb[0].mxu0
    %v4855 = vpop.f32.mrb[0].mxu0
    %v4856 = vpop.f32.mrb[0].mxu0
    %4857 = vdwg.mxu0
    %v4858 = vpack.c.bf16 %v4848, %v4845
    %v4859 = vpack.c.bf16 %v4853, %v4853
    %4862 = vrot.lane.b32.xlu0 %v4858, 120
    %v4863 = vpop.permute.xlu0 %4862
    %4864 = vrot.lane.b32.xlu0 %v4859, 120
    %v4865 = vpop.permute.xlu0 %4864
    %4866 = vrot.lane.b32.xlu0 %v4858, 112
    %v4867 = vpop.permute.xlu0 %4866
    %4868 = vrot.lane.b32.xlu0 %v4859, 112
    %v4869 = vpop.permute.xlu0 %4868
    %4870 = vrot.lane.b32.xlu0 %v4858, 104
    %v4871 = vpop.permute.xlu0 %4870
    %4872 = vrot.lane.b32.xlu0 %v4859, 104
    %v4873 = vpop.permute.xlu0 %4872
    %4874 = vrot.lane.b32.xlu0 %v4858, 96
    %v4875 = vpop.permute.xlu0 %4874
    %4876 = vrot.lane.b32.xlu0 %v4859, 96
    %v4877 = vpop.permute.xlu0 %4876
    %v4879 = vsel %vm556, %v4858, 0
    %v4882 = vsel %vm556, %v4859, 0
    %v4885 = vsel %vm556, %v4875, 0
    %v4888 = vsel %vm556, %v4877, 0
    %4890 = vmatprep.subr.bf16.mxu0 0
    %4891 = vmatpush1.bf16.xpose.msra.mxu0 %v4885
    %4892 = vmatprep.subr.bf16.mxu0 0
    %4893 = vmatpush1.bf16.xpose.msra.mxu0 %v4888
    %4894 = vmatprep.subr.bf16.mxu0 0
    %4895 = vmatpush1.bf16.xpose.msra.mxu0 0
    %4896 = vmatprep.subr.bf16.mxu0 0
    %4897 = vmatpush1.bf16.xpose.msra.mxu0 0
    %4898 = vmatprep.subr.bf16.mxu0 0
    %4899 = vmatpush1.bf16.xpose.msra.mxu0 0
    %4900 = vmatprep.subr.bf16.mxu0 0
    %4901 = vmatpush1.bf16.xpose.msra.mxu0 0
    %4902 = vmatprep.subr.bf16.mxu0 0
    %4903 = vmatpush1.bf16.xpose.msra.mxu0 0
    %4904 = vmatprep.subr.bf16.mxu0 0
    %4905 = vmatpush1.bf16.xpose.msra.mxu0 0
    %4906 = vmatprep.subr.bf16.mxu0 0
    %4907 = vmatpush1.bf16.xpose.msra.mxu0 0
    %4908 = vmatprep.subr.bf16.mxu0 0
    %4909 = vmatpush1.bf16.xpose.msra.mxu0 0
    %4910 = vmatprep.subr.bf16.mxu0 0
    %4911 = vmatpush1.bf16.xpose.msra.mxu0 0
    %4912 = vmatprep.subr.bf16.mxu0 0
    %4913 = vmatpush1.bf16.xpose.msra.mxu0 0
    %4914 = vmatprep.subr.bf16.mxu0 0
    %4915 = vmatpush1.bf16.xpose.msra.mxu0 0
    %4916 = vmatprep.subr.bf16.mxu0 0
    %4917 = vmatpush1.bf16.xpose.msra.mxu0 0
    %4918 = vmatprep.subr.bf16.mxu0 0
    %4919 = vmatpush1.bf16.xpose.msra.mxu0 0
    %4920 = vmatprep.subr.bf16.mxu0 0
    %4921 = vmatpush1.bf16.xpose.msra.mxu0 0
    %4922 = vmatprep.mubr.bf16.mxu0 0
    %4923 = vmatmul.mubr.bf16.gmra.mrb[0].mxu0 %v4879
    %v4924 = vpop.f32.mrb[0].mxu0
    %v4925 = vadd.f32 %v394, %v4924
    %v4926 = vpop.f32.mrb[0].mxu0
    %v4927 = vpop.f32.mrb[0].mxu0
    %v4928 = vadd.f32 %v395, %v4927
    %v4929 = vpop.f32.mrb[0].mxu0
    %4930 = vmatprep.mubr.bf16.mxu0 0
    %4931 = vmatmul.mubr.bf16.gmra.mrb[0].mxu0 %v4882
    %v4932 = vpop.f32.mrb[0].mxu0
    %v4933 = vadd.f32 %v396, %v4932
    %v4934 = vpop.f32.mrb[0].mxu0
    %v4935 = vpop.f32.mrb[0].mxu0
    %v4936 = vpop.f32.mrb[0].mxu0
    %4937 = vdwg.mxu0
    %4938 = vrot.lane.b32.xlu0 %v4863, 96
    %v4939 = vpop.permute.xlu0 %4938
    %4940 = vrot.lane.b32.xlu0 %v4865, 96
    %v4941 = vpop.permute.xlu0 %4940
    %v4943 = vsel %vm556, %v4863, 0
    %v4946 = vsel %vm556, %v4865, 0
    %v4949 = vsel %vm556, %v4939, 0
    %v4952 = vsel %vm556, %v4941, 0
    %4954 = vmatprep.subr.bf16.mxu0 0
    %4955 = vmatpush1.bf16.xpose.msra.mxu0 %v4949
    %4956 = vmatprep.subr.bf16.mxu0 0
    %4957 = vmatpush1.bf16.xpose.msra.mxu0 %v4952
    %4958 = vmatprep.subr.bf16.mxu0 0
    %4959 = vmatpush1.bf16.xpose.msra.mxu0 0
    %4960 = vmatprep.subr.bf16.mxu0 0
    %4961 = vmatpush1.bf16.xpose.msra.mxu0 0
    %4962 = vmatprep.subr.bf16.mxu0 0
    %4963 = vmatpush1.bf16.xpose.msra.mxu0 0
    %4964 = vmatprep.subr.bf16.mxu0 0
    %4965 = vmatpush1.bf16.xpose.msra.mxu0 0
    %4966 = vmatprep.subr.bf16.mxu0 0
    %4967 = vmatpush1.bf16.xpose.msra.mxu0 0
    %4968 = vmatprep.subr.bf16.mxu0 0
    %4969 = vmatpush1.bf16.xpose.msra.mxu0 0
    %4970 = vmatprep.subr.bf16.mxu0 0
    %4971 = vmatpush1.bf16.xpose.msra.mxu0 0
    %4972 = vmatprep.subr.bf16.mxu0 0
    %4973 = vmatpush1.bf16.xpose.msra.mxu0 0
    %4974 = vmatprep.subr.bf16.mxu0 0
    %4975 = vmatpush1.bf16.xpose.msra.mxu0 0
    %4976 = vmatprep.subr.bf16.mxu0 0
    %4977 = vmatpush1.bf16.xpose.msra.mxu0 0
    %4978 = vmatprep.subr.bf16.mxu0 0
    %4979 = vmatpush1.bf16.xpose.msra.mxu0 0
    %4980 = vmatprep.subr.bf16.mxu0 0
    %4981 = vmatpush1.bf16.xpose.msra.mxu0 0
    %4982 = vmatprep.subr.bf16.mxu0 0
    %4983 = vmatpush1.bf16.xpose.msra.mxu0 0
    %4984 = vmatprep.subr.bf16.mxu0 0
    %4985 = vmatpush1.bf16.xpose.msra.mxu0 0
    %4986 = vmatprep.mubr.bf16.mxu0 0
    %4987 = vmatmul.mubr.bf16.gmra.mrb[0].mxu0 %v4943
    %v4988 = vpop.f32.mrb[0].mxu0
    %v4989 = vadd.f32 %v394, %v4988
    %v4990 = vpop.f32.mrb[0].mxu0
    %v4991 = vpop.f32.mrb[0].mxu0
    %v4992 = vadd.f32 %v395, %v4991
    %v4993 = vpop.f32.mrb[0].mxu0
    %4994 = vmatprep.mubr.bf16.mxu0 0
    %4995 = vmatmul.mubr.bf16.gmra.mrb[0].mxu0 %v4946
    %v4996 = vpop.f32.mrb[0].mxu0
    %v4997 = vadd.f32 %v396, %v4996
    %v4998 = vpop.f32.mrb[0].mxu0
    %v4999 = vpop.f32.mrb[0].mxu0
    %v5000 = vpop.f32.mrb[0].mxu0
    %5001 = vdwg.mxu0
    %5002 = vrot.lane.b32.xlu0 %v4867, 96
    %v5003 = vpop.permute.xlu0 %5002
    %5004 = vrot.lane.b32.xlu0 %v4869, 96
    %v5005 = vpop.permute.xlu0 %5004
    %v5007 = vsel %vm556, %v4867, 0
    %v5010 = vsel %vm556, %v4869, 0
    %v5013 = vsel %vm556, %v5003, 0
    %v5016 = vsel %vm556, %v5005, 0
    %5018 = vmatprep.subr.bf16.mxu0 0
    %5019 = vmatpush1.bf16.xpose.msra.mxu0 %v5013
    %5020 = vmatprep.subr.bf16.mxu0 0
    %5021 = vmatpush1.bf16.xpose.msra.mxu0 %v5016
    %5022 = vmatprep.subr.bf16.mxu0 0
    %5023 = vmatpush1.bf16.xpose.msra.mxu0 0
    %5024 = vmatprep.subr.bf16.mxu0 0
    %5025 = vmatpush1.bf16.xpose.msra.mxu0 0
    %5026 = vmatprep.subr.bf16.mxu0 0
    %5027 = vmatpush1.bf16.xpose.msra.mxu0 0
    %5028 = vmatprep.subr.bf16.mxu0 0
    %5029 = vmatpush1.bf16.xpose.msra.mxu0 0
    %5030 = vmatprep.subr.bf16.mxu0 0
    %5031 = vmatpush1.bf16.xpose.msra.mxu0 0
    %5032 = vmatprep.subr.bf16.mxu0 0
    %5033 = vmatpush1.bf16.xpose.msra.mxu0 0
    %5034 = vmatprep.subr.bf16.mxu0 0
    %5035 = vmatpush1.bf16.xpose.msra.mxu0 0
    %5036 = vmatprep.subr.bf16.mxu0 0
    %5037 = vmatpush1.bf16.xpose.msra.mxu0 0
    %5038 = vmatprep.subr.bf16.mxu0 0
    %5039 = vmatpush1.bf16.xpose.msra.mxu0 0
    %5040 = vmatprep.subr.bf16.mxu0 0
    %5041 = vmatpush1.bf16.xpose.msra.mxu0 0
    %5042 = vmatprep.subr.bf16.mxu0 0
    %5043 = vmatpush1.bf16.xpose.msra.mxu0 0
    %5044 = vmatprep.subr.bf16.mxu0 0
    %5045 = vmatpush1.bf16.xpose.msra.mxu0 0
    %5046 = vmatprep.subr.bf16.mxu0 0
    %5047 = vmatpush1.bf16.xpose.msra.mxu0 0
    %5048 = vmatprep.subr.bf16.mxu0 0
    %5049 = vmatpush1.bf16.xpose.msra.mxu0 0
    %5050 = vmatprep.mubr.bf16.mxu0 0
    %5051 = vmatmul.mubr.bf16.gmra.mrb[0].mxu0 %v5007
    %v5052 = vpop.f32.mrb[0].mxu0
    %v5053 = vadd.f32 %v394, %v5052
    %v5054 = vpop.f32.mrb[0].mxu0
    %v5055 = vpop.f32.mrb[0].mxu0
    %v5056 = vadd.f32 %v395, %v5055
    %v5057 = vpop.f32.mrb[0].mxu0
    %5058 = vmatprep.mubr.bf16.mxu0 0
    %5059 = vmatmul.mubr.bf16.gmra.mrb[0].mxu0 %v5010
    %v5060 = vpop.f32.mrb[0].mxu0
    %v5061 = vadd.f32 %v396, %v5060
    %v5062 = vpop.f32.mrb[0].mxu0
    %v5063 = vpop.f32.mrb[0].mxu0
    %v5064 = vpop.f32.mrb[0].mxu0
    %5065 = vdwg.mxu0
    %5066 = vrot.lane.b32.xlu0 %v4871, 96
    %v5067 = vpop.permute.xlu0 %5066
    %5068 = vrot.lane.b32.xlu0 %v4873, 96
    %v5069 = vpop.permute.xlu0 %5068
    %v5071 = vsel %vm556, %v4871, 0
    %v5074 = vsel %vm556, %v4873, 0
    %v5077 = vsel %vm556, %v5067, 0
    %v5080 = vsel %vm556, %v5069, 0
    %5082 = vmatprep.subr.bf16.mxu0 0
    %5083 = vmatpush1.bf16.xpose.msra.mxu0 %v5077
    %5084 = vmatprep.subr.bf16.mxu0 0
    %5085 = vmatpush1.bf16.xpose.msra.mxu0 %v5080
    %5086 = vmatprep.subr.bf16.mxu0 0
    %5087 = vmatpush1.bf16.xpose.msra.mxu0 0
    %5088 = vmatprep.subr.bf16.mxu0 0
    %5089 = vmatpush1.bf16.xpose.msra.mxu0 0
    %5090 = vmatprep.subr.bf16.mxu0 0
    %5091 = vmatpush1.bf16.xpose.msra.mxu0 0
    %5092 = vmatprep.subr.bf16.mxu0 0
    %5093 = vmatpush1.bf16.xpose.msra.mxu0 0
    %5094 = vmatprep.subr.bf16.mxu0 0
    %5095 = vmatpush1.bf16.xpose.msra.mxu0 0
    %5096 = vmatprep.subr.bf16.mxu0 0
    %5097 = vmatpush1.bf16.xpose.msra.mxu0 0
    %5098 = vmatprep.subr.bf16.mxu0 0
    %5099 = vmatpush1.bf16.xpose.msra.mxu0 0
    %5100 = vmatprep.subr.bf16.mxu0 0
    %5101 = vmatpush1.bf16.xpose.msra.mxu0 0
    %5102 = vmatprep.subr.bf16.mxu0 0
    %5103 = vmatpush1.bf16.xpose.msra.mxu0 0
    %5104 = vmatprep.subr.bf16.mxu0 0
    %5105 = vmatpush1.bf16.xpose.msra.mxu0 0
    %5106 = vmatprep.subr.bf16.mxu0 0
    %5107 = vmatpush1.bf16.xpose.msra.mxu0 0
    %5108 = vmatprep.subr.bf16.mxu0 0
    %5109 = vmatpush1.bf16.xpose.msra.mxu0 0
    %5110 = vmatprep.subr.bf16.mxu0 0
    %5111 = vmatpush1.bf16.xpose.msra.mxu0 0
    %5112 = vmatprep.subr.bf16.mxu0 0
    %5113 = vmatpush1.bf16.xpose.msra.mxu0 0
    %5114 = vmatprep.mubr.bf16.mxu0 0
    %5115 = vmatmul.mubr.bf16.gmra.mrb[0].mxu0 %v5071
    %v5116 = vpop.f32.mrb[0].mxu0
    %v5117 = vadd.f32 %v394, %v5116
    %v5118 = vpop.f32.mrb[0].mxu0
    %v5119 = vpop.f32.mrb[0].mxu0
    %v5120 = vadd.f32 %v395, %v5119
    %v5121 = vpop.f32.mrb[0].mxu0
    %5122 = vmatprep.mubr.bf16.mxu0 0
    %5123 = vmatmul.mubr.bf16.gmra.mrb[0].mxu0 %v5074
    %v5124 = vpop.f32.mrb[0].mxu0
    %v5125 = vadd.f32 %v396, %v5124
    %v5126 = vpop.f32.mrb[0].mxu0
    %v5127 = vpop.f32.mrb[0].mxu0
    %v5128 = vpop.f32.mrb[0].mxu0
    %5129 = vdwg.mxu0
    %v5130 = vsel %vm1895, %v4925, -inf
    %5131 = vmax.xlane.f32.xlu0 %v5130
    %v5132 = vpop.xlane.xlu0 %5131
    %v5133 = vsel %vm1895, %v4928, -inf
    %5134 = vmax.xlane.f32.xlu0 %v5133
    %v5135 = vpop.xlane.xlu0 %5134
    %v5136 = vsel %vm1895, %v4933, -inf
    %5137 = vmax.xlane.f32.xlu0 %v5136
    %v5138 = vpop.xlane.xlu0 %5137
    %v5139 = vsel %vm1895, %v4989, -inf
    %5140 = vmax.xlane.f32.xlu0 %v5139
    %v5141 = vpop.xlane.xlu0 %5140
    %v5142 = vsel %vm1895, %v4992, -inf
    %5143 = vmax.xlane.f32.xlu0 %v5142
    %v5144 = vpop.xlane.xlu0 %5143
    %v5145 = vsel %vm1895, %v4997, -inf
    %5146 = vmax.xlane.f32.xlu0 %v5145
    %v5147 = vpop.xlane.xlu0 %5146
    %v5148 = vsel %vm1895, %v5053, -inf
    %5149 = vmax.xlane.f32.xlu0 %v5148
    %v5150 = vpop.xlane.xlu0 %5149
    %v5151 = vsel %vm1895, %v5056, -inf
    %5152 = vmax.xlane.f32.xlu0 %v5151
    %v5153 = vpop.xlane.xlu0 %5152
    %v5154 = vsel %vm1895, %v5061, -inf
    %5155 = vmax.xlane.f32.xlu0 %v5154
    %v5156 = vpop.xlane.xlu0 %5155
    %v5157 = vsel %vm1895, %v5117, -inf
    %5158 = vmax.xlane.f32.xlu0 %v5157
    %v5159 = vpop.xlane.xlu0 %5158
    %v5160 = vsel %vm1895, %v5120, -inf
    %5161 = vmax.xlane.f32.xlu0 %v5160
    %v5162 = vpop.xlane.xlu0 %5161
    %v5163 = vsel %vm1895, %v5125, -inf
    %5164 = vmax.xlane.f32.xlu0 %v5163
    %v5165 = vpop.xlane.xlu0 %5164
    %v5166 = vsub.f32 %v4925, %v5132
    %v5167 = vsub.f32 %v4928, %v5135
    %v5168 = vsub.f32 %v4933, %v5138
    %v5169 = vsub.f32 %v4989, %v5141
    %v5170 = vsub.f32 %v4992, %v5144
    %v5171 = vsub.f32 %v4997, %v5147
    %v5172 = vsub.f32 %v5053, %v5150
    %v5173 = vsub.f32 %v5056, %v5153
    %v5174 = vsub.f32 %v5061, %v5156
    %v5175 = vsub.f32 %v5117, %v5159
    %v5176 = vsub.f32 %v5120, %v5162
    %v5177 = vsub.f32 %v5125, %v5165
    %v5178 = vmul.f32 %v5166, 1.442695
    %v5179 = vpow.pop %v5178
    %v5180 = vmul.f32 %v5167, 1.442695
    %v5181 = vpow.pop %v5180
    %v5182 = vmul.f32 %v5168, 1.442695
    %v5183 = vpow.pop %v5182
    %v5184 = vmul.f32 %v5169, 1.442695
    %v5185 = vpow.pop %v5184
    %v5186 = vmul.f32 %v5170, 1.442695
    %v5187 = vpow.pop %v5186
    %v5188 = vmul.f32 %v5171, 1.442695
    %v5189 = vpow.pop %v5188
    %v5190 = vmul.f32 %v5172, 1.442695
    %v5191 = vpow.pop %v5190
    %v5192 = vmul.f32 %v5173, 1.442695
    %v5193 = vpow.pop %v5192
    %v5194 = vmul.f32 %v5174, 1.442695
    %v5195 = vpow.pop %v5194
    %v5196 = vmul.f32 %v5175, 1.442695
    %v5197 = vpow.pop %v5196
    %v5198 = vmul.f32 %v5176, 1.442695
    %v5199 = vpow.pop %v5198
    %v5200 = vmul.f32 %v5177, 1.442695
    %v5201 = vpow.pop %v5200
    %v5202 = vsel %vm1895, %v5179, 0.0
    %5203 = vadd.xlane.f32.xlu0 %v5202
    %v5204 = vpop.xlane.xlu0 %5203
    %v5205 = vsel %vm1895, %v5181, 0.0
    %5206 = vadd.xlane.f32.xlu0 %v5205
    %v5207 = vpop.xlane.xlu0 %5206
    %v5208 = vsel %vm1895, %v5183, 0.0
    %5209 = vadd.xlane.f32.xlu0 %v5208
    %v5210 = vpop.xlane.xlu0 %5209
    %v5211 = vsel %vm1895, %v5185, 0.0
    %5212 = vadd.xlane.f32.xlu0 %v5211
    %v5213 = vpop.xlane.xlu0 %5212
    %v5214 = vsel %vm1895, %v5187, 0.0
    %5215 = vadd.xlane.f32.xlu0 %v5214
    %v5216 = vpop.xlane.xlu0 %5215
    %v5217 = vsel %vm1895, %v5189, 0.0
    %5218 = vadd.xlane.f32.xlu0 %v5217
    %v5219 = vpop.xlane.xlu0 %5218
    %v5220 = vsel %vm1895, %v5191, 0.0
    %5221 = vadd.xlane.f32.xlu0 %v5220
    %v5222 = vpop.xlane.xlu0 %5221
    %v5223 = vsel %vm1895, %v5193, 0.0
    %5224 = vadd.xlane.f32.xlu0 %v5223
    %v5225 = vpop.xlane.xlu0 %5224
    %v5226 = vsel %vm1895, %v5195, 0.0
    %5227 = vadd.xlane.f32.xlu0 %v5226
    %v5228 = vpop.xlane.xlu0 %5227
    %v5229 = vsel %vm1895, %v5197, 0.0
    %5230 = vadd.xlane.f32.xlu0 %v5229
    %v5231 = vpop.xlane.xlu0 %5230
    %v5232 = vsel %vm1895, %v5199, 0.0
    %5233 = vadd.xlane.f32.xlu0 %v5232
    %v5234 = vpop.xlane.xlu0 %5233
    %v5235 = vsel %vm1895, %v5201, 0.0
    %5236 = vadd.xlane.f32.xlu0 %v5235
    %v5237 = vpop.xlane.xlu0 %5236
    %v5238 = vrcp.pop %v5204
    %v5239 = vrcp.pop %v5207
    %v5240 = vrcp.pop %v5210
    %v5241 = vrcp.pop %v5213
    %v5242 = vrcp.pop %v5216
    %v5243 = vrcp.pop %v5219
    %v5244 = vrcp.pop %v5222
    %v5245 = vrcp.pop %v5225
    %v5246 = vrcp.pop %v5228
    %v5247 = vrcp.pop %v5231
    %v5248 = vrcp.pop %v5234
    %v5249 = vrcp.pop %v5237
    %v5250 = vmul.f32 %v5179, %v5238
    %v5251 = vmul.f32 %v5181, %v5239
    %v5252 = vmul.f32 %v5183, %v5240
    %v5253 = vmul.f32 %v5185, %v5241
    %v5254 = vmul.f32 %v5187, %v5242
    %v5255 = vmul.f32 %v5189, %v5243
    %v5256 = vmul.f32 %v5191, %v5244
    %v5257 = vmul.f32 %v5193, %v5245
    %v5258 = vmul.f32 %v5195, %v5246
    %v5259 = vmul.f32 %v5197, %v5247
    %v5260 = vmul.f32 %v5199, %v5248
    %v5261 = vmul.f32 %v5201, %v5249
    %v5262 = vpack.c.bf16 %v5251, %v5250
    %v5263 = vpack.c.bf16 %v5252, %v5252
    %v5264 = vpack.c.bf16 %v5254, %v5253
    %v5265 = vpack.c.bf16 %v5255, %v5255
    %v5266 = vpack.c.bf16 %v5257, %v5256
    %v5267 = vpack.c.bf16 %v5258, %v5258
    %v5268 = vpack.c.bf16 %v5260, %v5259
    %v5269 = vpack.c.bf16 %v5261, %v5261
    %5270 = vrot.lane.b32.xlu0 %v4858, 64
    %v5271 = vpop.permute.xlu0 %5270
    %5272 = vrot.lane.b32.xlu0 %v4859, 64
    %v5273 = vpop.permute.xlu0 %5272
    %v5276 = vsel %vm1895, %v5262, 0
    %v5279 = vsel %vm1895, %v5263, 0
    %v5282 = vsel %vm1280, %v5273, 0
    %5284 = vmatprep.subr.bf16.mxu0 0
    %5285 = vmatpush1.bf16.msra.mxu0 %v5271
    %5286 = vmatprep.subr.bf16.mxu0 0
    %5287 = vmatpush1.bf16.msra.mxu0 %v5282
    %5288 = vmatprep.subr.bf16.mxu0 0
    %5289 = vmatpush1.bf16.msra.mxu0 0
    %5290 = vmatprep.subr.bf16.mxu0 0
    %5291 = vmatpush1.bf16.msra.mxu0 0
    %5292 = vmatprep.subr.bf16.mxu0 0
    %5293 = vmatpush1.bf16.msra.mxu0 0
    %5294 = vmatprep.subr.bf16.mxu0 0
    %5295 = vmatpush1.bf16.msra.mxu0 0
    %5296 = vmatprep.subr.bf16.mxu0 0
    %5297 = vmatpush1.bf16.msra.mxu0 0
    %5298 = vmatprep.subr.bf16.mxu0 0
    %5299 = vmatpush1.bf16.msra.mxu0 0
    %5300 = vmatprep.subr.bf16.mxu0 0
    %5301 = vmatpush1.bf16.msra.mxu0 0
    %5302 = vmatprep.subr.bf16.mxu0 0
    %5303 = vmatpush1.bf16.msra.mxu0 0
    %5304 = vmatprep.subr.bf16.mxu0 0
    %5305 = vmatpush1.bf16.msra.mxu0 0
    %5306 = vmatprep.subr.bf16.mxu0 0
    %5307 = vmatpush1.bf16.msra.mxu0 0
    %5308 = vmatprep.subr.bf16.mxu0 0
    %5309 = vmatpush1.bf16.msra.mxu0 0
    %5310 = vmatprep.subr.bf16.mxu0 0
    %5311 = vmatpush1.bf16.msra.mxu0 0
    %5312 = vmatprep.subr.bf16.mxu0 0
    %5313 = vmatpush1.bf16.msra.mxu0 0
    %5314 = vmatprep.subr.bf16.mxu0 0
    %5315 = vmatpush1.bf16.msra.mxu0 0
    %5316 = vmatprep.mubr.bf16.mxu0 0
    %5317 = vmatmul.mubr.bf16.gmra.mrb[0].mxu0 %v5276
    %v5318 = vpop.f32.mrb[0].mxu0
    %v5319 = vadd.f32 0.0, %v5318
    %v5320 = vpop.f32.mrb[0].mxu0
    %v5321 = vpop.f32.mrb[0].mxu0
    %v5322 = vadd.f32 0.0, %v5321
    %v5323 = vpop.f32.mrb[0].mxu0
    %5324 = vmatprep.mubr.bf16.mxu0 0
    %5325 = vmatmul.mubr.bf16.gmra.mrb[0].mxu0 %v5279
    %v5326 = vpop.f32.mrb[0].mxu0
    %v5327 = vadd.f32 0.0, %v5326
    %v5328 = vpop.f32.mrb[0].mxu0
    %v5329 = vpop.f32.mrb[0].mxu0
    %v5330 = vpop.f32.mrb[0].mxu0
    %5331 = vdwg.mxu0
    %5332 = vrot.lane.b32.xlu0 %v4863, 64
    %v5333 = vpop.permute.xlu0 %5332
    %5334 = vrot.lane.b32.xlu0 %v4865, 64
    %v5335 = vpop.permute.xlu0 %5334
    %v5338 = vsel %vm1895, %v5264, 0
    %v5341 = vsel %vm1895, %v5265, 0
    %v5344 = vsel %vm1280, %v5335, 0
    %5346 = vmatprep.subr.bf16.mxu0 0
    %5347 = vmatpush1.bf16.msra.mxu0 %v5333
    %5348 = vmatprep.subr.bf16.mxu0 0
    %5349 = vmatpush1.bf16.msra.mxu0 %v5344
    %5350 = vmatprep.subr.bf16.mxu0 0
    %5351 = vmatpush1.bf16.msra.mxu0 0
    %5352 = vmatprep.subr.bf16.mxu0 0
    %5353 = vmatpush1.bf16.msra.mxu0 0
    %5354 = vmatprep.subr.bf16.mxu0 0
    %5355 = vmatpush1.bf16.msra.mxu0 0
    %5356 = vmatprep.subr.bf16.mxu0 0
    %5357 = vmatpush1.bf16.msra.mxu0 0
    %5358 = vmatprep.subr.bf16.mxu0 0
    %5359 = vmatpush1.bf16.msra.mxu0 0
    %5360 = vmatprep.subr.bf16.mxu0 0
    %5361 = vmatpush1.bf16.msra.mxu0 0
    %5362 = vmatprep.subr.bf16.mxu0 0
    %5363 = vmatpush1.bf16.msra.mxu0 0
    %5364 = vmatprep.subr.bf16.mxu0 0
    %5365 = vmatpush1.bf16.msra.mxu0 0
    %5366 = vmatprep.subr.bf16.mxu0 0
    %5367 = vmatpush1.bf16.msra.mxu0 0
    %5368 = vmatprep.subr.bf16.mxu0 0
    %5369 = vmatpush1.bf16.msra.mxu0 0
    %5370 = vmatprep.subr.bf16.mxu0 0
    %5371 = vmatpush1.bf16.msra.mxu0 0
    %5372 = vmatprep.subr.bf16.mxu0 0
    %5373 = vmatpush1.bf16.msra.mxu0 0
    %5374 = vmatprep.subr.bf16.mxu0 0
    %5375 = vmatpush1.bf16.msra.mxu0 0
    %5376 = vmatprep.subr.bf16.mxu0 0
    %5377 = vmatpush1.bf16.msra.mxu0 0
    %5378 = vmatprep.mubr.bf16.mxu0 0
    %5379 = vmatmul.mubr.bf16.gmra.mrb[0].mxu0 %v5338
    %v5380 = vpop.f32.mrb[0].mxu0
    %v5381 = vadd.f32 0.0, %v5380
    %v5382 = vpop.f32.mrb[0].mxu0
    %v5383 = vpop.f32.mrb[0].mxu0
    %v5384 = vadd.f32 0.0, %v5383
    %v5385 = vpop.f32.mrb[0].mxu0
    %5386 = vmatprep.mubr.bf16.mxu0 0
    %5387 = vmatmul.mubr.bf16.gmra.mrb[0].mxu0 %v5341
    %v5388 = vpop.f32.mrb[0].mxu0
    %v5389 = vadd.f32 0.0, %v5388
    %v5390 = vpop.f32.mrb[0].mxu0
    %v5391 = vpop.f32.mrb[0].mxu0
    %v5392 = vpop.f32.mrb[0].mxu0
    %5393 = vdwg.mxu0
    %5394 = vrot.lane.b32.xlu0 %v4867, 64
    %v5395 = vpop.permute.xlu0 %5394
    %5396 = vrot.lane.b32.xlu0 %v4869, 64
    %v5397 = vpop.permute.xlu0 %5396
    %v5400 = vsel %vm1895, %v5266, 0
    %v5403 = vsel %vm1895, %v5267, 0
    %v5406 = vsel %vm1280, %v5397, 0
    %5408 = vmatprep.subr.bf16.mxu0 0
    %5409 = vmatpush1.bf16.msra.mxu0 %v5395
    %5410 = vmatprep.subr.bf16.mxu0 0
    %5411 = vmatpush1.bf16.msra.mxu0 %v5406
    %5412 = vmatprep.subr.bf16.mxu0 0
    %5413 = vmatpush1.bf16.msra.mxu0 0
    %5414 = vmatprep.subr.bf16.mxu0 0
    %5415 = vmatpush1.bf16.msra.mxu0 0
    %5416 = vmatprep.subr.bf16.mxu0 0
    %5417 = vmatpush1.bf16.msra.mxu0 0
    %5418 = vmatprep.subr.bf16.mxu0 0
    %5419 = vmatpush1.bf16.msra.mxu0 0
    %5420 = vmatprep.subr.bf16.mxu0 0
    %5421 = vmatpush1.bf16.msra.mxu0 0
    %5422 = vmatprep.subr.bf16.mxu0 0
    %5423 = vmatpush1.bf16.msra.mxu0 0
    %5424 = vmatprep.subr.bf16.mxu0 0
    %5425 = vmatpush1.bf16.msra.mxu0 0
    %5426 = vmatprep.subr.bf16.mxu0 0
    %5427 = vmatpush1.bf16.msra.mxu0 0
    %5428 = vmatprep.subr.bf16.mxu0 0
    %5429 = vmatpush1.bf16.msra.mxu0 0
    %5430 = vmatprep.subr.bf16.mxu0 0
    %5431 = vmatpush1.bf16.msra.mxu0 0
    %5432 = vmatprep.subr.bf16.mxu0 0
    %5433 = vmatpush1.bf16.msra.mxu0 0
    %5434 = vmatprep.subr.bf16.mxu0 0
    %5435 = vmatpush1.bf16.msra.mxu0 0
    %5436 = vmatprep.subr.bf16.mxu0 0
    %5437 = vmatpush1.bf16.msra.mxu0 0
    %5438 = vmatprep.subr.bf16.mxu0 0
    %5439 = vmatpush1.bf16.msra.mxu0 0
    %5440 = vmatprep.mubr.bf16.mxu0 0
    %5441 = vmatmul.mubr.bf16.gmra.mrb[0].mxu0 %v5400
    %v5442 = vpop.f32.mrb[0].mxu0
    %v5443 = vadd.f32 0.0, %v5442
    %v5444 = vpop.f32.mrb[0].mxu0
    %v5445 = vpop.f32.mrb[0].mxu0
    %v5446 = vadd.f32 0.0, %v5445
    %v5447 = vpop.f32.mrb[0].mxu0
    %5448 = vmatprep.mubr.bf16.mxu0 0
    %5449 = vmatmul.mubr.bf16.gmra.mrb[0].mxu0 %v5403
    %v5450 = vpop.f32.mrb[0].mxu0
    %v5451 = vadd.f32 0.0, %v5450
    %v5452 = vpop.f32.mrb[0].mxu0
    %v5453 = vpop.f32.mrb[0].mxu0
    %v5454 = vpop.f32.mrb[0].mxu0
    %5455 = vdwg.mxu0
    %5456 = vrot.lane.b32.xlu0 %v4871, 64
    %v5457 = vpop.permute.xlu0 %5456
    %5458 = vrot.lane.b32.xlu0 %v4873, 64
    %v5459 = vpop.permute.xlu0 %5458
    %v5462 = vsel %vm1895, %v5268, 0
    %v5465 = vsel %vm1895, %v5269, 0
    %v5468 = vsel %vm1280, %v5459, 0
    %5470 = vmatprep.subr.bf16.mxu0 0
    %5471 = vmatpush1.bf16.msra.mxu0 %v5457
    %5472 = vmatprep.subr.bf16.mxu0 0
    %5473 = vmatpush1.bf16.msra.mxu0 %v5468
    %5474 = vmatprep.subr.bf16.mxu0 0
    %5475 = vmatpush1.bf16.msra.mxu0 0
    %5476 = vmatprep.subr.bf16.mxu0 0
    %5477 = vmatpush1.bf16.msra.mxu0 0
    %5478 = vmatprep.subr.bf16.mxu0 0
    %5479 = vmatpush1.bf16.msra.mxu0 0
    %5480 = vmatprep.subr.bf16.mxu0 0
    %5481 = vmatpush1.bf16.msra.mxu0 0
    %5482 = vmatprep.subr.bf16.mxu0 0
    %5483 = vmatpush1.bf16.msra.mxu0 0
    %5484 = vmatprep.subr.bf16.mxu0 0
    %5485 = vmatpush1.bf16.msra.mxu0 0
    %5486 = vmatprep.subr.bf16.mxu0 0
    %5487 = vmatpush1.bf16.msra.mxu0 0
    %5488 = vmatprep.subr.bf16.mxu0 0
    %5489 = vmatpush1.bf16.msra.mxu0 0
    %5490 = vmatprep.subr.bf16.mxu0 0
    %5491 = vmatpush1.bf16.msra.mxu0 0
    %5492 = vmatprep.subr.bf16.mxu0 0
    %5493 = vmatpush1.bf16.msra.mxu0 0
    %5494 = vmatprep.subr.bf16.mxu0 0
    %5495 = vmatpush1.bf16.msra.mxu0 0
    %5496 = vmatprep.subr.bf16.mxu0 0
    %5497 = vmatpush1.bf16.msra.mxu0 0
    %5498 = vmatprep.subr.bf16.mxu0 0
    %5499 = vmatpush1.bf16.msra.mxu0 0
    %5500 = vmatprep.subr.bf16.mxu0 0
    %5501 = vmatpush1.bf16.msra.mxu0 0
    %5502 = vmatprep.mubr.bf16.mxu0 0
    %5503 = vmatmul.mubr.bf16.gmra.mrb[0].mxu0 %v5462
    %v5504 = vpop.f32.mrb[0].mxu0
    %v5505 = vadd.f32 0.0, %v5504
    %v5506 = vpop.f32.mrb[0].mxu0
    %v5507 = vpop.f32.mrb[0].mxu0
    %v5508 = vadd.f32 0.0, %v5507
    %v5509 = vpop.f32.mrb[0].mxu0
    %5510 = vmatprep.mubr.bf16.mxu0 0
    %5511 = vmatmul.mubr.bf16.gmra.mrb[0].mxu0 %v5465
    %v5512 = vpop.f32.mrb[0].mxu0
    %v5513 = vadd.f32 0.0, %v5512
    %v5514 = vpop.f32.mrb[0].mxu0
    %v5515 = vpop.f32.mrb[0].mxu0
    %v5516 = vpop.f32.mrb[0].mxu0
    %5517 = vdwg.mxu0
    %5521 = vrot.lane.b32.xlu0 %v5381, 8
    %v5522 = vpop.permute.xlu0 %5521
    %5523 = vrot.lane.b32.xlu0 %v5384, 8
    %v5524 = vpop.permute.xlu0 %5523
    %5525 = vrot.lane.b32.xlu0 %v5389, 8
    %v5526 = vpop.permute.xlu0 %5525
    %5533 = vrot.lane.b32.xlu0 %v5443, 16
    %v5534 = vpop.permute.xlu0 %5533
    %5535 = vrot.lane.b32.xlu0 %v5446, 16
    %v5536 = vpop.permute.xlu0 %5535
    %5537 = vrot.lane.b32.xlu0 %v5451, 16
    %v5538 = vpop.permute.xlu0 %5537
    %5545 = vrot.lane.b32.xlu0 %v5505, 24
    %v5546 = vpop.permute.xlu0 %5545
    %5547 = vrot.lane.b32.xlu0 %v5508, 24
    %v5548 = vpop.permute.xlu0 %5547
    %5549 = vrot.lane.b32.xlu0 %v5513, 24
    %v5550 = vpop.permute.xlu0 %5549
    %v5554 = vsel %vm556, %v5319, %v5522
    %v5555 = vsel %vm556, %v5322, %v5524
    %v5556 = vsel %vm556, %v5327, %v5526
    %v5557 = vsel %vm1891, %v5554, %v5534
    %v5558 = vsel %vm1891, %v5555, %v5536
    %v5559 = vsel %vm1891, %v5556, %v5538
    %v5560 = vsel %vm1895, %v5557, %v5546
    %v5561 = vsel %vm1895, %v5558, %v5548
    %v5562 = vsel %vm1895, %v5559, %v5550
    %v5563 = vpack.c.bf16 %v5561, %v5560
    %v5564 = vpack.c.bf16 %v5562, %v5562
    %v5566 = vlaneseq
    %v5567 = vshrl.u32 %v5566, 7
    %v5568 = vsub.s32 0, %v5567
    %v5569 = vrot.slane %v247, %v5568
    %v5575 = vunpack.c.l.b16 %v243
    %v5576 = vunpack.c.l.b16 %v244
    %v5577 = vunpack.c.l.b16 %v245
    %v5578 = vunpack.c.l.b16 %v246
    %v5579 = vpack.c.b16 %v5576, %v5575
    %v5580 = vpack.c.b16 %v5578, %v5577
    %v5584 = vsel %vm397, %v5563, 0
    %v5587 = vsel %vm397, %v5564, 0
    %5589 = vmatprep.subr.bf16.mxu0 0
    %5590 = vmatpush1.bf16.msra.mxu0 %v5579
    %5591 = vmatprep.subr.bf16.mxu0 0
    %5592 = vmatpush1.bf16.msra.mxu0 %v5580
    %5593 = vmatprep.subr.bf16.mxu0 0
    %5594 = vmatpush1.bf16.msra.mxu0 0
    %5595 = vmatprep.subr.bf16.mxu0 0
    %5596 = vmatpush1.bf16.msra.mxu0 0
    %5597 = vmatprep.subr.bf16.mxu0 0
    %5598 = vmatpush1.bf16.msra.mxu0 0
    %5599 = vmatprep.subr.bf16.mxu0 0
    %5600 = vmatpush1.bf16.msra.mxu0 0
    %5601 = vmatprep.subr.bf16.mxu0 0
    %5602 = vmatpush1.bf16.msra.mxu0 0
    %5603 = vmatprep.subr.bf16.mxu0 0
    %5604 = vmatpush1.bf16.msra.mxu0 0
    %5605 = vmatprep.subr.bf16.mxu0 0
    %5606 = vmatpush1.bf16.msra.mxu0 0
    %5607 = vmatprep.subr.bf16.mxu0 0
    %5608 = vmatpush1.bf16.msra.mxu0 0
    %5609 = vmatprep.subr.bf16.mxu0 0
    %5610 = vmatpush1.bf16.msra.mxu0 0
    %5611 = vmatprep.subr.bf16.mxu0 0
    %5612 = vmatpush1.bf16.msra.mxu0 0
    %5613 = vmatprep.subr.bf16.mxu0 0
    %5614 = vmatpush1.bf16.msra.mxu0 0
    %5615 = vmatprep.subr.bf16.mxu0 0
    %5616 = vmatpush1.bf16.msra.mxu0 0
    %5617 = vmatprep.subr.bf16.mxu0 0
    %5618 = vmatpush1.bf16.msra.mxu0 0
    %5619 = vmatprep.subr.bf16.mxu0 0
    %5620 = vmatpush1.bf16.msra.mxu0 0
    %5621 = vmatprep.mubr.bf16.mxu0 0
    %5622 = vmatmul.mubr.bf16.gmra.mrb[0].mxu0 %v5584
    %v5623 = vpop.f32.mrb[0].mxu0
    %v5624 = vadd.f32 %v5569, %v5623
    %v5625 = vpop.f32.mrb[0].mxu0
    %v5626 = vpop.f32.mrb[0].mxu0
    %v5627 = vadd.f32 %v5569, %v5626
    %v5628 = vpop.f32.mrb[0].mxu0
    %5629 = vmatprep.mubr.bf16.mxu0 0
    %5630 = vmatmul.mubr.bf16.gmra.mrb[0].mxu0 %v5587
    %v5631 = vpop.f32.mrb[0].mxu0
    %v5632 = vadd.f32 %v5569, %v5631
    %v5633 = vpop.f32.mrb[0].mxu0
    %v5634 = vpop.f32.mrb[0].mxu0
    %v5635 = vpop.f32.mrb[0].mxu0
    %5636 = vdwg.mxu0
    %v5637 = vadd.f32 %v4724, %v5624
    %v5638 = vadd.f32 %v4725, %v5627
    %v5639 = vadd.f32 %v4726, %v5632
    %v5640 = vsel %vm397, %v5637, 0.0
    %5641 = vadd.xlane.f32.xlu0 %v5640
    %v5642 = vpop.xlane.xlu0 %5641
    %v5643 = vsel %vm397, %v5638, 0.0
    %5644 = vadd.xlane.f32.xlu0 %v5643
    %v5645 = vpop.xlane.xlu0 %5644
    %v5646 = vsel %vm397, %v5639, 0.0
    %5647 = vadd.xlane.f32.xlu0 %v5646
    %v5648 = vpop.xlane.xlu0 %5647
    %v5649 = vmul.f32 %v5642, %v407
    %v5650 = vmul.f32 %v5645, %v407
    %v5651 = vmul.f32 %v5648, %v407
    %v5652 = vsub.f32 %v5637, %v5649
    %v5653 = vsub.f32 %v5638, %v5650
    %v5654 = vsub.f32 %v5639, %v5651
    %v5655 = vmul.f32 %v5652, %v5652
    %v5656 = vmul.f32 %v5653, %v5653
    %v5657 = vmul.f32 %v5654, %v5654
    %v5658 = vsel %vm397, %v5655, 0.0
    %5659 = vadd.xlane.f32.xlu0 %v5658
    %v5660 = vpop.xlane.xlu0 %5659
    %v5661 = vsel %vm397, %v5656, 0.0
    %5662 = vadd.xlane.f32.xlu0 %v5661
    %v5663 = vpop.xlane.xlu0 %5662
    %v5664 = vsel %vm397, %v5657, 0.0
    %5665 = vadd.xlane.f32.xlu0 %v5664
    %v5666 = vpop.xlane.xlu0 %5665
    %v5667 = vmul.f32 %v5660, %v407
    %v5668 = vmul.f32 %v5663, %v407
    %v5669 = vmul.f32 %v5666, %v407
    %v5670 = vadd.f32 %v5667, 1e-05
    %v5671 = vadd.f32 %v5668, 1e-05
    %v5672 = vadd.f32 %v5669, 1e-05
    %v5673 = vrsqrt.pop %v5670
    %v5674 = vrsqrt.pop %v5671
    %v5675 = vrsqrt.pop %v5672
    %v5676 = vmul.f32 %v5652, %v5673
    %v5677 = vmul.f32 %v5653, %v5674
    %v5678 = vmul.f32 %v5654, %v5675
    %v5680 = vlaneseq
    %v5681 = vshrl.u32 %v5680, 7
    %v5682 = vsub.s32 0, %v5681
    %v5683 = vrot.slane %v248, %v5682
    %v5685 = vmul.f32 %v5676, %v5683
    %v5686 = vmul.f32 %v5677, %v5683
    %v5687 = vmul.f32 %v5678, %v5683
    %v5689 = vlaneseq
    %v5690 = vshrl.u32 %v5689, 7
    %v5691 = vsub.s32 0, %v5690
    %v5692 = vrot.slane %v249, %v5691
    %v5694 = vadd.f32 %v5685, %v5692
    %v5695 = vadd.f32 %v5686, %v5692
    %v5696 = vadd.f32 %v5687, %v5692
    %v5697 = vpack.c.bf16 %v5695, %v5694
    %v5698 = vpack.c.bf16 %v5696, %v5696
    %v5700 = vlaneseq
    %v5701 = vshrl.u32 %v5700, 7
    %v5702 = vsub.s32 0, %v5701
    %v5703 = vrot.slane %v254, %v5702
    %v5709 = vunpack.c.l.b16 %v250
    %v5710 = vunpack.c.l.b16 %v251
    %v5711 = vunpack.c.l.b16 %v252
    %v5712 = vunpack.c.l.b16 %v253
    %v5713 = vpack.c.b16 %v5710, %v5709
    %v5714 = vpack.c.b16 %v5712, %v5711
    %v5718 = vsel %vm397, %v5697, 0
    %v5721 = vsel %vm397, %v5698, 0
    %5723 = vmatprep.subr.bf16.mxu0 0
    %5724 = vmatpush1.bf16.msra.mxu0 %v5713
    %5725 = vmatprep.subr.bf16.mxu0 0
    %5726 = vmatpush1.bf16.msra.mxu0 %v5714
    %5727 = vmatprep.subr.bf16.mxu0 0
    %5728 = vmatpush1.bf16.msra.mxu0 0
    %5729 = vmatprep.subr.bf16.mxu0 0
    %5730 = vmatpush1.bf16.msra.mxu0 0
    %5731 = vmatprep.subr.bf16.mxu0 0
    %5732 = vmatpush1.bf16.msra.mxu0 0
    %5733 = vmatprep.subr.bf16.mxu0 0
    %5734 = vmatpush1.bf16.msra.mxu0 0
    %5735 = vmatprep.subr.bf16.mxu0 0
    %5736 = vmatpush1.bf16.msra.mxu0 0
    %5737 = vmatprep.subr.bf16.mxu0 0
    %5738 = vmatpush1.bf16.msra.mxu0 0
    %5739 = vmatprep.subr.bf16.mxu0 0
    %5740 = vmatpush1.bf16.msra.mxu0 0
    %5741 = vmatprep.subr.bf16.mxu0 0
    %5742 = vmatpush1.bf16.msra.mxu0 0
    %5743 = vmatprep.subr.bf16.mxu0 0
    %5744 = vmatpush1.bf16.msra.mxu0 0
    %5745 = vmatprep.subr.bf16.mxu0 0
    %5746 = vmatpush1.bf16.msra.mxu0 0
    %5747 = vmatprep.subr.bf16.mxu0 0
    %5748 = vmatpush1.bf16.msra.mxu0 0
    %5749 = vmatprep.subr.bf16.mxu0 0
    %5750 = vmatpush1.bf16.msra.mxu0 0
    %5751 = vmatprep.subr.bf16.mxu0 0
    %5752 = vmatpush1.bf16.msra.mxu0 0
    %5753 = vmatprep.subr.bf16.mxu0 0
    %5754 = vmatpush1.bf16.msra.mxu0 0
    %5755 = vmatprep.mubr.bf16.mxu0 0
    %5756 = vmatmul.mubr.bf16.gmra.mrb[0].mxu0 %v5718
    %v5757 = vpop.f32.mrb[0].mxu0
    %v5758 = vadd.f32 %v5703, %v5757
    %v5759 = vpop.f32.mrb[0].mxu0
    %v5760 = vpop.f32.mrb[0].mxu0
    %v5761 = vadd.f32 %v5703, %v5760
    %v5762 = vpop.f32.mrb[0].mxu0
    %5763 = vmatprep.mubr.bf16.mxu0 0
    %5764 = vmatmul.mubr.bf16.gmra.mrb[0].mxu0 %v5721
    %v5765 = vpop.f32.mrb[0].mxu0
    %v5766 = vadd.f32 %v5703, %v5765
    %v5767 = vpop.f32.mrb[0].mxu0
    %v5768 = vpop.f32.mrb[0].mxu0
    %v5769 = vpop.f32.mrb[0].mxu0
    %5770 = vdwg.mxu0
    %v5771 = vmul.f32 %v5758, %v5758
    %v5772 = vmul.f32 %v5761, %v5761
    %v5773 = vmul.f32 %v5766, %v5766
    %v5774 = vmul.f32 %v5758, %v5771
    %v5775 = vmul.f32 %v5761, %v5772
    %v5776 = vmul.f32 %v5766, %v5773
    %v5777 = vmul.f32 %v5774, 0.044715
    %v5778 = vmul.f32 %v5775, 0.044715
    %v5779 = vmul.f32 %v5776, 0.044715
    %v5780 = vadd.f32 %v5758, %v5777
    %v5781 = vadd.f32 %v5761, %v5778
    %v5782 = vadd.f32 %v5766, %v5779
    %v5783 = vmul.f32 %v5780, 0.7978846
    %v5784 = vmul.f32 %v5781, 0.7978846
    %v5785 = vmul.f32 %v5782, 0.7978846
    %v5786 = vtanh.pop %v5783
    %v5787 = vtanh.pop %v5784
    %v5788 = vtanh.pop %v5785
    %v5789 = vadd.f32 %v5786, 1.0
    %v5790 = vadd.f32 %v5787, 1.0
    %v5791 = vadd.f32 %v5788, 1.0
    %v5792 = vmul.f32 %v5789, 0.5
    %v5793 = vmul.f32 %v5790, 0.5
    %v5794 = vmul.f32 %v5791, 0.5
    %v5795 = vmul.f32 %v5758, %v5792
    %v5796 = vmul.f32 %v5761, %v5793
    %v5797 = vmul.f32 %v5766, %v5794
    %v5798 = vpack.c.bf16 %v5796, %v5795
    %v5799 = vpack.c.bf16 %v5797, %v5797
    %v5801 = vlaneseq
    %v5802 = vshrl.u32 %v5801, 7
    %v5803 = vsub.s32 0, %v5802
    %v5804 = vrot.slane %v271, %v5803
    %v5822 = vunpack.c.l.b16 %v255
    %v5823 = vunpack.c.l.b16 %v256
    %v5824 = vunpack.c.l.b16 %v257
    %v5825 = vunpack.c.l.b16 %v258
    %v5826 = vunpack.c.l.b16 %v259
    %v5827 = vunpack.c.l.b16 %v260
    %v5828 = vunpack.c.l.b16 %v261
    %v5829 = vunpack.c.l.b16 %v262
    %v5830 = vunpack.c.l.b16 %v263
    %v5831 = vunpack.c.l.b16 %v264
    %v5832 = vunpack.c.l.b16 %v265
    %v5833 = vunpack.c.l.b16 %v266
    %v5834 = vunpack.c.l.b16 %v267
    %v5835 = vunpack.c.l.b16 %v268
    %v5836 = vunpack.c.l.b16 %v269
    %v5837 = vunpack.c.l.b16 %v270
    %v5838 = vpack.c.b16 %v5823, %v5822
    %v5839 = vpack.c.b16 %v5825, %v5824
    %v5840 = vpack.c.b16 %v5827, %v5826
    %v5841 = vpack.c.b16 %v5829, %v5828
    %v5842 = vpack.c.b16 %v5831, %v5830
    %v5843 = vpack.c.b16 %v5833, %v5832
    %v5844 = vpack.c.b16 %v5835, %v5834
    %v5845 = vpack.c.b16 %v5837, %v5836
    %5854 = vmatprep.subr.bf16.mxu0 0
    %5855 = vmatpush1.bf16.msra.mxu0 %v5838
    %5856 = vmatprep.subr.bf16.mxu0 0
    %5857 = vmatpush1.bf16.msra.mxu0 %v5839
    %5858 = vmatprep.subr.bf16.mxu0 0
    %5859 = vmatpush1.bf16.msra.mxu0 %v5840
    %5860 = vmatprep.subr.bf16.mxu0 0
    %5861 = vmatpush1.bf16.msra.mxu0 %v5841
    %5862 = vmatprep.subr.bf16.mxu0 0
    %5863 = vmatpush1.bf16.msra.mxu0 %v5842
    %5864 = vmatprep.subr.bf16.mxu0 0
    %5865 = vmatpush1.bf16.msra.mxu0 %v5843
    %5866 = vmatprep.subr.bf16.mxu0 0
    %5867 = vmatpush1.bf16.msra.mxu0 %v5844
    %5868 = vmatprep.subr.bf16.mxu0 0
    %5869 = vmatpush1.bf16.msra.mxu0 %v5845
    %5870 = vmatprep.subr.bf16.mxu0 0
    %5871 = vmatpush1.bf16.msra.mxu0 0
    %5872 = vmatprep.subr.bf16.mxu0 0
    %5873 = vmatpush1.bf16.msra.mxu0 0
    %5874 = vmatprep.subr.bf16.mxu0 0
    %5875 = vmatpush1.bf16.msra.mxu0 0
    %5876 = vmatprep.subr.bf16.mxu0 0
    %5877 = vmatpush1.bf16.msra.mxu0 0
    %5878 = vmatprep.subr.bf16.mxu0 0
    %5879 = vmatpush1.bf16.msra.mxu0 0
    %5880 = vmatprep.subr.bf16.mxu0 0
    %5881 = vmatpush1.bf16.msra.mxu0 0
    %5882 = vmatprep.subr.bf16.mxu0 0
    %5883 = vmatpush1.bf16.msra.mxu0 0
    %5884 = vmatprep.subr.bf16.mxu0 0
    %5885 = vmatpush1.bf16.msra.mxu0 0
    %5886 = vmatprep.mubr.bf16.mxu0 0
    %5887 = vmatmul.mubr.bf16.gmra.mrb[0].mxu0 %v5798
    %v5888 = vpop.f32.mrb[0].mxu0
    %v5889 = vadd.f32 %v5804, %v5888
    %v5890 = vpop.f32.mrb[0].mxu0
    %v5891 = vpop.f32.mrb[0].mxu0
    %v5892 = vadd.f32 %v5804, %v5891
    %v5893 = vpop.f32.mrb[0].mxu0
    %5894 = vmatprep.mubr.bf16.mxu0 0
    %5895 = vmatmul.mubr.bf16.gmra.mrb[0].mxu0 %v5799
    %v5896 = vpop.f32.mrb[0].mxu0
    %v5897 = vadd.f32 %v5804, %v5896
    %v5898 = vpop.f32.mrb[0].mxu0
    %v5899 = vpop.f32.mrb[0].mxu0
    %v5900 = vpop.f32.mrb[0].mxu0
    %5901 = vdwg.mxu0
    %v5902 = vadd.f32 %v5637, %v5889
    %v5903 = vadd.f32 %v5638, %v5892
    %v5904 = vadd.f32 %v5639, %v5897
    %v5905 = vsel %vm397, %v5902, 0.0
    %5906 = vadd.xlane.f32.xlu0 %v5905
    %v5907 = vpop.xlane.xlu0 %5906
    %v5908 = vsel %vm397, %v5903, 0.0
    %5909 = vadd.xlane.f32.xlu0 %v5908
    %v5910 = vpop.xlane.xlu0 %5909
    %v5911 = vsel %vm397, %v5904, 0.0
    %5912 = vadd.xlane.f32.xlu0 %v5911
    %v5913 = vpop.xlane.xlu0 %5912
    %v5914 = vmul.f32 %v5907, %v407
    %v5915 = vmul.f32 %v5910, %v407
    %v5916 = vmul.f32 %v5913, %v407
    %v5917 = vsub.f32 %v5902, %v5914
    %v5918 = vsub.f32 %v5903, %v5915
    %v5919 = vsub.f32 %v5904, %v5916
    %v5920 = vmul.f32 %v5917, %v5917
    %v5921 = vmul.f32 %v5918, %v5918
    %v5922 = vmul.f32 %v5919, %v5919
    %v5923 = vsel %vm397, %v5920, 0.0
    %5924 = vadd.xlane.f32.xlu0 %v5923
    %v5925 = vpop.xlane.xlu0 %5924
    %v5926 = vsel %vm397, %v5921, 0.0
    %5927 = vadd.xlane.f32.xlu0 %v5926
    %v5928 = vpop.xlane.xlu0 %5927
    %v5929 = vsel %vm397, %v5922, 0.0
    %5930 = vadd.xlane.f32.xlu0 %v5929
    %v5931 = vpop.xlane.xlu0 %5930
    %v5932 = vmul.f32 %v5925, %v407
    %v5933 = vmul.f32 %v5928, %v407
    %v5934 = vmul.f32 %v5931, %v407
    %v5935 = vadd.f32 %v5932, 1e-05
    %v5936 = vadd.f32 %v5933, 1e-05
    %v5937 = vadd.f32 %v5934, 1e-05
    %v5938 = vrsqrt.pop %v5935
    %v5939 = vrsqrt.pop %v5936
    %v5940 = vrsqrt.pop %v5937
    %v5941 = vmul.f32 %v5917, %v5938
    %v5942 = vmul.f32 %v5918, %v5939
    %v5943 = vmul.f32 %v5919, %v5940
    %v5945 = vlaneseq
    %v5946 = vshrl.u32 %v5945, 7
    %v5947 = vsub.s32 0, %v5946
    %v5948 = vrot.slane %v272, %v5947
    %v5950 = vmul.f32 %v5941, %v5948
    %v5951 = vmul.f32 %v5942, %v5948
    %v5952 = vmul.f32 %v5943, %v5948
    %v5954 = vlaneseq
    %v5955 = vshrl.u32 %v5954, 7
    %v5956 = vsub.s32 0, %v5955
    %v5957 = vrot.slane %v273, %v5956
    %v5959 = vadd.f32 %v5950, %v5957
    %v5960 = vadd.f32 %v5951, %v5957
    %v5961 = vadd.f32 %v5952, %v5957
    %vm5962 = vcmask 261121
    %5963 = vst.msk [vmem:[#allocation2 - $0x1] sm:$0xfe] %vm5962, %v5959
    %5964 = vst.msk [vmem:[#allocation2 + $0x7] sm:$0xfe] %vm5962, %v5960
    %5965 = vst.msk [vmem:[#allocation2 + $0xf] sm:$0xfe] %vm5962, %v5961
    // Predicated region
    $region170: #{finetune_esm_msa_forward.1} parent=1 // pred_check
      _
    $region171: #{finetune_esm_msa_forward.1} parent=1 // pred_check_branch
      %5967 = sbr.rel (0) target = $region173
    $region172: #{finetune_esm_msa_forward.1} parent=1 // pred_region
      %s5969 = ssub.s32 384, 384
      %5970 = vsyncadd [#allocation3], %s5969
      %s5971 = sshll.u32 [#allocation2], 4
      %s5972 = int_to_ptr.vmem [resolvable:$true] %s5971
      %5977 = dma.vmem_to_hbm [thread:$0]  %s5972, 384, %s85, [#allocation3], 128, 128, 8
    $region173: #{finetune_esm_msa_forward.1} parent=1 // pred_fallthru
      _
    // Predicated region
    $region174: #{finetune_esm_msa_forward.1} parent=1 // pred_check
      _
    $region175: #{finetune_esm_msa_forward.1} parent=1 // pred_check_branch
      %5979 = sbr.rel (0) target = $region177
    $region176: #{finetune_esm_msa_forward.1} parent=1 // pred_region
      %5980 = dma.done [#allocation3], 384
    $region177: #{finetune_esm_msa_forward.1} parent=1 // pred_fallthru
      _
    %5981 = vsyncpa [#allocation3], 1

</llo_original>
